<compile_context>
chip_gen: v6e
topology: v6e:2x2x1
jax: 0.10.0
libtpu: 0.0.40
codegen_flags: <defaults>
</compile_context>

<pallas_src>
import functools

import numpy as np
import jax
import jax.numpy as jnp
from jax.experimental import pallas as pl
from jax.experimental.pallas import tpu as pltpu


# ---------------------------------------------------------------------------
# Model configuration (small shapes for the demo)
# ---------------------------------------------------------------------------
BATCH = 2
IN_SIZE = 64          # scaled-down stand-in for the cfg-driven 256
UV_SIZE = 16          # cfg.UV_SIZE stand-in
NF = 16               # base channel width of the encoder
COUT = 202            # encoder output dim (2 x 101 HTML coefficients)
COUT_PAD = 256        # lane-padded encoder output (zero weight columns)
CIN_PAD = 8           # RGB input channels padded 3 -> 8 so conv1 K = 4*4*8 = 128
TEX_DIM = UV_SIZE * UV_SIZE * 3        # 768
VMEM_LIMIT = 32 * 1024 * 1024          # explicit budget; safe on v7x (64 MiB phys)


# ---------------------------------------------------------------------------
# Hardware-aware tiling helpers
# ---------------------------------------------------------------------------
@functools.lru_cache(maxsize=1)
def _num_tensorcores():
    """Best-effort TensorCore count (v7x megacore => 2); defaults to 1."""
    try:
        info = pltpu.get_tpu_info()
        for name in ("num_cores", "num_tensorcores", "tensorcore_count",
                     "core_count"):
            v = getattr(info, name, None)
            if isinstance(v, int) and v > 0:
                return min(v, 2)
    except Exception:
        pass
    try:
        v = getattr(jax.devices()[0], "num_cores", None)
        if isinstance(v, int) and v > 0:
            return min(v, 2)
    except Exception:
        pass
    return 1


def _pick_tile_m(m):
    """Lane-aligned M tile: >= 4 grid steps on multi-TC chips (v7x) so both
    cores get pipelined work; grid = 1 on single-TC chips (v5e/v6e) where each
    extra step is ~0.35 us of pure overhead at these sizes."""
    want_steps = 4 if _num_tensorcores() >= 2 else 1
    if want_steps <= 1 or m % 128 != 0:
        return m
    for tm in (1024, 512, 256, 128):
        if m % tm == 0 and m // tm >= want_steps:
            return tm
    return m


# ---------------------------------------------------------------------------
# Pallas kernel: transposed conv-matmul  out[Cout, M] = W[Cout, K] @ P[K, M]
# fused with bias + optional ReLU (f32 accumulate, bf16 in/out) -- conv1/conv2
# ---------------------------------------------------------------------------
def _conv_mm_kernel(w_ref, p_ref, b_ref, o_ref, *, relu):
    acc = jnp.dot(w_ref[...], p_ref[...], preferred_element_type=jnp.float32)
    acc = acc + b_ref[...]                       # (Cout, 1) broadcast over M
    if relu:
        acc = jnp.maximum(acc, 0.0)
    o_ref[...] = acc.astype(o_ref.dtype)


def matmul_t(w_t, patches, b, *, relu, out_dtype=jnp.bfloat16):
    """out[Cout, M] = act(w_t @ patches + b)   (lane-dense output)."""
    cout, k = w_t.shape
    k2, m = patches.shape
    assert k == k2, (k, k2)
    tm = _pick_tile_m(m)
    grid_m = m // tm
    kernel = functools.partial(_conv_mm_kernel, relu=relu)
    bytes_accessed = int(w_t.size * 2 + patches.size * 2 + b.size * 4
                         + cout * m * jnp.dtype(out_dtype).itemsize)
    # NOTE: at grid_m > 1 the W / bias specs have constant index maps; with a
    # newer Pallas, pipeline_mode=pl.Buffered(1) on them would halve their VMEM
    # footprint (left at defaults here for portability).
    return pl.pallas_call(
        kernel,
        out_shape=jax.ShapeDtypeStruct((cout, m), out_dtype),
        grid=(grid_m,),
        in_specs=[
            pl.BlockSpec((cout, k), lambda i: (0, 0)),
            pl.BlockSpec((k, tm), lambda i: (0, i)),
            pl.BlockSpec((cout, 1), lambda i: (0, 0)),
        ],
        out_specs=pl.BlockSpec((cout, tm), lambda i: (0, i)),
        compiler_params=pltpu.CompilerParams(
            dimension_semantics=("parallel",),
            vmem_limit_bytes=VMEM_LIMIT),
        cost_estimate=pl.CostEstimate(flops=2 * cout * k * m, transcendentals=0,
                                      bytes_accessed=bytes_accessed),
    )(w_t, patches, b.reshape(cout, 1))


# ---------------------------------------------------------------------------
# im2col glue for the two big entry convs (channel-major) and for the tail
# entry (batch-major).  Cheap at these sizes.
# ---------------------------------------------------------------------------
def _im2col_t(x, kh, kw, stride, pad):
    """x: [C, B, H, W] -> patches [kh*kw*C, B*OH*OW]  (K ordered (kh, kw, c))."""
    if pad:
        x = jnp.pad(x, ((0, 0), (0, 0), (pad, pad), (pad, pad)))
    c, b, hp, wp = x.shape
    oh = (hp - kh) // stride + 1
    ow = (wp - kw) // stride + 1
    cols = [x[:, :, i:i + stride * oh:stride, j:j + stride * ow:stride]
            for i in range(kh) for j in range(kw)]
    # TODO(synk): at the real 256x256 config this im2col should move in-kernel
    # (kh*kw reduction grid axis) to avoid the ~4x patch expansion in HBM.
    patches = jnp.stack(cols, axis=0).reshape(kh * kw * c, b * oh * ow)
    return patches, oh, ow


def conv_t(x_cbhw, w_t, b, *, kh, kw, stride, pad, relu):
    """x: [Cin, B, H, W], w_t: [Cout, kh*kw*Cin] -> out [Cout, B, OH, OW]."""
    patches, oh, ow = _im2col_t(x_cbhw, kh, kw, stride, pad)
    out = matmul_t(w_t, patches, b, relu=relu)           # [Cout, B*OH*OW], bf16
    return out.reshape(w_t.shape[0], x_cbhw.shape[1], oh, ow)


def _im2col_bm(x, kh, kw, stride, pad):
    """x: [C, B, H, W] -> patches [B*OH*OW, kh*kw*C] (rows (b,oh,ow), cols (i,j,c))."""
    if pad:
        x = jnp.pad(x, ((0, 0), (0, 0), (pad, pad), (pad, pad)))
    c, b, hp, wp = x.shape
    oh = (hp - kh) // stride + 1
    ow = (wp - kw) // stride + 1
    cols = [x[:, :, i:i + stride * oh:stride, j:j + stride * ow:stride]
            for i in range(kh) for j in range(kw)]
    t = jnp.stack(cols, axis=0)                           # [kh*kw, c, b, oh, ow]
    return t.transpose(2, 3, 4, 0, 1).reshape(b * oh * ow, kh * kw * c)


# ---------------------------------------------------------------------------
# Fused tail kernel: conv3 -> conv4 -> flatten -> conv5(dense) -> conv6(*2)
# -> both-hand PCA decode -> clip.  Everything stays in VMEM; only the two
# lane-dense [B, 2*TEX_DIM] texture slabs go out.
# ---------------------------------------------------------------------------
def _tail_kernel(p3_ref, w3_ref, b3_ref, sel4_ref, w4_ref, b4_ref,
                 sel5_ref, w5_ref, b5_ref, w6_ref, b6_ref,
                 basis_ref, mean_ref, tex_ref, uv_ref):
    f32, bf16 = jnp.float32, jnp.bfloat16
    bsz = tex_ref.shape[0]
    m4 = bsz * 16                      # conv4 output positions (b, 4, 4)
    c3, c4 = 4 * NF, 8 * NF            # 64, 128

    # conv3: [B*8*8, 4*4*2NF] @ [4*4*2NF, 4NF] + bias + ReLU
    h3 = jnp.dot(p3_ref[...], w3_ref[...], preferred_element_type=f32)
    h3 = jnp.maximum(h3 + b3_ref[...], 0.0).astype(bf16)          # [B*64, 64]

    # conv4: in-kernel im2col via one-hot selection matmuls (spatial padding is
    # folded into sel4 as all-zero rows), then accumulate the 16 tap matmuls.
    acc4 = jnp.zeros((m4, c4), f32)
    for t in range(16):
        p4_t = jnp.dot(sel4_ref[pl.ds(t * m4, m4), :], h3,
                       preferred_element_type=f32).astype(bf16)   # [m4, 64]
        acc4 = acc4 + jnp.dot(p4_t, w4_ref[pl.ds(t * c3, c3), :],
                              preferred_element_type=f32)         # [m4, 128]
    h4 = jnp.maximum(acc4 + b4_ref[...], 0.0).astype(bf16)        # [B*16, 128]

    # conv5 (4x4 valid on the 4x4 map == dense over (h, w, c)): gather rows of
    # h4 per spatial tap into an 8-row (sublane-aligned) padded batch group and
    # accumulate; rows >= bsz are zero-selected padding and get dropped below.
    acc5 = jnp.zeros((8, c4), f32)
    for s in range(16):
        p5_s = jnp.dot(sel5_ref[pl.ds(s * 8, 8), :], h4,
                       preferred_element_type=f32).astype(bf16)   # [8, 128]
        acc5 = acc5 + jnp.dot(p5_s, w5_ref[pl.ds(s * c4, c4), :],
                              preferred_element_type=f32)         # [8, 128]
    h5 = jnp.maximum(acc5 + b5_ref[...], 0.0).astype(bf16)        # [8, 128]

    # conv6 (1x1) to 202 coeffs (lane-padded to 256 with zero weight columns);
    # the CoarseModel `* 2` is fused here as a static scale.
    vec = (jnp.dot(h5, w6_ref[...], preferred_element_type=f32)
           + b6_ref[...]) * 2.0                                   # [8, 256]

    # Both-hand PCA texture decode via the block-diagonal (left|right) basis.
    tex = jnp.dot(vec.astype(bf16), basis_ref[...],
                  preferred_element_type=f32) + mean_ref[...]     # [8, 1536]
    tex_b = tex[:bsz]                                             # drop pad rows
    tex_ref[...] = tex_b
    uv_ref[...] = jnp.clip(tex_b, 0.0, 1.0)


def fused_tail(p, p3):
    """p3: [B*64, 512] bf16 conv3 patches -> (tex_both, uv_both) [B, 2*TEX_DIM] f32."""
    bsz = p3.shape[0] // 64
    ins = [p3, p["w3"], p["b3"], p["sel4"], p["w4"], p["b4"], p["sel5"],
           p["w5"], p["b5"], p["w6"], p["b6"], p["basis_bd"], p["mean_both"]]

    def full(a):
        return pl.BlockSpec(a.shape, lambda i: (0, 0))

    flops = 2 * (bsz * 64 * 512 * 64                    # conv3
                 + 16 * (bsz * 16) * (bsz * 64) * 64    # conv4 gathers
                 + 16 * (bsz * 16) * 64 * 128           # conv4 taps
                 + 16 * 8 * (bsz * 16) * 128            # conv5 gathers
                 + 16 * 8 * 128 * 128                   # conv5 taps
                 + 8 * 128 * COUT_PAD                   # conv6
                 + 8 * COUT_PAD * 2 * TEX_DIM)          # PCA decode
    bytes_accessed = int(sum(int(a.size) * a.dtype.itemsize for a in ins)
                         + 2 * bsz * 2 * TEX_DIM * 4)
    out_sds = jax.ShapeDtypeStruct((bsz, 2 * TEX_DIM), jnp.float32)
    tex_both, uv_both = pl.pallas_call(
        _tail_kernel,
        out_shape=(out_sds, out_sds),
        grid=(1,),
        in_specs=[full(a) for a in ins],
        out_specs=(pl.BlockSpec((bsz, 2 * TEX_DIM), lambda i: (0, 0)),
                   pl.BlockSpec((bsz, 2 * TEX_DIM), lambda i: (0, 0))),
        compiler_params=pltpu.CompilerParams(
            dimension_semantics=("arbitrary",),
            vmem_limit_bytes=VMEM_LIMIT),
        cost_estimate=pl.CostEstimate(flops=int(flops), transcendentals=0,
                                      bytes_accessed=bytes_accessed),
    )(*ins)
    return tex_both, uv_both


# ---------------------------------------------------------------------------
# One-hot "im2col as matmul" constants for the fused tail
# ---------------------------------------------------------------------------
def _make_sel4(batch):
    """[16 taps * (batch*16), batch*64]: conv4 gather (4x4, stride 2, pad 1)
    over conv3's [b, 8, 8] rows; out-of-bounds taps are all-zero rows."""
    m4 = batch * 16
    sel = np.zeros((16 * m4, batch * 64), np.float32)
    for i in range(4):
        for j in range(4):
            t = i * 4 + j
            for b in range(batch):
                for oh in range(4):
                    for ow in range(4):
                        y, x = 2 * oh + i - 1, 2 * ow + j - 1
                        if 0 <= y < 8 and 0 <= x < 8:
                            sel[t * m4 + b * 16 + oh * 4 + ow,
                                b * 64 + y * 8 + x] = 1.0
    return jnp.asarray(sel)


def _make_sel5(batch):
    """[16 taps * 8, batch*16]: conv5 'flatten' gather; each tap's batch group
    is padded to 8 rows so all in-kernel slices stay sublane-aligned."""
    assert batch <= 8, "demo fused tail assumes batch <= 8"
    sel = np.zeros((16 * 8, batch * 16), np.float32)
    for s in range(16):
        for b in range(batch):
            sel[s * 8 + b, b * 16 + s] = 1.0
    return jnp.asarray(sel)


# ---------------------------------------------------------------------------
# Synthetic parameters, pre-packed into the kernel-facing layouts / dtypes
# ---------------------------------------------------------------------------
def init_params(key, batch=BATCH):
    def normal(k, shape, s=0.05):
        return jax.random.normal(k, shape, dtype=jnp.float32) * s

    ks = jax.random.split(key, 12)
    p = {}

    def conv_wt(k, kh, kw, cin, cin_pad, cout):
        w = normal(k, (kh, kw, cin, cout))
        if cin_pad > cin:
            w = jnp.pad(w, ((0, 0), (0, 0), (0, cin_pad - cin), (0, 0)))
        # [Cout, kh*kw*Cin] with K ordered (kh, kw, c) to match _im2col_t.
        return jnp.transpose(w, (3, 0, 1, 2)).reshape(
            cout, kh * kw * cin_pad).astype(jnp.bfloat16)

    # TODO(synk): `Encoder` source not provided; this mirrors the standard
    # stride-2 4x4 conv + ReLU encoder ending in a dense head.
    p["w1"] = conv_wt(ks[0], 4, 4, 3, CIN_PAD, NF)
    p["b1"] = jnp.zeros((NF,), jnp.float32)
    p["w2"] = conv_wt(ks[1], 4, 4, NF, NF, 2 * NF)
    p["b2"] = normal(ks[2], (2 * NF,))
    # Tail weights in [K, Cout] (batch/spatial-major matmuls), K ordered (i,j,c).
    p["w3"] = normal(ks[3], (4, 4, 2 * NF, 4 * NF)).reshape(
        16 * 2 * NF, 4 * NF).astype(jnp.bfloat16)                 # [512, 64]
    p["b3"] = normal(ks[4], (1, 4 * NF))
    p["w4"] = normal(ks[5], (4, 4, 4 * NF, 8 * NF)).reshape(
        16 * 4 * NF, 8 * NF).astype(jnp.bfloat16)                 # [1024, 128]
    p["b4"] = normal(ks[6], (1, 8 * NF))
    p["w5"] = normal(ks[7], (4, 4, 8 * NF, 8 * NF)).reshape(
        16 * 8 * NF, 8 * NF).astype(jnp.bfloat16)                 # [2048, 128]
    p["b5"] = normal(ks[8], (1, 8 * NF))
    w6 = normal(ks[9], (8 * NF, COUT))
    p["w6"] = jnp.pad(w6, ((0, 0), (0, COUT_PAD - COUT))).astype(jnp.bfloat16)
    p["b6"] = jnp.zeros((1, COUT_PAD), jnp.float32)
    # TODO(synk): hand_render.vec2tex internals not provided; implemented as a
    # linear PCA decoder (tex = mean + vec @ basis).  Left/right bases are
    # packed block-diagonally so one MXU dot decodes both hands; stored bf16
    # (largest DMA) while the decode still accumulates in f32.
    basis_l = normal(ks[10], (101, TEX_DIM), 0.02)
    basis_r = normal(ks[11], (101, TEX_DIM), 0.02)
    basis_bd = jnp.zeros((COUT_PAD, 2 * TEX_DIM), jnp.float32)
    basis_bd = basis_bd.at[:101, :TEX_DIM].set(basis_l)
    basis_bd = basis_bd.at[101:202, TEX_DIM:].set(basis_r)
    p["basis_bd"] = basis_bd.astype(jnp.bfloat16)
    p["mean_both"] = jnp.full((1, 2 * TEX_DIM), 0.5, jnp.float32)
    # In-kernel im2col constants (exact 0/1 values, bf16 for the MXU).
    p["sel4"] = _make_sel4(batch).astype(jnp.bfloat16)
    p["sel5"] = _make_sel5(batch).astype(jnp.bfloat16)
    return p


# ---------------------------------------------------------------------------
# Forward pass
# ---------------------------------------------------------------------------
def encoder_stem(p, x_nchw):
    """conv1 + conv2 (channel-major, lane-dense M) -> [2*NF, B, 16, 16] bf16."""
    # Single layout change at entry: channel-major bf16, channels padded 3 -> 8.
    x = jnp.transpose(x_nchw, (1, 0, 2, 3)).astype(jnp.bfloat16)
    x = jnp.pad(x, ((0, CIN_PAD - 3), (0, 0), (0, 0), (0, 0)))
    h = conv_t(x, p["w1"], p["b1"], kh=4, kw=4, stride=2, pad=1, relu=True)  # [16,B,32,32]
    h = conv_t(h, p["w2"], p["b2"], kh=4, kw=4, stride=2, pad=1, relu=True)  # [32,B,16,16]
    return h


@jax.jit
def coarse_model_forward(params, input_hand):
    """input_hand: [B, 3, H, W] (NCHW)."""
    bsz = input_hand.shape[0]
    # T.Resize(256) equivalent (scaled to IN_SIZE for the demo).
    # TODO(synk): torchvision Resize antialias behaviour not reproduced exactly.
    x = jax.image.resize(input_hand, (bsz, 3, IN_SIZE, IN_SIZE), method="bilinear")
    h2 = encoder_stem(params, x)                           # [32, B, 16, 16] bf16
    p3 = _im2col_bm(h2, 4, 4, 2, 1)                        # [B*64, 512] bf16
    tex_both, uv_both = fused_tail(params, p3)             # each [B, 1536] f32

    def to_maps(t1d):   # [B, TEX_DIM] -> NCHW [B, 3, UV, UV]
        return t1d.reshape(bsz, UV_SIZE, UV_SIZE, 3).transpose(0, 3, 1, 2)

    tex_l_1d, tex_r_1d = tex_both[:, :TEX_DIM], tex_both[:, TEX_DIM:]
    uv_l_1d, uv_r_1d = uv_both[:, :TEX_DIM], uv_both[:, TEX_DIM:]
    html_uv_list = [to_maps(uv_l_1d), to_maps(uv_r_1d)]
    html_tex_list = [to_maps(tex_l_1d), to_maps(tex_r_1d)]
    html_tex_1d_list = [tex_l_1d, tex_r_1d]
    return html_uv_list, html_tex_list, html_tex_1d_list


if __name__ == "__main__":
    key = jax.random.PRNGKey(0)
    k_x, k_p = jax.random.split(key)
    # Small input consistent with the module: batch=2, RGB hand crops 96x96.
    x = jax.random.uniform(k_x, (BATCH, 3, 96, 96), dtype=jnp.float32)
    params = init_params(k_p, batch=BATCH)

    uv_list, tex_list, tex1d_list = coarse_model_forward(params, x)
    jax.block_until_ready((uv_list, tex_list, tex1d_list))

    assert uv_list[0].shape == (BATCH, 3, UV_SIZE, UV_SIZE)
    assert tex_list[1].shape == (BATCH, 3, UV_SIZE, UV_SIZE)
    assert tex1d_list[0].shape == (BATCH, TEX_DIM)
    assert bool(jnp.all(jnp.isfinite(tex1d_list[0])))
    assert bool(jnp.all(jnp.isfinite(tex1d_list[1])))
    assert bool(jnp.all((uv_list[0] >= 0.0) & (uv_list[0] <= 1.0)))
    assert bool(jnp.all((uv_list[1] >= 0.0) & (uv_list[1] <= 1.0)))
    print("KERNEL_OK")
</pallas_src>

<mosaic_0001>
module attributes {stable_mosaic.version = 11 : i64} {
  func.func @_conv_mm_kernel(%arg0: i32, %arg1: memref<16x128xbf16, #tpu.memory_space<vmem>>, %arg2: memref<128x2048xbf16, #tpu.memory_space<vmem>>, %arg3: memref<16x1xf32, #tpu.memory_space<vmem>>, %arg4: memref<16x2048xbf16, #tpu.memory_space<vmem>>) attributes {dimension_semantics = [#tpu.dimension_semantics<parallel>], iteration_bounds = array<i64: 1>, scalar_prefetch = 0 : i64, scratch_operands = 0 : i64, tpu.core_type = #tpu.core_type<tc>, window_params = [{pipeline_mode = #tpu.pipeline_mode<synchronous>, transform_indices = @transform_0, window_bounds = array<i64: 16, 128>}, {transform_indices = @transform_1, window_bounds = array<i64: 128, 2048>}, {pipeline_mode = #tpu.pipeline_mode<synchronous>, transform_indices = @transform_2, window_bounds = array<i64: 16, 1>}, {transform_indices = @transform_3, window_bounds = array<i64: 16, 2048>}]} {
    %c0 = arith.constant 0 : index
    %c0_0 = arith.constant 0 : index
    %0 = vector.load %arg1[%c0, %c0_0] : memref<16x128xbf16, #tpu.memory_space<vmem>>, vector<16x128xbf16>
    %c0_1 = arith.constant 0 : index
    %c0_2 = arith.constant 0 : index
    %1 = vector.load %arg2[%c0_1, %c0_2] : memref<128x2048xbf16, #tpu.memory_space<vmem>>, vector<128x2048xbf16>
    %cst = arith.constant dense<0.000000e+00> : vector<16x2048xf32>
    %2 = tpu.matmul %0, %1, %cst {dimension_numbers = #tpu.dot_dimension_numbers<[1], [0], [0], [1], [0, 0, 1, 1], [], []>} : vector<16x128xbf16>, vector<128x2048xbf16>, vector<16x2048xf32> -> vector<16x2048xf32>
    %c0_3 = arith.constant 0 : index
    %c0_4 = arith.constant 0 : index
    %3 = vector.load %arg3[%c0_3, %c0_4] : memref<16x1xf32, #tpu.memory_space<vmem>>, vector<16x1xf32>
    %4 = vector.broadcast %3 : vector<16x1xf32> to vector<16x2048xf32>
    %5 = arith.addf %2, %4 : vector<16x2048xf32>
    %cst_5 = arith.constant 0.000000e+00 : f32
    %6 = vector.broadcast %cst_5 : f32 to vector<16x2048xf32>
    %7 = arith.maximumf %5, %6 : vector<16x2048xf32>
    %8 = arith.truncf %7 : vector<16x2048xf32> to vector<16x2048xbf16>
    %c0_6 = arith.constant 0 : index
    %c0_7 = arith.constant 0 : index
    %9 = vector.load %arg4[%c0_6, %c0_7] : memref<16x2048xbf16, #tpu.memory_space<vmem>>, vector<16x2048xbf16>
    tpu.vector_store %arg4[%c0_6, %c0_7], %8 {strides = array<i32>} : memref<16x2048xbf16, #tpu.memory_space<vmem>>, vector<16x2048xbf16>,
    return
  }
  func.func @transform_0(%arg0: i32) -> (i32, i32) {
    %c0_i32 = arith.constant 0 : i32
    %c0_i32_0 = arith.constant 0 : i32
    %c0_i32_1 = arith.constant 0 : i32
    return %c0_i32, %c0_i32_0 : i32, i32
  }
  func.func @transform_1(%arg0: i32) -> (i32, i32) {
    %c0_i32 = arith.constant 0 : i32
    %c0_i32_0 = arith.constant 0 : i32
    return %c0_i32, %arg0 : i32, i32
  }
  func.func @transform_2(%arg0: i32) -> (i32, i32) {
    %c0_i32 = arith.constant 0 : i32
    %c0_i32_0 = arith.constant 0 : i32
    %c0_i32_1 = arith.constant 0 : i32
    return %c0_i32, %c0_i32_0 : i32, i32
  }
  func.func @transform_3(%arg0: i32) -> (i32, i32) {
    %c0_i32 = arith.constant 0 : i32
    %c0_i32_0 = arith.constant 0 : i32
    return %c0_i32, %arg0 : i32, i32
  }
}

module attributes {stable_mosaic.version = 11 : i64} {
  func.func @_conv_mm_kernel(%arg0: i32, %arg1: memref<32x256xbf16, #tpu.memory_space<vmem>>, %arg2: memref<256x512xbf16, #tpu.memory_space<vmem>>, %arg3: memref<32x1xf32, #tpu.memory_space<vmem>>, %arg4: memref<32x512xbf16, #tpu.memory_space<vmem>>) attributes {dimension_semantics = [#tpu.dimension_semantics<parallel>], iteration_bounds = array<i64: 1>, scalar_prefetch = 0 : i64, scratch_operands = 0 : i64, tpu.core_type = #tpu.core_type<tc>, window_params = [{pipeline_mode = #tpu.pipeline_mode<synchronous>, transform_indices = @transform_0, window_bounds = array<i64: 32, 256>}, {transform_indices = @transform_1, window_bounds = array<i64: 256, 512>}, {pipeline_mode = #tpu.pipeline_mode<synchronous>, transform_indices = @transform_2, window_bounds = array<i64: 32, 1>}, {transform_indices = @transform_3, window_bounds = array<i64: 32, 512>}]} {
    %c0 = arith.constant 0 : index
    %c0_0 = arith.constant 0 : index
    %0 = vector.load %arg1[%c0, %c0_0] : memref<32x256xbf16, #tpu.memory_space<vmem>>, vector<32x256xbf16>
    %c0_1 = arith.constant 0 : index
    %c0_2 = arith.constant 0 : index
    %1 = vector.load %arg2[%c0_1, %c0_2] : memref<256x512xbf16, #tpu.memory_space<vmem>>, vector<256x512xbf16>
    %cst = arith.constant dense<0.000000e+00> : vector<32x512xf32>
    %2 = tpu.matmul %0, %1, %cst {dimension_numbers = #tpu.dot_dimension_numbers<[1], [0], [0], [1], [0, 0, 1, 1], [], []>} : vector<32x256xbf16>, vector<256x512xbf16>, vector<32x512xf32> -> vector<32x512xf32>
    %c0_3 = arith.constant 0 : index
    %c0_4 = arith.constant 0 : index
    %3 = vector.load %arg3[%c0_3, %c0_4] : memref<32x1xf32, #tpu.memory_space<vmem>>, vector<32x1xf32>
    %4 = vector.broadcast %3 : vector<32x1xf32> to vector<32x512xf32>
    %5 = arith.addf %2, %4 : vector<32x512xf32>
    %cst_5 = arith.constant 0.000000e+00 : f32
    %6 = vector.broadcast %cst_5 : f32 to vector<32x512xf32>
    %7 = arith.maximumf %5, %6 : vector<32x512xf32>
    %8 = arith.truncf %7 : vector<32x512xf32> to vector<32x512xbf16>
    %c0_6 = arith.constant 0 : index
    %c0_7 = arith.constant 0 : index
    %9 = vector.load %arg4[%c0_6, %c0_7] : memref<32x512xbf16, #tpu.memory_space<vmem>>, vector<32x512xbf16>
    tpu.vector_store %arg4[%c0_6, %c0_7], %8 {strides = array<i32>} : memref<32x512xbf16, #tpu.memory_space<vmem>>, vector<32x512xbf16>,
    return
  }
  func.func @transform_0(%arg0: i32) -> (i32, i32) {
    %c0_i32 = arith.constant 0 : i32
    %c0_i32_0 = arith.constant 0 : i32
    %c0_i32_1 = arith.constant 0 : i32
    return %c0_i32, %c0_i32_0 : i32, i32
  }
  func.func @transform_1(%arg0: i32) -> (i32, i32) {
    %c0_i32 = arith.constant 0 : i32
    %c0_i32_0 = arith.constant 0 : i32
    return %c0_i32, %arg0 : i32, i32
  }
  func.func @transform_2(%arg0: i32) -> (i32, i32) {
    %c0_i32 = arith.constant 0 : i32
    %c0_i32_0 = arith.constant 0 : i32
    %c0_i32_1 = arith.constant 0 : i32
    return %c0_i32, %c0_i32_0 : i32, i32
  }
  func.func @transform_3(%arg0: i32) -> (i32, i32) {
    %c0_i32 = arith.constant 0 : i32
    %c0_i32_0 = arith.constant 0 : i32
    return %c0_i32, %arg0 : i32, i32
  }
}

module attributes {stable_mosaic.version = 11 : i64} {
  func.func @_tail_kernel(%arg0: i32, %arg1: memref<128x512xbf16, #tpu.memory_space<vmem>>, %arg2: memref<512x64xbf16, #tpu.memory_space<vmem>>, %arg3: memref<1x64xf32, #tpu.memory_space<vmem>>, %arg4: memref<512x128xbf16, #tpu.memory_space<vmem>>, %arg5: memref<1024x128xbf16, #tpu.memory_space<vmem>>, %arg6: memref<1x128xf32, #tpu.memory_space<vmem>>, %arg7: memref<128x32xbf16, #tpu.memory_space<vmem>>, %arg8: memref<2048x128xbf16, #tpu.memory_space<vmem>>, %arg9: memref<1x128xf32, #tpu.memory_space<vmem>>, %arg10: memref<128x256xbf16, #tpu.memory_space<vmem>>, %arg11: memref<1x256xf32, #tpu.memory_space<vmem>>, %arg12: memref<256x1536xbf16, #tpu.memory_space<vmem>>, %arg13: memref<1x1536xf32, #tpu.memory_space<vmem>>, %arg14: memref<2x1536xf32, #tpu.memory_space<vmem>>, %arg15: memref<2x1536xf32, #tpu.memory_space<vmem>>) attributes {dimension_semantics = [#tpu.dimension_semantics<arbitrary>], iteration_bounds = array<i64: 1>, scalar_prefetch = 0 : i64, scratch_operands = 0 : i64, tpu.core_type = #tpu.core_type<tc>, window_params = [{pipeline_mode = #tpu.pipeline_mode<synchronous>, transform_indices = @transform_0, window_bounds = array<i64: 128, 512>}, {pipeline_mode = #tpu.pipeline_mode<synchronous>, transform_indices = @transform_1, window_bounds = array<i64: 512, 64>}, {pipeline_mode = #tpu.pipeline_mode<synchronous>, transform_indices = @transform_2, window_bounds = array<i64: 1, 64>}, {pipeline_mode = #tpu.pipeline_mode<synchronous>, transform_indices = @transform_3, window_bounds = array<i64: 512, 128>}, {pipeline_mode = #tpu.pipeline_mode<synchronous>, transform_indices = @transform_4, window_bounds = array<i64: 1024, 128>}, {pipeline_mode = #tpu.pipeline_mode<synchronous>, transform_indices = @transform_5, window_bounds = array<i64: 1, 128>}, {pipeline_mode = #tpu.pipeline_mode<synchronous>, transform_indices = @transform_6, window_bounds = array<i64: 128, 32>}, {pipeline_mode = #tpu.pipeline_mode<synchronous>, transform_indices = @transform_7, window_bounds = array<i64: 2048, 128>}, {pipeline_mode = #tpu.pipeline_mode<synchronous>, transform_indices = @transform_8, window_bounds = array<i64: 1, 128>}, {pipeline_mode = #tpu.pipeline_mode<synchronous>, transform_indices = @transform_9, window_bounds = array<i64: 128, 256>}, {pipeline_mode = #tpu.pipeline_mode<synchronous>, transform_indices = @transform_10, window_bounds = array<i64: 1, 256>}, {pipeline_mode = #tpu.pipeline_mode<synchronous>, transform_indices = @transform_11, window_bounds = array<i64: 256, 1536>}, {pipeline_mode = #tpu.pipeline_mode<synchronous>, transform_indices = @transform_12, window_bounds = array<i64: 1, 1536>}, {pipeline_mode = #tpu.pipeline_mode<synchronous>, transform_indices = @transform_13, window_bounds = array<i64: 2, 1536>}, {pipeline_mode = #tpu.pipeline_mode<synchronous>, transform_indices = @transform_14, window_bounds = array<i64: 2, 1536>}]} {
    %c0 = arith.constant 0 : index
    %c0_0 = arith.constant 0 : index
    %0 = vector.load %arg1[%c0, %c0_0] : memref<128x512xbf16, #tpu.memory_space<vmem>>, vector<128x512xbf16>
    %c0_1 = arith.constant 0 : index
    %c0_2 = arith.constant 0 : index
    %1 = vector.load %arg2[%c0_1, %c0_2] : memref<512x64xbf16, #tpu.memory_space<vmem>>, vector<512x64xbf16>
    %cst = arith.constant dense<0.000000e+00> : vector<128x64xf32>
    %2 = tpu.matmul %0, %1, %cst {dimension_numbers = #tpu.dot_dimension_numbers<[1], [0], [0], [1], [0, 0, 1, 1], [], []>} : vector<128x512xbf16>, vector<512x64xbf16>, vector<128x64xf32> -> vector<128x64xf32>
    %c0_3 = arith.constant 0 : index
    %c0_4 = arith.constant 0 : index
    %3 = vector.load %arg3[%c0_3, %c0_4] : memref<1x64xf32, #tpu.memory_space<vmem>>, vector<1x64xf32>
    %4 = vector.broadcast %3 : vector<1x64xf32> to vector<128x64xf32>
    %5 = arith.addf %2, %4 : vector<128x64xf32>
    %cst_5 = arith.constant 0.000000e+00 : f32
    %6 = vector.broadcast %cst_5 : f32 to vector<128x64xf32>
    %7 = arith.maximumf %5, %6 : vector<128x64xf32>
    %8 = arith.truncf %7 : vector<128x64xf32> to vector<128x64xbf16>
    %cst_6 = arith.constant 0.000000e+00 : f32
    %9 = vector.broadcast %cst_6 : f32 to vector<32x128xf32>
    %c0_7 = arith.constant 0 : index
    %c0_8 = arith.constant 0 : index
    %10 = vector.load %arg4[%c0_7, %c0_8] : memref<512x128xbf16, #tpu.memory_space<vmem>>, vector<32x128xbf16>
    %cst_9 = arith.constant dense<0.000000e+00> : vector<32x64xf32>
    %11 = tpu.matmul %10, %8, %cst_9 {dimension_numbers = #tpu.dot_dimension_numbers<[1], [0], [0], [1], [0, 0, 1, 1], [], []>} : vector<32x128xbf16>, vector<128x64xbf16>, vector<32x64xf32> -> vector<32x64xf32>
    %12 = arith.truncf %11 : vector<32x64xf32> to vector<32x64xbf16>
    %c0_10 = arith.constant 0 : index
    %c0_11 = arith.constant 0 : index
    %13 = vector.load %arg5[%c0_10, %c0_11] : memref<1024x128xbf16, #tpu.memory_space<vmem>>, vector<64x128xbf16>
    %cst_12 = arith.constant dense<0.000000e+00> : vector<32x128xf32>
    %14 = tpu.matmul %12, %13, %cst_12 {dimension_numbers = #tpu.dot_dimension_numbers<[1], [0], [0], [1], [0, 0, 1, 1], [], []>} : vector<32x64xbf16>, vector<64x128xbf16>, vector<32x128xf32> -> vector<32x128xf32>
    %15 = arith.addf %9, %14 : vector<32x128xf32>
    %c32 = arith.constant 32 : index
    %c0_13 = arith.constant 0 : index
    %16 = vector.load %arg4[%c32, %c0_13] : memref<512x128xbf16, #tpu.memory_space<vmem>>, vector<32x128xbf16>
    %cst_14 = arith.constant dense<0.000000e+00> : vector<32x64xf32>
    %17 = tpu.matmul %16, %8, %cst_14 {dimension_numbers = #tpu.dot_dimension_numbers<[1], [0], [0], [1], [0, 0, 1, 1], [], []>} : vector<32x128xbf16>, vector<128x64xbf16>, vector<32x64xf32> -> vector<32x64xf32>
    %18 = arith.truncf %17 : vector<32x64xf32> to vector<32x64xbf16>
    %c64 = arith.constant 64 : index
    %c0_15 = arith.constant 0 : index
    %19 = vector.load %arg5[%c64, %c0_15] : memref<1024x128xbf16, #tpu.memory_space<vmem>>, vector<64x128xbf16>
    %cst_16 = arith.constant dense<0.000000e+00> : vector<32x128xf32>
    %20 = tpu.matmul %18, %19, %cst_16 {dimension_numbers = #tpu.dot_dimension_numbers<[1], [0], [0], [1], [0, 0, 1, 1], [], []>} : vector<32x64xbf16>, vector<64x128xbf16>, vector<32x128xf32> -> vector<32x128xf32>
    %21 = arith.addf %15, %20 : vector<32x128xf32>
    %c64_17 = arith.constant 64 : index
    %c0_18 = arith.constant 0 : index
    %22 = vector.load %arg4[%c64_17, %c0_18] : memref<512x128xbf16, #tpu.memory_space<vmem>>, vector<32x128xbf16>
    %cst_19 = arith.constant dense<0.000000e+00> : vector<32x64xf32>
    %23 = tpu.matmul %22, %8, %cst_19 {dimension_numbers = #tpu.dot_dimension_numbers<[1], [0], [0], [1], [0, 0, 1, 1], [], []>} : vector<32x128xbf16>, vector<128x64xbf16>, vector<32x64xf32> -> vector<32x64xf32>
    %24 = arith.truncf %23 : vector<32x64xf32> to vector<32x64xbf16>
    %c128 = arith.constant 128 : index
    %c0_20 = arith.constant 0 : index
    %25 = vector.load %arg5[%c128, %c0_20] : memref<1024x128xbf16, #tpu.memory_space<vmem>>, vector<64x128xbf16>
    %cst_21 = arith.constant dense<0.000000e+00> : vector<32x128xf32>
    %26 = tpu.matmul %24, %25, %cst_21 {dimension_numbers = #tpu.dot_dimension_numbers<[1], [0], [0], [1], [0, 0, 1, 1], [], []>} : vector<32x64xbf16>, vector<64x128xbf16>, vector<32x128xf32> -> vector<32x128xf32>
    %27 = arith.addf %21, %26 : vector<32x128xf32>
    %c96 = arith.constant 96 : index
    %c0_22 = arith.constant 0 : index
    %28 = vector.load %arg4[%c96, %c0_22] : memref<512x128xbf16, #tpu.memory_space<vmem>>, vector<32x128xbf16>
    %cst_23 = arith.constant dense<0.000000e+00> : vector<32x64xf32>
    %29 = tpu.matmul %28, %8, %cst_23 {dimension_numbers = #tpu.dot_dimension_numbers<[1], [0], [0], [1], [0, 0, 1, 1], [], []>} : vector<32x128xbf16>, vector<128x64xbf16>, vector<32x64xf32> -> vector<32x64xf32>
    %30 = arith.truncf %29 : vector<32x64xf32> to vector<32x64xbf16>
    %c192 = arith.constant 192 : index
    %c0_24 = arith.constant 0 : index
    %31 = vector.load %arg5[%c192, %c0_24] : memref<1024x128xbf16, #tpu.memory_space<vmem>>, vector<64x128xbf16>
    %cst_25 = arith.constant dense<0.000000e+00> : vector<32x128xf32>
    %32 = tpu.matmul %30, %31, %cst_25 {dimension_numbers = #tpu.dot_dimension_numbers<[1], [0], [0], [1], [0, 0, 1, 1], [], []>} : vector<32x64xbf16>, vector<64x128xbf16>, vector<32x128xf32> -> vector<32x128xf32>
    %33 = arith.addf %27, %32 : vector<32x128xf32>
    %c128_26 = arith.constant 128 : index
    %c0_27 = arith.constant 0 : index
    %34 = vector.load %arg4[%c128_26, %c0_27] : memref<512x128xbf16, #tpu.memory_space<vmem>>, vector<32x128xbf16>
    %cst_28 = arith.constant dense<0.000000e+00> : vector<32x64xf32>
    %35 = tpu.matmul %34, %8, %cst_28 {dimension_numbers = #tpu.dot_dimension_numbers<[1], [0], [0], [1], [0, 0, 1, 1], [], []>} : vector<32x128xbf16>, vector<128x64xbf16>, vector<32x64xf32> -> vector<32x64xf32>
    %36 = arith.truncf %35 : vector<32x64xf32> to vector<32x64xbf16>
    %c256 = arith.constant 256 : index
    %c0_29 = arith.constant 0 : index
    %37 = vector.load %arg5[%c256, %c0_29] : memref<1024x128xbf16, #tpu.memory_space<vmem>>, vector<64x128xbf16>
    %cst_30 = arith.constant dense<0.000000e+00> : vector<32x128xf32>
    %38 = tpu.matmul %36, %37, %cst_30 {dimension_numbers = #tpu.dot_dimension_numbers<[1], [0], [0], [1], [0, 0, 1, 1], [], []>} : vector<32x64xbf16>, vector<64x128xbf16>, vector<32x128xf32> -> vector<32x128xf32>
    %39 = arith.addf %33, %38 : vector<32x128xf32>
    %c160 = arith.constant 160 : index
    %c0_31 = arith.constant 0 : index
    %40 = vector.load %arg4[%c160, %c0_31] : memref<512x128xbf16, #tpu.memory_space<vmem>>, vector<32x128xbf16>
    %cst_32 = arith.constant dense<0.000000e+00> : vector<32x64xf32>
    %41 = tpu.matmul %40, %8, %cst_32 {dimension_numbers = #tpu.dot_dimension_numbers<[1], [0], [0], [1], [0, 0, 1, 1], [], []>} : vector<32x128xbf16>, vector<128x64xbf16>, vector<32x64xf32> -> vector<32x64xf32>
    %42 = arith.truncf %41 : vector<32x64xf32> to vector<32x64xbf16>
    %c320 = arith.constant 320 : index
    %c0_33 = arith.constant 0 : index
    %43 = vector.load %arg5[%c320, %c0_33] : memref<1024x128xbf16, #tpu.memory_space<vmem>>, vector<64x128xbf16>
    %cst_34 = arith.constant dense<0.000000e+00> : vector<32x128xf32>
    %44 = tpu.matmul %42, %43, %cst_34 {dimension_numbers = #tpu.dot_dimension_numbers<[1], [0], [0], [1], [0, 0, 1, 1], [], []>} : vector<32x64xbf16>, vector<64x128xbf16>, vector<32x128xf32> -> vector<32x128xf32>
    %45 = arith.addf %39, %44 : vector<32x128xf32>
    %c192_35 = arith.constant 192 : index
    %c0_36 = arith.constant 0 : index
    %46 = vector.load %arg4[%c192_35, %c0_36] : memref<512x128xbf16, #tpu.memory_space<vmem>>, vector<32x128xbf16>
    %cst_37 = arith.constant dense<0.000000e+00> : vector<32x64xf32>
    %47 = tpu.matmul %46, %8, %cst_37 {dimension_numbers = #tpu.dot_dimension_numbers<[1], [0], [0], [1], [0, 0, 1, 1], [], []>} : vector<32x128xbf16>, vector<128x64xbf16>, vector<32x64xf32> -> vector<32x64xf32>
    %48 = arith.truncf %47 : vector<32x64xf32> to vector<32x64xbf16>
    %c384 = arith.constant 384 : index
    %c0_38 = arith.constant 0 : index
    %49 = vector.load %arg5[%c384, %c0_38] : memref<1024x128xbf16, #tpu.memory_space<vmem>>, vector<64x128xbf16>
    %cst_39 = arith.constant dense<0.000000e+00> : vector<32x128xf32>
    %50 = tpu.matmul %48, %49, %cst_39 {dimension_numbers = #tpu.dot_dimension_numbers<[1], [0], [0], [1], [0, 0, 1, 1], [], []>} : vector<32x64xbf16>, vector<64x128xbf16>, vector<32x128xf32> -> vector<32x128xf32>
    %51 = arith.addf %45, %50 : vector<32x128xf32>
    %c224 = arith.constant 224 : index
    %c0_40 = arith.constant 0 : index
    %52 = vector.load %arg4[%c224, %c0_40] : memref<512x128xbf16, #tpu.memory_space<vmem>>, vector<32x128xbf16>
    %cst_41 = arith.constant dense<0.000000e+00> : vector<32x64xf32>
    %53 = tpu.matmul %52, %8, %cst_41 {dimension_numbers = #tpu.dot_dimension_numbers<[1], [0], [0], [1], [0, 0, 1, 1], [], []>} : vector<32x128xbf16>, vector<128x64xbf16>, vector<32x64xf32> -> vector<32x64xf32>
    %54 = arith.truncf %53 : vector<32x64xf32> to vector<32x64xbf16>
    %c448 = arith.constant 448 : index
    %c0_42 = arith.constant 0 : index
    %55 = vector.load %arg5[%c448, %c0_42] : memref<1024x128xbf16, #tpu.memory_space<vmem>>, vector<64x128xbf16>
    %cst_43 = arith.constant dense<0.000000e+00> : vector<32x128xf32>
    %56 = tpu.matmul %54, %55, %cst_43 {dimension_numbers = #tpu.dot_dimension_numbers<[1], [0], [0], [1], [0, 0, 1, 1], [], []>} : vector<32x64xbf16>, vector<64x128xbf16>, vector<32x128xf32> -> vector<32x128xf32>
    %57 = arith.addf %51, %56 : vector<32x128xf32>
    %c256_44 = arith.constant 256 : index
    %c0_45 = arith.constant 0 : index
    %58 = vector.load %arg4[%c256_44, %c0_45] : memref<512x128xbf16, #tpu.memory_space<vmem>>, vector<32x128xbf16>
    %cst_46 = arith.constant dense<0.000000e+00> : vector<32x64xf32>
    %59 = tpu.matmul %58, %8, %cst_46 {dimension_numbers = #tpu.dot_dimension_numbers<[1], [0], [0], [1], [0, 0, 1, 1], [], []>} : vector<32x128xbf16>, vector<128x64xbf16>, vector<32x64xf32> -> vector<32x64xf32>
    %60 = arith.truncf %59 : vector<32x64xf32> to vector<32x64xbf16>
    %c512 = arith.constant 512 : index
    %c0_47 = arith.constant 0 : index
    %61 = vector.load %arg5[%c512, %c0_47] : memref<1024x128xbf16, #tpu.memory_space<vmem>>, vector<64x128xbf16>
    %cst_48 = arith.constant dense<0.000000e+00> : vector<32x128xf32>
    %62 = tpu.matmul %60, %61, %cst_48 {dimension_numbers = #tpu.dot_dimension_numbers<[1], [0], [0], [1], [0, 0, 1, 1], [], []>} : vector<32x64xbf16>, vector<64x128xbf16>, vector<32x128xf32> -> vector<32x128xf32>
    %63 = arith.addf %57, %62 : vector<32x128xf32>
    %c288 = arith.constant 288 : index
    %c0_49 = arith.constant 0 : index
    %64 = vector.load %arg4[%c288, %c0_49] : memref<512x128xbf16, #tpu.memory_space<vmem>>, vector<32x128xbf16>
    %cst_50 = arith.constant dense<0.000000e+00> : vector<32x64xf32>
    %65 = tpu.matmul %64, %8, %cst_50 {dimension_numbers = #tpu.dot_dimension_numbers<[1], [0], [0], [1], [0, 0, 1, 1], [], []>} : vector<32x128xbf16>, vector<128x64xbf16>, vector<32x64xf32> -> vector<32x64xf32>
    %66 = arith.truncf %65 : vector<32x64xf32> to vector<32x64xbf16>
    %c576 = arith.constant 576 : index
    %c0_51 = arith.constant 0 : index
    %67 = vector.load %arg5[%c576, %c0_51] : memref<1024x128xbf16, #tpu.memory_space<vmem>>, vector<64x128xbf16>
    %cst_52 = arith.constant dense<0.000000e+00> : vector<32x128xf32>
    %68 = tpu.matmul %66, %67, %cst_52 {dimension_numbers = #tpu.dot_dimension_numbers<[1], [0], [0], [1], [0, 0, 1, 1], [], []>} : vector<32x64xbf16>, vector<64x128xbf16>, vector<32x128xf32> -> vector<32x128xf32>
    %69 = arith.addf %63, %68 : vector<32x128xf32>
    %c320_53 = arith.constant 320 : index
    %c0_54 = arith.constant 0 : index
    %70 = vector.load %arg4[%c320_53, %c0_54] : memref<512x128xbf16, #tpu.memory_space<vmem>>, vector<32x128xbf16>
    %cst_55 = arith.constant dense<0.000000e+00> : vector<32x64xf32>
    %71 = tpu.matmul %70, %8, %cst_55 {dimension_numbers = #tpu.dot_dimension_numbers<[1], [0], [0], [1], [0, 0, 1, 1], [], []>} : vector<32x128xbf16>, vector<128x64xbf16>, vector<32x64xf32> -> vector<32x64xf32>
    %72 = arith.truncf %71 : vector<32x64xf32> to vector<32x64xbf16>
    %c640 = arith.constant 640 : index
    %c0_56 = arith.constant 0 : index
    %73 = vector.load %arg5[%c640, %c0_56] : memref<1024x128xbf16, #tpu.memory_space<vmem>>, vector<64x128xbf16>
    %cst_57 = arith.constant dense<0.000000e+00> : vector<32x128xf32>
    %74 = tpu.matmul %72, %73, %cst_57 {dimension_numbers = #tpu.dot_dimension_numbers<[1], [0], [0], [1], [0, 0, 1, 1], [], []>} : vector<32x64xbf16>, vector<64x128xbf16>, vector<32x128xf32> -> vector<32x128xf32>
    %75 = arith.addf %69, %74 : vector<32x128xf32>
    %c352 = arith.constant 352 : index
    %c0_58 = arith.constant 0 : index
    %76 = vector.load %arg4[%c352, %c0_58] : memref<512x128xbf16, #tpu.memory_space<vmem>>, vector<32x128xbf16>
    %cst_59 = arith.constant dense<0.000000e+00> : vector<32x64xf32>
    %77 = tpu.matmul %76, %8, %cst_59 {dimension_numbers = #tpu.dot_dimension_numbers<[1], [0], [0], [1], [0, 0, 1, 1], [], []>} : vector<32x128xbf16>, vector<128x64xbf16>, vector<32x64xf32> -> vector<32x64xf32>
    %78 = arith.truncf %77 : vector<32x64xf32> to vector<32x64xbf16>
    %c704 = arith.constant 704 : index
    %c0_60 = arith.constant 0 : index
    %79 = vector.load %arg5[%c704, %c0_60] : memref<1024x128xbf16, #tpu.memory_space<vmem>>, vector<64x128xbf16>
    %cst_61 = arith.constant dense<0.000000e+00> : vector<32x128xf32>
    %80 = tpu.matmul %78, %79, %cst_61 {dimension_numbers = #tpu.dot_dimension_numbers<[1], [0], [0], [1], [0, 0, 1, 1], [], []>} : vector<32x64xbf16>, vector<64x128xbf16>, vector<32x128xf32> -> vector<32x128xf32>
    %81 = arith.addf %75, %80 : vector<32x128xf32>
    %c384_62 = arith.constant 384 : index
    %c0_63 = arith.constant 0 : index
    %82 = vector.load %arg4[%c384_62, %c0_63] : memref<512x128xbf16, #tpu.memory_space<vmem>>, vector<32x128xbf16>
    %cst_64 = arith.constant dense<0.000000e+00> : vector<32x64xf32>
    %83 = tpu.matmul %82, %8, %cst_64 {dimension_numbers = #tpu.dot_dimension_numbers<[1], [0], [0], [1], [0, 0, 1, 1], [], []>} : vector<32x128xbf16>, vector<128x64xbf16>, vector<32x64xf32> -> vector<32x64xf32>
    %84 = arith.truncf %83 : vector<32x64xf32> to vector<32x64xbf16>
    %c768 = arith.constant 768 : index
    %c0_65 = arith.constant 0 : index
    %85 = vector.load %arg5[%c768, %c0_65] : memref<1024x128xbf16, #tpu.memory_space<vmem>>, vector<64x128xbf16>
    %cst_66 = arith.constant dense<0.000000e+00> : vector<32x128xf32>
    %86 = tpu.matmul %84, %85, %cst_66 {dimension_numbers = #tpu.dot_dimension_numbers<[1], [0], [0], [1], [0, 0, 1, 1], [], []>} : vector<32x64xbf16>, vector<64x128xbf16>, vector<32x128xf32> -> vector<32x128xf32>
    %87 = arith.addf %81, %86 : vector<32x128xf32>
    %c416 = arith.constant 416 : index
    %c0_67 = arith.constant 0 : index
    %88 = vector.load %arg4[%c416, %c0_67] : memref<512x128xbf16, #tpu.memory_space<vmem>>, vector<32x128xbf16>
    %cst_68 = arith.constant dense<0.000000e+00> : vector<32x64xf32>
    %89 = tpu.matmul %88, %8, %cst_68 {dimension_numbers = #tpu.dot_dimension_numbers<[1], [0], [0], [1], [0, 0, 1, 1], [], []>} : vector<32x128xbf16>, vector<128x64xbf16>, vector<32x64xf32> -> vector<32x64xf32>
    %90 = arith.truncf %89 : vector<32x64xf32> to vector<32x64xbf16>
    %c832 = arith.constant 832 : index
    %c0_69 = arith.constant 0 : index
    %91 = vector.load %arg5[%c832, %c0_69] : memref<1024x128xbf16, #tpu.memory_space<vmem>>, vector<64x128xbf16>
    %cst_70 = arith.constant dense<0.000000e+00> : vector<32x128xf32>
    %92 = tpu.matmul %90, %91, %cst_70 {dimension_numbers = #tpu.dot_dimension_numbers<[1], [0], [0], [1], [0, 0, 1, 1], [], []>} : vector<32x64xbf16>, vector<64x128xbf16>, vector<32x128xf32> -> vector<32x128xf32>
    %93 = arith.addf %87, %92 : vector<32x128xf32>
    %c448_71 = arith.constant 448 : index
    %c0_72 = arith.constant 0 : index
    %94 = vector.load %arg4[%c448_71, %c0_72] : memref<512x128xbf16, #tpu.memory_space<vmem>>, vector<32x128xbf16>
    %cst_73 = arith.constant dense<0.000000e+00> : vector<32x64xf32>
    %95 = tpu.matmul %94, %8, %cst_73 {dimension_numbers = #tpu.dot_dimension_numbers<[1], [0], [0], [1], [0, 0, 1, 1], [], []>} : vector<32x128xbf16>, vector<128x64xbf16>, vector<32x64xf32> -> vector<32x64xf32>
    %96 = arith.truncf %95 : vector<32x64xf32> to vector<32x64xbf16>
    %c896 = arith.constant 896 : index
    %c0_74 = arith.constant 0 : index
    %97 = vector.load %arg5[%c896, %c0_74] : memref<1024x128xbf16, #tpu.memory_space<vmem>>, vector<64x128xbf16>
    %cst_75 = arith.constant dense<0.000000e+00> : vector<32x128xf32>
    %98 = tpu.matmul %96, %97, %cst_75 {dimension_numbers = #tpu.dot_dimension_numbers<[1], [0], [0], [1], [0, 0, 1, 1], [], []>} : vector<32x64xbf16>, vector<64x128xbf16>, vector<32x128xf32> -> vector<32x128xf32>
    %99 = arith.addf %93, %98 : vector<32x128xf32>
    %c480 = arith.constant 480 : index
    %c0_76 = arith.constant 0 : index
    %100 = vector.load %arg4[%c480, %c0_76] : memref<512x128xbf16, #tpu.memory_space<vmem>>, vector<32x128xbf16>
    %cst_77 = arith.constant dense<0.000000e+00> : vector<32x64xf32>
    %101 = tpu.matmul %100, %8, %cst_77 {dimension_numbers = #tpu.dot_dimension_numbers<[1], [0], [0], [1], [0, 0, 1, 1], [], []>} : vector<32x128xbf16>, vector<128x64xbf16>, vector<32x64xf32> -> vector<32x64xf32>
    %102 = arith.truncf %101 : vector<32x64xf32> to vector<32x64xbf16>
    %c960 = arith.constant 960 : index
    %c0_78 = arith.constant 0 : index
    %103 = vector.load %arg5[%c960, %c0_78] : memref<1024x128xbf16, #tpu.memory_space<vmem>>, vector<64x128xbf16>
    %cst_79 = arith.constant dense<0.000000e+00> : vector<32x128xf32>
    %104 = tpu.matmul %102, %103, %cst_79 {dimension_numbers = #tpu.dot_dimension_numbers<[1], [0], [0], [1], [0, 0, 1, 1], [], []>} : vector<32x64xbf16>, vector<64x128xbf16>, vector<32x128xf32> -> vector<32x128xf32>
    %105 = arith.addf %99, %104 : vector<32x128xf32>
    %c0_80 = arith.constant 0 : index
    %c0_81 = arith.constant 0 : index
    %106 = vector.load %arg6[%c0_80, %c0_81] : memref<1x128xf32, #tpu.memory_space<vmem>>, vector<1x128xf32>
    %107 = vector.broadcast %106 : vector<1x128xf32> to vector<32x128xf32>
    %108 = arith.addf %105, %107 : vector<32x128xf32>
    %cst_82 = arith.constant 0.000000e+00 : f32
    %109 = vector.broadcast %cst_82 : f32 to vector<32x128xf32>
    %110 = arith.maximumf %108, %109 : vector<32x128xf32>
    %111 = arith.truncf %110 : vector<32x128xf32> to vector<32x128xbf16>
    %cst_83 = arith.constant 0.000000e+00 : f32
    %112 = vector.broadcast %cst_83 : f32 to vector<8x128xf32>
    %c0_84 = arith.constant 0 : index
    %c0_85 = arith.constant 0 : index
    %113 = vector.load %arg7[%c0_84, %c0_85] : memref<128x32xbf16, #tpu.memory_space<vmem>>, vector<8x32xbf16>
    %cst_86 = arith.constant dense<0.000000e+00> : vector<8x128xf32>
    %114 = tpu.matmul %113, %111, %cst_86 {dimension_numbers = #tpu.dot_dimension_numbers<[1], [0], [0], [1], [0, 0, 1, 1], [], []>} : vector<8x32xbf16>, vector<32x128xbf16>, vector<8x128xf32> -> vector<8x128xf32>
    %115 = arith.truncf %114 : vector<8x128xf32> to vector<8x128xbf16>
    %c0_87 = arith.constant 0 : index
    %c0_88 = arith.constant 0 : index
    %116 = vector.load %arg8[%c0_87, %c0_88] : memref<2048x128xbf16, #tpu.memory_space<vmem>>, vector<128x128xbf16>
    %cst_89 = arith.constant dense<0.000000e+00> : vector<8x128xf32>
    %117 = tpu.matmul %115, %116, %cst_89 {dimension_numbers = #tpu.dot_dimension_numbers<[1], [0], [0], [1], [0, 0, 1, 1], [], []>} : vector<8x128xbf16>, vector<128x128xbf16>, vector<8x128xf32> -> vector<8x128xf32>
    %118 = arith.addf %112, %117 : vector<8x128xf32>
    %c8 = arith.constant 8 : index
    %c0_90 = arith.constant 0 : index
    %119 = vector.load %arg7[%c8, %c0_90] : memref<128x32xbf16, #tpu.memory_space<vmem>>, vector<8x32xbf16>
    %cst_91 = arith.constant dense<0.000000e+00> : vector<8x128xf32>
    %120 = tpu.matmul %119, %111, %cst_91 {dimension_numbers = #tpu.dot_dimension_numbers<[1], [0], [0], [1], [0, 0, 1, 1], [], []>} : vector<8x32xbf16>, vector<32x128xbf16>, vector<8x128xf32> -> vector<8x128xf32>
    %121 = arith.truncf %120 : vector<8x128xf32> to vector<8x128xbf16>
    %c128_92 = arith.constant 128 : index
    %c0_93 = arith.constant 0 : index
    %122 = vector.load %arg8[%c128_92, %c0_93] : memref<2048x128xbf16, #tpu.memory_space<vmem>>, vector<128x128xbf16>
    %cst_94 = arith.constant dense<0.000000e+00> : vector<8x128xf32>
    %123 = tpu.matmul %121, %122, %cst_94 {dimension_numbers = #tpu.dot_dimension_numbers<[1], [0], [0], [1], [0, 0, 1, 1], [], []>} : vector<8x128xbf16>, vector<128x128xbf16>, vector<8x128xf32> -> vector<8x128xf32>
    %124 = arith.addf %118, %123 : vector<8x128xf32>
    %c16 = arith.constant 16 : index
    %c0_95 = arith.constant 0 : index
    %125 = vector.load %arg7[%c16, %c0_95] : memref<128x32xbf16, #tpu.memory_space<vmem>>, vector<8x32xbf16>
    %cst_96 = arith.constant dense<0.000000e+00> : vector<8x128xf32>
    %126 = tpu.matmul %125, %111, %cst_96 {dimension_numbers = #tpu.dot_dimension_numbers<[1], [0], [0], [1], [0, 0, 1, 1], [], []>} : vector<8x32xbf16>, vector<32x128xbf16>, vector<8x128xf32> -> vector<8x128xf32>
    %127 = arith.truncf %126 : vector<8x128xf32> to vector<8x128xbf16>
    %c256_97 = arith.constant 256 : index
    %c0_98 = arith.constant 0 : index
    %128 = vector.load %arg8[%c256_97, %c0_98] : memref<2048x128xbf16, #tpu.memory_space<vmem>>, vector<128x128xbf16>
    %cst_99 = arith.constant dense<0.000000e+00> : vector<8x128xf32>
    %129 = tpu.matmul %127, %128, %cst_99 {dimension_numbers = #tpu.dot_dimension_numbers<[1], [0], [0], [1], [0, 0, 1, 1], [], []>} : vector<8x128xbf16>, vector<128x128xbf16>, vector<8x128xf32> -> vector<8x128xf32>
    %130 = arith.addf %124, %129 : vector<8x128xf32>
    %c24 = arith.constant 24 : index
    %c0_100 = arith.constant 0 : index
    %131 = vector.load %arg7[%c24, %c0_100] : memref<128x32xbf16, #tpu.memory_space<vmem>>, vector<8x32xbf16>
    %cst_101 = arith.constant dense<0.000000e+00> : vector<8x128xf32>
    %132 = tpu.matmul %131, %111, %cst_101 {dimension_numbers = #tpu.dot_dimension_numbers<[1], [0], [0], [1], [0, 0, 1, 1], [], []>} : vector<8x32xbf16>, vector<32x128xbf16>, vector<8x128xf32> -> vector<8x128xf32>
    %133 = arith.truncf %132 : vector<8x128xf32> to vector<8x128xbf16>
    %c384_102 = arith.constant 384 : index
    %c0_103 = arith.constant 0 : index
    %134 = vector.load %arg8[%c384_102, %c0_103] : memref<2048x128xbf16, #tpu.memory_space<vmem>>, vector<128x128xbf16>
    %cst_104 = arith.constant dense<0.000000e+00> : vector<8x128xf32>
    %135 = tpu.matmul %133, %134, %cst_104 {dimension_numbers = #tpu.dot_dimension_numbers<[1], [0], [0], [1], [0, 0, 1, 1], [], []>} : vector<8x128xbf16>, vector<128x128xbf16>, vector<8x128xf32> -> vector<8x128xf32>
    %136 = arith.addf %130, %135 : vector<8x128xf32>
    %c32_105 = arith.constant 32 : index
    %c0_106 = arith.constant 0 : index
    %137 = vector.load %arg7[%c32_105, %c0_106] : memref<128x32xbf16, #tpu.memory_space<vmem>>, vector<8x32xbf16>
    %cst_107 = arith.constant dense<0.000000e+00> : vector<8x128xf32>
    %138 = tpu.matmul %137, %111, %cst_107 {dimension_numbers = #tpu.dot_dimension_numbers<[1], [0], [0], [1], [0, 0, 1, 1], [], []>} : vector<8x32xbf16>, vector<32x128xbf16>, vector<8x128xf32> -> vector<8x128xf32>
    %139 = arith.truncf %138 : vector<8x128xf32> to vector<8x128xbf16>
    %c512_108 = arith.constant 512 : index
    %c0_109 = arith.constant 0 : index
    %140 = vector.load %arg8[%c512_108, %c0_109] : memref<2048x128xbf16, #tpu.memory_space<vmem>>, vector<128x128xbf16>
    %cst_110 = arith.constant dense<0.000000e+00> : vector<8x128xf32>
    %141 = tpu.matmul %139, %140, %cst_110 {dimension_numbers = #tpu.dot_dimension_numbers<[1], [0], [0], [1], [0, 0, 1, 1], [], []>} : vector<8x128xbf16>, vector<128x128xbf16>, vector<8x128xf32> -> vector<8x128xf32>
    %142 = arith.addf %136, %141 : vector<8x128xf32>
    %c40 = arith.constant 40 : index
    %c0_111 = arith.constant 0 : index
    %143 = vector.load %arg7[%c40, %c0_111] : memref<128x32xbf16, #tpu.memory_space<vmem>>, vector<8x32xbf16>
    %cst_112 = arith.constant dense<0.000000e+00> : vector<8x128xf32>
    %144 = tpu.matmul %143, %111, %cst_112 {dimension_numbers = #tpu.dot_dimension_numbers<[1], [0], [0], [1], [0, 0, 1, 1], [], []>} : vector<8x32xbf16>, vector<32x128xbf16>, vector<8x128xf32> -> vector<8x128xf32>
    %145 = arith.truncf %144 : vector<8x128xf32> to vector<8x128xbf16>
    %c640_113 = arith.constant 640 : index
    %c0_114 = arith.constant 0 : index
    %146 = vector.load %arg8[%c640_113, %c0_114] : memref<2048x128xbf16, #tpu.memory_space<vmem>>, vector<128x128xbf16>
    %cst_115 = arith.constant dense<0.000000e+00> : vector<8x128xf32>
    %147 = tpu.matmul %145, %146, %cst_115 {dimension_numbers = #tpu.dot_dimension_numbers<[1], [0], [0], [1], [0, 0, 1, 1], [], []>} : vector<8x128xbf16>, vector<128x128xbf16>, vector<8x128xf32> -> vector<8x128xf32>
    %148 = arith.addf %142, %147 : vector<8x128xf32>
    %c48 = arith.constant 48 : index
    %c0_116 = arith.constant 0 : index
    %149 = vector.load %arg7[%c48, %c0_116] : memref<128x32xbf16, #tpu.memory_space<vmem>>, vector<8x32xbf16>
    %cst_117 = arith.constant dense<0.000000e+00> : vector<8x128xf32>
    %150 = tpu.matmul %149, %111, %cst_117 {dimension_numbers = #tpu.dot_dimension_numbers<[1], [0], [0], [1], [0, 0, 1, 1], [], []>} : vector<8x32xbf16>, vector<32x128xbf16>, vector<8x128xf32> -> vector<8x128xf32>
    %151 = arith.truncf %150 : vector<8x128xf32> to vector<8x128xbf16>
    %c768_118 = arith.constant 768 : index
    %c0_119 = arith.constant 0 : index
    %152 = vector.load %arg8[%c768_118, %c0_119] : memref<2048x128xbf16, #tpu.memory_space<vmem>>, vector<128x128xbf16>
    %cst_120 = arith.constant dense<0.000000e+00> : vector<8x128xf32>
    %153 = tpu.matmul %151, %152, %cst_120 {dimension_numbers = #tpu.dot_dimension_numbers<[1], [0], [0], [1], [0, 0, 1, 1], [], []>} : vector<8x128xbf16>, vector<128x128xbf16>, vector<8x128xf32> -> vector<8x128xf32>
    %154 = arith.addf %148, %153 : vector<8x128xf32>
    %c56 = arith.constant 56 : index
    %c0_121 = arith.constant 0 : index
    %155 = vector.load %arg7[%c56, %c0_121] : memref<128x32xbf16, #tpu.memory_space<vmem>>, vector<8x32xbf16>
    %cst_122 = arith.constant dense<0.000000e+00> : vector<8x128xf32>
    %156 = tpu.matmul %155, %111, %cst_122 {dimension_numbers = #tpu.dot_dimension_numbers<[1], [0], [0], [1], [0, 0, 1, 1], [], []>} : vector<8x32xbf16>, vector<32x128xbf16>, vector<8x128xf32> -> vector<8x128xf32>
    %157 = arith.truncf %156 : vector<8x128xf32> to vector<8x128xbf16>
    %c896_123 = arith.constant 896 : index
    %c0_124 = arith.constant 0 : index
    %158 = vector.load %arg8[%c896_123, %c0_124] : memref<2048x128xbf16, #tpu.memory_space<vmem>>, vector<128x128xbf16>
    %cst_125 = arith.constant dense<0.000000e+00> : vector<8x128xf32>
    %159 = tpu.matmul %157, %158, %cst_125 {dimension_numbers = #tpu.dot_dimension_numbers<[1], [0], [0], [1], [0, 0, 1, 1], [], []>} : vector<8x128xbf16>, vector<128x128xbf16>, vector<8x128xf32> -> vector<8x128xf32>
    %160 = arith.addf %154, %159 : vector<8x128xf32>
    %c64_126 = arith.constant 64 : index
    %c0_127 = arith.constant 0 : index
    %161 = vector.load %arg7[%c64_126, %c0_127] : memref<128x32xbf16, #tpu.memory_space<vmem>>, vector<8x32xbf16>
    %cst_128 = arith.constant dense<0.000000e+00> : vector<8x128xf32>
    %162 = tpu.matmul %161, %111, %cst_128 {dimension_numbers = #tpu.dot_dimension_numbers<[1], [0], [0], [1], [0, 0, 1, 1], [], []>} : vector<8x32xbf16>, vector<32x128xbf16>, vector<8x128xf32> -> vector<8x128xf32>
    %163 = arith.truncf %162 : vector<8x128xf32> to vector<8x128xbf16>
    %c1024 = arith.constant 1024 : index
    %c0_129 = arith.constant 0 : index
    %164 = vector.load %arg8[%c1024, %c0_129] : memref<2048x128xbf16, #tpu.memory_space<vmem>>, vector<128x128xbf16>
    %cst_130 = arith.constant dense<0.000000e+00> : vector<8x128xf32>
    %165 = tpu.matmul %163, %164, %cst_130 {dimension_numbers = #tpu.dot_dimension_numbers<[1], [0], [0], [1], [0, 0, 1, 1], [], []>} : vector<8x128xbf16>, vector<128x128xbf16>, vector<8x128xf32> -> vector<8x128xf32>
    %166 = arith.addf %160, %165 : vector<8x128xf32>
    %c72 = arith.constant 72 : index
    %c0_131 = arith.constant 0 : index
    %167 = vector.load %arg7[%c72, %c0_131] : memref<128x32xbf16, #tpu.memory_space<vmem>>, vector<8x32xbf16>
    %cst_132 = arith.constant dense<0.000000e+00> : vector<8x128xf32>
    %168 = tpu.matmul %167, %111, %cst_132 {dimension_numbers = #tpu.dot_dimension_numbers<[1], [0], [0], [1], [0, 0, 1, 1], [], []>} : vector<8x32xbf16>, vector<32x128xbf16>, vector<8x128xf32> -> vector<8x128xf32>
    %169 = arith.truncf %168 : vector<8x128xf32> to vector<8x128xbf16>
    %c1152 = arith.constant 1152 : index
    %c0_133 = arith.constant 0 : index
    %170 = vector.load %arg8[%c1152, %c0_133] : memref<2048x128xbf16, #tpu.memory_space<vmem>>, vector<128x128xbf16>
    %cst_134 = arith.constant dense<0.000000e+00> : vector<8x128xf32>
    %171 = tpu.matmul %169, %170, %cst_134 {dimension_numbers = #tpu.dot_dimension_numbers<[1], [0], [0], [1], [0, 0, 1, 1], [], []>} : vector<8x128xbf16>, vector<128x128xbf16>, vector<8x128xf32> -> vector<8x128xf32>
    %172 = arith.addf %166, %171 : vector<8x128xf32>
    %c80 = arith.constant 80 : index
    %c0_135 = arith.constant 0 : index
    %173 = vector.load %arg7[%c80, %c0_135] : memref<128x32xbf16, #tpu.memory_space<vmem>>, vector<8x32xbf16>
    %cst_136 = arith.constant dense<0.000000e+00> : vector<8x128xf32>
    %174 = tpu.matmul %173, %111, %cst_136 {dimension_numbers = #tpu.dot_dimension_numbers<[1], [0], [0], [1], [0, 0, 1, 1], [], []>} : vector<8x32xbf16>, vector<32x128xbf16>, vector<8x128xf32> -> vector<8x128xf32>
    %175 = arith.truncf %174 : vector<8x128xf32> to vector<8x128xbf16>
    %c1280 = arith.constant 1280 : index
    %c0_137 = arith.constant 0 : index
    %176 = vector.load %arg8[%c1280, %c0_137] : memref<2048x128xbf16, #tpu.memory_space<vmem>>, vector<128x128xbf16>
    %cst_138 = arith.constant dense<0.000000e+00> : vector<8x128xf32>
    %177 = tpu.matmul %175, %176, %cst_138 {dimension_numbers = #tpu.dot_dimension_numbers<[1], [0], [0], [1], [0, 0, 1, 1], [], []>} : vector<8x128xbf16>, vector<128x128xbf16>, vector<8x128xf32> -> vector<8x128xf32>
    %178 = arith.addf %172, %177 : vector<8x128xf32>
    %c88 = arith.constant 88 : index
    %c0_139 = arith.constant 0 : index
    %179 = vector.load %arg7[%c88, %c0_139] : memref<128x32xbf16, #tpu.memory_space<vmem>>, vector<8x32xbf16>
    %cst_140 = arith.constant dense<0.000000e+00> : vector<8x128xf32>
    %180 = tpu.matmul %179, %111, %cst_140 {dimension_numbers = #tpu.dot_dimension_numbers<[1], [0], [0], [1], [0, 0, 1, 1], [], []>} : vector<8x32xbf16>, vector<32x128xbf16>, vector<8x128xf32> -> vector<8x128xf32>
    %181 = arith.truncf %180 : vector<8x128xf32> to vector<8x128xbf16>
    %c1408 = arith.constant 1408 : index
    %c0_141 = arith.constant 0 : index
    %182 = vector.load %arg8[%c1408, %c0_141] : memref<2048x128xbf16, #tpu.memory_space<vmem>>, vector<128x128xbf16>
    %cst_142 = arith.constant dense<0.000000e+00> : vector<8x128xf32>
    %183 = tpu.matmul %181, %182, %cst_142 {dimension_numbers = #tpu.dot_dimension_numbers<[1], [0], [0], [1], [0, 0, 1, 1], [], []>} : vector<8x128xbf16>, vector<128x128xbf16>, vector<8x128xf32> -> vector<8x128xf32>
    %184 = arith.addf %178, %183 : vector<8x128xf32>
    %c96_143 = arith.constant 96 : index
    %c0_144 = arith.constant 0 : index
    %185 = vector.load %arg7[%c96_143, %c0_144] : memref<128x32xbf16, #tpu.memory_space<vmem>>, vector<8x32xbf16>
    %cst_145 = arith.constant dense<0.000000e+00> : vector<8x128xf32>
    %186 = tpu.matmul %185, %111, %cst_145 {dimension_numbers = #tpu.dot_dimension_numbers<[1], [0], [0], [1], [0, 0, 1, 1], [], []>} : vector<8x32xbf16>, vector<32x128xbf16>, vector<8x128xf32> -> vector<8x128xf32>
    %187 = arith.truncf %186 : vector<8x128xf32> to vector<8x128xbf16>
    %c1536 = arith.constant 1536 : index
    %c0_146 = arith.constant 0 : index
    %188 = vector.load %arg8[%c1536, %c0_146] : memref<2048x128xbf16, #tpu.memory_space<vmem>>, vector<128x128xbf16>
    %cst_147 = arith.constant dense<0.000000e+00> : vector<8x128xf32>
    %189 = tpu.matmul %187, %188, %cst_147 {dimension_numbers = #tpu.dot_dimension_numbers<[1], [0], [0], [1], [0, 0, 1, 1], [], []>} : vector<8x128xbf16>, vector<128x128xbf16>, vector<8x128xf32> -> vector<8x128xf32>
    %190 = arith.addf %184, %189 : vector<8x128xf32>
    %c104 = arith.constant 104 : index
    %c0_148 = arith.constant 0 : index
    %191 = vector.load %arg7[%c104, %c0_148] : memref<128x32xbf16, #tpu.memory_space<vmem>>, vector<8x32xbf16>
    %cst_149 = arith.constant dense<0.000000e+00> : vector<8x128xf32>
    %192 = tpu.matmul %191, %111, %cst_149 {dimension_numbers = #tpu.dot_dimension_numbers<[1], [0], [0], [1], [0, 0, 1, 1], [], []>} : vector<8x32xbf16>, vector<32x128xbf16>, vector<8x128xf32> -> vector<8x128xf32>
    %193 = arith.truncf %192 : vector<8x128xf32> to vector<8x128xbf16>
    %c1664 = arith.constant 1664 : index
    %c0_150 = arith.constant 0 : index
    %194 = vector.load %arg8[%c1664, %c0_150] : memref<2048x128xbf16, #tpu.memory_space<vmem>>, vector<128x128xbf16>
    %cst_151 = arith.constant dense<0.000000e+00> : vector<8x128xf32>
    %195 = tpu.matmul %193, %194, %cst_151 {dimension_numbers = #tpu.dot_dimension_numbers<[1], [0], [0], [1], [0, 0, 1, 1], [], []>} : vector<8x128xbf16>, vector<128x128xbf16>, vector<8x128xf32> -> vector<8x128xf32>
    %196 = arith.addf %190, %195 : vector<8x128xf32>
    %c112 = arith.constant 112 : index
    %c0_152 = arith.constant 0 : index
    %197 = vector.load %arg7[%c112, %c0_152] : memref<128x32xbf16, #tpu.memory_space<vmem>>, vector<8x32xbf16>
    %cst_153 = arith.constant dense<0.000000e+00> : vector<8x128xf32>
    %198 = tpu.matmul %197, %111, %cst_153 {dimension_numbers = #tpu.dot_dimension_numbers<[1], [0], [0], [1], [0, 0, 1, 1], [], []>} : vector<8x32xbf16>, vector<32x128xbf16>, vector<8x128xf32> -> vector<8x128xf32>
    %199 = arith.truncf %198 : vector<8x128xf32> to vector<8x128xbf16>
    %c1792 = arith.constant 1792 : index
    %c0_154 = arith.constant 0 : index
    %200 = vector.load %arg8[%c1792, %c0_154] : memref<2048x128xbf16, #tpu.memory_space<vmem>>, vector<128x128xbf16>
    %cst_155 = arith.constant dense<0.000000e+00> : vector<8x128xf32>
    %201 = tpu.matmul %199, %200, %cst_155 {dimension_numbers = #tpu.dot_dimension_numbers<[1], [0], [0], [1], [0, 0, 1, 1], [], []>} : vector<8x128xbf16>, vector<128x128xbf16>, vector<8x128xf32> -> vector<8x128xf32>
    %202 = arith.addf %196, %201 : vector<8x128xf32>
    %c120 = arith.constant 120 : index
    %c0_156 = arith.constant 0 : index
    %203 = vector.load %arg7[%c120, %c0_156] : memref<128x32xbf16, #tpu.memory_space<vmem>>, vector<8x32xbf16>
    %cst_157 = arith.constant dense<0.000000e+00> : vector<8x128xf32>
    %204 = tpu.matmul %203, %111, %cst_157 {dimension_numbers = #tpu.dot_dimension_numbers<[1], [0], [0], [1], [0, 0, 1, 1], [], []>} : vector<8x32xbf16>, vector<32x128xbf16>, vector<8x128xf32> -> vector<8x128xf32>
    %205 = arith.truncf %204 : vector<8x128xf32> to vector<8x128xbf16>
    %c1920 = arith.constant 1920 : index
    %c0_158 = arith.constant 0 : index
    %206 = vector.load %arg8[%c1920, %c0_158] : memref<2048x128xbf16, #tpu.memory_space<vmem>>, vector<128x128xbf16>
    %cst_159 = arith.constant dense<0.000000e+00> : vector<8x128xf32>
    %207 = tpu.matmul %205, %206, %cst_159 {dimension_numbers = #tpu.dot_dimension_numbers<[1], [0], [0], [1], [0, 0, 1, 1], [], []>} : vector<8x128xbf16>, vector<128x128xbf16>, vector<8x128xf32> -> vector<8x128xf32>
    %208 = arith.addf %202, %207 : vector<8x128xf32>
    %c0_160 = arith.constant 0 : index
    %c0_161 = arith.constant 0 : index
    %209 = vector.load %arg9[%c0_160, %c0_161] : memref<1x128xf32, #tpu.memory_space<vmem>>, vector<1x128xf32>
    %210 = vector.broadcast %209 : vector<1x128xf32> to vector<8x128xf32>
    %211 = arith.addf %208, %210 : vector<8x128xf32>
    %cst_162 = arith.constant 0.000000e+00 : f32
    %212 = vector.broadcast %cst_162 : f32 to vector<8x128xf32>
    %213 = arith.maximumf %211, %212 : vector<8x128xf32>
    %214 = arith.truncf %213 : vector<8x128xf32> to vector<8x128xbf16>
    %c0_163 = arith.constant 0 : index
    %c0_164 = arith.constant 0 : index
    %215 = vector.load %arg10[%c0_163, %c0_164] : memref<128x256xbf16, #tpu.memory_space<vmem>>, vector<128x256xbf16>
    %cst_165 = arith.constant dense<0.000000e+00> : vector<8x256xf32>
    %216 = tpu.matmul %214, %215, %cst_165 {dimension_numbers = #tpu.dot_dimension_numbers<[1], [0], [0], [1], [0, 0, 1, 1], [], []>} : vector<8x128xbf16>, vector<128x256xbf16>, vector<8x256xf32> -> vector<8x256xf32>
    %c0_166 = arith.constant 0 : index
    %c0_167 = arith.constant 0 : index
    %217 = vector.load %arg11[%c0_166, %c0_167] : memref<1x256xf32, #tpu.memory_space<vmem>>, vector<1x256xf32>
    %218 = vector.broadcast %217 : vector<1x256xf32> to vector<8x256xf32>
    %219 = arith.addf %216, %218 : vector<8x256xf32>
    %cst_168 = arith.constant 2.000000e+00 : f32
    %220 = vector.broadcast %cst_168 : f32 to vector<8x256xf32>
    %221 = arith.mulf %219, %220 : vector<8x256xf32>
    %222 = arith.truncf %221 : vector<8x256xf32> to vector<8x256xbf16>
    %c0_169 = arith.constant 0 : index
    %c0_170 = arith.constant 0 : index
    %223 = vector.load %arg12[%c0_169, %c0_170] : memref<256x1536xbf16, #tpu.memory_space<vmem>>, vector<256x1536xbf16>
    %cst_171 = arith.constant dense<0.000000e+00> : vector<8x1536xf32>
    %224 = tpu.matmul %222, %223, %cst_171 {dimension_numbers = #tpu.dot_dimension_numbers<[1], [0], [0], [1], [0, 0, 1, 1], [], []>} : vector<8x256xbf16>, vector<256x1536xbf16>, vector<8x1536xf32> -> vector<8x1536xf32>
    %c0_172 = arith.constant 0 : index
    %c0_173 = arith.constant 0 : index
    %225 = vector.load %arg13[%c0_172, %c0_173] : memref<1x1536xf32, #tpu.memory_space<vmem>>, vector<1x1536xf32>
    %226 = vector.broadcast %225 : vector<1x1536xf32> to vector<8x1536xf32>
    %227 = arith.addf %224, %226 : vector<8x1536xf32>
    %228 = vector.extract_strided_slice %227 {offsets = [0, 0], sizes = [2, 1536], strides = [1, 1]} : vector<8x1536xf32> to vector<2x1536xf32>
    %c0_174 = arith.constant 0 : index
    %c0_175 = arith.constant 0 : index
    %229 = vector.load %arg14[%c0_174, %c0_175] : memref<2x1536xf32, #tpu.memory_space<vmem>>, vector<2x1536xf32>
    tpu.vector_store %arg14[%c0_174, %c0_175], %228 {strides = array<i32>} : memref<2x1536xf32, #tpu.memory_space<vmem>>, vector<2x1536xf32>,
    %cst_176 = arith.constant 0.000000e+00 : f32
    %cst_177 = arith.constant 1.000000e+00 : f32
    %230 = vector.broadcast %cst_176 : f32 to vector<2x1536xf32>
    %231 = arith.maximumf %230, %228 : vector<2x1536xf32>
    %232 = vector.broadcast %cst_177 : f32 to vector<2x1536xf32>
    %233 = arith.minimumf %232, %231 : vector<2x1536xf32>
    %c0_178 = arith.constant 0 : index
    %c0_179 = arith.constant 0 : index
    %234 = vector.load %arg15[%c0_178, %c0_179] : memref<2x1536xf32, #tpu.memory_space<vmem>>, vector<2x1536xf32>
    tpu.vector_store %arg15[%c0_178, %c0_179], %233 {strides = array<i32>} : memref<2x1536xf32, #tpu.memory_space<vmem>>, vector<2x1536xf32>,
    return
  }
  func.func @transform_0(%arg0: i32) -> (i32, i32) {
    %c0_i32 = arith.constant 0 : i32
    %c0_i32_0 = arith.constant 0 : i32
    %c0_i32_1 = arith.constant 0 : i32
    return %c0_i32, %c0_i32_0 : i32, i32
  }
  func.func @transform_1(%arg0: i32) -> (i32, i32) {
    %c0_i32 = arith.constant 0 : i32
    %c0_i32_0 = arith.constant 0 : i32
    %c0_i32_1 = arith.constant 0 : i32
    return %c0_i32, %c0_i32_0 : i32, i32
  }
  func.func @transform_2(%arg0: i32) -> (i32, i32) {
    %c0_i32 = arith.constant 0 : i32
    %c0_i32_0 = arith.constant 0 : i32
    %c0_i32_1 = arith.constant 0 : i32
    return %c0_i32, %c0_i32_0 : i32, i32
  }
  func.func @transform_3(%arg0: i32) -> (i32, i32) {
    %c0_i32 = arith.constant 0 : i32
    %c0_i32_0 = arith.constant 0 : i32
    %c0_i32_1 = arith.constant 0 : i32
    return %c0_i32, %c0_i32_0 : i32, i32
  }
  func.func @transform_4(%arg0: i32) -> (i32, i32) {
    %c0_i32 = arith.constant 0 : i32
    %c0_i32_0 = arith.constant 0 : i32
    %c0_i32_1 = arith.constant 0 : i32
    return %c0_i32, %c0_i32_0 : i32, i32
  }
  func.func @transform_5(%arg0: i32) -> (i32, i32) {
    %c0_i32 = arith.constant 0 : i32
    %c0_i32_0 = arith.constant 0 : i32
    %c0_i32_1 = arith.constant 0 : i32
    return %c0_i32, %c0_i32_0 : i32, i32
  }
  func.func @transform_6(%arg0: i32) -> (i32, i32) {
    %c0_i32 = arith.constant 0 : i32
    %c0_i32_0 = arith.constant 0 : i32
    %c0_i32_1 = arith.constant 0 : i32
    return %c0_i32, %c0_i32_0 : i32, i32
  }
  func.func @transform_7(%arg0: i32) -> (i32, i32) {
    %c0_i32 = arith.constant 0 : i32
    %c0_i32_0 = arith.constant 0 : i32
    %c0_i32_1 = arith.constant 0 : i32
    return %c0_i32, %c0_i32_0 : i32, i32
  }
  func.func @transform_8(%arg0: i32) -> (i32, i32) {
    %c0_i32 = arith.constant 0 : i32
    %c0_i32_0 = arith.constant 0 : i32
    %c0_i32_1 = arith.constant 0 : i32
    return %c0_i32, %c0_i32_0 : i32, i32
  }
  func.func @transform_9(%arg0: i32) -> (i32, i32) {
    %c0_i32 = arith.constant 0 : i32
    %c0_i32_0 = arith.constant 0 : i32
    %c0_i32_1 = arith.constant 0 : i32
    return %c0_i32, %c0_i32_0 : i32, i32
  }
  func.func @transform_10(%arg0: i32) -> (i32, i32) {
    %c0_i32 = arith.constant 0 : i32
    %c0_i32_0 = arith.constant 0 : i32
    %c0_i32_1 = arith.constant 0 : i32
    return %c0_i32, %c0_i32_0 : i32, i32
  }
  func.func @transform_11(%arg0: i32) -> (i32, i32) {
    %c0_i32 = arith.constant 0 : i32
    %c0_i32_0 = arith.constant 0 : i32
    %c0_i32_1 = arith.constant 0 : i32
    return %c0_i32, %c0_i32_0 : i32, i32
  }
  func.func @transform_12(%arg0: i32) -> (i32, i32) {
    %c0_i32 = arith.constant 0 : i32
    %c0_i32_0 = arith.constant 0 : i32
    %c0_i32_1 = arith.constant 0 : i32
    return %c0_i32, %c0_i32_0 : i32, i32
  }
  func.func @transform_13(%arg0: i32) -> (i32, i32) {
    %c0_i32 = arith.constant 0 : i32
    %c0_i32_0 = arith.constant 0 : i32
    %c0_i32_1 = arith.constant 0 : i32
    return %c0_i32, %c0_i32_0 : i32, i32
  }
  func.func @transform_14(%arg0: i32) -> (i32, i32) {
    %c0_i32 = arith.constant 0 : i32
    %c0_i32_0 = arith.constant 0 : i32
    %c0_i32_1 = arith.constant 0 : i32
    return %c0_i32, %c0_i32_0 : i32, i32
  }
}

</mosaic_0001>

<llo_original>
// kernel: coarse_model_forward.3
$region0: #{coarse_model_forward.3}
  #allocation0 [shape = 'u32[]', space=smem, size = 0x4, offset = 0x4, fixed_abs, tag = 'smem constant byte address 0x4 - core index']
  #allocation1 [shape = 'u32[144,128]{1,0:T(1,128)}', space=vmem, size = 0x12000, scoped, tag = 'internal scratch']
  %s0 = inlined_call_operand.vmem [shape: bf16[16,128], index: 0, kind: input, shape index: {}]
  %s1 = inlined_call_operand.vmem [shape: bf16[128,2048], index: 1, kind: input, shape index: {}]
  %s2 = inlined_call_operand.vmem [shape: f32[16,1], index: 2, kind: input, shape index: {}]
  %s3 = inlined_call_operand.vmem [shape: bf16[16,2048], index: 3, kind: output, shape index: {}]
  %s4 = sld [smem:[#allocation0]]
  $region22: #{coarse_model_forward.3} parent=0
    _
  %s6 = ssub.s32 1, %s4
  %s7 = scalar_select 0, %s6, %s4
  // Predicated region
  $region2: #{coarse_model_forward.3} parent=0 // pred_check
    _
  $region3: #{coarse_model_forward.3} parent=0 // pred_check_branch
    %9 = sbr.rel (0) target = $region5
  $region4: #{coarse_model_forward.3} parent=0 // pred_region
    _
  $region5: #{coarse_model_forward.3} parent=0 // pred_fallthru
    _
  // Predicated region
  $region6: #{coarse_model_forward.3} parent=0 // pred_check
    _
  $region7: #{coarse_model_forward.3} parent=0 // pred_check_branch
    %11 = sbr.rel (0) target = $region9
  $region8: #{coarse_model_forward.3} parent=0 // pred_region
    _
  $region9: #{coarse_model_forward.3} parent=0 // pred_fallthru
    _
  // Predicated region
  $region10: #{coarse_model_forward.3} parent=0 // pred_check
    _
  $region11: #{coarse_model_forward.3} parent=0 // pred_check_branch
    %13 = sbr.rel (0) target = $region13
  $region12: #{coarse_model_forward.3} parent=0 // pred_region
    _
  $region13: #{coarse_model_forward.3} parent=0 // pred_fallthru
    _
  %v15 = vld [vmem:[%s0] sm:$0xf]
  %v16 = vld [vmem:[%s0 + $0x4] sm:$0xf]
  %v17 = vld [vmem:[%s1] sm:$0xff]
  %v18 = vld [vmem:[%s1 + $0x8] sm:$0xff]
  %v19 = vld [vmem:[%s1 + $0x10] sm:$0xff]
  %v20 = vld [vmem:[%s1 + $0x18] sm:$0xff]
  %v21 = vld [vmem:[%s1 + $0x20] sm:$0xff]
  %v22 = vld [vmem:[%s1 + $0x28] sm:$0xff]
  %v23 = vld [vmem:[%s1 + $0x30] sm:$0xff]
  %v24 = vld [vmem:[%s1 + $0x38] sm:$0xff]
  %v25 = vld [vmem:[%s1 + $0x40] sm:$0xff]
  %v26 = vld [vmem:[%s1 + $0x48] sm:$0xff]
  %v27 = vld [vmem:[%s1 + $0x50] sm:$0xff]
  %v28 = vld [vmem:[%s1 + $0x58] sm:$0xff]
  %v29 = vld [vmem:[%s1 + $0x60] sm:$0xff]
  %v30 = vld [vmem:[%s1 + $0x68] sm:$0xff]
  %v31 = vld [vmem:[%s1 + $0x70] sm:$0xff]
  %v32 = vld [vmem:[%s1 + $0x78] sm:$0xff]
  %v33 = vld [vmem:[%s1 + $0x80] sm:$0xff]
  %v34 = vld [vmem:[%s1 + $0x88] sm:$0xff]
  %v35 = vld [vmem:[%s1 + $0x90] sm:$0xff]
  %v36 = vld [vmem:[%s1 + $0x98] sm:$0xff]
  %v37 = vld [vmem:[%s1 + $0xa0] sm:$0xff]
  %v38 = vld [vmem:[%s1 + $0xa8] sm:$0xff]
  %v39 = vld [vmem:[%s1 + $0xb0] sm:$0xff]
  %v40 = vld [vmem:[%s1 + $0xb8] sm:$0xff]
  %v41 = vld [vmem:[%s1 + $0xc0] sm:$0xff]
  %v42 = vld [vmem:[%s1 + $0xc8] sm:$0xff]
  %v43 = vld [vmem:[%s1 + $0xd0] sm:$0xff]
  %v44 = vld [vmem:[%s1 + $0xd8] sm:$0xff]
  %v45 = vld [vmem:[%s1 + $0xe0] sm:$0xff]
  %v46 = vld [vmem:[%s1 + $0xe8] sm:$0xff]
  %v47 = vld [vmem:[%s1 + $0xf0] sm:$0xff]
  %v48 = vld [vmem:[%s1 + $0xf8] sm:$0xff]
  %v49 = vld [vmem:[%s1 + $0x100] sm:$0xff]
  %v50 = vld [vmem:[%s1 + $0x108] sm:$0xff]
  %v51 = vld [vmem:[%s1 + $0x110] sm:$0xff]
  %v52 = vld [vmem:[%s1 + $0x118] sm:$0xff]
  %v53 = vld [vmem:[%s1 + $0x120] sm:$0xff]
  %v54 = vld [vmem:[%s1 + $0x128] sm:$0xff]
  %v55 = vld [vmem:[%s1 + $0x130] sm:$0xff]
  %v56 = vld [vmem:[%s1 + $0x138] sm:$0xff]
  %v57 = vld [vmem:[%s1 + $0x140] sm:$0xff]
  %v58 = vld [vmem:[%s1 + $0x148] sm:$0xff]
  %v59 = vld [vmem:[%s1 + $0x150] sm:$0xff]
  %v60 = vld [vmem:[%s1 + $0x158] sm:$0xff]
  %v61 = vld [vmem:[%s1 + $0x160] sm:$0xff]
  %v62 = vld [vmem:[%s1 + $0x168] sm:$0xff]
  %v63 = vld [vmem:[%s1 + $0x170] sm:$0xff]
  %v64 = vld [vmem:[%s1 + $0x178] sm:$0xff]
  %v65 = vld [vmem:[%s1 + $0x180] sm:$0xff]
  %v66 = vld [vmem:[%s1 + $0x188] sm:$0xff]
  %v67 = vld [vmem:[%s1 + $0x190] sm:$0xff]
  %v68 = vld [vmem:[%s1 + $0x198] sm:$0xff]
  %v69 = vld [vmem:[%s1 + $0x1a0] sm:$0xff]
  %v70 = vld [vmem:[%s1 + $0x1a8] sm:$0xff]
  %v71 = vld [vmem:[%s1 + $0x1b0] sm:$0xff]
  %v72 = vld [vmem:[%s1 + $0x1b8] sm:$0xff]
  %v73 = vld [vmem:[%s1 + $0x1c0] sm:$0xff]
  %v74 = vld [vmem:[%s1 + $0x1c8] sm:$0xff]
  %v75 = vld [vmem:[%s1 + $0x1d0] sm:$0xff]
  %v76 = vld [vmem:[%s1 + $0x1d8] sm:$0xff]
  %v77 = vld [vmem:[%s1 + $0x1e0] sm:$0xff]
  %v78 = vld [vmem:[%s1 + $0x1e8] sm:$0xff]
  %v79 = vld [vmem:[%s1 + $0x1f0] sm:$0xff]
  %v80 = vld [vmem:[%s1 + $0x1f8] sm:$0xff]
  %v81 = vld [vmem:[%s1 + $0x200] sm:$0xff]
  %v82 = vld [vmem:[%s1 + $0x208] sm:$0xff]
  %v83 = vld [vmem:[%s1 + $0x210] sm:$0xff]
  %v84 = vld [vmem:[%s1 + $0x218] sm:$0xff]
  %v85 = vld [vmem:[%s1 + $0x220] sm:$0xff]
  %v86 = vld [vmem:[%s1 + $0x228] sm:$0xff]
  %v87 = vld [vmem:[%s1 + $0x230] sm:$0xff]
  %v88 = vld [vmem:[%s1 + $0x238] sm:$0xff]
  %v89 = vld [vmem:[%s1 + $0x240] sm:$0xff]
  %v90 = vld [vmem:[%s1 + $0x248] sm:$0xff]
  %v91 = vld [vmem:[%s1 + $0x250] sm:$0xff]
  %v92 = vld [vmem:[%s1 + $0x258] sm:$0xff]
  %v93 = vld [vmem:[%s1 + $0x260] sm:$0xff]
  %v94 = vld [vmem:[%s1 + $0x268] sm:$0xff]
  %v95 = vld [vmem:[%s1 + $0x270] sm:$0xff]
  %v96 = vld [vmem:[%s1 + $0x278] sm:$0xff]
  %v97 = vld [vmem:[%s1 + $0x280] sm:$0xff]
  %v98 = vld [vmem:[%s1 + $0x288] sm:$0xff]
  %v99 = vld [vmem:[%s1 + $0x290] sm:$0xff]
  %v100 = vld [vmem:[%s1 + $0x298] sm:$0xff]
  %v101 = vld [vmem:[%s1 + $0x2a0] sm:$0xff]
  %v102 = vld [vmem:[%s1 + $0x2a8] sm:$0xff]
  %v103 = vld [vmem:[%s1 + $0x2b0] sm:$0xff]
  %v104 = vld [vmem:[%s1 + $0x2b8] sm:$0xff]
  %v105 = vld [vmem:[%s1 + $0x2c0] sm:$0xff]
  %v106 = vld [vmem:[%s1 + $0x2c8] sm:$0xff]
  %v107 = vld [vmem:[%s1 + $0x2d0] sm:$0xff]
  %v108 = vld [vmem:[%s1 + $0x2d8] sm:$0xff]
  %v109 = vld [vmem:[%s1 + $0x2e0] sm:$0xff]
  %v110 = vld [vmem:[%s1 + $0x2e8] sm:$0xff]
  %v111 = vld [vmem:[%s1 + $0x2f0] sm:$0xff]
  %v112 = vld [vmem:[%s1 + $0x2f8] sm:$0xff]
  %v113 = vld [vmem:[%s1 + $0x300] sm:$0xff]
  %v114 = vld [vmem:[%s1 + $0x308] sm:$0xff]
  %v115 = vld [vmem:[%s1 + $0x310] sm:$0xff]
  %v116 = vld [vmem:[%s1 + $0x318] sm:$0xff]
  %v117 = vld [vmem:[%s1 + $0x320] sm:$0xff]
  %v118 = vld [vmem:[%s1 + $0x328] sm:$0xff]
  %v119 = vld [vmem:[%s1 + $0x330] sm:$0xff]
  %v120 = vld [vmem:[%s1 + $0x338] sm:$0xff]
  %v121 = vld [vmem:[%s1 + $0x340] sm:$0xff]
  %v122 = vld [vmem:[%s1 + $0x348] sm:$0xff]
  %v123 = vld [vmem:[%s1 + $0x350] sm:$0xff]
  %v124 = vld [vmem:[%s1 + $0x358] sm:$0xff]
  %v125 = vld [vmem:[%s1 + $0x360] sm:$0xff]
  %v126 = vld [vmem:[%s1 + $0x368] sm:$0xff]
  %v127 = vld [vmem:[%s1 + $0x370] sm:$0xff]
  %v128 = vld [vmem:[%s1 + $0x378] sm:$0xff]
  %v129 = vld [vmem:[%s1 + $0x380] sm:$0xff]
  %v130 = vld [vmem:[%s1 + $0x388] sm:$0xff]
  %v131 = vld [vmem:[%s1 + $0x390] sm:$0xff]
  %v132 = vld [vmem:[%s1 + $0x398] sm:$0xff]
  %v133 = vld [vmem:[%s1 + $0x3a0] sm:$0xff]
  %v134 = vld [vmem:[%s1 + $0x3a8] sm:$0xff]
  %v135 = vld [vmem:[%s1 + $0x3b0] sm:$0xff]
  %v136 = vld [vmem:[%s1 + $0x3b8] sm:$0xff]
  %v137 = vld [vmem:[%s1 + $0x3c0] sm:$0xff]
  %v138 = vld [vmem:[%s1 + $0x3c8] sm:$0xff]
  %v139 = vld [vmem:[%s1 + $0x3d0] sm:$0xff]
  %v140 = vld [vmem:[%s1 + $0x3d8] sm:$0xff]
  %v141 = vld [vmem:[%s1 + $0x3e0] sm:$0xff]
  %v142 = vld [vmem:[%s1 + $0x3e8] sm:$0xff]
  %v143 = vld [vmem:[%s1 + $0x3f0] sm:$0xff]
  %v144 = vld [vmem:[%s1 + $0x3f8] sm:$0xff]
  %v145 = vld [vmem:[%s2] sm:$0xff]
  %v146 = vld [vmem:[%s2 + $0x8] sm:$0xff]
  %148 = vset.pattern.permute.xlu0 0
  %149 = vperm.xlu0 %148, %v145
  %v150 = vpop.permute.xlu0 %149
  %153 = vset.pattern.permute.xlu0 0
  %154 = vperm.xlu0 %153, %v146
  %v155 = vpop.permute.xlu0 %154
  %v159 = vunpack.c.l.b16 %v15
  %v160 = vunpack.c.l.b16 %v16
  %v161 = vpack.c.b16 %v160, %v159
  %v291 = vunpack.c.l.b16 %v17
  %v292 = vunpack.c.h.b16 %v17
  %v293 = vunpack.c.l.b16 %v18
  %v294 = vunpack.c.h.b16 %v18
  %v295 = vunpack.c.l.b16 %v19
  %v296 = vunpack.c.h.b16 %v19
  %v297 = vunpack.c.l.b16 %v20
  %v298 = vunpack.c.h.b16 %v20
  %v299 = vunpack.c.l.b16 %v21
  %v300 = vunpack.c.h.b16 %v21
  %v301 = vunpack.c.l.b16 %v22
  %v302 = vunpack.c.h.b16 %v22
  %v303 = vunpack.c.l.b16 %v23
  %v304 = vunpack.c.h.b16 %v23
  %v305 = vunpack.c.l.b16 %v24
  %v306 = vunpack.c.h.b16 %v24
  %v307 = vunpack.c.l.b16 %v25
  %v308 = vunpack.c.h.b16 %v25
  %v309 = vunpack.c.l.b16 %v26
  %v310 = vunpack.c.h.b16 %v26
  %v311 = vunpack.c.l.b16 %v27
  %v312 = vunpack.c.h.b16 %v27
  %v313 = vunpack.c.l.b16 %v28
  %v314 = vunpack.c.h.b16 %v28
  %v315 = vunpack.c.l.b16 %v29
  %v316 = vunpack.c.h.b16 %v29
  %v317 = vunpack.c.l.b16 %v30
  %v318 = vunpack.c.h.b16 %v30
  %v319 = vunpack.c.l.b16 %v31
  %v320 = vunpack.c.h.b16 %v31
  %v321 = vunpack.c.l.b16 %v32
  %v322 = vunpack.c.h.b16 %v32
  %v323 = vunpack.c.l.b16 %v33
  %v324 = vunpack.c.h.b16 %v33
  %v325 = vunpack.c.l.b16 %v34
  %v326 = vunpack.c.h.b16 %v34
  %v327 = vunpack.c.l.b16 %v35
  %v328 = vunpack.c.h.b16 %v35
  %v329 = vunpack.c.l.b16 %v36
  %v330 = vunpack.c.h.b16 %v36
  %v331 = vunpack.c.l.b16 %v37
  %v332 = vunpack.c.h.b16 %v37
  %v333 = vunpack.c.l.b16 %v38
  %v334 = vunpack.c.h.b16 %v38
  %v335 = vunpack.c.l.b16 %v39
  %v336 = vunpack.c.h.b16 %v39
  %v337 = vunpack.c.l.b16 %v40
  %v338 = vunpack.c.h.b16 %v40
  %v339 = vunpack.c.l.b16 %v41
  %v340 = vunpack.c.h.b16 %v41
  %v341 = vunpack.c.l.b16 %v42
  %v342 = vunpack.c.h.b16 %v42
  %v343 = vunpack.c.l.b16 %v43
  %v344 = vunpack.c.h.b16 %v43
  %v345 = vunpack.c.l.b16 %v44
  %v346 = vunpack.c.h.b16 %v44
  %v347 = vunpack.c.l.b16 %v45
  %v348 = vunpack.c.h.b16 %v45
  %v349 = vunpack.c.l.b16 %v46
  %v350 = vunpack.c.h.b16 %v46
  %v351 = vunpack.c.l.b16 %v47
  %v352 = vunpack.c.h.b16 %v47
  %v353 = vunpack.c.l.b16 %v48
  %v354 = vunpack.c.h.b16 %v48
  %v355 = vunpack.c.l.b16 %v49
  %v356 = vunpack.c.h.b16 %v49
  %v357 = vunpack.c.l.b16 %v50
  %v358 = vunpack.c.h.b16 %v50
  %v359 = vunpack.c.l.b16 %v51
  %v360 = vunpack.c.h.b16 %v51
  %v361 = vunpack.c.l.b16 %v52
  %v362 = vunpack.c.h.b16 %v52
  %v363 = vunpack.c.l.b16 %v53
  %v364 = vunpack.c.h.b16 %v53
  %v365 = vunpack.c.l.b16 %v54
  %v366 = vunpack.c.h.b16 %v54
  %v367 = vunpack.c.l.b16 %v55
  %v368 = vunpack.c.h.b16 %v55
  %v369 = vunpack.c.l.b16 %v56
  %v370 = vunpack.c.h.b16 %v56
  %v371 = vunpack.c.l.b16 %v57
  %v372 = vunpack.c.h.b16 %v57
  %v373 = vunpack.c.l.b16 %v58
  %v374 = vunpack.c.h.b16 %v58
  %v375 = vunpack.c.l.b16 %v59
  %v376 = vunpack.c.h.b16 %v59
  %v377 = vunpack.c.l.b16 %v60
  %v378 = vunpack.c.h.b16 %v60
  %v379 = vunpack.c.l.b16 %v61
  %v380 = vunpack.c.h.b16 %v61
  %v381 = vunpack.c.l.b16 %v62
  %v382 = vunpack.c.h.b16 %v62
  %v383 = vunpack.c.l.b16 %v63
  %v384 = vunpack.c.h.b16 %v63
  %v385 = vunpack.c.l.b16 %v64
  %v386 = vunpack.c.h.b16 %v64
  %v387 = vunpack.c.l.b16 %v65
  %v388 = vunpack.c.h.b16 %v65
  %v389 = vunpack.c.l.b16 %v66
  %v390 = vunpack.c.h.b16 %v66
  %v391 = vunpack.c.l.b16 %v67
  %v392 = vunpack.c.h.b16 %v67
  %v393 = vunpack.c.l.b16 %v68
  %v394 = vunpack.c.h.b16 %v68
  %v395 = vunpack.c.l.b16 %v69
  %v396 = vunpack.c.h.b16 %v69
  %v397 = vunpack.c.l.b16 %v70
  %v398 = vunpack.c.h.b16 %v70
  %v399 = vunpack.c.l.b16 %v71
  %v400 = vunpack.c.h.b16 %v71
  %v401 = vunpack.c.l.b16 %v72
  %v402 = vunpack.c.h.b16 %v72
  %v403 = vunpack.c.l.b16 %v73
  %v404 = vunpack.c.h.b16 %v73
  %v405 = vunpack.c.l.b16 %v74
  %v406 = vunpack.c.h.b16 %v74
  %v407 = vunpack.c.l.b16 %v75
  %v408 = vunpack.c.h.b16 %v75
  %v409 = vunpack.c.l.b16 %v76
  %v410 = vunpack.c.h.b16 %v76
  %v411 = vunpack.c.l.b16 %v77
  %v412 = vunpack.c.h.b16 %v77
  %v413 = vunpack.c.l.b16 %v78
  %v414 = vunpack.c.h.b16 %v78
  %v415 = vunpack.c.l.b16 %v79
  %v416 = vunpack.c.h.b16 %v79
  %v417 = vunpack.c.l.b16 %v80
  %v418 = vunpack.c.h.b16 %v80
  %v419 = vunpack.c.l.b16 %v81
  %v420 = vunpack.c.h.b16 %v81
  %v421 = vunpack.c.l.b16 %v82
  %v422 = vunpack.c.h.b16 %v82
  %v423 = vunpack.c.l.b16 %v83
  %v424 = vunpack.c.h.b16 %v83
  %v425 = vunpack.c.l.b16 %v84
  %v426 = vunpack.c.h.b16 %v84
  %v427 = vunpack.c.l.b16 %v85
  %v428 = vunpack.c.h.b16 %v85
  %v429 = vunpack.c.l.b16 %v86
  %v430 = vunpack.c.h.b16 %v86
  %v431 = vunpack.c.l.b16 %v87
  %v432 = vunpack.c.h.b16 %v87
  %v433 = vunpack.c.l.b16 %v88
  %v434 = vunpack.c.h.b16 %v88
  %v435 = vunpack.c.l.b16 %v89
  %v436 = vunpack.c.h.b16 %v89
  %v437 = vunpack.c.l.b16 %v90
  %v438 = vunpack.c.h.b16 %v90
  %v439 = vunpack.c.l.b16 %v91
  %v440 = vunpack.c.h.b16 %v91
  %v441 = vunpack.c.l.b16 %v92
  %v442 = vunpack.c.h.b16 %v92
  %v443 = vunpack.c.l.b16 %v93
  %v444 = vunpack.c.h.b16 %v93
  %v445 = vunpack.c.l.b16 %v94
  %v446 = vunpack.c.h.b16 %v94
  %v447 = vunpack.c.l.b16 %v95
  %v448 = vunpack.c.h.b16 %v95
  %v449 = vunpack.c.l.b16 %v96
  %v450 = vunpack.c.h.b16 %v96
  %v451 = vunpack.c.l.b16 %v97
  %v452 = vunpack.c.h.b16 %v97
  %v453 = vunpack.c.l.b16 %v98
  %v454 = vunpack.c.h.b16 %v98
  %v455 = vunpack.c.l.b16 %v99
  %v456 = vunpack.c.h.b16 %v99
  %v457 = vunpack.c.l.b16 %v100
  %v458 = vunpack.c.h.b16 %v100
  %v459 = vunpack.c.l.b16 %v101
  %v460 = vunpack.c.h.b16 %v101
  %v461 = vunpack.c.l.b16 %v102
  %v462 = vunpack.c.h.b16 %v102
  %v463 = vunpack.c.l.b16 %v103
  %v464 = vunpack.c.h.b16 %v103
  %v465 = vunpack.c.l.b16 %v104
  %v466 = vunpack.c.h.b16 %v104
  %v467 = vunpack.c.l.b16 %v105
  %v468 = vunpack.c.h.b16 %v105
  %v469 = vunpack.c.l.b16 %v106
  %v470 = vunpack.c.h.b16 %v106
  %v471 = vunpack.c.l.b16 %v107
  %v472 = vunpack.c.h.b16 %v107
  %v473 = vunpack.c.l.b16 %v108
  %v474 = vunpack.c.h.b16 %v108
  %v475 = vunpack.c.l.b16 %v109
  %v476 = vunpack.c.h.b16 %v109
  %v477 = vunpack.c.l.b16 %v110
  %v478 = vunpack.c.h.b16 %v110
  %v479 = vunpack.c.l.b16 %v111
  %v480 = vunpack.c.h.b16 %v111
  %v481 = vunpack.c.l.b16 %v112
  %v482 = vunpack.c.h.b16 %v112
  %v483 = vunpack.c.l.b16 %v113
  %v484 = vunpack.c.h.b16 %v113
  %v485 = vunpack.c.l.b16 %v114
  %v486 = vunpack.c.h.b16 %v114
  %v487 = vunpack.c.l.b16 %v115
  %v488 = vunpack.c.h.b16 %v115
  %v489 = vunpack.c.l.b16 %v116
  %v490 = vunpack.c.h.b16 %v116
  %v491 = vunpack.c.l.b16 %v117
  %v492 = vunpack.c.h.b16 %v117
  %v493 = vunpack.c.l.b16 %v118
  %v494 = vunpack.c.h.b16 %v118
  %v495 = vunpack.c.l.b16 %v119
  %v496 = vunpack.c.h.b16 %v119
  %v497 = vunpack.c.l.b16 %v120
  %v498 = vunpack.c.h.b16 %v120
  %v499 = vunpack.c.l.b16 %v121
  %v500 = vunpack.c.h.b16 %v121
  %v501 = vunpack.c.l.b16 %v122
  %v502 = vunpack.c.h.b16 %v122
  %v503 = vunpack.c.l.b16 %v123
  %v504 = vunpack.c.h.b16 %v123
  %v505 = vunpack.c.l.b16 %v124
  %v506 = vunpack.c.h.b16 %v124
  %v507 = vunpack.c.l.b16 %v125
  %v508 = vunpack.c.h.b16 %v125
  %v509 = vunpack.c.l.b16 %v126
  %v510 = vunpack.c.h.b16 %v126
  %v511 = vunpack.c.l.b16 %v127
  %v512 = vunpack.c.h.b16 %v127
  %v513 = vunpack.c.l.b16 %v128
  %v514 = vunpack.c.h.b16 %v128
  %v515 = vunpack.c.l.b16 %v129
  %v516 = vunpack.c.h.b16 %v129
  %v517 = vunpack.c.l.b16 %v130
  %v518 = vunpack.c.h.b16 %v130
  %v519 = vunpack.c.l.b16 %v131
  %v520 = vunpack.c.h.b16 %v131
  %v521 = vunpack.c.l.b16 %v132
  %v522 = vunpack.c.h.b16 %v132
  %v523 = vunpack.c.l.b16 %v133
  %v524 = vunpack.c.h.b16 %v133
  %v525 = vunpack.c.l.b16 %v134
  %v526 = vunpack.c.h.b16 %v134
  %v527 = vunpack.c.l.b16 %v135
  %v528 = vunpack.c.h.b16 %v135
  %v529 = vunpack.c.l.b16 %v136
  %v530 = vunpack.c.h.b16 %v136
  %v531 = vunpack.c.l.b16 %v137
  %v532 = vunpack.c.h.b16 %v137
  %v533 = vunpack.c.l.b16 %v138
  %v534 = vunpack.c.h.b16 %v138
  %v535 = vunpack.c.l.b16 %v139
  %v536 = vunpack.c.h.b16 %v139
  %v537 = vunpack.c.l.b16 %v140
  %v538 = vunpack.c.h.b16 %v140
  %v539 = vunpack.c.l.b16 %v141
  %v540 = vunpack.c.h.b16 %v141
  %v541 = vunpack.c.l.b16 %v142
  %v542 = vunpack.c.h.b16 %v142
  %v543 = vunpack.c.l.b16 %v143
  %v544 = vunpack.c.h.b16 %v143
  %v545 = vunpack.c.l.b16 %v144
  %v546 = vunpack.c.h.b16 %v144
  %v547 = vpack.c.b16 %v307, %v291
  %v548 = vpack.c.b16 %v308, %v292
  %v549 = vpack.c.b16 %v309, %v293
  %v550 = vpack.c.b16 %v310, %v294
  %v551 = vpack.c.b16 %v311, %v295
  %v552 = vpack.c.b16 %v312, %v296
  %v553 = vpack.c.b16 %v313, %v297
  %v554 = vpack.c.b16 %v314, %v298
  %v555 = vpack.c.b16 %v315, %v299
  %v556 = vpack.c.b16 %v316, %v300
  %v557 = vpack.c.b16 %v317, %v301
  %v558 = vpack.c.b16 %v318, %v302
  %v559 = vpack.c.b16 %v319, %v303
  %v560 = vpack.c.b16 %v320, %v304
  %v561 = vpack.c.b16 %v321, %v305
  %v562 = vpack.c.b16 %v322, %v306
  %v563 = vpack.c.b16 %v339, %v323
  %v564 = vpack.c.b16 %v340, %v324
  %v565 = vpack.c.b16 %v341, %v325
  %v566 = vpack.c.b16 %v342, %v326
  %v567 = vpack.c.b16 %v343, %v327
  %v568 = vpack.c.b16 %v344, %v328
  %v569 = vpack.c.b16 %v345, %v329
  %v570 = vpack.c.b16 %v346, %v330
  %v571 = vpack.c.b16 %v347, %v331
  %v572 = vpack.c.b16 %v348, %v332
  %v573 = vpack.c.b16 %v349, %v333
  %v574 = vpack.c.b16 %v350, %v334
  %v575 = vpack.c.b16 %v351, %v335
  %v576 = vpack.c.b16 %v352, %v336
  %v577 = vpack.c.b16 %v353, %v337
  %v578 = vpack.c.b16 %v354, %v338
  %v579 = vpack.c.b16 %v371, %v355
  %v580 = vpack.c.b16 %v372, %v356
  %v581 = vpack.c.b16 %v373, %v357
  %v582 = vpack.c.b16 %v374, %v358
  %v583 = vpack.c.b16 %v375, %v359
  %v584 = vpack.c.b16 %v376, %v360
  %v585 = vpack.c.b16 %v377, %v361
  %v586 = vpack.c.b16 %v378, %v362
  %v587 = vpack.c.b16 %v379, %v363
  %v588 = vpack.c.b16 %v380, %v364
  %v589 = vpack.c.b16 %v381, %v365
  %v590 = vpack.c.b16 %v382, %v366
  %v591 = vpack.c.b16 %v383, %v367
  %v592 = vpack.c.b16 %v384, %v368
  %v593 = vpack.c.b16 %v385, %v369
  %v594 = vpack.c.b16 %v386, %v370
  %v595 = vpack.c.b16 %v403, %v387
  %v596 = vpack.c.b16 %v404, %v388
  %v597 = vpack.c.b16 %v405, %v389
  %v598 = vpack.c.b16 %v406, %v390
  %v599 = vpack.c.b16 %v407, %v391
  %v600 = vpack.c.b16 %v408, %v392
  %v601 = vpack.c.b16 %v409, %v393
  %v602 = vpack.c.b16 %v410, %v394
  %v603 = vpack.c.b16 %v411, %v395
  %v604 = vpack.c.b16 %v412, %v396
  %v605 = vpack.c.b16 %v413, %v397
  %v606 = vpack.c.b16 %v414, %v398
  %v607 = vpack.c.b16 %v415, %v399
  %v608 = vpack.c.b16 %v416, %v400
  %v609 = vpack.c.b16 %v417, %v401
  %v610 = vpack.c.b16 %v418, %v402
  %v611 = vpack.c.b16 %v435, %v419
  %v612 = vpack.c.b16 %v436, %v420
  %v613 = vpack.c.b16 %v437, %v421
  %v614 = vpack.c.b16 %v438, %v422
  %v615 = vpack.c.b16 %v439, %v423
  %v616 = vpack.c.b16 %v440, %v424
  %v617 = vpack.c.b16 %v441, %v425
  %v618 = vpack.c.b16 %v442, %v426
  %v619 = vpack.c.b16 %v443, %v427
  %v620 = vpack.c.b16 %v444, %v428
  %v621 = vpack.c.b16 %v445, %v429
  %v622 = vpack.c.b16 %v446, %v430
  %v623 = vpack.c.b16 %v447, %v431
  %v624 = vpack.c.b16 %v448, %v432
  %v625 = vpack.c.b16 %v449, %v433
  %v626 = vpack.c.b16 %v450, %v434
  %v627 = vpack.c.b16 %v467, %v451
  %v628 = vpack.c.b16 %v468, %v452
  %v629 = vpack.c.b16 %v469, %v453
  %v630 = vpack.c.b16 %v470, %v454
  %v631 = vpack.c.b16 %v471, %v455
  %v632 = vpack.c.b16 %v472, %v456
  %v633 = vpack.c.b16 %v473, %v457
  %v634 = vpack.c.b16 %v474, %v458
  %v635 = vpack.c.b16 %v475, %v459
  %v636 = vpack.c.b16 %v476, %v460
  %v637 = vpack.c.b16 %v477, %v461
  %v638 = vpack.c.b16 %v478, %v462
  %v639 = vpack.c.b16 %v479, %v463
  %v640 = vpack.c.b16 %v480, %v464
  %v641 = vpack.c.b16 %v481, %v465
  %v642 = vpack.c.b16 %v482, %v466
  %v643 = vpack.c.b16 %v499, %v483
  %v644 = vpack.c.b16 %v500, %v484
  %v645 = vpack.c.b16 %v501, %v485
  %v646 = vpack.c.b16 %v502, %v486
  %v647 = vpack.c.b16 %v503, %v487
  %v648 = vpack.c.b16 %v504, %v488
  %v649 = vpack.c.b16 %v505, %v489
  %v650 = vpack.c.b16 %v506, %v490
  %v651 = vpack.c.b16 %v507, %v491
  %v652 = vpack.c.b16 %v508, %v492
  %v653 = vpack.c.b16 %v509, %v493
  %v654 = vpack.c.b16 %v510, %v494
  %v655 = vpack.c.b16 %v511, %v495
  %v656 = vpack.c.b16 %v512, %v496
  %v657 = vpack.c.b16 %v513, %v497
  %v658 = vpack.c.b16 %v514, %v498
  %v659 = vpack.c.b16 %v531, %v515
  %v660 = vpack.c.b16 %v532, %v516
  %v661 = vpack.c.b16 %v533, %v517
  %v662 = vpack.c.b16 %v534, %v518
  %v663 = vpack.c.b16 %v535, %v519
  %v664 = vpack.c.b16 %v536, %v520
  %v665 = vpack.c.b16 %v537, %v521
  %v666 = vpack.c.b16 %v538, %v522
  %v667 = vpack.c.b16 %v539, %v523
  %v668 = vpack.c.b16 %v540, %v524
  %v669 = vpack.c.b16 %v541, %v525
  %v670 = vpack.c.b16 %v542, %v526
  %v671 = vpack.c.b16 %v543, %v527
  %v672 = vpack.c.b16 %v544, %v528
  %v673 = vpack.c.b16 %v545, %v529
  %v674 = vpack.c.b16 %v546, %v530
  %803 = vmatprep.subr.bf16.mxu0 %v660
  %804 = vmatpush1.bf16.msra.mxu0 %v659
  %805 = vmatprep.subr.bf16.mxu0 %v644
  %806 = vmatpush1.bf16.msra.mxu0 %v643
  %807 = vmatprep.subr.bf16.mxu0 %v628
  %808 = vmatpush1.bf16.msra.mxu0 %v627
  %809 = vmatprep.subr.bf16.mxu0 %v612
  %810 = vmatpush1.bf16.msra.mxu0 %v611
  %811 = vmatprep.subr.bf16.mxu0 %v596
  %812 = vmatpush1.bf16.msra.mxu0 %v595
  %813 = vmatprep.subr.bf16.mxu0 %v580
  %814 = vmatpush1.bf16.msra.mxu0 %v579
  %815 = vmatprep.subr.bf16.mxu0 %v564
  %816 = vmatpush1.bf16.msra.mxu0 %v563
  %817 = vmatprep.subr.bf16.mxu0 %v548
  %818 = vmatpush1.bf16.msra.mxu0 %v547
  %819 = vmatprep.subr.bf16.mxu0 0
  %820 = vmatpush2.bf16.msra.mxu0 0
  %821 = vmatprep.subr.bf16.mxu0 0
  %822 = vmatpush2.bf16.msra.mxu0 0
  %823 = vmatprep.subr.bf16.mxu0 0
  %824 = vmatpush2.bf16.msra.mxu0 0
  %825 = vmatprep.subr.bf16.mxu0 0
  %826 = vmatpush2.bf16.msra.mxu0 0
  %827 = vmatprep.subr.bf16.mxu0 0
  %828 = vmatpush2.bf16.msra.mxu0 0
  %829 = vmatprep.subr.bf16.mxu0 0
  %830 = vmatpush2.bf16.msra.mxu0 0
  %831 = vmatprep.subr.bf16.mxu0 0
  %832 = vmatpush2.bf16.msra.mxu0 0
  %833 = vmatprep.subr.bf16.mxu0 0
  %834 = vmatpush2.bf16.msra.mxu0 0
  %835 = vmatprep.mubr.bf16.mxu0 0
  %836 = vmatmul.mubr.bf16.gmra.mxu0 %v161
  %v837 = vpop.f32.mrf.mxu0
  %v838 = vadd.f32 %v150, %v837
  %v839 = vpop.f32.mrf.mxu0
  %v840 = vadd.f32 %v150, %v839
  %v841 = vpop.f32.mrf.mxu0
  %v842 = vadd.f32 %v155, %v841
  %v843 = vpop.f32.mrf.mxu0
  %v844 = vadd.f32 %v155, %v843
  %845 = vdwg.mxu0
  %846 = vmatprep.subr.bf16.mxu0 %v662
  %847 = vmatpush1.bf16.msra.mxu0 %v661
  %848 = vmatprep.subr.bf16.mxu0 %v646
  %849 = vmatpush1.bf16.msra.mxu0 %v645
  %850 = vmatprep.subr.bf16.mxu0 %v630
  %851 = vmatpush1.bf16.msra.mxu0 %v629
  %852 = vmatprep.subr.bf16.mxu0 %v614
  %853 = vmatpush1.bf16.msra.mxu0 %v613
  %854 = vmatprep.subr.bf16.mxu0 %v598
  %855 = vmatpush1.bf16.msra.mxu0 %v597
  %856 = vmatprep.subr.bf16.mxu0 %v582
  %857 = vmatpush1.bf16.msra.mxu0 %v581
  %858 = vmatprep.subr.bf16.mxu0 %v566
  %859 = vmatpush1.bf16.msra.mxu0 %v565
  %860 = vmatprep.subr.bf16.mxu0 %v550
  %861 = vmatpush1.bf16.msra.mxu0 %v549
  %862 = vmatprep.subr.bf16.mxu0 0
  %863 = vmatpush2.bf16.msra.mxu0 0
  %864 = vmatprep.subr.bf16.mxu0 0
  %865 = vmatpush2.bf16.msra.mxu0 0
  %866 = vmatprep.subr.bf16.mxu0 0
  %867 = vmatpush2.bf16.msra.mxu0 0
  %868 = vmatprep.subr.bf16.mxu0 0
  %869 = vmatpush2.bf16.msra.mxu0 0
  %870 = vmatprep.subr.bf16.mxu0 0
  %871 = vmatpush2.bf16.msra.mxu0 0
  %872 = vmatprep.subr.bf16.mxu0 0
  %873 = vmatpush2.bf16.msra.mxu0 0
  %874 = vmatprep.subr.bf16.mxu0 0
  %875 = vmatpush2.bf16.msra.mxu0 0
  %876 = vmatprep.subr.bf16.mxu0 0
  %877 = vmatpush2.bf16.msra.mxu0 0
  %878 = vmatprep.mubr.bf16.mxu0 0
  %879 = vmatmul.mubr.bf16.gmra.mxu0 %v161
  %v880 = vpop.f32.mrf.mxu0
  %v881 = vadd.f32 %v150, %v880
  %v882 = vpop.f32.mrf.mxu0
  %v883 = vadd.f32 %v150, %v882
  %v884 = vpop.f32.mrf.mxu0
  %v885 = vadd.f32 %v155, %v884
  %v886 = vpop.f32.mrf.mxu0
  %v887 = vadd.f32 %v155, %v886
  %888 = vdwg.mxu0
  %889 = vmatprep.subr.bf16.mxu0 %v664
  %890 = vmatpush1.bf16.msra.mxu0 %v663
  %891 = vmatprep.subr.bf16.mxu0 %v648
  %892 = vmatpush1.bf16.msra.mxu0 %v647
  %893 = vmatprep.subr.bf16.mxu0 %v632
  %894 = vmatpush1.bf16.msra.mxu0 %v631
  %895 = vmatprep.subr.bf16.mxu0 %v616
  %896 = vmatpush1.bf16.msra.mxu0 %v615
  %897 = vmatprep.subr.bf16.mxu0 %v600
  %898 = vmatpush1.bf16.msra.mxu0 %v599
  %899 = vmatprep.subr.bf16.mxu0 %v584
  %900 = vmatpush1.bf16.msra.mxu0 %v583
  %901 = vmatprep.subr.bf16.mxu0 %v568
  %902 = vmatpush1.bf16.msra.mxu0 %v567
  %903 = vmatprep.subr.bf16.mxu0 %v552
  %904 = vmatpush1.bf16.msra.mxu0 %v551
  %905 = vmatprep.subr.bf16.mxu0 0
  %906 = vmatpush2.bf16.msra.mxu0 0
  %907 = vmatprep.subr.bf16.mxu0 0
  %908 = vmatpush2.bf16.msra.mxu0 0
  %909 = vmatprep.subr.bf16.mxu0 0
  %910 = vmatpush2.bf16.msra.mxu0 0
  %911 = vmatprep.subr.bf16.mxu0 0
  %912 = vmatpush2.bf16.msra.mxu0 0
  %913 = vmatprep.subr.bf16.mxu0 0
  %914 = vmatpush2.bf16.msra.mxu0 0
  %915 = vmatprep.subr.bf16.mxu0 0
  %916 = vmatpush2.bf16.msra.mxu0 0
  %917 = vmatprep.subr.bf16.mxu0 0
  %918 = vmatpush2.bf16.msra.mxu0 0
  %919 = vmatprep.subr.bf16.mxu0 0
  %920 = vmatpush2.bf16.msra.mxu0 0
  %921 = vmatprep.mubr.bf16.mxu0 0
  %922 = vmatmul.mubr.bf16.gmra.mxu0 %v161
  %v923 = vpop.f32.mrf.mxu0
  %v924 = vadd.f32 %v150, %v923
  %v925 = vpop.f32.mrf.mxu0
  %v926 = vadd.f32 %v150, %v925
  %v927 = vpop.f32.mrf.mxu0
  %v928 = vadd.f32 %v155, %v927
  %v929 = vpop.f32.mrf.mxu0
  %v930 = vadd.f32 %v155, %v929
  %931 = vdwg.mxu0
  %932 = vmatprep.subr.bf16.mxu0 %v666
  %933 = vmatpush1.bf16.msra.mxu0 %v665
  %934 = vmatprep.subr.bf16.mxu0 %v650
  %935 = vmatpush1.bf16.msra.mxu0 %v649
  %936 = vmatprep.subr.bf16.mxu0 %v634
  %937 = vmatpush1.bf16.msra.mxu0 %v633
  %938 = vmatprep.subr.bf16.mxu0 %v618
  %939 = vmatpush1.bf16.msra.mxu0 %v617
  %940 = vmatprep.subr.bf16.mxu0 %v602
  %941 = vmatpush1.bf16.msra.mxu0 %v601
  %942 = vmatprep.subr.bf16.mxu0 %v586
  %943 = vmatpush1.bf16.msra.mxu0 %v585
  %944 = vmatprep.subr.bf16.mxu0 %v570
  %945 = vmatpush1.bf16.msra.mxu0 %v569
  %946 = vmatprep.subr.bf16.mxu0 %v554
  %947 = vmatpush1.bf16.msra.mxu0 %v553
  %948 = vmatprep.subr.bf16.mxu0 0
  %949 = vmatpush2.bf16.msra.mxu0 0
  %950 = vmatprep.subr.bf16.mxu0 0
  %951 = vmatpush2.bf16.msra.mxu0 0
  %952 = vmatprep.subr.bf16.mxu0 0
  %953 = vmatpush2.bf16.msra.mxu0 0
  %954 = vmatprep.subr.bf16.mxu0 0
  %955 = vmatpush2.bf16.msra.mxu0 0
  %956 = vmatprep.subr.bf16.mxu0 0
  %957 = vmatpush2.bf16.msra.mxu0 0
  %958 = vmatprep.subr.bf16.mxu0 0
  %959 = vmatpush2.bf16.msra.mxu0 0
  %960 = vmatprep.subr.bf16.mxu0 0
  %961 = vmatpush2.bf16.msra.mxu0 0
  %962 = vmatprep.subr.bf16.mxu0 0
  %963 = vmatpush2.bf16.msra.mxu0 0
  %964 = vmatprep.mubr.bf16.mxu0 0
  %965 = vmatmul.mubr.bf16.gmra.mxu0 %v161
  %v966 = vpop.f32.mrf.mxu0
  %v967 = vadd.f32 %v150, %v966
  %v968 = vpop.f32.mrf.mxu0
  %v969 = vadd.f32 %v150, %v968
  %v970 = vpop.f32.mrf.mxu0
  %v971 = vadd.f32 %v155, %v970
  %v972 = vpop.f32.mrf.mxu0
  %v973 = vadd.f32 %v155, %v972
  %974 = vdwg.mxu0
  %975 = vmatprep.subr.bf16.mxu0 %v668
  %976 = vmatpush1.bf16.msra.mxu0 %v667
  %977 = vmatprep.subr.bf16.mxu0 %v652
  %978 = vmatpush1.bf16.msra.mxu0 %v651
  %979 = vmatprep.subr.bf16.mxu0 %v636
  %980 = vmatpush1.bf16.msra.mxu0 %v635
  %981 = vmatprep.subr.bf16.mxu0 %v620
  %982 = vmatpush1.bf16.msra.mxu0 %v619
  %983 = vmatprep.subr.bf16.mxu0 %v604
  %984 = vmatpush1.bf16.msra.mxu0 %v603
  %985 = vmatprep.subr.bf16.mxu0 %v588
  %986 = vmatpush1.bf16.msra.mxu0 %v587
  %987 = vmatprep.subr.bf16.mxu0 %v572
  %988 = vmatpush1.bf16.msra.mxu0 %v571
  %989 = vmatprep.subr.bf16.mxu0 %v556
  %990 = vmatpush1.bf16.msra.mxu0 %v555
  %991 = vmatprep.subr.bf16.mxu0 0
  %992 = vmatpush2.bf16.msra.mxu0 0
  %993 = vmatprep.subr.bf16.mxu0 0
  %994 = vmatpush2.bf16.msra.mxu0 0
  %995 = vmatprep.subr.bf16.mxu0 0
  %996 = vmatpush2.bf16.msra.mxu0 0
  %997 = vmatprep.subr.bf16.mxu0 0
  %998 = vmatpush2.bf16.msra.mxu0 0
  %999 = vmatprep.subr.bf16.mxu0 0
  %1000 = vmatpush2.bf16.msra.mxu0 0
  %1001 = vmatprep.subr.bf16.mxu0 0
  %1002 = vmatpush2.bf16.msra.mxu0 0
  %1003 = vmatprep.subr.bf16.mxu0 0
  %1004 = vmatpush2.bf16.msra.mxu0 0
  %1005 = vmatprep.subr.bf16.mxu0 0
  %1006 = vmatpush2.bf16.msra.mxu0 0
  %1007 = vmatprep.mubr.bf16.mxu0 0
  %1008 = vmatmul.mubr.bf16.gmra.mxu0 %v161
  %v1009 = vpop.f32.mrf.mxu0
  %v1010 = vadd.f32 %v150, %v1009
  %v1011 = vpop.f32.mrf.mxu0
  %v1012 = vadd.f32 %v150, %v1011
  %v1013 = vpop.f32.mrf.mxu0
  %v1014 = vadd.f32 %v155, %v1013
  %v1015 = vpop.f32.mrf.mxu0
  %v1016 = vadd.f32 %v155, %v1015
  %1017 = vdwg.mxu0
  %1018 = vmatprep.subr.bf16.mxu0 %v670
  %1019 = vmatpush1.bf16.msra.mxu0 %v669
  %1020 = vmatprep.subr.bf16.mxu0 %v654
  %1021 = vmatpush1.bf16.msra.mxu0 %v653
  %1022 = vmatprep.subr.bf16.mxu0 %v638
  %1023 = vmatpush1.bf16.msra.mxu0 %v637
  %1024 = vmatprep.subr.bf16.mxu0 %v622
  %1025 = vmatpush1.bf16.msra.mxu0 %v621
  %1026 = vmatprep.subr.bf16.mxu0 %v606
  %1027 = vmatpush1.bf16.msra.mxu0 %v605
  %1028 = vmatprep.subr.bf16.mxu0 %v590
  %1029 = vmatpush1.bf16.msra.mxu0 %v589
  %1030 = vmatprep.subr.bf16.mxu0 %v574
  %1031 = vmatpush1.bf16.msra.mxu0 %v573
  %1032 = vmatprep.subr.bf16.mxu0 %v558
  %1033 = vmatpush1.bf16.msra.mxu0 %v557
  %1034 = vmatprep.subr.bf16.mxu0 0
  %1035 = vmatpush2.bf16.msra.mxu0 0
  %1036 = vmatprep.subr.bf16.mxu0 0
  %1037 = vmatpush2.bf16.msra.mxu0 0
  %1038 = vmatprep.subr.bf16.mxu0 0
  %1039 = vmatpush2.bf16.msra.mxu0 0
  %1040 = vmatprep.subr.bf16.mxu0 0
  %1041 = vmatpush2.bf16.msra.mxu0 0
  %1042 = vmatprep.subr.bf16.mxu0 0
  %1043 = vmatpush2.bf16.msra.mxu0 0
  %1044 = vmatprep.subr.bf16.mxu0 0
  %1045 = vmatpush2.bf16.msra.mxu0 0
  %1046 = vmatprep.subr.bf16.mxu0 0
  %1047 = vmatpush2.bf16.msra.mxu0 0
  %1048 = vmatprep.subr.bf16.mxu0 0
  %1049 = vmatpush2.bf16.msra.mxu0 0
  %1050 = vmatprep.mubr.bf16.mxu0 0
  %1051 = vmatmul.mubr.bf16.gmra.mxu0 %v161
  %v1052 = vpop.f32.mrf.mxu0
  %v1053 = vadd.f32 %v150, %v1052
  %v1054 = vpop.f32.mrf.mxu0
  %v1055 = vadd.f32 %v150, %v1054
  %v1056 = vpop.f32.mrf.mxu0
  %v1057 = vadd.f32 %v155, %v1056
  %v1058 = vpop.f32.mrf.mxu0
  %v1059 = vadd.f32 %v155, %v1058
  %1060 = vdwg.mxu0
  %1061 = vmatprep.subr.bf16.mxu0 %v672
  %1062 = vmatpush1.bf16.msra.mxu0 %v671
  %1063 = vmatprep.subr.bf16.mxu0 %v656
  %1064 = vmatpush1.bf16.msra.mxu0 %v655
  %1065 = vmatprep.subr.bf16.mxu0 %v640
  %1066 = vmatpush1.bf16.msra.mxu0 %v639
  %1067 = vmatprep.subr.bf16.mxu0 %v624
  %1068 = vmatpush1.bf16.msra.mxu0 %v623
  %1069 = vmatprep.subr.bf16.mxu0 %v608
  %1070 = vmatpush1.bf16.msra.mxu0 %v607
  %1071 = vmatprep.subr.bf16.mxu0 %v592
  %1072 = vmatpush1.bf16.msra.mxu0 %v591
  %1073 = vmatprep.subr.bf16.mxu0 %v576
  %1074 = vmatpush1.bf16.msra.mxu0 %v575
  %1075 = vmatprep.subr.bf16.mxu0 %v560
  %1076 = vmatpush1.bf16.msra.mxu0 %v559
  %1077 = vmatprep.subr.bf16.mxu0 0
  %1078 = vmatpush2.bf16.msra.mxu0 0
  %1079 = vmatprep.subr.bf16.mxu0 0
  %1080 = vmatpush2.bf16.msra.mxu0 0
  %1081 = vmatprep.subr.bf16.mxu0 0
  %1082 = vmatpush2.bf16.msra.mxu0 0
  %1083 = vmatprep.subr.bf16.mxu0 0
  %1084 = vmatpush2.bf16.msra.mxu0 0
  %1085 = vmatprep.subr.bf16.mxu0 0
  %1086 = vmatpush2.bf16.msra.mxu0 0
  %1087 = vmatprep.subr.bf16.mxu0 0
  %1088 = vmatpush2.bf16.msra.mxu0 0
  %1089 = vmatprep.subr.bf16.mxu0 0
  %1090 = vmatpush2.bf16.msra.mxu0 0
  %1091 = vmatprep.subr.bf16.mxu0 0
  %1092 = vmatpush2.bf16.msra.mxu0 0
  %1093 = vmatprep.mubr.bf16.mxu0 0
  %1094 = vmatmul.mubr.bf16.gmra.mxu0 %v161
  %v1095 = vpop.f32.mrf.mxu0
  %v1096 = vadd.f32 %v150, %v1095
  %v1097 = vpop.f32.mrf.mxu0
  %v1098 = vadd.f32 %v150, %v1097
  %v1099 = vpop.f32.mrf.mxu0
  %v1100 = vadd.f32 %v155, %v1099
  %v1101 = vpop.f32.mrf.mxu0
  %v1102 = vadd.f32 %v155, %v1101
  %1103 = vdwg.mxu0
  %1104 = vmatprep.subr.bf16.mxu0 %v674
  %1105 = vmatpush1.bf16.msra.mxu0 %v673
  %1106 = vmatprep.subr.bf16.mxu0 %v658
  %1107 = vmatpush1.bf16.msra.mxu0 %v657
  %1108 = vmatprep.subr.bf16.mxu0 %v642
  %1109 = vmatpush1.bf16.msra.mxu0 %v641
  %1110 = vmatprep.subr.bf16.mxu0 %v626
  %1111 = vmatpush1.bf16.msra.mxu0 %v625
  %1112 = vmatprep.subr.bf16.mxu0 %v610
  %1113 = vmatpush1.bf16.msra.mxu0 %v609
  %1114 = vmatprep.subr.bf16.mxu0 %v594
  %1115 = vmatpush1.bf16.msra.mxu0 %v593
  %1116 = vmatprep.subr.bf16.mxu0 %v578
  %1117 = vmatpush1.bf16.msra.mxu0 %v577
  %1118 = vmatprep.subr.bf16.mxu0 %v562
  %1119 = vmatpush1.bf16.msra.mxu0 %v561
  %1120 = vmatprep.subr.bf16.mxu0 0
  %1121 = vmatpush2.bf16.msra.mxu0 0
  %1122 = vmatprep.subr.bf16.mxu0 0
  %1123 = vmatpush2.bf16.msra.mxu0 0
  %1124 = vmatprep.subr.bf16.mxu0 0
  %1125 = vmatpush2.bf16.msra.mxu0 0
  %1126 = vmatprep.subr.bf16.mxu0 0
  %1127 = vmatpush2.bf16.msra.mxu0 0
  %1128 = vmatprep.subr.bf16.mxu0 0
  %1129 = vmatpush2.bf16.msra.mxu0 0
  %1130 = vmatprep.subr.bf16.mxu0 0
  %1131 = vmatpush2.bf16.msra.mxu0 0
  %1132 = vmatprep.subr.bf16.mxu0 0
  %1133 = vmatpush2.bf16.msra.mxu0 0
  %1134 = vmatprep.subr.bf16.mxu0 0
  %1135 = vmatpush2.bf16.msra.mxu0 0
  %1136 = vmatprep.mubr.bf16.mxu0 0
  %1137 = vmatmul.mubr.bf16.gmra.mxu0 %v161
  %v1138 = vpop.f32.mrf.mxu0
  %v1139 = vadd.f32 %v150, %v1138
  %v1140 = vpop.f32.mrf.mxu0
  %v1141 = vadd.f32 %v150, %v1140
  %v1142 = vpop.f32.mrf.mxu0
  %v1143 = vadd.f32 %v155, %v1142
  %v1144 = vpop.f32.mrf.mxu0
  %v1145 = vadd.f32 %v155, %v1144
  %1146 = vdwg.mxu0
  %v1147 = vmax.f32 %v838, 0.0
  %v1148 = vmax.f32 %v840, 0.0
  %v1149 = vmax.f32 %v881, 0.0
  %v1150 = vmax.f32 %v883, 0.0
  %v1151 = vmax.f32 %v924, 0.0
  %v1152 = vmax.f32 %v926, 0.0
  %v1153 = vmax.f32 %v967, 0.0
  %v1154 = vmax.f32 %v969, 0.0
  %v1155 = vmax.f32 %v1010, 0.0
  %v1156 = vmax.f32 %v1012, 0.0
  %v1157 = vmax.f32 %v1053, 0.0
  %v1158 = vmax.f32 %v1055, 0.0
  %v1159 = vmax.f32 %v1096, 0.0
  %v1160 = vmax.f32 %v1098, 0.0
  %v1161 = vmax.f32 %v1139, 0.0
  %v1162 = vmax.f32 %v1141, 0.0
  %v1163 = vmax.f32 %v842, 0.0
  %v1164 = vmax.f32 %v844, 0.0
  %v1165 = vmax.f32 %v885, 0.0
  %v1166 = vmax.f32 %v887, 0.0
  %v1167 = vmax.f32 %v928, 0.0
  %v1168 = vmax.f32 %v930, 0.0
  %v1169 = vmax.f32 %v971, 0.0
  %v1170 = vmax.f32 %v973, 0.0
  %v1171 = vmax.f32 %v1014, 0.0
  %v1172 = vmax.f32 %v1016, 0.0
  %v1173 = vmax.f32 %v1057, 0.0
  %v1174 = vmax.f32 %v1059, 0.0
  %v1175 = vmax.f32 %v1100, 0.0
  %v1176 = vmax.f32 %v1102, 0.0
  %v1177 = vmax.f32 %v1143, 0.0
  %v1178 = vmax.f32 %v1145, 0.0
  %v1179 = vpack.c.bf16 %v1163, %v1147
  %v1180 = vpack.c.bf16 %v1164, %v1148
  %v1181 = vpack.c.bf16 %v1165, %v1149
  %v1182 = vpack.c.bf16 %v1166, %v1150
  %v1183 = vpack.c.bf16 %v1167, %v1151
  %v1184 = vpack.c.bf16 %v1168, %v1152
  %v1185 = vpack.c.bf16 %v1169, %v1153
  %v1186 = vpack.c.bf16 %v1170, %v1154
  %v1187 = vpack.c.bf16 %v1171, %v1155
  %v1188 = vpack.c.bf16 %v1172, %v1156
  %v1189 = vpack.c.bf16 %v1173, %v1157
  %v1190 = vpack.c.bf16 %v1174, %v1158
  %v1191 = vpack.c.bf16 %v1175, %v1159
  %v1192 = vpack.c.bf16 %v1176, %v1160
  %v1193 = vpack.c.bf16 %v1177, %v1161
  %v1194 = vpack.c.bf16 %v1178, %v1162
  %v1211 = vunpack.c.l.b16 %v1179
  %v1212 = vunpack.c.l.b16 %v1180
  %v1213 = vunpack.c.l.b16 %v1181
  %v1214 = vunpack.c.l.b16 %v1182
  %v1215 = vunpack.c.l.b16 %v1183
  %v1216 = vunpack.c.l.b16 %v1184
  %v1217 = vunpack.c.l.b16 %v1185
  %v1218 = vunpack.c.l.b16 %v1186
  %v1219 = vunpack.c.l.b16 %v1187
  %v1220 = vunpack.c.l.b16 %v1188
  %v1221 = vunpack.c.l.b16 %v1189
  %v1222 = vunpack.c.l.b16 %v1190
  %v1223 = vunpack.c.l.b16 %v1191
  %v1224 = vunpack.c.l.b16 %v1192
  %v1225 = vunpack.c.l.b16 %v1193
  %v1226 = vunpack.c.l.b16 %v1194
  %v1227 = vunpack.c.h.b16 %v1179
  %v1228 = vunpack.c.h.b16 %v1180
  %v1229 = vunpack.c.h.b16 %v1181
  %v1230 = vunpack.c.h.b16 %v1182
  %v1231 = vunpack.c.h.b16 %v1183
  %v1232 = vunpack.c.h.b16 %v1184
  %v1233 = vunpack.c.h.b16 %v1185
  %v1234 = vunpack.c.h.b16 %v1186
  %v1235 = vunpack.c.h.b16 %v1187
  %v1236 = vunpack.c.h.b16 %v1188
  %v1237 = vunpack.c.h.b16 %v1189
  %v1238 = vunpack.c.h.b16 %v1190
  %v1239 = vunpack.c.h.b16 %v1191
  %v1240 = vunpack.c.h.b16 %v1192
  %v1241 = vunpack.c.h.b16 %v1193
  %v1242 = vunpack.c.h.b16 %v1194
  %v1243 = vpack.c.b16 %v1212, %v1211
  %v1244 = vpack.c.b16 %v1214, %v1213
  %v1245 = vpack.c.b16 %v1216, %v1215
  %v1246 = vpack.c.b16 %v1218, %v1217
  %v1247 = vpack.c.b16 %v1220, %v1219
  %v1248 = vpack.c.b16 %v1222, %v1221
  %v1249 = vpack.c.b16 %v1224, %v1223
  %v1250 = vpack.c.b16 %v1226, %v1225
  %v1251 = vpack.c.b16 %v1228, %v1227
  %v1252 = vpack.c.b16 %v1230, %v1229
  %v1253 = vpack.c.b16 %v1232, %v1231
  %v1254 = vpack.c.b16 %v1234, %v1233
  %v1255 = vpack.c.b16 %v1236, %v1235
  %v1256 = vpack.c.b16 %v1238, %v1237
  %v1257 = vpack.c.b16 %v1240, %v1239
  %v1258 = vpack.c.b16 %v1242, %v1241
  %1275 = vst [vmem:[%s3] sm:$0xff] %v1243
  %1276 = vst [vmem:[%s3 + $0x8] sm:$0xff] %v1244
  %1277 = vst [vmem:[%s3 + $0x10] sm:$0xff] %v1245
  %1278 = vst [vmem:[%s3 + $0x18] sm:$0xff] %v1246
  %1279 = vst [vmem:[%s3 + $0x20] sm:$0xff] %v1247
  %1280 = vst [vmem:[%s3 + $0x28] sm:$0xff] %v1248
  %1281 = vst [vmem:[%s3 + $0x30] sm:$0xff] %v1249
  %1282 = vst [vmem:[%s3 + $0x38] sm:$0xff] %v1250
  %1283 = vst [vmem:[%s3 + $0x40] sm:$0xff] %v1251
  %1284 = vst [vmem:[%s3 + $0x48] sm:$0xff] %v1252
  %1285 = vst [vmem:[%s3 + $0x50] sm:$0xff] %v1253
  %1286 = vst [vmem:[%s3 + $0x58] sm:$0xff] %v1254
  %1287 = vst [vmem:[%s3 + $0x60] sm:$0xff] %v1255
  %1288 = vst [vmem:[%s3 + $0x68] sm:$0xff] %v1256
  %1289 = vst [vmem:[%s3 + $0x70] sm:$0xff] %v1257
  %1290 = vst [vmem:[%s3 + $0x78] sm:$0xff] %v1258
  // Predicated region
  $region14: #{coarse_model_forward.3} parent=0 // pred_check
    _
  $region15: #{coarse_model_forward.3} parent=0 // pred_check_branch
    %1292 = sbr.rel (0) target = $region17
  $region16: #{coarse_model_forward.3} parent=0 // pred_region
    _
  $region17: #{coarse_model_forward.3} parent=0 // pred_fallthru
    _
  // Predicated region
  $region18: #{coarse_model_forward.3} parent=0 // pred_check
    _
  $region19: #{coarse_model_forward.3} parent=0 // pred_check_branch
    %1294 = sbr.rel (0) target = $region21
  $region20: #{coarse_model_forward.3} parent=0 // pred_region
    _
  $region21: #{coarse_model_forward.3} parent=0 // pred_fallthru
    _

// kernel: coarse_model_forward.4
$region0: #{coarse_model_forward.4}
  #allocation0 [shape = 'u32[]', space=smem, size = 0x4, offset = 0x4, fixed_abs, tag = 'smem constant byte address 0x4 - core index']
  #allocation1 [shape = 'u32[144,128]{1,0:T(1,128)}', space=vmem, size = 0x12000, scoped, tag = 'internal scratch']
  %s0 = inlined_call_operand.vmem [shape: bf16[32,256], index: 0, kind: input, shape index: {}]
  %s1 = inlined_call_operand.vmem [shape: bf16[256,512], index: 1, kind: input, shape index: {}]
  %s2 = inlined_call_operand.vmem [shape: f32[32,1], index: 2, kind: input, shape index: {}]
  %s3 = inlined_call_operand.vmem [shape: bf16[32,512], index: 3, kind: output, shape index: {}]
  %s4 = sld [smem:[#allocation0]]
  $region22: #{coarse_model_forward.4} parent=0
    _
  %s6 = ssub.s32 1, %s4
  %s7 = scalar_select 0, %s6, %s4
  // Predicated region
  $region2: #{coarse_model_forward.4} parent=0 // pred_check
    _
  $region3: #{coarse_model_forward.4} parent=0 // pred_check_branch
    %9 = sbr.rel (0) target = $region5
  $region4: #{coarse_model_forward.4} parent=0 // pred_region
    _
  $region5: #{coarse_model_forward.4} parent=0 // pred_fallthru
    _
  // Predicated region
  $region6: #{coarse_model_forward.4} parent=0 // pred_check
    _
  $region7: #{coarse_model_forward.4} parent=0 // pred_check_branch
    %11 = sbr.rel (0) target = $region9
  $region8: #{coarse_model_forward.4} parent=0 // pred_region
    _
  $region9: #{coarse_model_forward.4} parent=0 // pred_fallthru
    _
  // Predicated region
  $region10: #{coarse_model_forward.4} parent=0 // pred_check
    _
  $region11: #{coarse_model_forward.4} parent=0 // pred_check_branch
    %13 = sbr.rel (0) target = $region13
  $region12: #{coarse_model_forward.4} parent=0 // pred_region
    _
  $region13: #{coarse_model_forward.4} parent=0 // pred_fallthru
    _
  %v14 = vld [vmem:[%s0] sm:$0xff]
  %v15 = vld [vmem:[%s0 + $0x8] sm:$0xff]
  %v16 = vld [vmem:[%s0 + $0x10] sm:$0xff]
  %v17 = vld [vmem:[%s0 + $0x18] sm:$0xff]
  %v18 = vld [vmem:[%s1] sm:$0xff]
  %v19 = vld [vmem:[%s1 + $0x8] sm:$0xff]
  %v20 = vld [vmem:[%s1 + $0x10] sm:$0xff]
  %v21 = vld [vmem:[%s1 + $0x18] sm:$0xff]
  %v22 = vld [vmem:[%s1 + $0x20] sm:$0xff]
  %v23 = vld [vmem:[%s1 + $0x28] sm:$0xff]
  %v24 = vld [vmem:[%s1 + $0x30] sm:$0xff]
  %v25 = vld [vmem:[%s1 + $0x38] sm:$0xff]
  %v26 = vld [vmem:[%s1 + $0x40] sm:$0xff]
  %v27 = vld [vmem:[%s1 + $0x48] sm:$0xff]
  %v28 = vld [vmem:[%s1 + $0x50] sm:$0xff]
  %v29 = vld [vmem:[%s1 + $0x58] sm:$0xff]
  %v30 = vld [vmem:[%s1 + $0x60] sm:$0xff]
  %v31 = vld [vmem:[%s1 + $0x68] sm:$0xff]
  %v32 = vld [vmem:[%s1 + $0x70] sm:$0xff]
  %v33 = vld [vmem:[%s1 + $0x78] sm:$0xff]
  %v34 = vld [vmem:[%s1 + $0x80] sm:$0xff]
  %v35 = vld [vmem:[%s1 + $0x88] sm:$0xff]
  %v36 = vld [vmem:[%s1 + $0x90] sm:$0xff]
  %v37 = vld [vmem:[%s1 + $0x98] sm:$0xff]
  %v38 = vld [vmem:[%s1 + $0xa0] sm:$0xff]
  %v39 = vld [vmem:[%s1 + $0xa8] sm:$0xff]
  %v40 = vld [vmem:[%s1 + $0xb0] sm:$0xff]
  %v41 = vld [vmem:[%s1 + $0xb8] sm:$0xff]
  %v42 = vld [vmem:[%s1 + $0xc0] sm:$0xff]
  %v43 = vld [vmem:[%s1 + $0xc8] sm:$0xff]
  %v44 = vld [vmem:[%s1 + $0xd0] sm:$0xff]
  %v45 = vld [vmem:[%s1 + $0xd8] sm:$0xff]
  %v46 = vld [vmem:[%s1 + $0xe0] sm:$0xff]
  %v47 = vld [vmem:[%s1 + $0xe8] sm:$0xff]
  %v48 = vld [vmem:[%s1 + $0xf0] sm:$0xff]
  %v49 = vld [vmem:[%s1 + $0xf8] sm:$0xff]
  %v50 = vld [vmem:[%s1 + $0x100] sm:$0xff]
  %v51 = vld [vmem:[%s1 + $0x108] sm:$0xff]
  %v52 = vld [vmem:[%s1 + $0x110] sm:$0xff]
  %v53 = vld [vmem:[%s1 + $0x118] sm:$0xff]
  %v54 = vld [vmem:[%s1 + $0x120] sm:$0xff]
  %v55 = vld [vmem:[%s1 + $0x128] sm:$0xff]
  %v56 = vld [vmem:[%s1 + $0x130] sm:$0xff]
  %v57 = vld [vmem:[%s1 + $0x138] sm:$0xff]
  %v58 = vld [vmem:[%s1 + $0x140] sm:$0xff]
  %v59 = vld [vmem:[%s1 + $0x148] sm:$0xff]
  %v60 = vld [vmem:[%s1 + $0x150] sm:$0xff]
  %v61 = vld [vmem:[%s1 + $0x158] sm:$0xff]
  %v62 = vld [vmem:[%s1 + $0x160] sm:$0xff]
  %v63 = vld [vmem:[%s1 + $0x168] sm:$0xff]
  %v64 = vld [vmem:[%s1 + $0x170] sm:$0xff]
  %v65 = vld [vmem:[%s1 + $0x178] sm:$0xff]
  %v66 = vld [vmem:[%s1 + $0x180] sm:$0xff]
  %v67 = vld [vmem:[%s1 + $0x188] sm:$0xff]
  %v68 = vld [vmem:[%s1 + $0x190] sm:$0xff]
  %v69 = vld [vmem:[%s1 + $0x198] sm:$0xff]
  %v70 = vld [vmem:[%s1 + $0x1a0] sm:$0xff]
  %v71 = vld [vmem:[%s1 + $0x1a8] sm:$0xff]
  %v72 = vld [vmem:[%s1 + $0x1b0] sm:$0xff]
  %v73 = vld [vmem:[%s1 + $0x1b8] sm:$0xff]
  %v74 = vld [vmem:[%s1 + $0x1c0] sm:$0xff]
  %v75 = vld [vmem:[%s1 + $0x1c8] sm:$0xff]
  %v76 = vld [vmem:[%s1 + $0x1d0] sm:$0xff]
  %v77 = vld [vmem:[%s1 + $0x1d8] sm:$0xff]
  %v78 = vld [vmem:[%s1 + $0x1e0] sm:$0xff]
  %v79 = vld [vmem:[%s1 + $0x1e8] sm:$0xff]
  %v80 = vld [vmem:[%s1 + $0x1f0] sm:$0xff]
  %v81 = vld [vmem:[%s1 + $0x1f8] sm:$0xff]
  %v82 = vld [vmem:[%s2] sm:$0xff]
  %v83 = vld [vmem:[%s2 + $0x8] sm:$0xff]
  %v84 = vld [vmem:[%s2 + $0x10] sm:$0xff]
  %v85 = vld [vmem:[%s2 + $0x18] sm:$0xff]
  %87 = vset.pattern.permute.xlu0 0
  %88 = vperm.xlu0 %87, %v82
  %v89 = vpop.permute.xlu0 %88
  %92 = vset.pattern.permute.xlu0 0
  %93 = vperm.xlu0 %92, %v83
  %v94 = vpop.permute.xlu0 %93
  %97 = vset.pattern.permute.xlu0 0
  %98 = vperm.xlu0 %97, %v84
  %v99 = vpop.permute.xlu0 %98
  %102 = vset.pattern.permute.xlu0 0
  %103 = vperm.xlu0 %102, %v85
  %v104 = vpop.permute.xlu0 %103
  %v110 = vunpack.c.l.b16 %v14
  %v111 = vunpack.c.h.b16 %v14
  %v112 = vunpack.c.l.b16 %v15
  %v113 = vunpack.c.h.b16 %v15
  %v114 = vunpack.c.l.b16 %v16
  %v115 = vunpack.c.h.b16 %v16
  %v116 = vunpack.c.l.b16 %v17
  %v117 = vunpack.c.h.b16 %v17
  %v118 = vpack.c.b16 %v112, %v110
  %v119 = vpack.c.b16 %v113, %v111
  %v120 = vpack.c.b16 %v116, %v114
  %v121 = vpack.c.b16 %v117, %v115
  %v190 = vunpack.c.l.b16 %v18
  %v191 = vunpack.c.h.b16 %v18
  %v192 = vunpack.c.l.b16 %v19
  %v193 = vunpack.c.h.b16 %v19
  %v194 = vunpack.c.l.b16 %v20
  %v195 = vunpack.c.h.b16 %v20
  %v196 = vunpack.c.l.b16 %v21
  %v197 = vunpack.c.h.b16 %v21
  %v198 = vunpack.c.l.b16 %v22
  %v199 = vunpack.c.h.b16 %v22
  %v200 = vunpack.c.l.b16 %v23
  %v201 = vunpack.c.h.b16 %v23
  %v202 = vunpack.c.l.b16 %v24
  %v203 = vunpack.c.h.b16 %v24
  %v204 = vunpack.c.l.b16 %v25
  %v205 = vunpack.c.h.b16 %v25
  %v206 = vunpack.c.l.b16 %v26
  %v207 = vunpack.c.h.b16 %v26
  %v208 = vunpack.c.l.b16 %v27
  %v209 = vunpack.c.h.b16 %v27
  %v210 = vunpack.c.l.b16 %v28
  %v211 = vunpack.c.h.b16 %v28
  %v212 = vunpack.c.l.b16 %v29
  %v213 = vunpack.c.h.b16 %v29
  %v214 = vunpack.c.l.b16 %v30
  %v215 = vunpack.c.h.b16 %v30
  %v216 = vunpack.c.l.b16 %v31
  %v217 = vunpack.c.h.b16 %v31
  %v218 = vunpack.c.l.b16 %v32
  %v219 = vunpack.c.h.b16 %v32
  %v220 = vunpack.c.l.b16 %v33
  %v221 = vunpack.c.h.b16 %v33
  %v222 = vunpack.c.l.b16 %v34
  %v223 = vunpack.c.h.b16 %v34
  %v224 = vunpack.c.l.b16 %v35
  %v225 = vunpack.c.h.b16 %v35
  %v226 = vunpack.c.l.b16 %v36
  %v227 = vunpack.c.h.b16 %v36
  %v228 = vunpack.c.l.b16 %v37
  %v229 = vunpack.c.h.b16 %v37
  %v230 = vunpack.c.l.b16 %v38
  %v231 = vunpack.c.h.b16 %v38
  %v232 = vunpack.c.l.b16 %v39
  %v233 = vunpack.c.h.b16 %v39
  %v234 = vunpack.c.l.b16 %v40
  %v235 = vunpack.c.h.b16 %v40
  %v236 = vunpack.c.l.b16 %v41
  %v237 = vunpack.c.h.b16 %v41
  %v238 = vunpack.c.l.b16 %v42
  %v239 = vunpack.c.h.b16 %v42
  %v240 = vunpack.c.l.b16 %v43
  %v241 = vunpack.c.h.b16 %v43
  %v242 = vunpack.c.l.b16 %v44
  %v243 = vunpack.c.h.b16 %v44
  %v244 = vunpack.c.l.b16 %v45
  %v245 = vunpack.c.h.b16 %v45
  %v246 = vunpack.c.l.b16 %v46
  %v247 = vunpack.c.h.b16 %v46
  %v248 = vunpack.c.l.b16 %v47
  %v249 = vunpack.c.h.b16 %v47
  %v250 = vunpack.c.l.b16 %v48
  %v251 = vunpack.c.h.b16 %v48
  %v252 = vunpack.c.l.b16 %v49
  %v253 = vunpack.c.h.b16 %v49
  %v254 = vunpack.c.l.b16 %v50
  %v255 = vunpack.c.h.b16 %v50
  %v256 = vunpack.c.l.b16 %v51
  %v257 = vunpack.c.h.b16 %v51
  %v258 = vunpack.c.l.b16 %v52
  %v259 = vunpack.c.h.b16 %v52
  %v260 = vunpack.c.l.b16 %v53
  %v261 = vunpack.c.h.b16 %v53
  %v262 = vunpack.c.l.b16 %v54
  %v263 = vunpack.c.h.b16 %v54
  %v264 = vunpack.c.l.b16 %v55
  %v265 = vunpack.c.h.b16 %v55
  %v266 = vunpack.c.l.b16 %v56
  %v267 = vunpack.c.h.b16 %v56
  %v268 = vunpack.c.l.b16 %v57
  %v269 = vunpack.c.h.b16 %v57
  %v270 = vunpack.c.l.b16 %v58
  %v271 = vunpack.c.h.b16 %v58
  %v272 = vunpack.c.l.b16 %v59
  %v273 = vunpack.c.h.b16 %v59
  %v274 = vunpack.c.l.b16 %v60
  %v275 = vunpack.c.h.b16 %v60
  %v276 = vunpack.c.l.b16 %v61
  %v277 = vunpack.c.h.b16 %v61
  %v278 = vunpack.c.l.b16 %v62
  %v279 = vunpack.c.h.b16 %v62
  %v280 = vunpack.c.l.b16 %v63
  %v281 = vunpack.c.h.b16 %v63
  %v282 = vunpack.c.l.b16 %v64
  %v283 = vunpack.c.h.b16 %v64
  %v284 = vunpack.c.l.b16 %v65
  %v285 = vunpack.c.h.b16 %v65
  %v286 = vunpack.c.l.b16 %v66
  %v287 = vunpack.c.h.b16 %v66
  %v288 = vunpack.c.l.b16 %v67
  %v289 = vunpack.c.h.b16 %v67
  %v290 = vunpack.c.l.b16 %v68
  %v291 = vunpack.c.h.b16 %v68
  %v292 = vunpack.c.l.b16 %v69
  %v293 = vunpack.c.h.b16 %v69
  %v294 = vunpack.c.l.b16 %v70
  %v295 = vunpack.c.h.b16 %v70
  %v296 = vunpack.c.l.b16 %v71
  %v297 = vunpack.c.h.b16 %v71
  %v298 = vunpack.c.l.b16 %v72
  %v299 = vunpack.c.h.b16 %v72
  %v300 = vunpack.c.l.b16 %v73
  %v301 = vunpack.c.h.b16 %v73
  %v302 = vunpack.c.l.b16 %v74
  %v303 = vunpack.c.h.b16 %v74
  %v304 = vunpack.c.l.b16 %v75
  %v305 = vunpack.c.h.b16 %v75
  %v306 = vunpack.c.l.b16 %v76
  %v307 = vunpack.c.h.b16 %v76
  %v308 = vunpack.c.l.b16 %v77
  %v309 = vunpack.c.h.b16 %v77
  %v310 = vunpack.c.l.b16 %v78
  %v311 = vunpack.c.h.b16 %v78
  %v312 = vunpack.c.l.b16 %v79
  %v313 = vunpack.c.h.b16 %v79
  %v314 = vunpack.c.l.b16 %v80
  %v315 = vunpack.c.h.b16 %v80
  %v316 = vunpack.c.l.b16 %v81
  %v317 = vunpack.c.h.b16 %v81
  %v318 = vpack.c.b16 %v194, %v190
  %v319 = vpack.c.b16 %v195, %v191
  %v320 = vpack.c.b16 %v196, %v192
  %v321 = vpack.c.b16 %v197, %v193
  %v322 = vpack.c.b16 %v202, %v198
  %v323 = vpack.c.b16 %v203, %v199
  %v324 = vpack.c.b16 %v204, %v200
  %v325 = vpack.c.b16 %v205, %v201
  %v326 = vpack.c.b16 %v210, %v206
  %v327 = vpack.c.b16 %v211, %v207
  %v328 = vpack.c.b16 %v212, %v208
  %v329 = vpack.c.b16 %v213, %v209
  %v330 = vpack.c.b16 %v218, %v214
  %v331 = vpack.c.b16 %v219, %v215
  %v332 = vpack.c.b16 %v220, %v216
  %v333 = vpack.c.b16 %v221, %v217
  %v334 = vpack.c.b16 %v226, %v222
  %v335 = vpack.c.b16 %v227, %v223
  %v336 = vpack.c.b16 %v228, %v224
  %v337 = vpack.c.b16 %v229, %v225
  %v338 = vpack.c.b16 %v234, %v230
  %v339 = vpack.c.b16 %v235, %v231
  %v340 = vpack.c.b16 %v236, %v232
  %v341 = vpack.c.b16 %v237, %v233
  %v342 = vpack.c.b16 %v242, %v238
  %v343 = vpack.c.b16 %v243, %v239
  %v344 = vpack.c.b16 %v244, %v240
  %v345 = vpack.c.b16 %v245, %v241
  %v346 = vpack.c.b16 %v250, %v246
  %v347 = vpack.c.b16 %v251, %v247
  %v348 = vpack.c.b16 %v252, %v248
  %v349 = vpack.c.b16 %v253, %v249
  %v350 = vpack.c.b16 %v258, %v254
  %v351 = vpack.c.b16 %v259, %v255
  %v352 = vpack.c.b16 %v260, %v256
  %v353 = vpack.c.b16 %v261, %v257
  %v354 = vpack.c.b16 %v266, %v262
  %v355 = vpack.c.b16 %v267, %v263
  %v356 = vpack.c.b16 %v268, %v264
  %v357 = vpack.c.b16 %v269, %v265
  %v358 = vpack.c.b16 %v274, %v270
  %v359 = vpack.c.b16 %v275, %v271
  %v360 = vpack.c.b16 %v276, %v272
  %v361 = vpack.c.b16 %v277, %v273
  %v362 = vpack.c.b16 %v282, %v278
  %v363 = vpack.c.b16 %v283, %v279
  %v364 = vpack.c.b16 %v284, %v280
  %v365 = vpack.c.b16 %v285, %v281
  %v366 = vpack.c.b16 %v290, %v286
  %v367 = vpack.c.b16 %v291, %v287
  %v368 = vpack.c.b16 %v292, %v288
  %v369 = vpack.c.b16 %v293, %v289
  %v370 = vpack.c.b16 %v298, %v294
  %v371 = vpack.c.b16 %v299, %v295
  %v372 = vpack.c.b16 %v300, %v296
  %v373 = vpack.c.b16 %v301, %v297
  %v374 = vpack.c.b16 %v306, %v302
  %v375 = vpack.c.b16 %v307, %v303
  %v376 = vpack.c.b16 %v308, %v304
  %v377 = vpack.c.b16 %v309, %v305
  %v378 = vpack.c.b16 %v314, %v310
  %v379 = vpack.c.b16 %v315, %v311
  %v380 = vpack.c.b16 %v316, %v312
  %v381 = vpack.c.b16 %v317, %v313
  %446 = vmatprep.subr.bf16.mxu0 %v347
  %447 = vmatpush1.bf16.msra.mxu0 %v346
  %448 = vmatprep.subr.bf16.mxu0 %v343
  %449 = vmatpush1.bf16.msra.mxu0 %v342
  %450 = vmatprep.subr.bf16.mxu0 %v339
  %451 = vmatpush1.bf16.msra.mxu0 %v338
  %452 = vmatprep.subr.bf16.mxu0 %v335
  %453 = vmatpush1.bf16.msra.mxu0 %v334
  %454 = vmatprep.subr.bf16.mxu0 %v331
  %455 = vmatpush1.bf16.msra.mxu0 %v330
  %456 = vmatprep.subr.bf16.mxu0 %v327
  %457 = vmatpush1.bf16.msra.mxu0 %v326
  %458 = vmatprep.subr.bf16.mxu0 %v323
  %459 = vmatpush1.bf16.msra.mxu0 %v322
  %460 = vmatprep.subr.bf16.mxu0 %v319
  %461 = vmatpush1.bf16.msra.mxu0 %v318
  %462 = vmatprep.subr.bf16.mxu0 %v379
  %463 = vmatpush2.bf16.msra.mxu0 %v378
  %464 = vmatprep.subr.bf16.mxu0 %v375
  %465 = vmatpush2.bf16.msra.mxu0 %v374
  %466 = vmatprep.subr.bf16.mxu0 %v371
  %467 = vmatpush2.bf16.msra.mxu0 %v370
  %468 = vmatprep.subr.bf16.mxu0 %v367
  %469 = vmatpush2.bf16.msra.mxu0 %v366
  %470 = vmatprep.subr.bf16.mxu0 %v363
  %471 = vmatpush2.bf16.msra.mxu0 %v362
  %472 = vmatprep.subr.bf16.mxu0 %v359
  %473 = vmatpush2.bf16.msra.mxu0 %v358
  %474 = vmatprep.subr.bf16.mxu0 %v355
  %475 = vmatpush2.bf16.msra.mxu0 %v354
  %476 = vmatprep.subr.bf16.mxu0 %v351
  %477 = vmatpush2.bf16.msra.mxu0 %v350
  %478 = vmatprep.mubr.bf16.mxu0 %v119
  %479 = vmatmul.mubr.bf16.gmra.mxu0 %v118
  %v480 = vpop.f32.mrf.mxu0
  %v481 = vadd.f32 %v89, %v480
  %v482 = vpop.f32.mrf.mxu0
  %v483 = vadd.f32 %v89, %v482
  %v484 = vpop.f32.mrf.mxu0
  %v485 = vadd.f32 %v94, %v484
  %v486 = vpop.f32.mrf.mxu0
  %v487 = vadd.f32 %v94, %v486
  %488 = vmatprep.mubr.bf16.mxu0 %v121
  %489 = vmatmul.mubr.bf16.gmra.mxu0 %v120
  %v490 = vpop.f32.mrf.mxu0
  %v491 = vadd.f32 %v99, %v490
  %v492 = vpop.f32.mrf.mxu0
  %v493 = vadd.f32 %v99, %v492
  %v494 = vpop.f32.mrf.mxu0
  %v495 = vadd.f32 %v104, %v494
  %v496 = vpop.f32.mrf.mxu0
  %v497 = vadd.f32 %v104, %v496
  %498 = vdwg.mxu0
  %499 = vmatprep.subr.bf16.mxu0 %v349
  %500 = vmatpush1.bf16.msra.mxu0 %v348
  %501 = vmatprep.subr.bf16.mxu0 %v345
  %502 = vmatpush1.bf16.msra.mxu0 %v344
  %503 = vmatprep.subr.bf16.mxu0 %v341
  %504 = vmatpush1.bf16.msra.mxu0 %v340
  %505 = vmatprep.subr.bf16.mxu0 %v337
  %506 = vmatpush1.bf16.msra.mxu0 %v336
  %507 = vmatprep.subr.bf16.mxu0 %v333
  %508 = vmatpush1.bf16.msra.mxu0 %v332
  %509 = vmatprep.subr.bf16.mxu0 %v329
  %510 = vmatpush1.bf16.msra.mxu0 %v328
  %511 = vmatprep.subr.bf16.mxu0 %v325
  %512 = vmatpush1.bf16.msra.mxu0 %v324
  %513 = vmatprep.subr.bf16.mxu0 %v321
  %514 = vmatpush1.bf16.msra.mxu0 %v320
  %515 = vmatprep.subr.bf16.mxu0 %v381
  %516 = vmatpush2.bf16.msra.mxu0 %v380
  %517 = vmatprep.subr.bf16.mxu0 %v377
  %518 = vmatpush2.bf16.msra.mxu0 %v376
  %519 = vmatprep.subr.bf16.mxu0 %v373
  %520 = vmatpush2.bf16.msra.mxu0 %v372
  %521 = vmatprep.subr.bf16.mxu0 %v369
  %522 = vmatpush2.bf16.msra.mxu0 %v368
  %523 = vmatprep.subr.bf16.mxu0 %v365
  %524 = vmatpush2.bf16.msra.mxu0 %v364
  %525 = vmatprep.subr.bf16.mxu0 %v361
  %526 = vmatpush2.bf16.msra.mxu0 %v360
  %527 = vmatprep.subr.bf16.mxu0 %v357
  %528 = vmatpush2.bf16.msra.mxu0 %v356
  %529 = vmatprep.subr.bf16.mxu0 %v353
  %530 = vmatpush2.bf16.msra.mxu0 %v352
  %531 = vmatprep.mubr.bf16.mxu0 %v119
  %532 = vmatmul.mubr.bf16.gmra.mxu0 %v118
  %v533 = vpop.f32.mrf.mxu0
  %v534 = vadd.f32 %v89, %v533
  %v535 = vpop.f32.mrf.mxu0
  %v536 = vadd.f32 %v89, %v535
  %v537 = vpop.f32.mrf.mxu0
  %v538 = vadd.f32 %v94, %v537
  %v539 = vpop.f32.mrf.mxu0
  %v540 = vadd.f32 %v94, %v539
  %541 = vmatprep.mubr.bf16.mxu0 %v121
  %542 = vmatmul.mubr.bf16.gmra.mxu0 %v120
  %v543 = vpop.f32.mrf.mxu0
  %v544 = vadd.f32 %v99, %v543
  %v545 = vpop.f32.mrf.mxu0
  %v546 = vadd.f32 %v99, %v545
  %v547 = vpop.f32.mrf.mxu0
  %v548 = vadd.f32 %v104, %v547
  %v549 = vpop.f32.mrf.mxu0
  %v550 = vadd.f32 %v104, %v549
  %551 = vdwg.mxu0
  %v552 = vmax.f32 %v481, 0.0
  %v553 = vmax.f32 %v483, 0.0
  %v554 = vmax.f32 %v534, 0.0
  %v555 = vmax.f32 %v536, 0.0
  %v556 = vmax.f32 %v485, 0.0
  %v557 = vmax.f32 %v487, 0.0
  %v558 = vmax.f32 %v538, 0.0
  %v559 = vmax.f32 %v540, 0.0
  %v560 = vmax.f32 %v491, 0.0
  %v561 = vmax.f32 %v493, 0.0
  %v562 = vmax.f32 %v544, 0.0
  %v563 = vmax.f32 %v546, 0.0
  %v564 = vmax.f32 %v495, 0.0
  %v565 = vmax.f32 %v497, 0.0
  %v566 = vmax.f32 %v548, 0.0
  %v567 = vmax.f32 %v550, 0.0
  %v568 = vpack.c.bf16 %v556, %v552
  %v569 = vpack.c.bf16 %v557, %v553
  %v570 = vpack.c.bf16 %v558, %v554
  %v571 = vpack.c.bf16 %v559, %v555
  %v572 = vpack.c.bf16 %v564, %v560
  %v573 = vpack.c.bf16 %v565, %v561
  %v574 = vpack.c.bf16 %v566, %v562
  %v575 = vpack.c.bf16 %v567, %v563
  %v584 = vunpack.c.l.b16 %v568
  %v585 = vunpack.c.l.b16 %v569
  %v586 = vunpack.c.l.b16 %v570
  %v587 = vunpack.c.l.b16 %v571
  %v588 = vunpack.c.h.b16 %v568
  %v589 = vunpack.c.h.b16 %v569
  %v590 = vunpack.c.h.b16 %v570
  %v591 = vunpack.c.h.b16 %v571
  %v592 = vunpack.c.l.b16 %v572
  %v593 = vunpack.c.l.b16 %v573
  %v594 = vunpack.c.l.b16 %v574
  %v595 = vunpack.c.l.b16 %v575
  %v596 = vunpack.c.h.b16 %v572
  %v597 = vunpack.c.h.b16 %v573
  %v598 = vunpack.c.h.b16 %v574
  %v599 = vunpack.c.h.b16 %v575
  %v600 = vpack.c.b16 %v585, %v584
  %v601 = vpack.c.b16 %v587, %v586
  %v602 = vpack.c.b16 %v589, %v588
  %v603 = vpack.c.b16 %v591, %v590
  %v604 = vpack.c.b16 %v593, %v592
  %v605 = vpack.c.b16 %v595, %v594
  %v606 = vpack.c.b16 %v597, %v596
  %v607 = vpack.c.b16 %v599, %v598
  %616 = vst [vmem:[%s3] sm:$0xff] %v600
  %617 = vst [vmem:[%s3 + $0x8] sm:$0xff] %v601
  %618 = vst [vmem:[%s3 + $0x10] sm:$0xff] %v602
  %619 = vst [vmem:[%s3 + $0x18] sm:$0xff] %v603
  %620 = vst [vmem:[%s3 + $0x20] sm:$0xff] %v604
  %621 = vst [vmem:[%s3 + $0x28] sm:$0xff] %v605
  %622 = vst [vmem:[%s3 + $0x30] sm:$0xff] %v606
  %623 = vst [vmem:[%s3 + $0x38] sm:$0xff] %v607
  // Predicated region
  $region14: #{coarse_model_forward.4} parent=0 // pred_check
    _
  $region15: #{coarse_model_forward.4} parent=0 // pred_check_branch
    %625 = sbr.rel (0) target = $region17
  $region16: #{coarse_model_forward.4} parent=0 // pred_region
    _
  $region17: #{coarse_model_forward.4} parent=0 // pred_fallthru
    _
  // Predicated region
  $region18: #{coarse_model_forward.4} parent=0 // pred_check
    _
  $region19: #{coarse_model_forward.4} parent=0 // pred_check_branch
    %627 = sbr.rel (0) target = $region21
  $region20: #{coarse_model_forward.4} parent=0 // pred_region
    _
  $region21: #{coarse_model_forward.4} parent=0 // pred_fallthru
    _

// kernel: coarse_model_forward.5
$region0: #{coarse_model_forward.5}
  #allocation0 [shape = 'u32[]', space=smem, size = 0x4, offset = 0x4, fixed_abs, tag = 'smem constant byte address 0x4 - core index']
  #allocation1 [shape = 'u32[144,128]{1,0:T(1,128)}', space=vmem, size = 0x12000, scoped, tag = 'internal scratch']
  %s0 = inlined_call_operand.vmem [shape: bf16[128,512], index: 0, kind: input, shape index: {}]
  %s1 = inlined_call_operand.vmem [shape: bf16[512,64], index: 1, kind: input, shape index: {}]
  %s2 = inlined_call_operand.vmem [shape: f32[1,64], index: 2, kind: input, shape index: {}]
  %s3 = inlined_call_operand.vmem [shape: bf16[512,128], index: 3, kind: input, shape index: {}]
  %s4 = inlined_call_operand.vmem [shape: bf16[1024,128], index: 4, kind: input, shape index: {}]
  %s5 = inlined_call_operand.vmem [shape: f32[1,128], index: 5, kind: input, shape index: {}]
  %s6 = inlined_call_operand.vmem [shape: bf16[128,32], index: 6, kind: input, shape index: {}]
  %s7 = inlined_call_operand.vmem [shape: bf16[2048,128], index: 7, kind: input, shape index: {}]
  %s8 = inlined_call_operand.vmem [shape: f32[1,128], index: 8, kind: input, shape index: {}]
  %s9 = inlined_call_operand.vmem [shape: bf16[128,256], index: 9, kind: input, shape index: {}]
  %s10 = inlined_call_operand.vmem [shape: f32[1,256], index: 10, kind: input, shape index: {}]
  %s11 = inlined_call_operand.vmem [shape: bf16[256,1536], index: 11, kind: input, shape index: {}]
  %s12 = inlined_call_operand.vmem [shape: f32[1,1536], index: 12, kind: input, shape index: {}]
  %s13 = inlined_call_operand.vmem [shape: f32[2,1536], index: 13, kind: output, shape index: {0}]
  %s14 = inlined_call_operand.vmem [shape: f32[2,1536], index: 14, kind: output, shape index: {1}]
  %15 = xla_tuple %s13, %s14
  %s16 = sld [smem:[#allocation0]]
  $region70: #{coarse_model_forward.5} parent=0
    _
  %s18 = ssub.s32 1, %s16
  %s19 = scalar_select 0, %s18, %s16
  // Predicated region
  $region2: #{coarse_model_forward.5} parent=0 // pred_check
    _
  $region3: #{coarse_model_forward.5} parent=0 // pred_check_branch
    %21 = sbr.rel (0) target = $region5
  $region4: #{coarse_model_forward.5} parent=0 // pred_region
    _
  $region5: #{coarse_model_forward.5} parent=0 // pred_fallthru
    _
  // Predicated region
  $region6: #{coarse_model_forward.5} parent=0 // pred_check
    _
  $region7: #{coarse_model_forward.5} parent=0 // pred_check_branch
    %23 = sbr.rel (0) target = $region9
  $region8: #{coarse_model_forward.5} parent=0 // pred_region
    _
  $region9: #{coarse_model_forward.5} parent=0 // pred_fallthru
    _
  // Predicated region
  $region10: #{coarse_model_forward.5} parent=0 // pred_check
    _
  $region11: #{coarse_model_forward.5} parent=0 // pred_check_branch
    %25 = sbr.rel (0) target = $region13
  $region12: #{coarse_model_forward.5} parent=0 // pred_region
    _
  $region13: #{coarse_model_forward.5} parent=0 // pred_fallthru
    _
  // Predicated region
  $region14: #{coarse_model_forward.5} parent=0 // pred_check
    _
  $region15: #{coarse_model_forward.5} parent=0 // pred_check_branch
    %27 = sbr.rel (0) target = $region17
  $region16: #{coarse_model_forward.5} parent=0 // pred_region
    _
  $region17: #{coarse_model_forward.5} parent=0 // pred_fallthru
    _
  // Predicated region
  $region18: #{coarse_model_forward.5} parent=0 // pred_check
    _
  $region19: #{coarse_model_forward.5} parent=0 // pred_check_branch
    %29 = sbr.rel (0) target = $region21
  $region20: #{coarse_model_forward.5} parent=0 // pred_region
    _
  $region21: #{coarse_model_forward.5} parent=0 // pred_fallthru
    _
  // Predicated region
  $region22: #{coarse_model_forward.5} parent=0 // pred_check
    _
  $region23: #{coarse_model_forward.5} parent=0 // pred_check_branch
    %31 = sbr.rel (0) target = $region25
  $region24: #{coarse_model_forward.5} parent=0 // pred_region
    _
  $region25: #{coarse_model_forward.5} parent=0 // pred_fallthru
    _
  // Predicated region
  $region26: #{coarse_model_forward.5} parent=0 // pred_check
    _
  $region27: #{coarse_model_forward.5} parent=0 // pred_check_branch
    %33 = sbr.rel (0) target = $region29
  $region28: #{coarse_model_forward.5} parent=0 // pred_region
    _
  $region29: #{coarse_model_forward.5} parent=0 // pred_fallthru
    _
  // Predicated region
  $region30: #{coarse_model_forward.5} parent=0 // pred_check
    _
  $region31: #{coarse_model_forward.5} parent=0 // pred_check_branch
    %35 = sbr.rel (0) target = $region33
  $region32: #{coarse_model_forward.5} parent=0 // pred_region
    _
  $region33: #{coarse_model_forward.5} parent=0 // pred_fallthru
    _
  // Predicated region
  $region34: #{coarse_model_forward.5} parent=0 // pred_check
    _
  $region35: #{coarse_model_forward.5} parent=0 // pred_check_branch
    %37 = sbr.rel (0) target = $region37
  $region36: #{coarse_model_forward.5} parent=0 // pred_region
    _
  $region37: #{coarse_model_forward.5} parent=0 // pred_fallthru
    _
  // Predicated region
  $region38: #{coarse_model_forward.5} parent=0 // pred_check
    _
  $region39: #{coarse_model_forward.5} parent=0 // pred_check_branch
    %39 = sbr.rel (0) target = $region41
  $region40: #{coarse_model_forward.5} parent=0 // pred_region
    _
  $region41: #{coarse_model_forward.5} parent=0 // pred_fallthru
    _
  // Predicated region
  $region42: #{coarse_model_forward.5} parent=0 // pred_check
    _
  $region43: #{coarse_model_forward.5} parent=0 // pred_check_branch
    %41 = sbr.rel (0) target = $region45
  $region44: #{coarse_model_forward.5} parent=0 // pred_region
    _
  $region45: #{coarse_model_forward.5} parent=0 // pred_fallthru
    _
  // Predicated region
  $region46: #{coarse_model_forward.5} parent=0 // pred_check
    _
  $region47: #{coarse_model_forward.5} parent=0 // pred_check_branch
    %43 = sbr.rel (0) target = $region49
  $region48: #{coarse_model_forward.5} parent=0 // pred_region
    _
  $region49: #{coarse_model_forward.5} parent=0 // pred_fallthru
    _
  // Predicated region
  $region50: #{coarse_model_forward.5} parent=0 // pred_check
    _
  $region51: #{coarse_model_forward.5} parent=0 // pred_check_branch
    %45 = sbr.rel (0) target = $region53
  $region52: #{coarse_model_forward.5} parent=0 // pred_region
    _
  $region53: #{coarse_model_forward.5} parent=0 // pred_fallthru
    _
  %v47 = vld [vmem:[%s0] sm:$0xff]
  %v48 = vld [vmem:[%s0 + $0x8] sm:$0xff]
  %v49 = vld [vmem:[%s0 + $0x10] sm:$0xff]
  %v50 = vld [vmem:[%s0 + $0x18] sm:$0xff]
  %v51 = vld [vmem:[%s0 + $0x20] sm:$0xff]
  %v52 = vld [vmem:[%s0 + $0x28] sm:$0xff]
  %v53 = vld [vmem:[%s0 + $0x30] sm:$0xff]
  %v54 = vld [vmem:[%s0 + $0x38] sm:$0xff]
  %v55 = vld [vmem:[%s0 + $0x40] sm:$0xff]
  %v56 = vld [vmem:[%s0 + $0x48] sm:$0xff]
  %v57 = vld [vmem:[%s0 + $0x50] sm:$0xff]
  %v58 = vld [vmem:[%s0 + $0x58] sm:$0xff]
  %v59 = vld [vmem:[%s0 + $0x60] sm:$0xff]
  %v60 = vld [vmem:[%s0 + $0x68] sm:$0xff]
  %v61 = vld [vmem:[%s0 + $0x70] sm:$0xff]
  %v62 = vld [vmem:[%s0 + $0x78] sm:$0xff]
  %v63 = vld [vmem:[%s0 + $0x80] sm:$0xff]
  %v64 = vld [vmem:[%s0 + $0x88] sm:$0xff]
  %v65 = vld [vmem:[%s0 + $0x90] sm:$0xff]
  %v66 = vld [vmem:[%s0 + $0x98] sm:$0xff]
  %v67 = vld [vmem:[%s0 + $0xa0] sm:$0xff]
  %v68 = vld [vmem:[%s0 + $0xa8] sm:$0xff]
  %v69 = vld [vmem:[%s0 + $0xb0] sm:$0xff]
  %v70 = vld [vmem:[%s0 + $0xb8] sm:$0xff]
  %v71 = vld [vmem:[%s0 + $0xc0] sm:$0xff]
  %v72 = vld [vmem:[%s0 + $0xc8] sm:$0xff]
  %v73 = vld [vmem:[%s0 + $0xd0] sm:$0xff]
  %v74 = vld [vmem:[%s0 + $0xd8] sm:$0xff]
  %v75 = vld [vmem:[%s0 + $0xe0] sm:$0xff]
  %v76 = vld [vmem:[%s0 + $0xe8] sm:$0xff]
  %v77 = vld [vmem:[%s0 + $0xf0] sm:$0xff]
  %v78 = vld [vmem:[%s0 + $0xf8] sm:$0xff]
  %v79 = vld [vmem:[%s1] sm:$0xf]
  %v80 = vld [vmem:[%s1 + $0x4] sm:$0xf]
  %v81 = vld [vmem:[%s1 + $0x8] sm:$0xf]
  %v82 = vld [vmem:[%s1 + $0xc] sm:$0xf]
  %v83 = vld [vmem:[%s1 + $0x10] sm:$0xf]
  %v84 = vld [vmem:[%s1 + $0x14] sm:$0xf]
  %v85 = vld [vmem:[%s1 + $0x18] sm:$0xf]
  %v86 = vld [vmem:[%s1 + $0x1c] sm:$0xf]
  %v87 = vld [vmem:[%s1 + $0x20] sm:$0xf]
  %v88 = vld [vmem:[%s1 + $0x24] sm:$0xf]
  %v89 = vld [vmem:[%s1 + $0x28] sm:$0xf]
  %v90 = vld [vmem:[%s1 + $0x2c] sm:$0xf]
  %v91 = vld [vmem:[%s1 + $0x30] sm:$0xf]
  %v92 = vld [vmem:[%s1 + $0x34] sm:$0xf]
  %v93 = vld [vmem:[%s1 + $0x38] sm:$0xf]
  %v94 = vld [vmem:[%s1 + $0x3c] sm:$0xf]
  %v95 = vld [vmem:[%s1 + $0x40] sm:$0xf]
  %v96 = vld [vmem:[%s1 + $0x44] sm:$0xf]
  %v97 = vld [vmem:[%s1 + $0x48] sm:$0xf]
  %v98 = vld [vmem:[%s1 + $0x4c] sm:$0xf]
  %v99 = vld [vmem:[%s1 + $0x50] sm:$0xf]
  %v100 = vld [vmem:[%s1 + $0x54] sm:$0xf]
  %v101 = vld [vmem:[%s1 + $0x58] sm:$0xf]
  %v102 = vld [vmem:[%s1 + $0x5c] sm:$0xf]
  %v103 = vld [vmem:[%s1 + $0x60] sm:$0xf]
  %v104 = vld [vmem:[%s1 + $0x64] sm:$0xf]
  %v105 = vld [vmem:[%s1 + $0x68] sm:$0xf]
  %v106 = vld [vmem:[%s1 + $0x6c] sm:$0xf]
  %v107 = vld [vmem:[%s1 + $0x70] sm:$0xf]
  %v108 = vld [vmem:[%s1 + $0x74] sm:$0xf]
  %v109 = vld [vmem:[%s1 + $0x78] sm:$0xf]
  %v110 = vld [vmem:[%s1 + $0x7c] sm:$0xf]
  %v111 = vld [vmem:[%s1 + $0x80] sm:$0xf]
  %v112 = vld [vmem:[%s1 + $0x84] sm:$0xf]
  %v113 = vld [vmem:[%s1 + $0x88] sm:$0xf]
  %v114 = vld [vmem:[%s1 + $0x8c] sm:$0xf]
  %v115 = vld [vmem:[%s1 + $0x90] sm:$0xf]
  %v116 = vld [vmem:[%s1 + $0x94] sm:$0xf]
  %v117 = vld [vmem:[%s1 + $0x98] sm:$0xf]
  %v118 = vld [vmem:[%s1 + $0x9c] sm:$0xf]
  %v119 = vld [vmem:[%s1 + $0xa0] sm:$0xf]
  %v120 = vld [vmem:[%s1 + $0xa4] sm:$0xf]
  %v121 = vld [vmem:[%s1 + $0xa8] sm:$0xf]
  %v122 = vld [vmem:[%s1 + $0xac] sm:$0xf]
  %v123 = vld [vmem:[%s1 + $0xb0] sm:$0xf]
  %v124 = vld [vmem:[%s1 + $0xb4] sm:$0xf]
  %v125 = vld [vmem:[%s1 + $0xb8] sm:$0xf]
  %v126 = vld [vmem:[%s1 + $0xbc] sm:$0xf]
  %v127 = vld [vmem:[%s1 + $0xc0] sm:$0xf]
  %v128 = vld [vmem:[%s1 + $0xc4] sm:$0xf]
  %v129 = vld [vmem:[%s1 + $0xc8] sm:$0xf]
  %v130 = vld [vmem:[%s1 + $0xcc] sm:$0xf]
  %v131 = vld [vmem:[%s1 + $0xd0] sm:$0xf]
  %v132 = vld [vmem:[%s1 + $0xd4] sm:$0xf]
  %v133 = vld [vmem:[%s1 + $0xd8] sm:$0xf]
  %v134 = vld [vmem:[%s1 + $0xdc] sm:$0xf]
  %v135 = vld [vmem:[%s1 + $0xe0] sm:$0xf]
  %v136 = vld [vmem:[%s1 + $0xe4] sm:$0xf]
  %v137 = vld [vmem:[%s1 + $0xe8] sm:$0xf]
  %v138 = vld [vmem:[%s1 + $0xec] sm:$0xf]
  %v139 = vld [vmem:[%s1 + $0xf0] sm:$0xf]
  %v140 = vld [vmem:[%s1 + $0xf4] sm:$0xf]
  %v141 = vld [vmem:[%s1 + $0xf8] sm:$0xf]
  %v142 = vld [vmem:[%s1 + $0xfc] sm:$0xf]
  %v143 = vld [vmem:[%s2] sm:$0x1]
  %v145 = vlaneseq
  %v146 = vshrl.u32 %v145, 7
  %v147 = vsub.s32 0, %v146
  %v148 = vrot.slane %v143, %v147
  %v182 = vunpack.c.l.b16 %v47
  %v183 = vunpack.c.h.b16 %v47
  %v184 = vunpack.c.l.b16 %v48
  %v185 = vunpack.c.h.b16 %v48
  %v186 = vunpack.c.l.b16 %v49
  %v187 = vunpack.c.h.b16 %v49
  %v188 = vunpack.c.l.b16 %v50
  %v189 = vunpack.c.h.b16 %v50
  %v190 = vunpack.c.l.b16 %v51
  %v191 = vunpack.c.h.b16 %v51
  %v192 = vunpack.c.l.b16 %v52
  %v193 = vunpack.c.h.b16 %v52
  %v194 = vunpack.c.l.b16 %v53
  %v195 = vunpack.c.h.b16 %v53
  %v196 = vunpack.c.l.b16 %v54
  %v197 = vunpack.c.h.b16 %v54
  %v198 = vunpack.c.l.b16 %v55
  %v199 = vunpack.c.h.b16 %v55
  %v200 = vunpack.c.l.b16 %v56
  %v201 = vunpack.c.h.b16 %v56
  %v202 = vunpack.c.l.b16 %v57
  %v203 = vunpack.c.h.b16 %v57
  %v204 = vunpack.c.l.b16 %v58
  %v205 = vunpack.c.h.b16 %v58
  %v206 = vunpack.c.l.b16 %v59
  %v207 = vunpack.c.h.b16 %v59
  %v208 = vunpack.c.l.b16 %v60
  %v209 = vunpack.c.h.b16 %v60
  %v210 = vunpack.c.l.b16 %v61
  %v211 = vunpack.c.h.b16 %v61
  %v212 = vunpack.c.l.b16 %v62
  %v213 = vunpack.c.h.b16 %v62
  %v214 = vunpack.c.l.b16 %v63
  %v215 = vunpack.c.h.b16 %v63
  %v216 = vunpack.c.l.b16 %v64
  %v217 = vunpack.c.h.b16 %v64
  %v218 = vunpack.c.l.b16 %v65
  %v219 = vunpack.c.h.b16 %v65
  %v220 = vunpack.c.l.b16 %v66
  %v221 = vunpack.c.h.b16 %v66
  %v222 = vunpack.c.l.b16 %v67
  %v223 = vunpack.c.h.b16 %v67
  %v224 = vunpack.c.l.b16 %v68
  %v225 = vunpack.c.h.b16 %v68
  %v226 = vunpack.c.l.b16 %v69
  %v227 = vunpack.c.h.b16 %v69
  %v228 = vunpack.c.l.b16 %v70
  %v229 = vunpack.c.h.b16 %v70
  %v230 = vunpack.c.l.b16 %v71
  %v231 = vunpack.c.h.b16 %v71
  %v232 = vunpack.c.l.b16 %v72
  %v233 = vunpack.c.h.b16 %v72
  %v234 = vunpack.c.l.b16 %v73
  %v235 = vunpack.c.h.b16 %v73
  %v236 = vunpack.c.l.b16 %v74
  %v237 = vunpack.c.h.b16 %v74
  %v238 = vunpack.c.l.b16 %v75
  %v239 = vunpack.c.h.b16 %v75
  %v240 = vunpack.c.l.b16 %v76
  %v241 = vunpack.c.h.b16 %v76
  %v242 = vunpack.c.l.b16 %v77
  %v243 = vunpack.c.h.b16 %v77
  %v244 = vunpack.c.l.b16 %v78
  %v245 = vunpack.c.h.b16 %v78
  %v246 = vpack.c.b16 %v186, %v182
  %v247 = vpack.c.b16 %v187, %v183
  %v248 = vpack.c.b16 %v188, %v184
  %v249 = vpack.c.b16 %v189, %v185
  %v250 = vpack.c.b16 %v194, %v190
  %v251 = vpack.c.b16 %v195, %v191
  %v252 = vpack.c.b16 %v196, %v192
  %v253 = vpack.c.b16 %v197, %v193
  %v254 = vpack.c.b16 %v202, %v198
  %v255 = vpack.c.b16 %v203, %v199
  %v256 = vpack.c.b16 %v204, %v200
  %v257 = vpack.c.b16 %v205, %v201
  %v258 = vpack.c.b16 %v210, %v206
  %v259 = vpack.c.b16 %v211, %v207
  %v260 = vpack.c.b16 %v212, %v208
  %v261 = vpack.c.b16 %v213, %v209
  %v262 = vpack.c.b16 %v218, %v214
  %v263 = vpack.c.b16 %v219, %v215
  %v264 = vpack.c.b16 %v220, %v216
  %v265 = vpack.c.b16 %v221, %v217
  %v266 = vpack.c.b16 %v226, %v222
  %v267 = vpack.c.b16 %v227, %v223
  %v268 = vpack.c.b16 %v228, %v224
  %v269 = vpack.c.b16 %v229, %v225
  %v270 = vpack.c.b16 %v234, %v230
  %v271 = vpack.c.b16 %v235, %v231
  %v272 = vpack.c.b16 %v236, %v232
  %v273 = vpack.c.b16 %v237, %v233
  %v274 = vpack.c.b16 %v242, %v238
  %v275 = vpack.c.b16 %v243, %v239
  %v276 = vpack.c.b16 %v244, %v240
  %v277 = vpack.c.b16 %v245, %v241
  %v374 = vunpack.c.l.b16 %v79
  %v375 = vunpack.c.l.b16 %v80
  %v376 = vunpack.c.l.b16 %v81
  %v377 = vunpack.c.l.b16 %v82
  %v378 = vunpack.c.l.b16 %v83
  %v379 = vunpack.c.l.b16 %v84
  %v380 = vunpack.c.l.b16 %v85
  %v381 = vunpack.c.l.b16 %v86
  %v382 = vunpack.c.l.b16 %v87
  %v383 = vunpack.c.l.b16 %v88
  %v384 = vunpack.c.l.b16 %v89
  %v385 = vunpack.c.l.b16 %v90
  %v386 = vunpack.c.l.b16 %v91
  %v387 = vunpack.c.l.b16 %v92
  %v388 = vunpack.c.l.b16 %v93
  %v389 = vunpack.c.l.b16 %v94
  %v390 = vunpack.c.l.b16 %v95
  %v391 = vunpack.c.l.b16 %v96
  %v392 = vunpack.c.l.b16 %v97
  %v393 = vunpack.c.l.b16 %v98
  %v394 = vunpack.c.l.b16 %v99
  %v395 = vunpack.c.l.b16 %v100
  %v396 = vunpack.c.l.b16 %v101
  %v397 = vunpack.c.l.b16 %v102
  %v398 = vunpack.c.l.b16 %v103
  %v399 = vunpack.c.l.b16 %v104
  %v400 = vunpack.c.l.b16 %v105
  %v401 = vunpack.c.l.b16 %v106
  %v402 = vunpack.c.l.b16 %v107
  %v403 = vunpack.c.l.b16 %v108
  %v404 = vunpack.c.l.b16 %v109
  %v405 = vunpack.c.l.b16 %v110
  %v406 = vunpack.c.l.b16 %v111
  %v407 = vunpack.c.l.b16 %v112
  %v408 = vunpack.c.l.b16 %v113
  %v409 = vunpack.c.l.b16 %v114
  %v410 = vunpack.c.l.b16 %v115
  %v411 = vunpack.c.l.b16 %v116
  %v412 = vunpack.c.l.b16 %v117
  %v413 = vunpack.c.l.b16 %v118
  %v414 = vunpack.c.l.b16 %v119
  %v415 = vunpack.c.l.b16 %v120
  %v416 = vunpack.c.l.b16 %v121
  %v417 = vunpack.c.l.b16 %v122
  %v418 = vunpack.c.l.b16 %v123
  %v419 = vunpack.c.l.b16 %v124
  %v420 = vunpack.c.l.b16 %v125
  %v421 = vunpack.c.l.b16 %v126
  %v422 = vunpack.c.l.b16 %v127
  %v423 = vunpack.c.l.b16 %v128
  %v424 = vunpack.c.l.b16 %v129
  %v425 = vunpack.c.l.b16 %v130
  %v426 = vunpack.c.l.b16 %v131
  %v427 = vunpack.c.l.b16 %v132
  %v428 = vunpack.c.l.b16 %v133
  %v429 = vunpack.c.l.b16 %v134
  %v430 = vunpack.c.l.b16 %v135
  %v431 = vunpack.c.l.b16 %v136
  %v432 = vunpack.c.l.b16 %v137
  %v433 = vunpack.c.l.b16 %v138
  %v434 = vunpack.c.l.b16 %v139
  %v435 = vunpack.c.l.b16 %v140
  %v436 = vunpack.c.l.b16 %v141
  %v437 = vunpack.c.l.b16 %v142
  %v438 = vpack.c.b16 %v375, %v374
  %v439 = vpack.c.b16 %v377, %v376
  %v440 = vpack.c.b16 %v379, %v378
  %v441 = vpack.c.b16 %v381, %v380
  %v442 = vpack.c.b16 %v383, %v382
  %v443 = vpack.c.b16 %v385, %v384
  %v444 = vpack.c.b16 %v387, %v386
  %v445 = vpack.c.b16 %v389, %v388
  %v446 = vpack.c.b16 %v391, %v390
  %v447 = vpack.c.b16 %v393, %v392
  %v448 = vpack.c.b16 %v395, %v394
  %v449 = vpack.c.b16 %v397, %v396
  %v450 = vpack.c.b16 %v399, %v398
  %v451 = vpack.c.b16 %v401, %v400
  %v452 = vpack.c.b16 %v403, %v402
  %v453 = vpack.c.b16 %v405, %v404
  %v454 = vpack.c.b16 %v407, %v406
  %v455 = vpack.c.b16 %v409, %v408
  %v456 = vpack.c.b16 %v411, %v410
  %v457 = vpack.c.b16 %v413, %v412
  %v458 = vpack.c.b16 %v415, %v414
  %v459 = vpack.c.b16 %v417, %v416
  %v460 = vpack.c.b16 %v419, %v418
  %v461 = vpack.c.b16 %v421, %v420
  %v462 = vpack.c.b16 %v423, %v422
  %v463 = vpack.c.b16 %v425, %v424
  %v464 = vpack.c.b16 %v427, %v426
  %v465 = vpack.c.b16 %v429, %v428
  %v466 = vpack.c.b16 %v431, %v430
  %v467 = vpack.c.b16 %v433, %v432
  %v468 = vpack.c.b16 %v435, %v434
  %v469 = vpack.c.b16 %v437, %v436
  %502 = vmatprep.subr.bf16.mxu0 0
  %503 = vmatpush1.bf16.msra.mxu0 %v445
  %504 = vmatprep.subr.bf16.mxu0 0
  %505 = vmatpush1.bf16.msra.mxu0 %v444
  %506 = vmatprep.subr.bf16.mxu0 0
  %507 = vmatpush1.bf16.msra.mxu0 %v443
  %508 = vmatprep.subr.bf16.mxu0 0
  %509 = vmatpush1.bf16.msra.mxu0 %v442
  %510 = vmatprep.subr.bf16.mxu0 0
  %511 = vmatpush1.bf16.msra.mxu0 %v441
  %512 = vmatprep.subr.bf16.mxu0 0
  %513 = vmatpush1.bf16.msra.mxu0 %v440
  %514 = vmatprep.subr.bf16.mxu0 0
  %515 = vmatpush1.bf16.msra.mxu0 %v439
  %516 = vmatprep.subr.bf16.mxu0 0
  %517 = vmatpush1.bf16.msra.mxu0 %v438
  %518 = vmatprep.subr.bf16.mxu0 0
  %519 = vmatpush2.bf16.msra.mxu0 %v453
  %520 = vmatprep.subr.bf16.mxu0 0
  %521 = vmatpush2.bf16.msra.mxu0 %v452
  %522 = vmatprep.subr.bf16.mxu0 0
  %523 = vmatpush2.bf16.msra.mxu0 %v451
  %524 = vmatprep.subr.bf16.mxu0 0
  %525 = vmatpush2.bf16.msra.mxu0 %v450
  %526 = vmatprep.subr.bf16.mxu0 0
  %527 = vmatpush2.bf16.msra.mxu0 %v449
  %528 = vmatprep.subr.bf16.mxu0 0
  %529 = vmatpush2.bf16.msra.mxu0 %v448
  %530 = vmatprep.subr.bf16.mxu0 0
  %531 = vmatpush2.bf16.msra.mxu0 %v447
  %532 = vmatprep.subr.bf16.mxu0 0
  %533 = vmatpush2.bf16.msra.mxu0 %v446
  %534 = vmatprep.mubr.bf16.mxu0 %v247
  %535 = vmatmul.mubr.bf16.gmra.mxu0 %v246
  %v536 = vpop.f32.mrf.mxu0
  %v537 = vadd.f32 %v148, %v536
  %v538 = vpop.f32.mrf.mxu0
  %v539 = vpop.f32.mrf.mxu0
  %v540 = vadd.f32 %v148, %v539
  %v541 = vpop.f32.mrf.mxu0
  %542 = vmatprep.mubr.bf16.mxu0 %v251
  %543 = vmatmul.mubr.bf16.gmra.mxu0 %v250
  %v544 = vpop.f32.mrf.mxu0
  %v545 = vadd.f32 %v148, %v544
  %v546 = vpop.f32.mrf.mxu0
  %v547 = vpop.f32.mrf.mxu0
  %v548 = vadd.f32 %v148, %v547
  %v549 = vpop.f32.mrf.mxu0
  %550 = vmatprep.mubr.bf16.mxu0 %v255
  %551 = vmatmul.mubr.bf16.gmra.mxu0 %v254
  %v552 = vpop.f32.mrf.mxu0
  %v553 = vadd.f32 %v148, %v552
  %v554 = vpop.f32.mrf.mxu0
  %v555 = vpop.f32.mrf.mxu0
  %v556 = vadd.f32 %v148, %v555
  %v557 = vpop.f32.mrf.mxu0
  %558 = vmatprep.mubr.bf16.mxu0 %v259
  %559 = vmatmul.mubr.bf16.gmra.mxu0 %v258
  %v560 = vpop.f32.mrf.mxu0
  %v561 = vadd.f32 %v148, %v560
  %v562 = vpop.f32.mrf.mxu0
  %v563 = vpop.f32.mrf.mxu0
  %v564 = vadd.f32 %v148, %v563
  %v565 = vpop.f32.mrf.mxu0
  %566 = vmatprep.mubr.bf16.mxu0 %v263
  %567 = vmatmul.mubr.bf16.gmra.mxu0 %v262
  %v568 = vpop.f32.mrf.mxu0
  %v569 = vadd.f32 %v148, %v568
  %v570 = vpop.f32.mrf.mxu0
  %v571 = vpop.f32.mrf.mxu0
  %v572 = vadd.f32 %v148, %v571
  %v573 = vpop.f32.mrf.mxu0
  %574 = vmatprep.mubr.bf16.mxu0 %v267
  %575 = vmatmul.mubr.bf16.gmra.mxu0 %v266
  %v576 = vpop.f32.mrf.mxu0
  %v577 = vadd.f32 %v148, %v576
  %v578 = vpop.f32.mrf.mxu0
  %v579 = vpop.f32.mrf.mxu0
  %v580 = vadd.f32 %v148, %v579
  %v581 = vpop.f32.mrf.mxu0
  %582 = vmatprep.mubr.bf16.mxu0 %v271
  %583 = vmatmul.mubr.bf16.gmra.mxu0 %v270
  %v584 = vpop.f32.mrf.mxu0
  %v585 = vadd.f32 %v148, %v584
  %v586 = vpop.f32.mrf.mxu0
  %v587 = vpop.f32.mrf.mxu0
  %v588 = vadd.f32 %v148, %v587
  %v589 = vpop.f32.mrf.mxu0
  %590 = vmatprep.mubr.bf16.mxu0 %v275
  %591 = vmatmul.mubr.bf16.gmra.mxu0 %v274
  %v592 = vpop.f32.mrf.mxu0
  %v593 = vadd.f32 %v148, %v592
  %v594 = vpop.f32.mrf.mxu0
  %v595 = vpop.f32.mrf.mxu0
  %v596 = vadd.f32 %v148, %v595
  %v597 = vpop.f32.mrf.mxu0
  %598 = vdwg.mxu0
  %599 = vmatprep.subr.bf16.mxu0 0
  %600 = vmatpush1.bf16.msra.mxu0 %v461
  %601 = vmatprep.subr.bf16.mxu0 0
  %602 = vmatpush1.bf16.msra.mxu0 %v460
  %603 = vmatprep.subr.bf16.mxu0 0
  %604 = vmatpush1.bf16.msra.mxu0 %v459
  %605 = vmatprep.subr.bf16.mxu0 0
  %606 = vmatpush1.bf16.msra.mxu0 %v458
  %607 = vmatprep.subr.bf16.mxu0 0
  %608 = vmatpush1.bf16.msra.mxu0 %v457
  %609 = vmatprep.subr.bf16.mxu0 0
  %610 = vmatpush1.bf16.msra.mxu0 %v456
  %611 = vmatprep.subr.bf16.mxu0 0
  %612 = vmatpush1.bf16.msra.mxu0 %v455
  %613 = vmatprep.subr.bf16.mxu0 0
  %614 = vmatpush1.bf16.msra.mxu0 %v454
  %615 = vmatprep.subr.bf16.mxu0 0
  %616 = vmatpush2.bf16.msra.mxu0 %v469
  %617 = vmatprep.subr.bf16.mxu0 0
  %618 = vmatpush2.bf16.msra.mxu0 %v468
  %619 = vmatprep.subr.bf16.mxu0 0
  %620 = vmatpush2.bf16.msra.mxu0 %v467
  %621 = vmatprep.subr.bf16.mxu0 0
  %622 = vmatpush2.bf16.msra.mxu0 %v466
  %623 = vmatprep.subr.bf16.mxu0 0
  %624 = vmatpush2.bf16.msra.mxu0 %v465
  %625 = vmatprep.subr.bf16.mxu0 0
  %626 = vmatpush2.bf16.msra.mxu0 %v464
  %627 = vmatprep.subr.bf16.mxu0 0
  %628 = vmatpush2.bf16.msra.mxu0 %v463
  %629 = vmatprep.subr.bf16.mxu0 0
  %630 = vmatpush2.bf16.msra.mxu0 %v462
  %631 = vmatprep.mubr.bf16.mxu0 %v249
  %632 = vmatmul.mubr.bf16.gmra.mxu0 %v248
  %v633 = vpop.f32.mrf.mxu0
  %v634 = vadd.f32 %v537, %v633
  %v635 = vpop.f32.mrf.mxu0
  %v636 = vpop.f32.mrf.mxu0
  %v637 = vadd.f32 %v540, %v636
  %v638 = vpop.f32.mrf.mxu0
  %639 = vmatprep.mubr.bf16.mxu0 %v253
  %640 = vmatmul.mubr.bf16.gmra.mxu0 %v252
  %v641 = vpop.f32.mrf.mxu0
  %v642 = vadd.f32 %v545, %v641
  %v643 = vpop.f32.mrf.mxu0
  %v644 = vpop.f32.mrf.mxu0
  %v645 = vadd.f32 %v548, %v644
  %v646 = vpop.f32.mrf.mxu0
  %647 = vmatprep.mubr.bf16.mxu0 %v257
  %648 = vmatmul.mubr.bf16.gmra.mxu0 %v256
  %v649 = vpop.f32.mrf.mxu0
  %v650 = vadd.f32 %v553, %v649
  %v651 = vpop.f32.mrf.mxu0
  %v652 = vpop.f32.mrf.mxu0
  %v653 = vadd.f32 %v556, %v652
  %v654 = vpop.f32.mrf.mxu0
  %655 = vmatprep.mubr.bf16.mxu0 %v261
  %656 = vmatmul.mubr.bf16.gmra.mxu0 %v260
  %v657 = vpop.f32.mrf.mxu0
  %v658 = vadd.f32 %v561, %v657
  %v659 = vpop.f32.mrf.mxu0
  %v660 = vpop.f32.mrf.mxu0
  %v661 = vadd.f32 %v564, %v660
  %v662 = vpop.f32.mrf.mxu0
  %663 = vmatprep.mubr.bf16.mxu0 %v265
  %664 = vmatmul.mubr.bf16.gmra.mxu0 %v264
  %v665 = vpop.f32.mrf.mxu0
  %v666 = vadd.f32 %v569, %v665
  %v667 = vpop.f32.mrf.mxu0
  %v668 = vpop.f32.mrf.mxu0
  %v669 = vadd.f32 %v572, %v668
  %v670 = vpop.f32.mrf.mxu0
  %671 = vmatprep.mubr.bf16.mxu0 %v269
  %672 = vmatmul.mubr.bf16.gmra.mxu0 %v268
  %v673 = vpop.f32.mrf.mxu0
  %v674 = vadd.f32 %v577, %v673
  %v675 = vpop.f32.mrf.mxu0
  %v676 = vpop.f32.mrf.mxu0
  %v677 = vadd.f32 %v580, %v676
  %v678 = vpop.f32.mrf.mxu0
  %679 = vmatprep.mubr.bf16.mxu0 %v273
  %680 = vmatmul.mubr.bf16.gmra.mxu0 %v272
  %v681 = vpop.f32.mrf.mxu0
  %v682 = vadd.f32 %v585, %v681
  %v683 = vpop.f32.mrf.mxu0
  %v684 = vpop.f32.mrf.mxu0
  %v685 = vadd.f32 %v588, %v684
  %v686 = vpop.f32.mrf.mxu0
  %687 = vmatprep.mubr.bf16.mxu0 %v277
  %688 = vmatmul.mubr.bf16.gmra.mxu0 %v276
  %v689 = vpop.f32.mrf.mxu0
  %v690 = vadd.f32 %v593, %v689
  %v691 = vpop.f32.mrf.mxu0
  %v692 = vpop.f32.mrf.mxu0
  %v693 = vadd.f32 %v596, %v692
  %v694 = vpop.f32.mrf.mxu0
  %695 = vdwg.mxu0
  %v696 = vmax.f32 %v634, 0.0
  %v697 = vmax.f32 %v637, 0.0
  %v698 = vmax.f32 %v642, 0.0
  %v699 = vmax.f32 %v645, 0.0
  %v700 = vmax.f32 %v650, 0.0
  %v701 = vmax.f32 %v653, 0.0
  %v702 = vmax.f32 %v658, 0.0
  %v703 = vmax.f32 %v661, 0.0
  %v704 = vmax.f32 %v666, 0.0
  %v705 = vmax.f32 %v669, 0.0
  %v706 = vmax.f32 %v674, 0.0
  %v707 = vmax.f32 %v677, 0.0
  %v708 = vmax.f32 %v682, 0.0
  %v709 = vmax.f32 %v685, 0.0
  %v710 = vmax.f32 %v690, 0.0
  %v711 = vmax.f32 %v693, 0.0
  %v712 = vpack.c.bf16 %v697, %v696
  %v713 = vpack.c.bf16 %v699, %v698
  %v714 = vpack.c.bf16 %v701, %v700
  %v715 = vpack.c.bf16 %v703, %v702
  %v716 = vpack.c.bf16 %v705, %v704
  %v717 = vpack.c.bf16 %v707, %v706
  %v718 = vpack.c.bf16 %v709, %v708
  %v719 = vpack.c.bf16 %v711, %v710
  %v720 = vld [vmem:[%s3] sm:$0xf]
  %v721 = vld [vmem:[%s3 + $0x4] sm:$0xf]
  %v722 = vld [vmem:[%s3 + $0x8] sm:$0xf]
  %v723 = vld [vmem:[%s3 + $0xc] sm:$0xf]
  %v728 = vunpack.c.l.b16 %v720
  %v729 = vunpack.c.l.b16 %v721
  %v730 = vunpack.c.l.b16 %v722
  %v731 = vunpack.c.l.b16 %v723
  %v732 = vpack.c.b16 %v729, %v728
  %v733 = vpack.c.b16 %v731, %v730
  %736 = vmatprep.subr.bf16.mxu0 0
  %737 = vmatpush1.bf16.msra.mxu0 %v719
  %738 = vmatprep.subr.bf16.mxu0 0
  %739 = vmatpush1.bf16.msra.mxu0 %v718
  %740 = vmatprep.subr.bf16.mxu0 0
  %741 = vmatpush1.bf16.msra.mxu0 %v717
  %742 = vmatprep.subr.bf16.mxu0 0
  %743 = vmatpush1.bf16.msra.mxu0 %v716
  %744 = vmatprep.subr.bf16.mxu0 0
  %745 = vmatpush1.bf16.msra.mxu0 %v715
  %746 = vmatprep.subr.bf16.mxu0 0
  %747 = vmatpush1.bf16.msra.mxu0 %v714
  %748 = vmatprep.subr.bf16.mxu0 0
  %749 = vmatpush1.bf16.msra.mxu0 %v713
  %750 = vmatprep.subr.bf16.mxu0 0
  %751 = vmatpush1.bf16.msra.mxu0 %v712
  %752 = vmatprep.subr.bf16.mxu0 0
  %753 = vmatpush2.bf16.msra.mxu0 0
  %754 = vmatprep.subr.bf16.mxu0 0
  %755 = vmatpush2.bf16.msra.mxu0 0
  %756 = vmatprep.subr.bf16.mxu0 0
  %757 = vmatpush2.bf16.msra.mxu0 0
  %758 = vmatprep.subr.bf16.mxu0 0
  %759 = vmatpush2.bf16.msra.mxu0 0
  %760 = vmatprep.subr.bf16.mxu0 0
  %761 = vmatpush2.bf16.msra.mxu0 0
  %762 = vmatprep.subr.bf16.mxu0 0
  %763 = vmatpush2.bf16.msra.mxu0 0
  %764 = vmatprep.subr.bf16.mxu0 0
  %765 = vmatpush2.bf16.msra.mxu0 0
  %766 = vmatprep.subr.bf16.mxu0 0
  %767 = vmatpush2.bf16.msra.mxu0 0
  %768 = vmatprep.mubr.bf16.mxu0 0
  %769 = vmatmul.mubr.bf16.gmra.mxu0 %v732
  %v770 = vpop.f32.mrf.mxu0
  %v771 = vadd.f32 0.0, %v770
  %v772 = vpop.f32.mrf.mxu0
  %v773 = vpop.f32.mrf.mxu0
  %v774 = vadd.f32 0.0, %v773
  %v775 = vpop.f32.mrf.mxu0
  %776 = vmatprep.mubr.bf16.mxu0 0
  %777 = vmatmul.mubr.bf16.gmra.mxu0 %v733
  %v778 = vpop.f32.mrf.mxu0
  %v779 = vadd.f32 0.0, %v778
  %v780 = vpop.f32.mrf.mxu0
  %v781 = vpop.f32.mrf.mxu0
  %v782 = vadd.f32 0.0, %v781
  %v783 = vpop.f32.mrf.mxu0
  %784 = vdwg.mxu0
  %v785 = vpack.c.bf16 %v774, %v771
  %v786 = vpack.c.bf16 %v782, %v779
  %v787 = vld [vmem:[%s4] sm:$0xf]
  %v788 = vld [vmem:[%s4 + $0x4] sm:$0xf]
  %v789 = vld [vmem:[%s4 + $0x8] sm:$0xf]
  %v790 = vld [vmem:[%s4 + $0xc] sm:$0xf]
  %v791 = vld [vmem:[%s4 + $0x10] sm:$0xf]
  %v792 = vld [vmem:[%s4 + $0x14] sm:$0xf]
  %v793 = vld [vmem:[%s4 + $0x18] sm:$0xf]
  %v794 = vld [vmem:[%s4 + $0x1c] sm:$0xf]
  %v795 = vld [vmem:[%s3 + $0x10] sm:$0xf]
  %v796 = vld [vmem:[%s3 + $0x14] sm:$0xf]
  %v797 = vld [vmem:[%s3 + $0x18] sm:$0xf]
  %v798 = vld [vmem:[%s3 + $0x1c] sm:$0xf]
  %v803 = vunpack.c.l.b16 %v795
  %v804 = vunpack.c.l.b16 %v796
  %v805 = vunpack.c.l.b16 %v797
  %v806 = vunpack.c.l.b16 %v798
  %v807 = vpack.c.b16 %v804, %v803
  %v808 = vpack.c.b16 %v806, %v805
  %811 = vmatprep.subr.bf16.mxu0 0
  %812 = vmatpush1.bf16.msra.mxu0 %v719
  %813 = vmatprep.subr.bf16.mxu0 0
  %814 = vmatpush1.bf16.msra.mxu0 %v718
  %815 = vmatprep.subr.bf16.mxu0 0
  %816 = vmatpush1.bf16.msra.mxu0 %v717
  %817 = vmatprep.subr.bf16.mxu0 0
  %818 = vmatpush1.bf16.msra.mxu0 %v716
  %819 = vmatprep.subr.bf16.mxu0 0
  %820 = vmatpush1.bf16.msra.mxu0 %v715
  %821 = vmatprep.subr.bf16.mxu0 0
  %822 = vmatpush1.bf16.msra.mxu0 %v714
  %823 = vmatprep.subr.bf16.mxu0 0
  %824 = vmatpush1.bf16.msra.mxu0 %v713
  %825 = vmatprep.subr.bf16.mxu0 0
  %826 = vmatpush1.bf16.msra.mxu0 %v712
  %827 = vmatprep.subr.bf16.mxu0 0
  %828 = vmatpush2.bf16.msra.mxu0 0
  %829 = vmatprep.subr.bf16.mxu0 0
  %830 = vmatpush2.bf16.msra.mxu0 0
  %831 = vmatprep.subr.bf16.mxu0 0
  %832 = vmatpush2.bf16.msra.mxu0 0
  %833 = vmatprep.subr.bf16.mxu0 0
  %834 = vmatpush2.bf16.msra.mxu0 0
  %835 = vmatprep.subr.bf16.mxu0 0
  %836 = vmatpush2.bf16.msra.mxu0 0
  %837 = vmatprep.subr.bf16.mxu0 0
  %838 = vmatpush2.bf16.msra.mxu0 0
  %839 = vmatprep.subr.bf16.mxu0 0
  %840 = vmatpush2.bf16.msra.mxu0 0
  %841 = vmatprep.subr.bf16.mxu0 0
  %842 = vmatpush2.bf16.msra.mxu0 0
  %843 = vmatprep.mubr.bf16.mxu0 0
  %844 = vmatmul.mubr.bf16.gmra.mxu0 %v807
  %v845 = vpop.f32.mrf.mxu0
  %v846 = vadd.f32 0.0, %v845
  %v847 = vpop.f32.mrf.mxu0
  %v848 = vpop.f32.mrf.mxu0
  %v849 = vadd.f32 0.0, %v848
  %v850 = vpop.f32.mrf.mxu0
  %851 = vmatprep.mubr.bf16.mxu0 0
  %852 = vmatmul.mubr.bf16.gmra.mxu0 %v808
  %v853 = vpop.f32.mrf.mxu0
  %v854 = vadd.f32 0.0, %v853
  %v855 = vpop.f32.mrf.mxu0
  %v856 = vpop.f32.mrf.mxu0
  %v857 = vadd.f32 0.0, %v856
  %v858 = vpop.f32.mrf.mxu0
  %859 = vdwg.mxu0
  %v860 = vpack.c.bf16 %v849, %v846
  %v861 = vpack.c.bf16 %v857, %v854
  %v862 = vld [vmem:[%s4 + $0x20] sm:$0xf]
  %v863 = vld [vmem:[%s4 + $0x24] sm:$0xf]
  %v864 = vld [vmem:[%s4 + $0x28] sm:$0xf]
  %v865 = vld [vmem:[%s4 + $0x2c] sm:$0xf]
  %v866 = vld [vmem:[%s4 + $0x30] sm:$0xf]
  %v867 = vld [vmem:[%s4 + $0x34] sm:$0xf]
  %v868 = vld [vmem:[%s4 + $0x38] sm:$0xf]
  %v869 = vld [vmem:[%s4 + $0x3c] sm:$0xf]
  %v878 = vunpack.c.l.b16 %v862
  %v879 = vunpack.c.l.b16 %v863
  %v880 = vunpack.c.l.b16 %v864
  %v881 = vunpack.c.l.b16 %v865
  %v882 = vunpack.c.l.b16 %v866
  %v883 = vunpack.c.l.b16 %v867
  %v884 = vunpack.c.l.b16 %v868
  %v885 = vunpack.c.l.b16 %v869
  %v886 = vpack.c.b16 %v879, %v878
  %v887 = vpack.c.b16 %v881, %v880
  %v888 = vpack.c.b16 %v883, %v882
  %v889 = vpack.c.b16 %v885, %v884
  %vm894 = vcmask 523264
  %v896 = vsel %vm894, %v860, 0
  %v899 = vsel %vm894, %v861, 0
  %901 = vmatprep.subr.bf16.mxu0 0
  %902 = vmatpush1.bf16.msra.mxu0 0
  %903 = vmatprep.subr.bf16.mxu0 0
  %904 = vmatpush1.bf16.msra.mxu0 0
  %905 = vmatprep.subr.bf16.mxu0 0
  %906 = vmatpush1.bf16.msra.mxu0 0
  %907 = vmatprep.subr.bf16.mxu0 0
  %908 = vmatpush1.bf16.msra.mxu0 0
  %909 = vmatprep.subr.bf16.mxu0 0
  %910 = vmatpush1.bf16.msra.mxu0 %v889
  %911 = vmatprep.subr.bf16.mxu0 0
  %912 = vmatpush1.bf16.msra.mxu0 %v888
  %913 = vmatprep.subr.bf16.mxu0 0
  %914 = vmatpush1.bf16.msra.mxu0 %v887
  %915 = vmatprep.subr.bf16.mxu0 0
  %916 = vmatpush1.bf16.msra.mxu0 %v886
  %917 = vmatprep.subr.bf16.mxu0 0
  %918 = vmatpush2.bf16.msra.mxu0 0
  %919 = vmatprep.subr.bf16.mxu0 0
  %920 = vmatpush2.bf16.msra.mxu0 0
  %921 = vmatprep.subr.bf16.mxu0 0
  %922 = vmatpush2.bf16.msra.mxu0 0
  %923 = vmatprep.subr.bf16.mxu0 0
  %924 = vmatpush2.bf16.msra.mxu0 0
  %925 = vmatprep.subr.bf16.mxu0 0
  %926 = vmatpush2.bf16.msra.mxu0 0
  %927 = vmatprep.subr.bf16.mxu0 0
  %928 = vmatpush2.bf16.msra.mxu0 0
  %929 = vmatprep.subr.bf16.mxu0 0
  %930 = vmatpush2.bf16.msra.mxu0 0
  %931 = vmatprep.subr.bf16.mxu0 0
  %932 = vmatpush2.bf16.msra.mxu0 0
  %933 = vmatprep.mubr.bf16.mxu0 0
  %934 = vmatmul.mubr.bf16.gmra.mxu0 %v896
  %v935 = vpop.f32.mrf.mxu0
  %v936 = vadd.f32 0.0, %v935
  %v937 = vpop.f32.mrf.mxu0
  %v938 = vpop.f32.mrf.mxu0
  %v939 = vadd.f32 0.0, %v938
  %v940 = vpop.f32.mrf.mxu0
  %941 = vmatprep.mubr.bf16.mxu0 0
  %942 = vmatmul.mubr.bf16.gmra.mxu0 %v899
  %v943 = vpop.f32.mrf.mxu0
  %v944 = vadd.f32 0.0, %v943
  %v945 = vpop.f32.mrf.mxu0
  %v946 = vpop.f32.mrf.mxu0
  %v947 = vadd.f32 0.0, %v946
  %v948 = vpop.f32.mrf.mxu0
  %949 = vdwg.mxu0
  %v958 = vunpack.c.l.b16 %v787
  %v959 = vunpack.c.l.b16 %v788
  %v960 = vunpack.c.l.b16 %v789
  %v961 = vunpack.c.l.b16 %v790
  %v962 = vunpack.c.l.b16 %v791
  %v963 = vunpack.c.l.b16 %v792
  %v964 = vunpack.c.l.b16 %v793
  %v965 = vunpack.c.l.b16 %v794
  %v966 = vpack.c.b16 %v959, %v958
  %v967 = vpack.c.b16 %v961, %v960
  %v968 = vpack.c.b16 %v963, %v962
  %v969 = vpack.c.b16 %v965, %v964
  %v975 = vsel %vm894, %v785, 0
  %v978 = vsel %vm894, %v786, 0
  %980 = vmatprep.subr.bf16.mxu0 0
  %981 = vmatpush1.bf16.msra.mxu0 0
  %982 = vmatprep.subr.bf16.mxu0 0
  %983 = vmatpush1.bf16.msra.mxu0 0
  %984 = vmatprep.subr.bf16.mxu0 0
  %985 = vmatpush1.bf16.msra.mxu0 0
  %986 = vmatprep.subr.bf16.mxu0 0
  %987 = vmatpush1.bf16.msra.mxu0 0
  %988 = vmatprep.subr.bf16.mxu0 0
  %989 = vmatpush1.bf16.msra.mxu0 %v969
  %990 = vmatprep.subr.bf16.mxu0 0
  %991 = vmatpush1.bf16.msra.mxu0 %v968
  %992 = vmatprep.subr.bf16.mxu0 0
  %993 = vmatpush1.bf16.msra.mxu0 %v967
  %994 = vmatprep.subr.bf16.mxu0 0
  %995 = vmatpush1.bf16.msra.mxu0 %v966
  %996 = vmatprep.subr.bf16.mxu0 0
  %997 = vmatpush2.bf16.msra.mxu0 0
  %998 = vmatprep.subr.bf16.mxu0 0
  %999 = vmatpush2.bf16.msra.mxu0 0
  %1000 = vmatprep.subr.bf16.mxu0 0
  %1001 = vmatpush2.bf16.msra.mxu0 0
  %1002 = vmatprep.subr.bf16.mxu0 0
  %1003 = vmatpush2.bf16.msra.mxu0 0
  %1004 = vmatprep.subr.bf16.mxu0 0
  %1005 = vmatpush2.bf16.msra.mxu0 0
  %1006 = vmatprep.subr.bf16.mxu0 0
  %1007 = vmatpush2.bf16.msra.mxu0 0
  %1008 = vmatprep.subr.bf16.mxu0 0
  %1009 = vmatpush2.bf16.msra.mxu0 0
  %1010 = vmatprep.subr.bf16.mxu0 0
  %1011 = vmatpush2.bf16.msra.mxu0 0
  %1012 = vmatprep.mubr.bf16.mxu0 0
  %1013 = vmatmul.mubr.bf16.gmra.mxu0 %v975
  %v1014 = vpop.f32.mrf.mxu0
  %v1015 = vadd.f32 %v936, %v1014
  %v1016 = vpop.f32.mrf.mxu0
  %v1017 = vpop.f32.mrf.mxu0
  %v1018 = vadd.f32 %v939, %v1017
  %v1019 = vpop.f32.mrf.mxu0
  %1020 = vmatprep.mubr.bf16.mxu0 0
  %1021 = vmatmul.mubr.bf16.gmra.mxu0 %v978
  %v1022 = vpop.f32.mrf.mxu0
  %v1023 = vadd.f32 %v944, %v1022
  %v1024 = vpop.f32.mrf.mxu0
  %v1025 = vpop.f32.mrf.mxu0
  %v1026 = vadd.f32 %v947, %v1025
  %v1027 = vpop.f32.mrf.mxu0
  %1028 = vdwg.mxu0
  %v1029 = vld [vmem:[%s3 + $0x20] sm:$0xf]
  %v1030 = vld [vmem:[%s3 + $0x24] sm:$0xf]
  %v1031 = vld [vmem:[%s3 + $0x28] sm:$0xf]
  %v1032 = vld [vmem:[%s3 + $0x2c] sm:$0xf]
  %v1037 = vunpack.c.l.b16 %v1029
  %v1038 = vunpack.c.l.b16 %v1030
  %v1039 = vunpack.c.l.b16 %v1031
  %v1040 = vunpack.c.l.b16 %v1032
  %v1041 = vpack.c.b16 %v1038, %v1037
  %v1042 = vpack.c.b16 %v1040, %v1039
  %1045 = vmatprep.subr.bf16.mxu0 0
  %1046 = vmatpush1.bf16.msra.mxu0 %v719
  %1047 = vmatprep.subr.bf16.mxu0 0
  %1048 = vmatpush1.bf16.msra.mxu0 %v718
  %1049 = vmatprep.subr.bf16.mxu0 0
  %1050 = vmatpush1.bf16.msra.mxu0 %v717
  %1051 = vmatprep.subr.bf16.mxu0 0
  %1052 = vmatpush1.bf16.msra.mxu0 %v716
  %1053 = vmatprep.subr.bf16.mxu0 0
  %1054 = vmatpush1.bf16.msra.mxu0 %v715
  %1055 = vmatprep.subr.bf16.mxu0 0
  %1056 = vmatpush1.bf16.msra.mxu0 %v714
  %1057 = vmatprep.subr.bf16.mxu0 0
  %1058 = vmatpush1.bf16.msra.mxu0 %v713
  %1059 = vmatprep.subr.bf16.mxu0 0
  %1060 = vmatpush1.bf16.msra.mxu0 %v712
  %1061 = vmatprep.subr.bf16.mxu0 0
  %1062 = vmatpush2.bf16.msra.mxu0 0
  %1063 = vmatprep.subr.bf16.mxu0 0
  %1064 = vmatpush2.bf16.msra.mxu0 0
  %1065 = vmatprep.subr.bf16.mxu0 0
  %1066 = vmatpush2.bf16.msra.mxu0 0
  %1067 = vmatprep.subr.bf16.mxu0 0
  %1068 = vmatpush2.bf16.msra.mxu0 0
  %1069 = vmatprep.subr.bf16.mxu0 0
  %1070 = vmatpush2.bf16.msra.mxu0 0
  %1071 = vmatprep.subr.bf16.mxu0 0
  %1072 = vmatpush2.bf16.msra.mxu0 0
  %1073 = vmatprep.subr.bf16.mxu0 0
  %1074 = vmatpush2.bf16.msra.mxu0 0
  %1075 = vmatprep.subr.bf16.mxu0 0
  %1076 = vmatpush2.bf16.msra.mxu0 0
  %1077 = vmatprep.mubr.bf16.mxu0 0
  %1078 = vmatmul.mubr.bf16.gmra.mxu0 %v1041
  %v1079 = vpop.f32.mrf.mxu0
  %v1080 = vadd.f32 0.0, %v1079
  %v1081 = vpop.f32.mrf.mxu0
  %v1082 = vpop.f32.mrf.mxu0
  %v1083 = vadd.f32 0.0, %v1082
  %v1084 = vpop.f32.mrf.mxu0
  %1085 = vmatprep.mubr.bf16.mxu0 0
  %1086 = vmatmul.mubr.bf16.gmra.mxu0 %v1042
  %v1087 = vpop.f32.mrf.mxu0
  %v1088 = vadd.f32 0.0, %v1087
  %v1089 = vpop.f32.mrf.mxu0
  %v1090 = vpop.f32.mrf.mxu0
  %v1091 = vadd.f32 0.0, %v1090
  %v1092 = vpop.f32.mrf.mxu0
  %1093 = vdwg.mxu0
  %v1094 = vpack.c.bf16 %v1083, %v1080
  %v1095 = vpack.c.bf16 %v1091, %v1088
  %v1096 = vld [vmem:[%s4 + $0x40] sm:$0xf]
  %v1097 = vld [vmem:[%s4 + $0x44] sm:$0xf]
  %v1098 = vld [vmem:[%s4 + $0x48] sm:$0xf]
  %v1099 = vld [vmem:[%s4 + $0x4c] sm:$0xf]
  %v1100 = vld [vmem:[%s4 + $0x50] sm:$0xf]
  %v1101 = vld [vmem:[%s4 + $0x54] sm:$0xf]
  %v1102 = vld [vmem:[%s4 + $0x58] sm:$0xf]
  %v1103 = vld [vmem:[%s4 + $0x5c] sm:$0xf]
  %v1112 = vunpack.c.l.b16 %v1096
  %v1113 = vunpack.c.l.b16 %v1097
  %v1114 = vunpack.c.l.b16 %v1098
  %v1115 = vunpack.c.l.b16 %v1099
  %v1116 = vunpack.c.l.b16 %v1100
  %v1117 = vunpack.c.l.b16 %v1101
  %v1118 = vunpack.c.l.b16 %v1102
  %v1119 = vunpack.c.l.b16 %v1103
  %v1120 = vpack.c.b16 %v1113, %v1112
  %v1121 = vpack.c.b16 %v1115, %v1114
  %v1122 = vpack.c.b16 %v1117, %v1116
  %v1123 = vpack.c.b16 %v1119, %v1118
  %v1129 = vsel %vm894, %v1094, 0
  %v1132 = vsel %vm894, %v1095, 0
  %1134 = vmatprep.subr.bf16.mxu0 0
  %1135 = vmatpush1.bf16.msra.mxu0 0
  %1136 = vmatprep.subr.bf16.mxu0 0
  %1137 = vmatpush1.bf16.msra.mxu0 0
  %1138 = vmatprep.subr.bf16.mxu0 0
  %1139 = vmatpush1.bf16.msra.mxu0 0
  %1140 = vmatprep.subr.bf16.mxu0 0
  %1141 = vmatpush1.bf16.msra.mxu0 0
  %1142 = vmatprep.subr.bf16.mxu0 0
  %1143 = vmatpush1.bf16.msra.mxu0 %v1123
  %1144 = vmatprep.subr.bf16.mxu0 0
  %1145 = vmatpush1.bf16.msra.mxu0 %v1122
  %1146 = vmatprep.subr.bf16.mxu0 0
  %1147 = vmatpush1.bf16.msra.mxu0 %v1121
  %1148 = vmatprep.subr.bf16.mxu0 0
  %1149 = vmatpush1.bf16.msra.mxu0 %v1120
  %1150 = vmatprep.subr.bf16.mxu0 0
  %1151 = vmatpush2.bf16.msra.mxu0 0
  %1152 = vmatprep.subr.bf16.mxu0 0
  %1153 = vmatpush2.bf16.msra.mxu0 0
  %1154 = vmatprep.subr.bf16.mxu0 0
  %1155 = vmatpush2.bf16.msra.mxu0 0
  %1156 = vmatprep.subr.bf16.mxu0 0
  %1157 = vmatpush2.bf16.msra.mxu0 0
  %1158 = vmatprep.subr.bf16.mxu0 0
  %1159 = vmatpush2.bf16.msra.mxu0 0
  %1160 = vmatprep.subr.bf16.mxu0 0
  %1161 = vmatpush2.bf16.msra.mxu0 0
  %1162 = vmatprep.subr.bf16.mxu0 0
  %1163 = vmatpush2.bf16.msra.mxu0 0
  %1164 = vmatprep.subr.bf16.mxu0 0
  %1165 = vmatpush2.bf16.msra.mxu0 0
  %1166 = vmatprep.mubr.bf16.mxu0 0
  %1167 = vmatmul.mubr.bf16.gmra.mxu0 %v1129
  %v1168 = vpop.f32.mrf.mxu0
  %v1169 = vadd.f32 0.0, %v1168
  %v1170 = vpop.f32.mrf.mxu0
  %v1171 = vpop.f32.mrf.mxu0
  %v1172 = vadd.f32 0.0, %v1171
  %v1173 = vpop.f32.mrf.mxu0
  %1174 = vmatprep.mubr.bf16.mxu0 0
  %1175 = vmatmul.mubr.bf16.gmra.mxu0 %v1132
  %v1176 = vpop.f32.mrf.mxu0
  %v1177 = vadd.f32 0.0, %v1176
  %v1178 = vpop.f32.mrf.mxu0
  %v1179 = vpop.f32.mrf.mxu0
  %v1180 = vadd.f32 0.0, %v1179
  %v1181 = vpop.f32.mrf.mxu0
  %1182 = vdwg.mxu0
  %v1183 = vadd.f32 %v1015, %v1169
  %v1184 = vadd.f32 %v1018, %v1172
  %v1185 = vadd.f32 %v1023, %v1177
  %v1186 = vadd.f32 %v1026, %v1180
  %v1187 = vld [vmem:[%s3 + $0x30] sm:$0xf]
  %v1188 = vld [vmem:[%s3 + $0x34] sm:$0xf]
  %v1189 = vld [vmem:[%s3 + $0x38] sm:$0xf]
  %v1190 = vld [vmem:[%s3 + $0x3c] sm:$0xf]
  %v1195 = vunpack.c.l.b16 %v1187
  %v1196 = vunpack.c.l.b16 %v1188
  %v1197 = vunpack.c.l.b16 %v1189
  %v1198 = vunpack.c.l.b16 %v1190
  %v1199 = vpack.c.b16 %v1196, %v1195
  %v1200 = vpack.c.b16 %v1198, %v1197
  %1203 = vmatprep.subr.bf16.mxu0 0
  %1204 = vmatpush1.bf16.msra.mxu0 %v719
  %1205 = vmatprep.subr.bf16.mxu0 0
  %1206 = vmatpush1.bf16.msra.mxu0 %v718
  %1207 = vmatprep.subr.bf16.mxu0 0
  %1208 = vmatpush1.bf16.msra.mxu0 %v717
  %1209 = vmatprep.subr.bf16.mxu0 0
  %1210 = vmatpush1.bf16.msra.mxu0 %v716
  %1211 = vmatprep.subr.bf16.mxu0 0
  %1212 = vmatpush1.bf16.msra.mxu0 %v715
  %1213 = vmatprep.subr.bf16.mxu0 0
  %1214 = vmatpush1.bf16.msra.mxu0 %v714
  %1215 = vmatprep.subr.bf16.mxu0 0
  %1216 = vmatpush1.bf16.msra.mxu0 %v713
  %1217 = vmatprep.subr.bf16.mxu0 0
  %1218 = vmatpush1.bf16.msra.mxu0 %v712
  %1219 = vmatprep.subr.bf16.mxu0 0
  %1220 = vmatpush2.bf16.msra.mxu0 0
  %1221 = vmatprep.subr.bf16.mxu0 0
  %1222 = vmatpush2.bf16.msra.mxu0 0
  %1223 = vmatprep.subr.bf16.mxu0 0
  %1224 = vmatpush2.bf16.msra.mxu0 0
  %1225 = vmatprep.subr.bf16.mxu0 0
  %1226 = vmatpush2.bf16.msra.mxu0 0
  %1227 = vmatprep.subr.bf16.mxu0 0
  %1228 = vmatpush2.bf16.msra.mxu0 0
  %1229 = vmatprep.subr.bf16.mxu0 0
  %1230 = vmatpush2.bf16.msra.mxu0 0
  %1231 = vmatprep.subr.bf16.mxu0 0
  %1232 = vmatpush2.bf16.msra.mxu0 0
  %1233 = vmatprep.subr.bf16.mxu0 0
  %1234 = vmatpush2.bf16.msra.mxu0 0
  %1235 = vmatprep.mubr.bf16.mxu0 0
  %1236 = vmatmul.mubr.bf16.gmra.mxu0 %v1199
  %v1237 = vpop.f32.mrf.mxu0
  %v1238 = vadd.f32 0.0, %v1237
  %v1239 = vpop.f32.mrf.mxu0
  %v1240 = vpop.f32.mrf.mxu0
  %v1241 = vadd.f32 0.0, %v1240
  %v1242 = vpop.f32.mrf.mxu0
  %1243 = vmatprep.mubr.bf16.mxu0 0
  %1244 = vmatmul.mubr.bf16.gmra.mxu0 %v1200
  %v1245 = vpop.f32.mrf.mxu0
  %v1246 = vadd.f32 0.0, %v1245
  %v1247 = vpop.f32.mrf.mxu0
  %v1248 = vpop.f32.mrf.mxu0
  %v1249 = vadd.f32 0.0, %v1248
  %v1250 = vpop.f32.mrf.mxu0
  %1251 = vdwg.mxu0
  %v1252 = vpack.c.bf16 %v1241, %v1238
  %v1253 = vpack.c.bf16 %v1249, %v1246
  %v1254 = vld [vmem:[%s4 + $0x60] sm:$0xf]
  %v1255 = vld [vmem:[%s4 + $0x64] sm:$0xf]
  %v1256 = vld [vmem:[%s4 + $0x68] sm:$0xf]
  %v1257 = vld [vmem:[%s4 + $0x6c] sm:$0xf]
  %v1258 = vld [vmem:[%s4 + $0x70] sm:$0xf]
  %v1259 = vld [vmem:[%s4 + $0x74] sm:$0xf]
  %v1260 = vld [vmem:[%s4 + $0x78] sm:$0xf]
  %v1261 = vld [vmem:[%s4 + $0x7c] sm:$0xf]
  %v1270 = vunpack.c.l.b16 %v1254
  %v1271 = vunpack.c.l.b16 %v1255
  %v1272 = vunpack.c.l.b16 %v1256
  %v1273 = vunpack.c.l.b16 %v1257
  %v1274 = vunpack.c.l.b16 %v1258
  %v1275 = vunpack.c.l.b16 %v1259
  %v1276 = vunpack.c.l.b16 %v1260
  %v1277 = vunpack.c.l.b16 %v1261
  %v1278 = vpack.c.b16 %v1271, %v1270
  %v1279 = vpack.c.b16 %v1273, %v1272
  %v1280 = vpack.c.b16 %v1275, %v1274
  %v1281 = vpack.c.b16 %v1277, %v1276
  %v1287 = vsel %vm894, %v1252, 0
  %v1290 = vsel %vm894, %v1253, 0
  %1292 = vmatprep.subr.bf16.mxu0 0
  %1293 = vmatpush1.bf16.msra.mxu0 0
  %1294 = vmatprep.subr.bf16.mxu0 0
  %1295 = vmatpush1.bf16.msra.mxu0 0
  %1296 = vmatprep.subr.bf16.mxu0 0
  %1297 = vmatpush1.bf16.msra.mxu0 0
  %1298 = vmatprep.subr.bf16.mxu0 0
  %1299 = vmatpush1.bf16.msra.mxu0 0
  %1300 = vmatprep.subr.bf16.mxu0 0
  %1301 = vmatpush1.bf16.msra.mxu0 %v1281
  %1302 = vmatprep.subr.bf16.mxu0 0
  %1303 = vmatpush1.bf16.msra.mxu0 %v1280
  %1304 = vmatprep.subr.bf16.mxu0 0
  %1305 = vmatpush1.bf16.msra.mxu0 %v1279
  %1306 = vmatprep.subr.bf16.mxu0 0
  %1307 = vmatpush1.bf16.msra.mxu0 %v1278
  %1308 = vmatprep.subr.bf16.mxu0 0
  %1309 = vmatpush2.bf16.msra.mxu0 0
  %1310 = vmatprep.subr.bf16.mxu0 0
  %1311 = vmatpush2.bf16.msra.mxu0 0
  %1312 = vmatprep.subr.bf16.mxu0 0
  %1313 = vmatpush2.bf16.msra.mxu0 0
  %1314 = vmatprep.subr.bf16.mxu0 0
  %1315 = vmatpush2.bf16.msra.mxu0 0
  %1316 = vmatprep.subr.bf16.mxu0 0
  %1317 = vmatpush2.bf16.msra.mxu0 0
  %1318 = vmatprep.subr.bf16.mxu0 0
  %1319 = vmatpush2.bf16.msra.mxu0 0
  %1320 = vmatprep.subr.bf16.mxu0 0
  %1321 = vmatpush2.bf16.msra.mxu0 0
  %1322 = vmatprep.subr.bf16.mxu0 0
  %1323 = vmatpush2.bf16.msra.mxu0 0
  %1324 = vmatprep.mubr.bf16.mxu0 0
  %1325 = vmatmul.mubr.bf16.gmra.mxu0 %v1287
  %v1326 = vpop.f32.mrf.mxu0
  %v1327 = vadd.f32 0.0, %v1326
  %v1328 = vpop.f32.mrf.mxu0
  %v1329 = vpop.f32.mrf.mxu0
  %v1330 = vadd.f32 0.0, %v1329
  %v1331 = vpop.f32.mrf.mxu0
  %1332 = vmatprep.mubr.bf16.mxu0 0
  %1333 = vmatmul.mubr.bf16.gmra.mxu0 %v1290
  %v1334 = vpop.f32.mrf.mxu0
  %v1335 = vadd.f32 0.0, %v1334
  %v1336 = vpop.f32.mrf.mxu0
  %v1337 = vpop.f32.mrf.mxu0
  %v1338 = vadd.f32 0.0, %v1337
  %v1339 = vpop.f32.mrf.mxu0
  %1340 = vdwg.mxu0
  %v1341 = vadd.f32 %v1183, %v1327
  %v1342 = vadd.f32 %v1184, %v1330
  %v1343 = vadd.f32 %v1185, %v1335
  %v1344 = vadd.f32 %v1186, %v1338
  %v1345 = vld [vmem:[%s3 + $0x40] sm:$0xf]
  %v1346 = vld [vmem:[%s3 + $0x44] sm:$0xf]
  %v1347 = vld [vmem:[%s3 + $0x48] sm:$0xf]
  %v1348 = vld [vmem:[%s3 + $0x4c] sm:$0xf]
  %v1353 = vunpack.c.l.b16 %v1345
  %v1354 = vunpack.c.l.b16 %v1346
  %v1355 = vunpack.c.l.b16 %v1347
  %v1356 = vunpack.c.l.b16 %v1348
  %v1357 = vpack.c.b16 %v1354, %v1353
  %v1358 = vpack.c.b16 %v1356, %v1355
  %1361 = vmatprep.subr.bf16.mxu0 0
  %1362 = vmatpush1.bf16.msra.mxu0 %v719
  %1363 = vmatprep.subr.bf16.mxu0 0
  %1364 = vmatpush1.bf16.msra.mxu0 %v718
  %1365 = vmatprep.subr.bf16.mxu0 0
  %1366 = vmatpush1.bf16.msra.mxu0 %v717
  %1367 = vmatprep.subr.bf16.mxu0 0
  %1368 = vmatpush1.bf16.msra.mxu0 %v716
  %1369 = vmatprep.subr.bf16.mxu0 0
  %1370 = vmatpush1.bf16.msra.mxu0 %v715
  %1371 = vmatprep.subr.bf16.mxu0 0
  %1372 = vmatpush1.bf16.msra.mxu0 %v714
  %1373 = vmatprep.subr.bf16.mxu0 0
  %1374 = vmatpush1.bf16.msra.mxu0 %v713
  %1375 = vmatprep.subr.bf16.mxu0 0
  %1376 = vmatpush1.bf16.msra.mxu0 %v712
  %1377 = vmatprep.subr.bf16.mxu0 0
  %1378 = vmatpush2.bf16.msra.mxu0 0
  %1379 = vmatprep.subr.bf16.mxu0 0
  %1380 = vmatpush2.bf16.msra.mxu0 0
  %1381 = vmatprep.subr.bf16.mxu0 0
  %1382 = vmatpush2.bf16.msra.mxu0 0
  %1383 = vmatprep.subr.bf16.mxu0 0
  %1384 = vmatpush2.bf16.msra.mxu0 0
  %1385 = vmatprep.subr.bf16.mxu0 0
  %1386 = vmatpush2.bf16.msra.mxu0 0
  %1387 = vmatprep.subr.bf16.mxu0 0
  %1388 = vmatpush2.bf16.msra.mxu0 0
  %1389 = vmatprep.subr.bf16.mxu0 0
  %1390 = vmatpush2.bf16.msra.mxu0 0
  %1391 = vmatprep.subr.bf16.mxu0 0
  %1392 = vmatpush2.bf16.msra.mxu0 0
  %1393 = vmatprep.mubr.bf16.mxu0 0
  %1394 = vmatmul.mubr.bf16.gmra.mxu0 %v1357
  %v1395 = vpop.f32.mrf.mxu0
  %v1396 = vadd.f32 0.0, %v1395
  %v1397 = vpop.f32.mrf.mxu0
  %v1398 = vpop.f32.mrf.mxu0
  %v1399 = vadd.f32 0.0, %v1398
  %v1400 = vpop.f32.mrf.mxu0
  %1401 = vmatprep.mubr.bf16.mxu0 0
  %1402 = vmatmul.mubr.bf16.gmra.mxu0 %v1358
  %v1403 = vpop.f32.mrf.mxu0
  %v1404 = vadd.f32 0.0, %v1403
  %v1405 = vpop.f32.mrf.mxu0
  %v1406 = vpop.f32.mrf.mxu0
  %v1407 = vadd.f32 0.0, %v1406
  %v1408 = vpop.f32.mrf.mxu0
  %1409 = vdwg.mxu0
  %v1410 = vpack.c.bf16 %v1399, %v1396
  %v1411 = vpack.c.bf16 %v1407, %v1404
  %v1412 = vld [vmem:[%s4 + $0x80] sm:$0xf]
  %v1413 = vld [vmem:[%s4 + $0x84] sm:$0xf]
  %v1414 = vld [vmem:[%s4 + $0x88] sm:$0xf]
  %v1415 = vld [vmem:[%s4 + $0x8c] sm:$0xf]
  %v1416 = vld [vmem:[%s4 + $0x90] sm:$0xf]
  %v1417 = vld [vmem:[%s4 + $0x94] sm:$0xf]
  %v1418 = vld [vmem:[%s4 + $0x98] sm:$0xf]
  %v1419 = vld [vmem:[%s4 + $0x9c] sm:$0xf]
  %v1428 = vunpack.c.l.b16 %v1412
  %v1429 = vunpack.c.l.b16 %v1413
  %v1430 = vunpack.c.l.b16 %v1414
  %v1431 = vunpack.c.l.b16 %v1415
  %v1432 = vunpack.c.l.b16 %v1416
  %v1433 = vunpack.c.l.b16 %v1417
  %v1434 = vunpack.c.l.b16 %v1418
  %v1435 = vunpack.c.l.b16 %v1419
  %v1436 = vpack.c.b16 %v1429, %v1428
  %v1437 = vpack.c.b16 %v1431, %v1430
  %v1438 = vpack.c.b16 %v1433, %v1432
  %v1439 = vpack.c.b16 %v1435, %v1434
  %v1445 = vsel %vm894, %v1410, 0
  %v1448 = vsel %vm894, %v1411, 0
  %1450 = vmatprep.subr.bf16.mxu0 0
  %1451 = vmatpush1.bf16.msra.mxu0 0
  %1452 = vmatprep.subr.bf16.mxu0 0
  %1453 = vmatpush1.bf16.msra.mxu0 0
  %1454 = vmatprep.subr.bf16.mxu0 0
  %1455 = vmatpush1.bf16.msra.mxu0 0
  %1456 = vmatprep.subr.bf16.mxu0 0
  %1457 = vmatpush1.bf16.msra.mxu0 0
  %1458 = vmatprep.subr.bf16.mxu0 0
  %1459 = vmatpush1.bf16.msra.mxu0 %v1439
  %1460 = vmatprep.subr.bf16.mxu0 0
  %1461 = vmatpush1.bf16.msra.mxu0 %v1438
  %1462 = vmatprep.subr.bf16.mxu0 0
  %1463 = vmatpush1.bf16.msra.mxu0 %v1437
  %1464 = vmatprep.subr.bf16.mxu0 0
  %1465 = vmatpush1.bf16.msra.mxu0 %v1436
  %1466 = vmatprep.subr.bf16.mxu0 0
  %1467 = vmatpush2.bf16.msra.mxu0 0
  %1468 = vmatprep.subr.bf16.mxu0 0
  %1469 = vmatpush2.bf16.msra.mxu0 0
  %1470 = vmatprep.subr.bf16.mxu0 0
  %1471 = vmatpush2.bf16.msra.mxu0 0
  %1472 = vmatprep.subr.bf16.mxu0 0
  %1473 = vmatpush2.bf16.msra.mxu0 0
  %1474 = vmatprep.subr.bf16.mxu0 0
  %1475 = vmatpush2.bf16.msra.mxu0 0
  %1476 = vmatprep.subr.bf16.mxu0 0
  %1477 = vmatpush2.bf16.msra.mxu0 0
  %1478 = vmatprep.subr.bf16.mxu0 0
  %1479 = vmatpush2.bf16.msra.mxu0 0
  %1480 = vmatprep.subr.bf16.mxu0 0
  %1481 = vmatpush2.bf16.msra.mxu0 0
  %1482 = vmatprep.mubr.bf16.mxu0 0
  %1483 = vmatmul.mubr.bf16.gmra.mxu0 %v1445
  %v1484 = vpop.f32.mrf.mxu0
  %v1485 = vadd.f32 0.0, %v1484
  %v1486 = vpop.f32.mrf.mxu0
  %v1487 = vpop.f32.mrf.mxu0
  %v1488 = vadd.f32 0.0, %v1487
  %v1489 = vpop.f32.mrf.mxu0
  %1490 = vmatprep.mubr.bf16.mxu0 0
  %1491 = vmatmul.mubr.bf16.gmra.mxu0 %v1448
  %v1492 = vpop.f32.mrf.mxu0
  %v1493 = vadd.f32 0.0, %v1492
  %v1494 = vpop.f32.mrf.mxu0
  %v1495 = vpop.f32.mrf.mxu0
  %v1496 = vadd.f32 0.0, %v1495
  %v1497 = vpop.f32.mrf.mxu0
  %1498 = vdwg.mxu0
  %v1499 = vadd.f32 %v1341, %v1485
  %v1500 = vadd.f32 %v1342, %v1488
  %v1501 = vadd.f32 %v1343, %v1493
  %v1502 = vadd.f32 %v1344, %v1496
  %v1503 = vld [vmem:[%s3 + $0x50] sm:$0xf]
  %v1504 = vld [vmem:[%s3 + $0x54] sm:$0xf]
  %v1505 = vld [vmem:[%s3 + $0x58] sm:$0xf]
  %v1506 = vld [vmem:[%s3 + $0x5c] sm:$0xf]
  %v1511 = vunpack.c.l.b16 %v1503
  %v1512 = vunpack.c.l.b16 %v1504
  %v1513 = vunpack.c.l.b16 %v1505
  %v1514 = vunpack.c.l.b16 %v1506
  %v1515 = vpack.c.b16 %v1512, %v1511
  %v1516 = vpack.c.b16 %v1514, %v1513
  %1519 = vmatprep.subr.bf16.mxu0 0
  %1520 = vmatpush1.bf16.msra.mxu0 %v719
  %1521 = vmatprep.subr.bf16.mxu0 0
  %1522 = vmatpush1.bf16.msra.mxu0 %v718
  %1523 = vmatprep.subr.bf16.mxu0 0
  %1524 = vmatpush1.bf16.msra.mxu0 %v717
  %1525 = vmatprep.subr.bf16.mxu0 0
  %1526 = vmatpush1.bf16.msra.mxu0 %v716
  %1527 = vmatprep.subr.bf16.mxu0 0
  %1528 = vmatpush1.bf16.msra.mxu0 %v715
  %1529 = vmatprep.subr.bf16.mxu0 0
  %1530 = vmatpush1.bf16.msra.mxu0 %v714
  %1531 = vmatprep.subr.bf16.mxu0 0
  %1532 = vmatpush1.bf16.msra.mxu0 %v713
  %1533 = vmatprep.subr.bf16.mxu0 0
  %1534 = vmatpush1.bf16.msra.mxu0 %v712
  %1535 = vmatprep.subr.bf16.mxu0 0
  %1536 = vmatpush2.bf16.msra.mxu0 0
  %1537 = vmatprep.subr.bf16.mxu0 0
  %1538 = vmatpush2.bf16.msra.mxu0 0
  %1539 = vmatprep.subr.bf16.mxu0 0
  %1540 = vmatpush2.bf16.msra.mxu0 0
  %1541 = vmatprep.subr.bf16.mxu0 0
  %1542 = vmatpush2.bf16.msra.mxu0 0
  %1543 = vmatprep.subr.bf16.mxu0 0
  %1544 = vmatpush2.bf16.msra.mxu0 0
  %1545 = vmatprep.subr.bf16.mxu0 0
  %1546 = vmatpush2.bf16.msra.mxu0 0
  %1547 = vmatprep.subr.bf16.mxu0 0
  %1548 = vmatpush2.bf16.msra.mxu0 0
  %1549 = vmatprep.subr.bf16.mxu0 0
  %1550 = vmatpush2.bf16.msra.mxu0 0
  %1551 = vmatprep.mubr.bf16.mxu0 0
  %1552 = vmatmul.mubr.bf16.gmra.mxu0 %v1515
  %v1553 = vpop.f32.mrf.mxu0
  %v1554 = vadd.f32 0.0, %v1553
  %v1555 = vpop.f32.mrf.mxu0
  %v1556 = vpop.f32.mrf.mxu0
  %v1557 = vadd.f32 0.0, %v1556
  %v1558 = vpop.f32.mrf.mxu0
  %1559 = vmatprep.mubr.bf16.mxu0 0
  %1560 = vmatmul.mubr.bf16.gmra.mxu0 %v1516
  %v1561 = vpop.f32.mrf.mxu0
  %v1562 = vadd.f32 0.0, %v1561
  %v1563 = vpop.f32.mrf.mxu0
  %v1564 = vpop.f32.mrf.mxu0
  %v1565 = vadd.f32 0.0, %v1564
  %v1566 = vpop.f32.mrf.mxu0
  %1567 = vdwg.mxu0
  %v1568 = vpack.c.bf16 %v1557, %v1554
  %v1569 = vpack.c.bf16 %v1565, %v1562
  %v1570 = vld [vmem:[%s4 + $0xa0] sm:$0xf]
  %v1571 = vld [vmem:[%s4 + $0xa4] sm:$0xf]
  %v1572 = vld [vmem:[%s4 + $0xa8] sm:$0xf]
  %v1573 = vld [vmem:[%s4 + $0xac] sm:$0xf]
  %v1574 = vld [vmem:[%s4 + $0xb0] sm:$0xf]
  %v1575 = vld [vmem:[%s4 + $0xb4] sm:$0xf]
  %v1576 = vld [vmem:[%s4 + $0xb8] sm:$0xf]
  %v1577 = vld [vmem:[%s4 + $0xbc] sm:$0xf]
  %v1586 = vunpack.c.l.b16 %v1570
  %v1587 = vunpack.c.l.b16 %v1571
  %v1588 = vunpack.c.l.b16 %v1572
  %v1589 = vunpack.c.l.b16 %v1573
  %v1590 = vunpack.c.l.b16 %v1574
  %v1591 = vunpack.c.l.b16 %v1575
  %v1592 = vunpack.c.l.b16 %v1576
  %v1593 = vunpack.c.l.b16 %v1577
  %v1594 = vpack.c.b16 %v1587, %v1586
  %v1595 = vpack.c.b16 %v1589, %v1588
  %v1596 = vpack.c.b16 %v1591, %v1590
  %v1597 = vpack.c.b16 %v1593, %v1592
  %v1603 = vsel %vm894, %v1568, 0
  %v1606 = vsel %vm894, %v1569, 0
  %1608 = vmatprep.subr.bf16.mxu0 0
  %1609 = vmatpush1.bf16.msra.mxu0 0
  %1610 = vmatprep.subr.bf16.mxu0 0
  %1611 = vmatpush1.bf16.msra.mxu0 0
  %1612 = vmatprep.subr.bf16.mxu0 0
  %1613 = vmatpush1.bf16.msra.mxu0 0
  %1614 = vmatprep.subr.bf16.mxu0 0
  %1615 = vmatpush1.bf16.msra.mxu0 0
  %1616 = vmatprep.subr.bf16.mxu0 0
  %1617 = vmatpush1.bf16.msra.mxu0 %v1597
  %1618 = vmatprep.subr.bf16.mxu0 0
  %1619 = vmatpush1.bf16.msra.mxu0 %v1596
  %1620 = vmatprep.subr.bf16.mxu0 0
  %1621 = vmatpush1.bf16.msra.mxu0 %v1595
  %1622 = vmatprep.subr.bf16.mxu0 0
  %1623 = vmatpush1.bf16.msra.mxu0 %v1594
  %1624 = vmatprep.subr.bf16.mxu0 0
  %1625 = vmatpush2.bf16.msra.mxu0 0
  %1626 = vmatprep.subr.bf16.mxu0 0
  %1627 = vmatpush2.bf16.msra.mxu0 0
  %1628 = vmatprep.subr.bf16.mxu0 0
  %1629 = vmatpush2.bf16.msra.mxu0 0
  %1630 = vmatprep.subr.bf16.mxu0 0
  %1631 = vmatpush2.bf16.msra.mxu0 0
  %1632 = vmatprep.subr.bf16.mxu0 0
  %1633 = vmatpush2.bf16.msra.mxu0 0
  %1634 = vmatprep.subr.bf16.mxu0 0
  %1635 = vmatpush2.bf16.msra.mxu0 0
  %1636 = vmatprep.subr.bf16.mxu0 0
  %1637 = vmatpush2.bf16.msra.mxu0 0
  %1638 = vmatprep.subr.bf16.mxu0 0
  %1639 = vmatpush2.bf16.msra.mxu0 0
  %1640 = vmatprep.mubr.bf16.mxu0 0
  %1641 = vmatmul.mubr.bf16.gmra.mxu0 %v1603
  %v1642 = vpop.f32.mrf.mxu0
  %v1643 = vadd.f32 0.0, %v1642
  %v1644 = vpop.f32.mrf.mxu0
  %v1645 = vpop.f32.mrf.mxu0
  %v1646 = vadd.f32 0.0, %v1645
  %v1647 = vpop.f32.mrf.mxu0
  %1648 = vmatprep.mubr.bf16.mxu0 0
  %1649 = vmatmul.mubr.bf16.gmra.mxu0 %v1606
  %v1650 = vpop.f32.mrf.mxu0
  %v1651 = vadd.f32 0.0, %v1650
  %v1652 = vpop.f32.mrf.mxu0
  %v1653 = vpop.f32.mrf.mxu0
  %v1654 = vadd.f32 0.0, %v1653
  %v1655 = vpop.f32.mrf.mxu0
  %1656 = vdwg.mxu0
  %v1657 = vadd.f32 %v1499, %v1643
  %v1658 = vadd.f32 %v1500, %v1646
  %v1659 = vadd.f32 %v1501, %v1651
  %v1660 = vadd.f32 %v1502, %v1654
  %v1661 = vld [vmem:[%s3 + $0x60] sm:$0xf]
  %v1662 = vld [vmem:[%s3 + $0x64] sm:$0xf]
  %v1663 = vld [vmem:[%s3 + $0x68] sm:$0xf]
  %v1664 = vld [vmem:[%s3 + $0x6c] sm:$0xf]
  %v1669 = vunpack.c.l.b16 %v1661
  %v1670 = vunpack.c.l.b16 %v1662
  %v1671 = vunpack.c.l.b16 %v1663
  %v1672 = vunpack.c.l.b16 %v1664
  %v1673 = vpack.c.b16 %v1670, %v1669
  %v1674 = vpack.c.b16 %v1672, %v1671
  %1677 = vmatprep.subr.bf16.mxu0 0
  %1678 = vmatpush1.bf16.msra.mxu0 %v719
  %1679 = vmatprep.subr.bf16.mxu0 0
  %1680 = vmatpush1.bf16.msra.mxu0 %v718
  %1681 = vmatprep.subr.bf16.mxu0 0
  %1682 = vmatpush1.bf16.msra.mxu0 %v717
  %1683 = vmatprep.subr.bf16.mxu0 0
  %1684 = vmatpush1.bf16.msra.mxu0 %v716
  %1685 = vmatprep.subr.bf16.mxu0 0
  %1686 = vmatpush1.bf16.msra.mxu0 %v715
  %1687 = vmatprep.subr.bf16.mxu0 0
  %1688 = vmatpush1.bf16.msra.mxu0 %v714
  %1689 = vmatprep.subr.bf16.mxu0 0
  %1690 = vmatpush1.bf16.msra.mxu0 %v713
  %1691 = vmatprep.subr.bf16.mxu0 0
  %1692 = vmatpush1.bf16.msra.mxu0 %v712
  %1693 = vmatprep.subr.bf16.mxu0 0
  %1694 = vmatpush2.bf16.msra.mxu0 0
  %1695 = vmatprep.subr.bf16.mxu0 0
  %1696 = vmatpush2.bf16.msra.mxu0 0
  %1697 = vmatprep.subr.bf16.mxu0 0
  %1698 = vmatpush2.bf16.msra.mxu0 0
  %1699 = vmatprep.subr.bf16.mxu0 0
  %1700 = vmatpush2.bf16.msra.mxu0 0
  %1701 = vmatprep.subr.bf16.mxu0 0
  %1702 = vmatpush2.bf16.msra.mxu0 0
  %1703 = vmatprep.subr.bf16.mxu0 0
  %1704 = vmatpush2.bf16.msra.mxu0 0
  %1705 = vmatprep.subr.bf16.mxu0 0
  %1706 = vmatpush2.bf16.msra.mxu0 0
  %1707 = vmatprep.subr.bf16.mxu0 0
  %1708 = vmatpush2.bf16.msra.mxu0 0
  %1709 = vmatprep.mubr.bf16.mxu0 0
  %1710 = vmatmul.mubr.bf16.gmra.mxu0 %v1673
  %v1711 = vpop.f32.mrf.mxu0
  %v1712 = vadd.f32 0.0, %v1711
  %v1713 = vpop.f32.mrf.mxu0
  %v1714 = vpop.f32.mrf.mxu0
  %v1715 = vadd.f32 0.0, %v1714
  %v1716 = vpop.f32.mrf.mxu0
  %1717 = vmatprep.mubr.bf16.mxu0 0
  %1718 = vmatmul.mubr.bf16.gmra.mxu0 %v1674
  %v1719 = vpop.f32.mrf.mxu0
  %v1720 = vadd.f32 0.0, %v1719
  %v1721 = vpop.f32.mrf.mxu0
  %v1722 = vpop.f32.mrf.mxu0
  %v1723 = vadd.f32 0.0, %v1722
  %v1724 = vpop.f32.mrf.mxu0
  %1725 = vdwg.mxu0
  %v1726 = vpack.c.bf16 %v1715, %v1712
  %v1727 = vpack.c.bf16 %v1723, %v1720
  %v1728 = vld [vmem:[%s4 + $0xc0] sm:$0xf]
  %v1729 = vld [vmem:[%s4 + $0xc4] sm:$0xf]
  %v1730 = vld [vmem:[%s4 + $0xc8] sm:$0xf]
  %v1731 = vld [vmem:[%s4 + $0xcc] sm:$0xf]
  %v1732 = vld [vmem:[%s4 + $0xd0] sm:$0xf]
  %v1733 = vld [vmem:[%s4 + $0xd4] sm:$0xf]
  %v1734 = vld [vmem:[%s4 + $0xd8] sm:$0xf]
  %v1735 = vld [vmem:[%s4 + $0xdc] sm:$0xf]
  %v1744 = vunpack.c.l.b16 %v1728
  %v1745 = vunpack.c.l.b16 %v1729
  %v1746 = vunpack.c.l.b16 %v1730
  %v1747 = vunpack.c.l.b16 %v1731
  %v1748 = vunpack.c.l.b16 %v1732
  %v1749 = vunpack.c.l.b16 %v1733
  %v1750 = vunpack.c.l.b16 %v1734
  %v1751 = vunpack.c.l.b16 %v1735
  %v1752 = vpack.c.b16 %v1745, %v1744
  %v1753 = vpack.c.b16 %v1747, %v1746
  %v1754 = vpack.c.b16 %v1749, %v1748
  %v1755 = vpack.c.b16 %v1751, %v1750
  %v1761 = vsel %vm894, %v1726, 0
  %v1764 = vsel %vm894, %v1727, 0
  %1766 = vmatprep.subr.bf16.mxu0 0
  %1767 = vmatpush1.bf16.msra.mxu0 0
  %1768 = vmatprep.subr.bf16.mxu0 0
  %1769 = vmatpush1.bf16.msra.mxu0 0
  %1770 = vmatprep.subr.bf16.mxu0 0
  %1771 = vmatpush1.bf16.msra.mxu0 0
  %1772 = vmatprep.subr.bf16.mxu0 0
  %1773 = vmatpush1.bf16.msra.mxu0 0
  %1774 = vmatprep.subr.bf16.mxu0 0
  %1775 = vmatpush1.bf16.msra.mxu0 %v1755
  %1776 = vmatprep.subr.bf16.mxu0 0
  %1777 = vmatpush1.bf16.msra.mxu0 %v1754
  %1778 = vmatprep.subr.bf16.mxu0 0
  %1779 = vmatpush1.bf16.msra.mxu0 %v1753
  %1780 = vmatprep.subr.bf16.mxu0 0
  %1781 = vmatpush1.bf16.msra.mxu0 %v1752
  %1782 = vmatprep.subr.bf16.mxu0 0
  %1783 = vmatpush2.bf16.msra.mxu0 0
  %1784 = vmatprep.subr.bf16.mxu0 0
  %1785 = vmatpush2.bf16.msra.mxu0 0
  %1786 = vmatprep.subr.bf16.mxu0 0
  %1787 = vmatpush2.bf16.msra.mxu0 0
  %1788 = vmatprep.subr.bf16.mxu0 0
  %1789 = vmatpush2.bf16.msra.mxu0 0
  %1790 = vmatprep.subr.bf16.mxu0 0
  %1791 = vmatpush2.bf16.msra.mxu0 0
  %1792 = vmatprep.subr.bf16.mxu0 0
  %1793 = vmatpush2.bf16.msra.mxu0 0
  %1794 = vmatprep.subr.bf16.mxu0 0
  %1795 = vmatpush2.bf16.msra.mxu0 0
  %1796 = vmatprep.subr.bf16.mxu0 0
  %1797 = vmatpush2.bf16.msra.mxu0 0
  %1798 = vmatprep.mubr.bf16.mxu0 0
  %1799 = vmatmul.mubr.bf16.gmra.mxu0 %v1761
  %v1800 = vpop.f32.mrf.mxu0
  %v1801 = vadd.f32 0.0, %v1800
  %v1802 = vpop.f32.mrf.mxu0
  %v1803 = vpop.f32.mrf.mxu0
  %v1804 = vadd.f32 0.0, %v1803
  %v1805 = vpop.f32.mrf.mxu0
  %1806 = vmatprep.mubr.bf16.mxu0 0
  %1807 = vmatmul.mubr.bf16.gmra.mxu0 %v1764
  %v1808 = vpop.f32.mrf.mxu0
  %v1809 = vadd.f32 0.0, %v1808
  %v1810 = vpop.f32.mrf.mxu0
  %v1811 = vpop.f32.mrf.mxu0
  %v1812 = vadd.f32 0.0, %v1811
  %v1813 = vpop.f32.mrf.mxu0
  %1814 = vdwg.mxu0
  %v1815 = vadd.f32 %v1657, %v1801
  %v1816 = vadd.f32 %v1658, %v1804
  %v1817 = vadd.f32 %v1659, %v1809
  %v1818 = vadd.f32 %v1660, %v1812
  %v1819 = vld [vmem:[%s3 + $0x70] sm:$0xf]
  %v1820 = vld [vmem:[%s3 + $0x74] sm:$0xf]
  %v1821 = vld [vmem:[%s3 + $0x78] sm:$0xf]
  %v1822 = vld [vmem:[%s3 + $0x7c] sm:$0xf]
  %v1827 = vunpack.c.l.b16 %v1819
  %v1828 = vunpack.c.l.b16 %v1820
  %v1829 = vunpack.c.l.b16 %v1821
  %v1830 = vunpack.c.l.b16 %v1822
  %v1831 = vpack.c.b16 %v1828, %v1827
  %v1832 = vpack.c.b16 %v1830, %v1829
  %1835 = vmatprep.subr.bf16.mxu0 0
  %1836 = vmatpush1.bf16.msra.mxu0 %v719
  %1837 = vmatprep.subr.bf16.mxu0 0
  %1838 = vmatpush1.bf16.msra.mxu0 %v718
  %1839 = vmatprep.subr.bf16.mxu0 0
  %1840 = vmatpush1.bf16.msra.mxu0 %v717
  %1841 = vmatprep.subr.bf16.mxu0 0
  %1842 = vmatpush1.bf16.msra.mxu0 %v716
  %1843 = vmatprep.subr.bf16.mxu0 0
  %1844 = vmatpush1.bf16.msra.mxu0 %v715
  %1845 = vmatprep.subr.bf16.mxu0 0
  %1846 = vmatpush1.bf16.msra.mxu0 %v714
  %1847 = vmatprep.subr.bf16.mxu0 0
  %1848 = vmatpush1.bf16.msra.mxu0 %v713
  %1849 = vmatprep.subr.bf16.mxu0 0
  %1850 = vmatpush1.bf16.msra.mxu0 %v712
  %1851 = vmatprep.subr.bf16.mxu0 0
  %1852 = vmatpush2.bf16.msra.mxu0 0
  %1853 = vmatprep.subr.bf16.mxu0 0
  %1854 = vmatpush2.bf16.msra.mxu0 0
  %1855 = vmatprep.subr.bf16.mxu0 0
  %1856 = vmatpush2.bf16.msra.mxu0 0
  %1857 = vmatprep.subr.bf16.mxu0 0
  %1858 = vmatpush2.bf16.msra.mxu0 0
  %1859 = vmatprep.subr.bf16.mxu0 0
  %1860 = vmatpush2.bf16.msra.mxu0 0
  %1861 = vmatprep.subr.bf16.mxu0 0
  %1862 = vmatpush2.bf16.msra.mxu0 0
  %1863 = vmatprep.subr.bf16.mxu0 0
  %1864 = vmatpush2.bf16.msra.mxu0 0
  %1865 = vmatprep.subr.bf16.mxu0 0
  %1866 = vmatpush2.bf16.msra.mxu0 0
  %1867 = vmatprep.mubr.bf16.mxu0 0
  %1868 = vmatmul.mubr.bf16.gmra.mxu0 %v1831
  %v1869 = vpop.f32.mrf.mxu0
  %v1870 = vadd.f32 0.0, %v1869
  %v1871 = vpop.f32.mrf.mxu0
  %v1872 = vpop.f32.mrf.mxu0
  %v1873 = vadd.f32 0.0, %v1872
  %v1874 = vpop.f32.mrf.mxu0
  %1875 = vmatprep.mubr.bf16.mxu0 0
  %1876 = vmatmul.mubr.bf16.gmra.mxu0 %v1832
  %v1877 = vpop.f32.mrf.mxu0
  %v1878 = vadd.f32 0.0, %v1877
  %v1879 = vpop.f32.mrf.mxu0
  %v1880 = vpop.f32.mrf.mxu0
  %v1881 = vadd.f32 0.0, %v1880
  %v1882 = vpop.f32.mrf.mxu0
  %1883 = vdwg.mxu0
  %v1884 = vpack.c.bf16 %v1873, %v1870
  %v1885 = vpack.c.bf16 %v1881, %v1878
  %v1886 = vld [vmem:[%s4 + $0xe0] sm:$0xf]
  %v1887 = vld [vmem:[%s4 + $0xe4] sm:$0xf]
  %v1888 = vld [vmem:[%s4 + $0xe8] sm:$0xf]
  %v1889 = vld [vmem:[%s4 + $0xec] sm:$0xf]
  %v1890 = vld [vmem:[%s4 + $0xf0] sm:$0xf]
  %v1891 = vld [vmem:[%s4 + $0xf4] sm:$0xf]
  %v1892 = vld [vmem:[%s4 + $0xf8] sm:$0xf]
  %v1893 = vld [vmem:[%s4 + $0xfc] sm:$0xf]
  %v1902 = vunpack.c.l.b16 %v1886
  %v1903 = vunpack.c.l.b16 %v1887
  %v1904 = vunpack.c.l.b16 %v1888
  %v1905 = vunpack.c.l.b16 %v1889
  %v1906 = vunpack.c.l.b16 %v1890
  %v1907 = vunpack.c.l.b16 %v1891
  %v1908 = vunpack.c.l.b16 %v1892
  %v1909 = vunpack.c.l.b16 %v1893
  %v1910 = vpack.c.b16 %v1903, %v1902
  %v1911 = vpack.c.b16 %v1905, %v1904
  %v1912 = vpack.c.b16 %v1907, %v1906
  %v1913 = vpack.c.b16 %v1909, %v1908
  %v1919 = vsel %vm894, %v1884, 0
  %v1922 = vsel %vm894, %v1885, 0
  %1924 = vmatprep.subr.bf16.mxu0 0
  %1925 = vmatpush1.bf16.msra.mxu0 0
  %1926 = vmatprep.subr.bf16.mxu0 0
  %1927 = vmatpush1.bf16.msra.mxu0 0
  %1928 = vmatprep.subr.bf16.mxu0 0
  %1929 = vmatpush1.bf16.msra.mxu0 0
  %1930 = vmatprep.subr.bf16.mxu0 0
  %1931 = vmatpush1.bf16.msra.mxu0 0
  %1932 = vmatprep.subr.bf16.mxu0 0
  %1933 = vmatpush1.bf16.msra.mxu0 %v1913
  %1934 = vmatprep.subr.bf16.mxu0 0
  %1935 = vmatpush1.bf16.msra.mxu0 %v1912
  %1936 = vmatprep.subr.bf16.mxu0 0
  %1937 = vmatpush1.bf16.msra.mxu0 %v1911
  %1938 = vmatprep.subr.bf16.mxu0 0
  %1939 = vmatpush1.bf16.msra.mxu0 %v1910
  %1940 = vmatprep.subr.bf16.mxu0 0
  %1941 = vmatpush2.bf16.msra.mxu0 0
  %1942 = vmatprep.subr.bf16.mxu0 0
  %1943 = vmatpush2.bf16.msra.mxu0 0
  %1944 = vmatprep.subr.bf16.mxu0 0
  %1945 = vmatpush2.bf16.msra.mxu0 0
  %1946 = vmatprep.subr.bf16.mxu0 0
  %1947 = vmatpush2.bf16.msra.mxu0 0
  %1948 = vmatprep.subr.bf16.mxu0 0
  %1949 = vmatpush2.bf16.msra.mxu0 0
  %1950 = vmatprep.subr.bf16.mxu0 0
  %1951 = vmatpush2.bf16.msra.mxu0 0
  %1952 = vmatprep.subr.bf16.mxu0 0
  %1953 = vmatpush2.bf16.msra.mxu0 0
  %1954 = vmatprep.subr.bf16.mxu0 0
  %1955 = vmatpush2.bf16.msra.mxu0 0
  %1956 = vmatprep.mubr.bf16.mxu0 0
  %1957 = vmatmul.mubr.bf16.gmra.mxu0 %v1919
  %v1958 = vpop.f32.mrf.mxu0
  %v1959 = vadd.f32 0.0, %v1958
  %v1960 = vpop.f32.mrf.mxu0
  %v1961 = vpop.f32.mrf.mxu0
  %v1962 = vadd.f32 0.0, %v1961
  %v1963 = vpop.f32.mrf.mxu0
  %1964 = vmatprep.mubr.bf16.mxu0 0
  %1965 = vmatmul.mubr.bf16.gmra.mxu0 %v1922
  %v1966 = vpop.f32.mrf.mxu0
  %v1967 = vadd.f32 0.0, %v1966
  %v1968 = vpop.f32.mrf.mxu0
  %v1969 = vpop.f32.mrf.mxu0
  %v1970 = vadd.f32 0.0, %v1969
  %v1971 = vpop.f32.mrf.mxu0
  %1972 = vdwg.mxu0
  %v1973 = vadd.f32 %v1815, %v1959
  %v1974 = vadd.f32 %v1816, %v1962
  %v1975 = vadd.f32 %v1817, %v1967
  %v1976 = vadd.f32 %v1818, %v1970
  %v1977 = vld [vmem:[%s3 + $0x80] sm:$0xf]
  %v1978 = vld [vmem:[%s3 + $0x84] sm:$0xf]
  %v1979 = vld [vmem:[%s3 + $0x88] sm:$0xf]
  %v1980 = vld [vmem:[%s3 + $0x8c] sm:$0xf]
  %v1985 = vunpack.c.l.b16 %v1977
  %v1986 = vunpack.c.l.b16 %v1978
  %v1987 = vunpack.c.l.b16 %v1979
  %v1988 = vunpack.c.l.b16 %v1980
  %v1989 = vpack.c.b16 %v1986, %v1985
  %v1990 = vpack.c.b16 %v1988, %v1987
  %1993 = vmatprep.subr.bf16.mxu0 0
  %1994 = vmatpush1.bf16.msra.mxu0 %v719
  %1995 = vmatprep.subr.bf16.mxu0 0
  %1996 = vmatpush1.bf16.msra.mxu0 %v718
  %1997 = vmatprep.subr.bf16.mxu0 0
  %1998 = vmatpush1.bf16.msra.mxu0 %v717
  %1999 = vmatprep.subr.bf16.mxu0 0
  %2000 = vmatpush1.bf16.msra.mxu0 %v716
  %2001 = vmatprep.subr.bf16.mxu0 0
  %2002 = vmatpush1.bf16.msra.mxu0 %v715
  %2003 = vmatprep.subr.bf16.mxu0 0
  %2004 = vmatpush1.bf16.msra.mxu0 %v714
  %2005 = vmatprep.subr.bf16.mxu0 0
  %2006 = vmatpush1.bf16.msra.mxu0 %v713
  %2007 = vmatprep.subr.bf16.mxu0 0
  %2008 = vmatpush1.bf16.msra.mxu0 %v712
  %2009 = vmatprep.subr.bf16.mxu0 0
  %2010 = vmatpush2.bf16.msra.mxu0 0
  %2011 = vmatprep.subr.bf16.mxu0 0
  %2012 = vmatpush2.bf16.msra.mxu0 0
  %2013 = vmatprep.subr.bf16.mxu0 0
  %2014 = vmatpush2.bf16.msra.mxu0 0
  %2015 = vmatprep.subr.bf16.mxu0 0
  %2016 = vmatpush2.bf16.msra.mxu0 0
  %2017 = vmatprep.subr.bf16.mxu0 0
  %2018 = vmatpush2.bf16.msra.mxu0 0
  %2019 = vmatprep.subr.bf16.mxu0 0
  %2020 = vmatpush2.bf16.msra.mxu0 0
  %2021 = vmatprep.subr.bf16.mxu0 0
  %2022 = vmatpush2.bf16.msra.mxu0 0
  %2023 = vmatprep.subr.bf16.mxu0 0
  %2024 = vmatpush2.bf16.msra.mxu0 0
  %2025 = vmatprep.mubr.bf16.mxu0 0
  %2026 = vmatmul.mubr.bf16.gmra.mxu0 %v1989
  %v2027 = vpop.f32.mrf.mxu0
  %v2028 = vadd.f32 0.0, %v2027
  %v2029 = vpop.f32.mrf.mxu0
  %v2030 = vpop.f32.mrf.mxu0
  %v2031 = vadd.f32 0.0, %v2030
  %v2032 = vpop.f32.mrf.mxu0
  %2033 = vmatprep.mubr.bf16.mxu0 0
  %2034 = vmatmul.mubr.bf16.gmra.mxu0 %v1990
  %v2035 = vpop.f32.mrf.mxu0
  %v2036 = vadd.f32 0.0, %v2035
  %v2037 = vpop.f32.mrf.mxu0
  %v2038 = vpop.f32.mrf.mxu0
  %v2039 = vadd.f32 0.0, %v2038
  %v2040 = vpop.f32.mrf.mxu0
  %2041 = vdwg.mxu0
  %v2042 = vpack.c.bf16 %v2031, %v2028
  %v2043 = vpack.c.bf16 %v2039, %v2036
  %v2044 = vld [vmem:[%s4 + $0x100] sm:$0xf]
  %v2045 = vld [vmem:[%s4 + $0x104] sm:$0xf]
  %v2046 = vld [vmem:[%s4 + $0x108] sm:$0xf]
  %v2047 = vld [vmem:[%s4 + $0x10c] sm:$0xf]
  %v2048 = vld [vmem:[%s4 + $0x110] sm:$0xf]
  %v2049 = vld [vmem:[%s4 + $0x114] sm:$0xf]
  %v2050 = vld [vmem:[%s4 + $0x118] sm:$0xf]
  %v2051 = vld [vmem:[%s4 + $0x11c] sm:$0xf]
  %v2060 = vunpack.c.l.b16 %v2044
  %v2061 = vunpack.c.l.b16 %v2045
  %v2062 = vunpack.c.l.b16 %v2046
  %v2063 = vunpack.c.l.b16 %v2047
  %v2064 = vunpack.c.l.b16 %v2048
  %v2065 = vunpack.c.l.b16 %v2049
  %v2066 = vunpack.c.l.b16 %v2050
  %v2067 = vunpack.c.l.b16 %v2051
  %v2068 = vpack.c.b16 %v2061, %v2060
  %v2069 = vpack.c.b16 %v2063, %v2062
  %v2070 = vpack.c.b16 %v2065, %v2064
  %v2071 = vpack.c.b16 %v2067, %v2066
  %v2077 = vsel %vm894, %v2042, 0
  %v2080 = vsel %vm894, %v2043, 0
  %2082 = vmatprep.subr.bf16.mxu0 0
  %2083 = vmatpush1.bf16.msra.mxu0 0
  %2084 = vmatprep.subr.bf16.mxu0 0
  %2085 = vmatpush1.bf16.msra.mxu0 0
  %2086 = vmatprep.subr.bf16.mxu0 0
  %2087 = vmatpush1.bf16.msra.mxu0 0
  %2088 = vmatprep.subr.bf16.mxu0 0
  %2089 = vmatpush1.bf16.msra.mxu0 0
  %2090 = vmatprep.subr.bf16.mxu0 0
  %2091 = vmatpush1.bf16.msra.mxu0 %v2071
  %2092 = vmatprep.subr.bf16.mxu0 0
  %2093 = vmatpush1.bf16.msra.mxu0 %v2070
  %2094 = vmatprep.subr.bf16.mxu0 0
  %2095 = vmatpush1.bf16.msra.mxu0 %v2069
  %2096 = vmatprep.subr.bf16.mxu0 0
  %2097 = vmatpush1.bf16.msra.mxu0 %v2068
  %2098 = vmatprep.subr.bf16.mxu0 0
  %2099 = vmatpush2.bf16.msra.mxu0 0
  %2100 = vmatprep.subr.bf16.mxu0 0
  %2101 = vmatpush2.bf16.msra.mxu0 0
  %2102 = vmatprep.subr.bf16.mxu0 0
  %2103 = vmatpush2.bf16.msra.mxu0 0
  %2104 = vmatprep.subr.bf16.mxu0 0
  %2105 = vmatpush2.bf16.msra.mxu0 0
  %2106 = vmatprep.subr.bf16.mxu0 0
  %2107 = vmatpush2.bf16.msra.mxu0 0
  %2108 = vmatprep.subr.bf16.mxu0 0
  %2109 = vmatpush2.bf16.msra.mxu0 0
  %2110 = vmatprep.subr.bf16.mxu0 0
  %2111 = vmatpush2.bf16.msra.mxu0 0
  %2112 = vmatprep.subr.bf16.mxu0 0
  %2113 = vmatpush2.bf16.msra.mxu0 0
  %2114 = vmatprep.mubr.bf16.mxu0 0
  %2115 = vmatmul.mubr.bf16.gmra.mxu0 %v2077
  %v2116 = vpop.f32.mrf.mxu0
  %v2117 = vadd.f32 0.0, %v2116
  %v2118 = vpop.f32.mrf.mxu0
  %v2119 = vpop.f32.mrf.mxu0
  %v2120 = vadd.f32 0.0, %v2119
  %v2121 = vpop.f32.mrf.mxu0
  %2122 = vmatprep.mubr.bf16.mxu0 0
  %2123 = vmatmul.mubr.bf16.gmra.mxu0 %v2080
  %v2124 = vpop.f32.mrf.mxu0
  %v2125 = vadd.f32 0.0, %v2124
  %v2126 = vpop.f32.mrf.mxu0
  %v2127 = vpop.f32.mrf.mxu0
  %v2128 = vadd.f32 0.0, %v2127
  %v2129 = vpop.f32.mrf.mxu0
  %2130 = vdwg.mxu0
  %v2131 = vadd.f32 %v1973, %v2117
  %v2132 = vadd.f32 %v1974, %v2120
  %v2133 = vadd.f32 %v1975, %v2125
  %v2134 = vadd.f32 %v1976, %v2128
  %v2135 = vld [vmem:[%s3 + $0x90] sm:$0xf]
  %v2136 = vld [vmem:[%s3 + $0x94] sm:$0xf]
  %v2137 = vld [vmem:[%s3 + $0x98] sm:$0xf]
  %v2138 = vld [vmem:[%s3 + $0x9c] sm:$0xf]
  %v2143 = vunpack.c.l.b16 %v2135
  %v2144 = vunpack.c.l.b16 %v2136
  %v2145 = vunpack.c.l.b16 %v2137
  %v2146 = vunpack.c.l.b16 %v2138
  %v2147 = vpack.c.b16 %v2144, %v2143
  %v2148 = vpack.c.b16 %v2146, %v2145
  %2151 = vmatprep.subr.bf16.mxu0 0
  %2152 = vmatpush1.bf16.msra.mxu0 %v719
  %2153 = vmatprep.subr.bf16.mxu0 0
  %2154 = vmatpush1.bf16.msra.mxu0 %v718
  %2155 = vmatprep.subr.bf16.mxu0 0
  %2156 = vmatpush1.bf16.msra.mxu0 %v717
  %2157 = vmatprep.subr.bf16.mxu0 0
  %2158 = vmatpush1.bf16.msra.mxu0 %v716
  %2159 = vmatprep.subr.bf16.mxu0 0
  %2160 = vmatpush1.bf16.msra.mxu0 %v715
  %2161 = vmatprep.subr.bf16.mxu0 0
  %2162 = vmatpush1.bf16.msra.mxu0 %v714
  %2163 = vmatprep.subr.bf16.mxu0 0
  %2164 = vmatpush1.bf16.msra.mxu0 %v713
  %2165 = vmatprep.subr.bf16.mxu0 0
  %2166 = vmatpush1.bf16.msra.mxu0 %v712
  %2167 = vmatprep.subr.bf16.mxu0 0
  %2168 = vmatpush2.bf16.msra.mxu0 0
  %2169 = vmatprep.subr.bf16.mxu0 0
  %2170 = vmatpush2.bf16.msra.mxu0 0
  %2171 = vmatprep.subr.bf16.mxu0 0
  %2172 = vmatpush2.bf16.msra.mxu0 0
  %2173 = vmatprep.subr.bf16.mxu0 0
  %2174 = vmatpush2.bf16.msra.mxu0 0
  %2175 = vmatprep.subr.bf16.mxu0 0
  %2176 = vmatpush2.bf16.msra.mxu0 0
  %2177 = vmatprep.subr.bf16.mxu0 0
  %2178 = vmatpush2.bf16.msra.mxu0 0
  %2179 = vmatprep.subr.bf16.mxu0 0
  %2180 = vmatpush2.bf16.msra.mxu0 0
  %2181 = vmatprep.subr.bf16.mxu0 0
  %2182 = vmatpush2.bf16.msra.mxu0 0
  %2183 = vmatprep.mubr.bf16.mxu0 0
  %2184 = vmatmul.mubr.bf16.gmra.mxu0 %v2147
  %v2185 = vpop.f32.mrf.mxu0
  %v2186 = vadd.f32 0.0, %v2185
  %v2187 = vpop.f32.mrf.mxu0
  %v2188 = vpop.f32.mrf.mxu0
  %v2189 = vadd.f32 0.0, %v2188
  %v2190 = vpop.f32.mrf.mxu0
  %2191 = vmatprep.mubr.bf16.mxu0 0
  %2192 = vmatmul.mubr.bf16.gmra.mxu0 %v2148
  %v2193 = vpop.f32.mrf.mxu0
  %v2194 = vadd.f32 0.0, %v2193
  %v2195 = vpop.f32.mrf.mxu0
  %v2196 = vpop.f32.mrf.mxu0
  %v2197 = vadd.f32 0.0, %v2196
  %v2198 = vpop.f32.mrf.mxu0
  %2199 = vdwg.mxu0
  %v2200 = vpack.c.bf16 %v2189, %v2186
  %v2201 = vpack.c.bf16 %v2197, %v2194
  %v2202 = vld [vmem:[%s4 + $0x120] sm:$0xf]
  %v2203 = vld [vmem:[%s4 + $0x124] sm:$0xf]
  %v2204 = vld [vmem:[%s4 + $0x128] sm:$0xf]
  %v2205 = vld [vmem:[%s4 + $0x12c] sm:$0xf]
  %v2206 = vld [vmem:[%s4 + $0x130] sm:$0xf]
  %v2207 = vld [vmem:[%s4 + $0x134] sm:$0xf]
  %v2208 = vld [vmem:[%s4 + $0x138] sm:$0xf]
  %v2209 = vld [vmem:[%s4 + $0x13c] sm:$0xf]
  %v2218 = vunpack.c.l.b16 %v2202
  %v2219 = vunpack.c.l.b16 %v2203
  %v2220 = vunpack.c.l.b16 %v2204
  %v2221 = vunpack.c.l.b16 %v2205
  %v2222 = vunpack.c.l.b16 %v2206
  %v2223 = vunpack.c.l.b16 %v2207
  %v2224 = vunpack.c.l.b16 %v2208
  %v2225 = vunpack.c.l.b16 %v2209
  %v2226 = vpack.c.b16 %v2219, %v2218
  %v2227 = vpack.c.b16 %v2221, %v2220
  %v2228 = vpack.c.b16 %v2223, %v2222
  %v2229 = vpack.c.b16 %v2225, %v2224
  %v2235 = vsel %vm894, %v2200, 0
  %v2238 = vsel %vm894, %v2201, 0
  %2240 = vmatprep.subr.bf16.mxu0 0
  %2241 = vmatpush1.bf16.msra.mxu0 0
  %2242 = vmatprep.subr.bf16.mxu0 0
  %2243 = vmatpush1.bf16.msra.mxu0 0
  %2244 = vmatprep.subr.bf16.mxu0 0
  %2245 = vmatpush1.bf16.msra.mxu0 0
  %2246 = vmatprep.subr.bf16.mxu0 0
  %2247 = vmatpush1.bf16.msra.mxu0 0
  %2248 = vmatprep.subr.bf16.mxu0 0
  %2249 = vmatpush1.bf16.msra.mxu0 %v2229
  %2250 = vmatprep.subr.bf16.mxu0 0
  %2251 = vmatpush1.bf16.msra.mxu0 %v2228
  %2252 = vmatprep.subr.bf16.mxu0 0
  %2253 = vmatpush1.bf16.msra.mxu0 %v2227
  %2254 = vmatprep.subr.bf16.mxu0 0
  %2255 = vmatpush1.bf16.msra.mxu0 %v2226
  %2256 = vmatprep.subr.bf16.mxu0 0
  %2257 = vmatpush2.bf16.msra.mxu0 0
  %2258 = vmatprep.subr.bf16.mxu0 0
  %2259 = vmatpush2.bf16.msra.mxu0 0
  %2260 = vmatprep.subr.bf16.mxu0 0
  %2261 = vmatpush2.bf16.msra.mxu0 0
  %2262 = vmatprep.subr.bf16.mxu0 0
  %2263 = vmatpush2.bf16.msra.mxu0 0
  %2264 = vmatprep.subr.bf16.mxu0 0
  %2265 = vmatpush2.bf16.msra.mxu0 0
  %2266 = vmatprep.subr.bf16.mxu0 0
  %2267 = vmatpush2.bf16.msra.mxu0 0
  %2268 = vmatprep.subr.bf16.mxu0 0
  %2269 = vmatpush2.bf16.msra.mxu0 0
  %2270 = vmatprep.subr.bf16.mxu0 0
  %2271 = vmatpush2.bf16.msra.mxu0 0
  %2272 = vmatprep.mubr.bf16.mxu0 0
  %2273 = vmatmul.mubr.bf16.gmra.mxu0 %v2235
  %v2274 = vpop.f32.mrf.mxu0
  %v2275 = vadd.f32 0.0, %v2274
  %v2276 = vpop.f32.mrf.mxu0
  %v2277 = vpop.f32.mrf.mxu0
  %v2278 = vadd.f32 0.0, %v2277
  %v2279 = vpop.f32.mrf.mxu0
  %2280 = vmatprep.mubr.bf16.mxu0 0
  %2281 = vmatmul.mubr.bf16.gmra.mxu0 %v2238
  %v2282 = vpop.f32.mrf.mxu0
  %v2283 = vadd.f32 0.0, %v2282
  %v2284 = vpop.f32.mrf.mxu0
  %v2285 = vpop.f32.mrf.mxu0
  %v2286 = vadd.f32 0.0, %v2285
  %v2287 = vpop.f32.mrf.mxu0
  %2288 = vdwg.mxu0
  %v2289 = vadd.f32 %v2131, %v2275
  %v2290 = vadd.f32 %v2132, %v2278
  %v2291 = vadd.f32 %v2133, %v2283
  %v2292 = vadd.f32 %v2134, %v2286
  %v2293 = vld [vmem:[%s3 + $0xa0] sm:$0xf]
  %v2294 = vld [vmem:[%s3 + $0xa4] sm:$0xf]
  %v2295 = vld [vmem:[%s3 + $0xa8] sm:$0xf]
  %v2296 = vld [vmem:[%s3 + $0xac] sm:$0xf]
  %v2301 = vunpack.c.l.b16 %v2293
  %v2302 = vunpack.c.l.b16 %v2294
  %v2303 = vunpack.c.l.b16 %v2295
  %v2304 = vunpack.c.l.b16 %v2296
  %v2305 = vpack.c.b16 %v2302, %v2301
  %v2306 = vpack.c.b16 %v2304, %v2303
  %2309 = vmatprep.subr.bf16.mxu0 0
  %2310 = vmatpush1.bf16.msra.mxu0 %v719
  %2311 = vmatprep.subr.bf16.mxu0 0
  %2312 = vmatpush1.bf16.msra.mxu0 %v718
  %2313 = vmatprep.subr.bf16.mxu0 0
  %2314 = vmatpush1.bf16.msra.mxu0 %v717
  %2315 = vmatprep.subr.bf16.mxu0 0
  %2316 = vmatpush1.bf16.msra.mxu0 %v716
  %2317 = vmatprep.subr.bf16.mxu0 0
  %2318 = vmatpush1.bf16.msra.mxu0 %v715
  %2319 = vmatprep.subr.bf16.mxu0 0
  %2320 = vmatpush1.bf16.msra.mxu0 %v714
  %2321 = vmatprep.subr.bf16.mxu0 0
  %2322 = vmatpush1.bf16.msra.mxu0 %v713
  %2323 = vmatprep.subr.bf16.mxu0 0
  %2324 = vmatpush1.bf16.msra.mxu0 %v712
  %2325 = vmatprep.subr.bf16.mxu0 0
  %2326 = vmatpush2.bf16.msra.mxu0 0
  %2327 = vmatprep.subr.bf16.mxu0 0
  %2328 = vmatpush2.bf16.msra.mxu0 0
  %2329 = vmatprep.subr.bf16.mxu0 0
  %2330 = vmatpush2.bf16.msra.mxu0 0
  %2331 = vmatprep.subr.bf16.mxu0 0
  %2332 = vmatpush2.bf16.msra.mxu0 0
  %2333 = vmatprep.subr.bf16.mxu0 0
  %2334 = vmatpush2.bf16.msra.mxu0 0
  %2335 = vmatprep.subr.bf16.mxu0 0
  %2336 = vmatpush2.bf16.msra.mxu0 0
  %2337 = vmatprep.subr.bf16.mxu0 0
  %2338 = vmatpush2.bf16.msra.mxu0 0
  %2339 = vmatprep.subr.bf16.mxu0 0
  %2340 = vmatpush2.bf16.msra.mxu0 0
  %2341 = vmatprep.mubr.bf16.mxu0 0
  %2342 = vmatmul.mubr.bf16.gmra.mxu0 %v2305
  %v2343 = vpop.f32.mrf.mxu0
  %v2344 = vadd.f32 0.0, %v2343
  %v2345 = vpop.f32.mrf.mxu0
  %v2346 = vpop.f32.mrf.mxu0
  %v2347 = vadd.f32 0.0, %v2346
  %v2348 = vpop.f32.mrf.mxu0
  %2349 = vmatprep.mubr.bf16.mxu0 0
  %2350 = vmatmul.mubr.bf16.gmra.mxu0 %v2306
  %v2351 = vpop.f32.mrf.mxu0
  %v2352 = vadd.f32 0.0, %v2351
  %v2353 = vpop.f32.mrf.mxu0
  %v2354 = vpop.f32.mrf.mxu0
  %v2355 = vadd.f32 0.0, %v2354
  %v2356 = vpop.f32.mrf.mxu0
  %2357 = vdwg.mxu0
  %v2358 = vpack.c.bf16 %v2347, %v2344
  %v2359 = vpack.c.bf16 %v2355, %v2352
  %v2360 = vld [vmem:[%s4 + $0x140] sm:$0xf]
  %v2361 = vld [vmem:[%s4 + $0x144] sm:$0xf]
  %v2362 = vld [vmem:[%s4 + $0x148] sm:$0xf]
  %v2363 = vld [vmem:[%s4 + $0x14c] sm:$0xf]
  %v2364 = vld [vmem:[%s4 + $0x150] sm:$0xf]
  %v2365 = vld [vmem:[%s4 + $0x154] sm:$0xf]
  %v2366 = vld [vmem:[%s4 + $0x158] sm:$0xf]
  %v2367 = vld [vmem:[%s4 + $0x15c] sm:$0xf]
  %v2376 = vunpack.c.l.b16 %v2360
  %v2377 = vunpack.c.l.b16 %v2361
  %v2378 = vunpack.c.l.b16 %v2362
  %v2379 = vunpack.c.l.b16 %v2363
  %v2380 = vunpack.c.l.b16 %v2364
  %v2381 = vunpack.c.l.b16 %v2365
  %v2382 = vunpack.c.l.b16 %v2366
  %v2383 = vunpack.c.l.b16 %v2367
  %v2384 = vpack.c.b16 %v2377, %v2376
  %v2385 = vpack.c.b16 %v2379, %v2378
  %v2386 = vpack.c.b16 %v2381, %v2380
  %v2387 = vpack.c.b16 %v2383, %v2382
  %v2393 = vsel %vm894, %v2358, 0
  %v2396 = vsel %vm894, %v2359, 0
  %2398 = vmatprep.subr.bf16.mxu0 0
  %2399 = vmatpush1.bf16.msra.mxu0 0
  %2400 = vmatprep.subr.bf16.mxu0 0
  %2401 = vmatpush1.bf16.msra.mxu0 0
  %2402 = vmatprep.subr.bf16.mxu0 0
  %2403 = vmatpush1.bf16.msra.mxu0 0
  %2404 = vmatprep.subr.bf16.mxu0 0
  %2405 = vmatpush1.bf16.msra.mxu0 0
  %2406 = vmatprep.subr.bf16.mxu0 0
  %2407 = vmatpush1.bf16.msra.mxu0 %v2387
  %2408 = vmatprep.subr.bf16.mxu0 0
  %2409 = vmatpush1.bf16.msra.mxu0 %v2386
  %2410 = vmatprep.subr.bf16.mxu0 0
  %2411 = vmatpush1.bf16.msra.mxu0 %v2385
  %2412 = vmatprep.subr.bf16.mxu0 0
  %2413 = vmatpush1.bf16.msra.mxu0 %v2384
  %2414 = vmatprep.subr.bf16.mxu0 0
  %2415 = vmatpush2.bf16.msra.mxu0 0
  %2416 = vmatprep.subr.bf16.mxu0 0
  %2417 = vmatpush2.bf16.msra.mxu0 0
  %2418 = vmatprep.subr.bf16.mxu0 0
  %2419 = vmatpush2.bf16.msra.mxu0 0
  %2420 = vmatprep.subr.bf16.mxu0 0
  %2421 = vmatpush2.bf16.msra.mxu0 0
  %2422 = vmatprep.subr.bf16.mxu0 0
  %2423 = vmatpush2.bf16.msra.mxu0 0
  %2424 = vmatprep.subr.bf16.mxu0 0
  %2425 = vmatpush2.bf16.msra.mxu0 0
  %2426 = vmatprep.subr.bf16.mxu0 0
  %2427 = vmatpush2.bf16.msra.mxu0 0
  %2428 = vmatprep.subr.bf16.mxu0 0
  %2429 = vmatpush2.bf16.msra.mxu0 0
  %2430 = vmatprep.mubr.bf16.mxu0 0
  %2431 = vmatmul.mubr.bf16.gmra.mxu0 %v2393
  %v2432 = vpop.f32.mrf.mxu0
  %v2433 = vadd.f32 0.0, %v2432
  %v2434 = vpop.f32.mrf.mxu0
  %v2435 = vpop.f32.mrf.mxu0
  %v2436 = vadd.f32 0.0, %v2435
  %v2437 = vpop.f32.mrf.mxu0
  %2438 = vmatprep.mubr.bf16.mxu0 0
  %2439 = vmatmul.mubr.bf16.gmra.mxu0 %v2396
  %v2440 = vpop.f32.mrf.mxu0
  %v2441 = vadd.f32 0.0, %v2440
  %v2442 = vpop.f32.mrf.mxu0
  %v2443 = vpop.f32.mrf.mxu0
  %v2444 = vadd.f32 0.0, %v2443
  %v2445 = vpop.f32.mrf.mxu0
  %2446 = vdwg.mxu0
  %v2447 = vadd.f32 %v2289, %v2433
  %v2448 = vadd.f32 %v2290, %v2436
  %v2449 = vadd.f32 %v2291, %v2441
  %v2450 = vadd.f32 %v2292, %v2444
  %v2451 = vld [vmem:[%s3 + $0xb0] sm:$0xf]
  %v2452 = vld [vmem:[%s3 + $0xb4] sm:$0xf]
  %v2453 = vld [vmem:[%s3 + $0xb8] sm:$0xf]
  %v2454 = vld [vmem:[%s3 + $0xbc] sm:$0xf]
  %v2459 = vunpack.c.l.b16 %v2451
  %v2460 = vunpack.c.l.b16 %v2452
  %v2461 = vunpack.c.l.b16 %v2453
  %v2462 = vunpack.c.l.b16 %v2454
  %v2463 = vpack.c.b16 %v2460, %v2459
  %v2464 = vpack.c.b16 %v2462, %v2461
  %2467 = vmatprep.subr.bf16.mxu0 0
  %2468 = vmatpush1.bf16.msra.mxu0 %v719
  %2469 = vmatprep.subr.bf16.mxu0 0
  %2470 = vmatpush1.bf16.msra.mxu0 %v718
  %2471 = vmatprep.subr.bf16.mxu0 0
  %2472 = vmatpush1.bf16.msra.mxu0 %v717
  %2473 = vmatprep.subr.bf16.mxu0 0
  %2474 = vmatpush1.bf16.msra.mxu0 %v716
  %2475 = vmatprep.subr.bf16.mxu0 0
  %2476 = vmatpush1.bf16.msra.mxu0 %v715
  %2477 = vmatprep.subr.bf16.mxu0 0
  %2478 = vmatpush1.bf16.msra.mxu0 %v714
  %2479 = vmatprep.subr.bf16.mxu0 0
  %2480 = vmatpush1.bf16.msra.mxu0 %v713
  %2481 = vmatprep.subr.bf16.mxu0 0
  %2482 = vmatpush1.bf16.msra.mxu0 %v712
  %2483 = vmatprep.subr.bf16.mxu0 0
  %2484 = vmatpush2.bf16.msra.mxu0 0
  %2485 = vmatprep.subr.bf16.mxu0 0
  %2486 = vmatpush2.bf16.msra.mxu0 0
  %2487 = vmatprep.subr.bf16.mxu0 0
  %2488 = vmatpush2.bf16.msra.mxu0 0
  %2489 = vmatprep.subr.bf16.mxu0 0
  %2490 = vmatpush2.bf16.msra.mxu0 0
  %2491 = vmatprep.subr.bf16.mxu0 0
  %2492 = vmatpush2.bf16.msra.mxu0 0
  %2493 = vmatprep.subr.bf16.mxu0 0
  %2494 = vmatpush2.bf16.msra.mxu0 0
  %2495 = vmatprep.subr.bf16.mxu0 0
  %2496 = vmatpush2.bf16.msra.mxu0 0
  %2497 = vmatprep.subr.bf16.mxu0 0
  %2498 = vmatpush2.bf16.msra.mxu0 0
  %2499 = vmatprep.mubr.bf16.mxu0 0
  %2500 = vmatmul.mubr.bf16.gmra.mxu0 %v2463
  %v2501 = vpop.f32.mrf.mxu0
  %v2502 = vadd.f32 0.0, %v2501
  %v2503 = vpop.f32.mrf.mxu0
  %v2504 = vpop.f32.mrf.mxu0
  %v2505 = vadd.f32 0.0, %v2504
  %v2506 = vpop.f32.mrf.mxu0
  %2507 = vmatprep.mubr.bf16.mxu0 0
  %2508 = vmatmul.mubr.bf16.gmra.mxu0 %v2464
  %v2509 = vpop.f32.mrf.mxu0
  %v2510 = vadd.f32 0.0, %v2509
  %v2511 = vpop.f32.mrf.mxu0
  %v2512 = vpop.f32.mrf.mxu0
  %v2513 = vadd.f32 0.0, %v2512
  %v2514 = vpop.f32.mrf.mxu0
  %2515 = vdwg.mxu0
  %v2516 = vpack.c.bf16 %v2505, %v2502
  %v2517 = vpack.c.bf16 %v2513, %v2510
  %v2518 = vld [vmem:[%s4 + $0x160] sm:$0xf]
  %v2519 = vld [vmem:[%s4 + $0x164] sm:$0xf]
  %v2520 = vld [vmem:[%s4 + $0x168] sm:$0xf]
  %v2521 = vld [vmem:[%s4 + $0x16c] sm:$0xf]
  %v2522 = vld [vmem:[%s4 + $0x170] sm:$0xf]
  %v2523 = vld [vmem:[%s4 + $0x174] sm:$0xf]
  %v2524 = vld [vmem:[%s4 + $0x178] sm:$0xf]
  %v2525 = vld [vmem:[%s4 + $0x17c] sm:$0xf]
  %v2534 = vunpack.c.l.b16 %v2518
  %v2535 = vunpack.c.l.b16 %v2519
  %v2536 = vunpack.c.l.b16 %v2520
  %v2537 = vunpack.c.l.b16 %v2521
  %v2538 = vunpack.c.l.b16 %v2522
  %v2539 = vunpack.c.l.b16 %v2523
  %v2540 = vunpack.c.l.b16 %v2524
  %v2541 = vunpack.c.l.b16 %v2525
  %v2542 = vpack.c.b16 %v2535, %v2534
  %v2543 = vpack.c.b16 %v2537, %v2536
  %v2544 = vpack.c.b16 %v2539, %v2538
  %v2545 = vpack.c.b16 %v2541, %v2540
  %v2551 = vsel %vm894, %v2516, 0
  %v2554 = vsel %vm894, %v2517, 0
  %2556 = vmatprep.subr.bf16.mxu0 0
  %2557 = vmatpush1.bf16.msra.mxu0 0
  %2558 = vmatprep.subr.bf16.mxu0 0
  %2559 = vmatpush1.bf16.msra.mxu0 0
  %2560 = vmatprep.subr.bf16.mxu0 0
  %2561 = vmatpush1.bf16.msra.mxu0 0
  %2562 = vmatprep.subr.bf16.mxu0 0
  %2563 = vmatpush1.bf16.msra.mxu0 0
  %2564 = vmatprep.subr.bf16.mxu0 0
  %2565 = vmatpush1.bf16.msra.mxu0 %v2545
  %2566 = vmatprep.subr.bf16.mxu0 0
  %2567 = vmatpush1.bf16.msra.mxu0 %v2544
  %2568 = vmatprep.subr.bf16.mxu0 0
  %2569 = vmatpush1.bf16.msra.mxu0 %v2543
  %2570 = vmatprep.subr.bf16.mxu0 0
  %2571 = vmatpush1.bf16.msra.mxu0 %v2542
  %2572 = vmatprep.subr.bf16.mxu0 0
  %2573 = vmatpush2.bf16.msra.mxu0 0
  %2574 = vmatprep.subr.bf16.mxu0 0
  %2575 = vmatpush2.bf16.msra.mxu0 0
  %2576 = vmatprep.subr.bf16.mxu0 0
  %2577 = vmatpush2.bf16.msra.mxu0 0
  %2578 = vmatprep.subr.bf16.mxu0 0
  %2579 = vmatpush2.bf16.msra.mxu0 0
  %2580 = vmatprep.subr.bf16.mxu0 0
  %2581 = vmatpush2.bf16.msra.mxu0 0
  %2582 = vmatprep.subr.bf16.mxu0 0
  %2583 = vmatpush2.bf16.msra.mxu0 0
  %2584 = vmatprep.subr.bf16.mxu0 0
  %2585 = vmatpush2.bf16.msra.mxu0 0
  %2586 = vmatprep.subr.bf16.mxu0 0
  %2587 = vmatpush2.bf16.msra.mxu0 0
  %2588 = vmatprep.mubr.bf16.mxu0 0
  %2589 = vmatmul.mubr.bf16.gmra.mxu0 %v2551
  %v2590 = vpop.f32.mrf.mxu0
  %v2591 = vadd.f32 0.0, %v2590
  %v2592 = vpop.f32.mrf.mxu0
  %v2593 = vpop.f32.mrf.mxu0
  %v2594 = vadd.f32 0.0, %v2593
  %v2595 = vpop.f32.mrf.mxu0
  %2596 = vmatprep.mubr.bf16.mxu0 0
  %2597 = vmatmul.mubr.bf16.gmra.mxu0 %v2554
  %v2598 = vpop.f32.mrf.mxu0
  %v2599 = vadd.f32 0.0, %v2598
  %v2600 = vpop.f32.mrf.mxu0
  %v2601 = vpop.f32.mrf.mxu0
  %v2602 = vadd.f32 0.0, %v2601
  %v2603 = vpop.f32.mrf.mxu0
  %2604 = vdwg.mxu0
  %v2605 = vadd.f32 %v2447, %v2591
  %v2606 = vadd.f32 %v2448, %v2594
  %v2607 = vadd.f32 %v2449, %v2599
  %v2608 = vadd.f32 %v2450, %v2602
  %v2609 = vld [vmem:[%s3 + $0xc0] sm:$0xf]
  %v2610 = vld [vmem:[%s3 + $0xc4] sm:$0xf]
  %v2611 = vld [vmem:[%s3 + $0xc8] sm:$0xf]
  %v2612 = vld [vmem:[%s3 + $0xcc] sm:$0xf]
  %v2617 = vunpack.c.l.b16 %v2609
  %v2618 = vunpack.c.l.b16 %v2610
  %v2619 = vunpack.c.l.b16 %v2611
  %v2620 = vunpack.c.l.b16 %v2612
  %v2621 = vpack.c.b16 %v2618, %v2617
  %v2622 = vpack.c.b16 %v2620, %v2619
  %2625 = vmatprep.subr.bf16.mxu0 0
  %2626 = vmatpush1.bf16.msra.mxu0 %v719
  %2627 = vmatprep.subr.bf16.mxu0 0
  %2628 = vmatpush1.bf16.msra.mxu0 %v718
  %2629 = vmatprep.subr.bf16.mxu0 0
  %2630 = vmatpush1.bf16.msra.mxu0 %v717
  %2631 = vmatprep.subr.bf16.mxu0 0
  %2632 = vmatpush1.bf16.msra.mxu0 %v716
  %2633 = vmatprep.subr.bf16.mxu0 0
  %2634 = vmatpush1.bf16.msra.mxu0 %v715
  %2635 = vmatprep.subr.bf16.mxu0 0
  %2636 = vmatpush1.bf16.msra.mxu0 %v714
  %2637 = vmatprep.subr.bf16.mxu0 0
  %2638 = vmatpush1.bf16.msra.mxu0 %v713
  %2639 = vmatprep.subr.bf16.mxu0 0
  %2640 = vmatpush1.bf16.msra.mxu0 %v712
  %2641 = vmatprep.subr.bf16.mxu0 0
  %2642 = vmatpush2.bf16.msra.mxu0 0
  %2643 = vmatprep.subr.bf16.mxu0 0
  %2644 = vmatpush2.bf16.msra.mxu0 0
  %2645 = vmatprep.subr.bf16.mxu0 0
  %2646 = vmatpush2.bf16.msra.mxu0 0
  %2647 = vmatprep.subr.bf16.mxu0 0
  %2648 = vmatpush2.bf16.msra.mxu0 0
  %2649 = vmatprep.subr.bf16.mxu0 0
  %2650 = vmatpush2.bf16.msra.mxu0 0
  %2651 = vmatprep.subr.bf16.mxu0 0
  %2652 = vmatpush2.bf16.msra.mxu0 0
  %2653 = vmatprep.subr.bf16.mxu0 0
  %2654 = vmatpush2.bf16.msra.mxu0 0
  %2655 = vmatprep.subr.bf16.mxu0 0
  %2656 = vmatpush2.bf16.msra.mxu0 0
  %2657 = vmatprep.mubr.bf16.mxu0 0
  %2658 = vmatmul.mubr.bf16.gmra.mxu0 %v2621
  %v2659 = vpop.f32.mrf.mxu0
  %v2660 = vadd.f32 0.0, %v2659
  %v2661 = vpop.f32.mrf.mxu0
  %v2662 = vpop.f32.mrf.mxu0
  %v2663 = vadd.f32 0.0, %v2662
  %v2664 = vpop.f32.mrf.mxu0
  %2665 = vmatprep.mubr.bf16.mxu0 0
  %2666 = vmatmul.mubr.bf16.gmra.mxu0 %v2622
  %v2667 = vpop.f32.mrf.mxu0
  %v2668 = vadd.f32 0.0, %v2667
  %v2669 = vpop.f32.mrf.mxu0
  %v2670 = vpop.f32.mrf.mxu0
  %v2671 = vadd.f32 0.0, %v2670
  %v2672 = vpop.f32.mrf.mxu0
  %2673 = vdwg.mxu0
  %v2674 = vpack.c.bf16 %v2663, %v2660
  %v2675 = vpack.c.bf16 %v2671, %v2668
  %v2676 = vld [vmem:[%s4 + $0x180] sm:$0xf]
  %v2677 = vld [vmem:[%s4 + $0x184] sm:$0xf]
  %v2678 = vld [vmem:[%s4 + $0x188] sm:$0xf]
  %v2679 = vld [vmem:[%s4 + $0x18c] sm:$0xf]
  %v2680 = vld [vmem:[%s4 + $0x190] sm:$0xf]
  %v2681 = vld [vmem:[%s4 + $0x194] sm:$0xf]
  %v2682 = vld [vmem:[%s4 + $0x198] sm:$0xf]
  %v2683 = vld [vmem:[%s4 + $0x19c] sm:$0xf]
  %v2692 = vunpack.c.l.b16 %v2676
  %v2693 = vunpack.c.l.b16 %v2677
  %v2694 = vunpack.c.l.b16 %v2678
  %v2695 = vunpack.c.l.b16 %v2679
  %v2696 = vunpack.c.l.b16 %v2680
  %v2697 = vunpack.c.l.b16 %v2681
  %v2698 = vunpack.c.l.b16 %v2682
  %v2699 = vunpack.c.l.b16 %v2683
  %v2700 = vpack.c.b16 %v2693, %v2692
  %v2701 = vpack.c.b16 %v2695, %v2694
  %v2702 = vpack.c.b16 %v2697, %v2696
  %v2703 = vpack.c.b16 %v2699, %v2698
  %v2709 = vsel %vm894, %v2674, 0
  %v2712 = vsel %vm894, %v2675, 0
  %2714 = vmatprep.subr.bf16.mxu0 0
  %2715 = vmatpush1.bf16.msra.mxu0 0
  %2716 = vmatprep.subr.bf16.mxu0 0
  %2717 = vmatpush1.bf16.msra.mxu0 0
  %2718 = vmatprep.subr.bf16.mxu0 0
  %2719 = vmatpush1.bf16.msra.mxu0 0
  %2720 = vmatprep.subr.bf16.mxu0 0
  %2721 = vmatpush1.bf16.msra.mxu0 0
  %2722 = vmatprep.subr.bf16.mxu0 0
  %2723 = vmatpush1.bf16.msra.mxu0 %v2703
  %2724 = vmatprep.subr.bf16.mxu0 0
  %2725 = vmatpush1.bf16.msra.mxu0 %v2702
  %2726 = vmatprep.subr.bf16.mxu0 0
  %2727 = vmatpush1.bf16.msra.mxu0 %v2701
  %2728 = vmatprep.subr.bf16.mxu0 0
  %2729 = vmatpush1.bf16.msra.mxu0 %v2700
  %2730 = vmatprep.subr.bf16.mxu0 0
  %2731 = vmatpush2.bf16.msra.mxu0 0
  %2732 = vmatprep.subr.bf16.mxu0 0
  %2733 = vmatpush2.bf16.msra.mxu0 0
  %2734 = vmatprep.subr.bf16.mxu0 0
  %2735 = vmatpush2.bf16.msra.mxu0 0
  %2736 = vmatprep.subr.bf16.mxu0 0
  %2737 = vmatpush2.bf16.msra.mxu0 0
  %2738 = vmatprep.subr.bf16.mxu0 0
  %2739 = vmatpush2.bf16.msra.mxu0 0
  %2740 = vmatprep.subr.bf16.mxu0 0
  %2741 = vmatpush2.bf16.msra.mxu0 0
  %2742 = vmatprep.subr.bf16.mxu0 0
  %2743 = vmatpush2.bf16.msra.mxu0 0
  %2744 = vmatprep.subr.bf16.mxu0 0
  %2745 = vmatpush2.bf16.msra.mxu0 0
  %2746 = vmatprep.mubr.bf16.mxu0 0
  %2747 = vmatmul.mubr.bf16.gmra.mxu0 %v2709
  %v2748 = vpop.f32.mrf.mxu0
  %v2749 = vadd.f32 0.0, %v2748
  %v2750 = vpop.f32.mrf.mxu0
  %v2751 = vpop.f32.mrf.mxu0
  %v2752 = vadd.f32 0.0, %v2751
  %v2753 = vpop.f32.mrf.mxu0
  %2754 = vmatprep.mubr.bf16.mxu0 0
  %2755 = vmatmul.mubr.bf16.gmra.mxu0 %v2712
  %v2756 = vpop.f32.mrf.mxu0
  %v2757 = vadd.f32 0.0, %v2756
  %v2758 = vpop.f32.mrf.mxu0
  %v2759 = vpop.f32.mrf.mxu0
  %v2760 = vadd.f32 0.0, %v2759
  %v2761 = vpop.f32.mrf.mxu0
  %2762 = vdwg.mxu0
  %v2763 = vadd.f32 %v2605, %v2749
  %v2764 = vadd.f32 %v2606, %v2752
  %v2765 = vadd.f32 %v2607, %v2757
  %v2766 = vadd.f32 %v2608, %v2760
  %v2767 = vld [vmem:[%s3 + $0xd0] sm:$0xf]
  %v2768 = vld [vmem:[%s3 + $0xd4] sm:$0xf]
  %v2769 = vld [vmem:[%s3 + $0xd8] sm:$0xf]
  %v2770 = vld [vmem:[%s3 + $0xdc] sm:$0xf]
  %v2775 = vunpack.c.l.b16 %v2767
  %v2776 = vunpack.c.l.b16 %v2768
  %v2777 = vunpack.c.l.b16 %v2769
  %v2778 = vunpack.c.l.b16 %v2770
  %v2779 = vpack.c.b16 %v2776, %v2775
  %v2780 = vpack.c.b16 %v2778, %v2777
  %2783 = vmatprep.subr.bf16.mxu0 0
  %2784 = vmatpush1.bf16.msra.mxu0 %v719
  %2785 = vmatprep.subr.bf16.mxu0 0
  %2786 = vmatpush1.bf16.msra.mxu0 %v718
  %2787 = vmatprep.subr.bf16.mxu0 0
  %2788 = vmatpush1.bf16.msra.mxu0 %v717
  %2789 = vmatprep.subr.bf16.mxu0 0
  %2790 = vmatpush1.bf16.msra.mxu0 %v716
  %2791 = vmatprep.subr.bf16.mxu0 0
  %2792 = vmatpush1.bf16.msra.mxu0 %v715
  %2793 = vmatprep.subr.bf16.mxu0 0
  %2794 = vmatpush1.bf16.msra.mxu0 %v714
  %2795 = vmatprep.subr.bf16.mxu0 0
  %2796 = vmatpush1.bf16.msra.mxu0 %v713
  %2797 = vmatprep.subr.bf16.mxu0 0
  %2798 = vmatpush1.bf16.msra.mxu0 %v712
  %2799 = vmatprep.subr.bf16.mxu0 0
  %2800 = vmatpush2.bf16.msra.mxu0 0
  %2801 = vmatprep.subr.bf16.mxu0 0
  %2802 = vmatpush2.bf16.msra.mxu0 0
  %2803 = vmatprep.subr.bf16.mxu0 0
  %2804 = vmatpush2.bf16.msra.mxu0 0
  %2805 = vmatprep.subr.bf16.mxu0 0
  %2806 = vmatpush2.bf16.msra.mxu0 0
  %2807 = vmatprep.subr.bf16.mxu0 0
  %2808 = vmatpush2.bf16.msra.mxu0 0
  %2809 = vmatprep.subr.bf16.mxu0 0
  %2810 = vmatpush2.bf16.msra.mxu0 0
  %2811 = vmatprep.subr.bf16.mxu0 0
  %2812 = vmatpush2.bf16.msra.mxu0 0
  %2813 = vmatprep.subr.bf16.mxu0 0
  %2814 = vmatpush2.bf16.msra.mxu0 0
  %2815 = vmatprep.mubr.bf16.mxu0 0
  %2816 = vmatmul.mubr.bf16.gmra.mxu0 %v2779
  %v2817 = vpop.f32.mrf.mxu0
  %v2818 = vadd.f32 0.0, %v2817
  %v2819 = vpop.f32.mrf.mxu0
  %v2820 = vpop.f32.mrf.mxu0
  %v2821 = vadd.f32 0.0, %v2820
  %v2822 = vpop.f32.mrf.mxu0
  %2823 = vmatprep.mubr.bf16.mxu0 0
  %2824 = vmatmul.mubr.bf16.gmra.mxu0 %v2780
  %v2825 = vpop.f32.mrf.mxu0
  %v2826 = vadd.f32 0.0, %v2825
  %v2827 = vpop.f32.mrf.mxu0
  %v2828 = vpop.f32.mrf.mxu0
  %v2829 = vadd.f32 0.0, %v2828
  %v2830 = vpop.f32.mrf.mxu0
  %2831 = vdwg.mxu0
  %v2832 = vpack.c.bf16 %v2821, %v2818
  %v2833 = vpack.c.bf16 %v2829, %v2826
  %v2834 = vld [vmem:[%s4 + $0x1a0] sm:$0xf]
  %v2835 = vld [vmem:[%s4 + $0x1a4] sm:$0xf]
  %v2836 = vld [vmem:[%s4 + $0x1a8] sm:$0xf]
  %v2837 = vld [vmem:[%s4 + $0x1ac] sm:$0xf]
  %v2838 = vld [vmem:[%s4 + $0x1b0] sm:$0xf]
  %v2839 = vld [vmem:[%s4 + $0x1b4] sm:$0xf]
  %v2840 = vld [vmem:[%s4 + $0x1b8] sm:$0xf]
  %v2841 = vld [vmem:[%s4 + $0x1bc] sm:$0xf]
  %v2850 = vunpack.c.l.b16 %v2834
  %v2851 = vunpack.c.l.b16 %v2835
  %v2852 = vunpack.c.l.b16 %v2836
  %v2853 = vunpack.c.l.b16 %v2837
  %v2854 = vunpack.c.l.b16 %v2838
  %v2855 = vunpack.c.l.b16 %v2839
  %v2856 = vunpack.c.l.b16 %v2840
  %v2857 = vunpack.c.l.b16 %v2841
  %v2858 = vpack.c.b16 %v2851, %v2850
  %v2859 = vpack.c.b16 %v2853, %v2852
  %v2860 = vpack.c.b16 %v2855, %v2854
  %v2861 = vpack.c.b16 %v2857, %v2856
  %v2867 = vsel %vm894, %v2832, 0
  %v2870 = vsel %vm894, %v2833, 0
  %2872 = vmatprep.subr.bf16.mxu0 0
  %2873 = vmatpush1.bf16.msra.mxu0 0
  %2874 = vmatprep.subr.bf16.mxu0 0
  %2875 = vmatpush1.bf16.msra.mxu0 0
  %2876 = vmatprep.subr.bf16.mxu0 0
  %2877 = vmatpush1.bf16.msra.mxu0 0
  %2878 = vmatprep.subr.bf16.mxu0 0
  %2879 = vmatpush1.bf16.msra.mxu0 0
  %2880 = vmatprep.subr.bf16.mxu0 0
  %2881 = vmatpush1.bf16.msra.mxu0 %v2861
  %2882 = vmatprep.subr.bf16.mxu0 0
  %2883 = vmatpush1.bf16.msra.mxu0 %v2860
  %2884 = vmatprep.subr.bf16.mxu0 0
  %2885 = vmatpush1.bf16.msra.mxu0 %v2859
  %2886 = vmatprep.subr.bf16.mxu0 0
  %2887 = vmatpush1.bf16.msra.mxu0 %v2858
  %2888 = vmatprep.subr.bf16.mxu0 0
  %2889 = vmatpush2.bf16.msra.mxu0 0
  %2890 = vmatprep.subr.bf16.mxu0 0
  %2891 = vmatpush2.bf16.msra.mxu0 0
  %2892 = vmatprep.subr.bf16.mxu0 0
  %2893 = vmatpush2.bf16.msra.mxu0 0
  %2894 = vmatprep.subr.bf16.mxu0 0
  %2895 = vmatpush2.bf16.msra.mxu0 0
  %2896 = vmatprep.subr.bf16.mxu0 0
  %2897 = vmatpush2.bf16.msra.mxu0 0
  %2898 = vmatprep.subr.bf16.mxu0 0
  %2899 = vmatpush2.bf16.msra.mxu0 0
  %2900 = vmatprep.subr.bf16.mxu0 0
  %2901 = vmatpush2.bf16.msra.mxu0 0
  %2902 = vmatprep.subr.bf16.mxu0 0
  %2903 = vmatpush2.bf16.msra.mxu0 0
  %2904 = vmatprep.mubr.bf16.mxu0 0
  %2905 = vmatmul.mubr.bf16.gmra.mxu0 %v2867
  %v2906 = vpop.f32.mrf.mxu0
  %v2907 = vadd.f32 0.0, %v2906
  %v2908 = vpop.f32.mrf.mxu0
  %v2909 = vpop.f32.mrf.mxu0
  %v2910 = vadd.f32 0.0, %v2909
  %v2911 = vpop.f32.mrf.mxu0
  %2912 = vmatprep.mubr.bf16.mxu0 0
  %2913 = vmatmul.mubr.bf16.gmra.mxu0 %v2870
  %v2914 = vpop.f32.mrf.mxu0
  %v2915 = vadd.f32 0.0, %v2914
  %v2916 = vpop.f32.mrf.mxu0
  %v2917 = vpop.f32.mrf.mxu0
  %v2918 = vadd.f32 0.0, %v2917
  %v2919 = vpop.f32.mrf.mxu0
  %2920 = vdwg.mxu0
  %v2921 = vadd.f32 %v2763, %v2907
  %v2922 = vadd.f32 %v2764, %v2910
  %v2923 = vadd.f32 %v2765, %v2915
  %v2924 = vadd.f32 %v2766, %v2918
  %v2925 = vld [vmem:[%s3 + $0xe0] sm:$0xf]
  %v2926 = vld [vmem:[%s3 + $0xe4] sm:$0xf]
  %v2927 = vld [vmem:[%s3 + $0xe8] sm:$0xf]
  %v2928 = vld [vmem:[%s3 + $0xec] sm:$0xf]
  %v2933 = vunpack.c.l.b16 %v2925
  %v2934 = vunpack.c.l.b16 %v2926
  %v2935 = vunpack.c.l.b16 %v2927
  %v2936 = vunpack.c.l.b16 %v2928
  %v2937 = vpack.c.b16 %v2934, %v2933
  %v2938 = vpack.c.b16 %v2936, %v2935
  %2941 = vmatprep.subr.bf16.mxu0 0
  %2942 = vmatpush1.bf16.msra.mxu0 %v719
  %2943 = vmatprep.subr.bf16.mxu0 0
  %2944 = vmatpush1.bf16.msra.mxu0 %v718
  %2945 = vmatprep.subr.bf16.mxu0 0
  %2946 = vmatpush1.bf16.msra.mxu0 %v717
  %2947 = vmatprep.subr.bf16.mxu0 0
  %2948 = vmatpush1.bf16.msra.mxu0 %v716
  %2949 = vmatprep.subr.bf16.mxu0 0
  %2950 = vmatpush1.bf16.msra.mxu0 %v715
  %2951 = vmatprep.subr.bf16.mxu0 0
  %2952 = vmatpush1.bf16.msra.mxu0 %v714
  %2953 = vmatprep.subr.bf16.mxu0 0
  %2954 = vmatpush1.bf16.msra.mxu0 %v713
  %2955 = vmatprep.subr.bf16.mxu0 0
  %2956 = vmatpush1.bf16.msra.mxu0 %v712
  %2957 = vmatprep.subr.bf16.mxu0 0
  %2958 = vmatpush2.bf16.msra.mxu0 0
  %2959 = vmatprep.subr.bf16.mxu0 0
  %2960 = vmatpush2.bf16.msra.mxu0 0
  %2961 = vmatprep.subr.bf16.mxu0 0
  %2962 = vmatpush2.bf16.msra.mxu0 0
  %2963 = vmatprep.subr.bf16.mxu0 0
  %2964 = vmatpush2.bf16.msra.mxu0 0
  %2965 = vmatprep.subr.bf16.mxu0 0
  %2966 = vmatpush2.bf16.msra.mxu0 0
  %2967 = vmatprep.subr.bf16.mxu0 0
  %2968 = vmatpush2.bf16.msra.mxu0 0
  %2969 = vmatprep.subr.bf16.mxu0 0
  %2970 = vmatpush2.bf16.msra.mxu0 0
  %2971 = vmatprep.subr.bf16.mxu0 0
  %2972 = vmatpush2.bf16.msra.mxu0 0
  %2973 = vmatprep.mubr.bf16.mxu0 0
  %2974 = vmatmul.mubr.bf16.gmra.mxu0 %v2937
  %v2975 = vpop.f32.mrf.mxu0
  %v2976 = vadd.f32 0.0, %v2975
  %v2977 = vpop.f32.mrf.mxu0
  %v2978 = vpop.f32.mrf.mxu0
  %v2979 = vadd.f32 0.0, %v2978
  %v2980 = vpop.f32.mrf.mxu0
  %2981 = vmatprep.mubr.bf16.mxu0 0
  %2982 = vmatmul.mubr.bf16.gmra.mxu0 %v2938
  %v2983 = vpop.f32.mrf.mxu0
  %v2984 = vadd.f32 0.0, %v2983
  %v2985 = vpop.f32.mrf.mxu0
  %v2986 = vpop.f32.mrf.mxu0
  %v2987 = vadd.f32 0.0, %v2986
  %v2988 = vpop.f32.mrf.mxu0
  %2989 = vdwg.mxu0
  %v2990 = vpack.c.bf16 %v2979, %v2976
  %v2991 = vpack.c.bf16 %v2987, %v2984
  %v2992 = vld [vmem:[%s4 + $0x1c0] sm:$0xf]
  %v2993 = vld [vmem:[%s4 + $0x1c4] sm:$0xf]
  %v2994 = vld [vmem:[%s4 + $0x1c8] sm:$0xf]
  %v2995 = vld [vmem:[%s4 + $0x1cc] sm:$0xf]
  %v2996 = vld [vmem:[%s4 + $0x1d0] sm:$0xf]
  %v2997 = vld [vmem:[%s4 + $0x1d4] sm:$0xf]
  %v2998 = vld [vmem:[%s4 + $0x1d8] sm:$0xf]
  %v2999 = vld [vmem:[%s4 + $0x1dc] sm:$0xf]
  %v3008 = vunpack.c.l.b16 %v2992
  %v3009 = vunpack.c.l.b16 %v2993
  %v3010 = vunpack.c.l.b16 %v2994
  %v3011 = vunpack.c.l.b16 %v2995
  %v3012 = vunpack.c.l.b16 %v2996
  %v3013 = vunpack.c.l.b16 %v2997
  %v3014 = vunpack.c.l.b16 %v2998
  %v3015 = vunpack.c.l.b16 %v2999
  %v3016 = vpack.c.b16 %v3009, %v3008
  %v3017 = vpack.c.b16 %v3011, %v3010
  %v3018 = vpack.c.b16 %v3013, %v3012
  %v3019 = vpack.c.b16 %v3015, %v3014
  %v3025 = vsel %vm894, %v2990, 0
  %v3028 = vsel %vm894, %v2991, 0
  %3030 = vmatprep.subr.bf16.mxu0 0
  %3031 = vmatpush1.bf16.msra.mxu0 0
  %3032 = vmatprep.subr.bf16.mxu0 0
  %3033 = vmatpush1.bf16.msra.mxu0 0
  %3034 = vmatprep.subr.bf16.mxu0 0
  %3035 = vmatpush1.bf16.msra.mxu0 0
  %3036 = vmatprep.subr.bf16.mxu0 0
  %3037 = vmatpush1.bf16.msra.mxu0 0
  %3038 = vmatprep.subr.bf16.mxu0 0
  %3039 = vmatpush1.bf16.msra.mxu0 %v3019
  %3040 = vmatprep.subr.bf16.mxu0 0
  %3041 = vmatpush1.bf16.msra.mxu0 %v3018
  %3042 = vmatprep.subr.bf16.mxu0 0
  %3043 = vmatpush1.bf16.msra.mxu0 %v3017
  %3044 = vmatprep.subr.bf16.mxu0 0
  %3045 = vmatpush1.bf16.msra.mxu0 %v3016
  %3046 = vmatprep.subr.bf16.mxu0 0
  %3047 = vmatpush2.bf16.msra.mxu0 0
  %3048 = vmatprep.subr.bf16.mxu0 0
  %3049 = vmatpush2.bf16.msra.mxu0 0
  %3050 = vmatprep.subr.bf16.mxu0 0
  %3051 = vmatpush2.bf16.msra.mxu0 0
  %3052 = vmatprep.subr.bf16.mxu0 0
  %3053 = vmatpush2.bf16.msra.mxu0 0
  %3054 = vmatprep.subr.bf16.mxu0 0
  %3055 = vmatpush2.bf16.msra.mxu0 0
  %3056 = vmatprep.subr.bf16.mxu0 0
  %3057 = vmatpush2.bf16.msra.mxu0 0
  %3058 = vmatprep.subr.bf16.mxu0 0
  %3059 = vmatpush2.bf16.msra.mxu0 0
  %3060 = vmatprep.subr.bf16.mxu0 0
  %3061 = vmatpush2.bf16.msra.mxu0 0
  %3062 = vmatprep.mubr.bf16.mxu0 0
  %3063 = vmatmul.mubr.bf16.gmra.mxu0 %v3025
  %v3064 = vpop.f32.mrf.mxu0
  %v3065 = vadd.f32 0.0, %v3064
  %v3066 = vpop.f32.mrf.mxu0
  %v3067 = vpop.f32.mrf.mxu0
  %v3068 = vadd.f32 0.0, %v3067
  %v3069 = vpop.f32.mrf.mxu0
  %3070 = vmatprep.mubr.bf16.mxu0 0
  %3071 = vmatmul.mubr.bf16.gmra.mxu0 %v3028
  %v3072 = vpop.f32.mrf.mxu0
  %v3073 = vadd.f32 0.0, %v3072
  %v3074 = vpop.f32.mrf.mxu0
  %v3075 = vpop.f32.mrf.mxu0
  %v3076 = vadd.f32 0.0, %v3075
  %v3077 = vpop.f32.mrf.mxu0
  %3078 = vdwg.mxu0
  %v3079 = vadd.f32 %v2921, %v3065
  %v3080 = vadd.f32 %v2922, %v3068
  %v3081 = vadd.f32 %v2923, %v3073
  %v3082 = vadd.f32 %v2924, %v3076
  %v3083 = vld [vmem:[%s3 + $0xf0] sm:$0xf]
  %v3084 = vld [vmem:[%s3 + $0xf4] sm:$0xf]
  %v3085 = vld [vmem:[%s3 + $0xf8] sm:$0xf]
  %v3086 = vld [vmem:[%s3 + $0xfc] sm:$0xf]
  %v3091 = vunpack.c.l.b16 %v3083
  %v3092 = vunpack.c.l.b16 %v3084
  %v3093 = vunpack.c.l.b16 %v3085
  %v3094 = vunpack.c.l.b16 %v3086
  %v3095 = vpack.c.b16 %v3092, %v3091
  %v3096 = vpack.c.b16 %v3094, %v3093
  %3099 = vmatprep.subr.bf16.mxu0 0
  %3100 = vmatpush1.bf16.msra.mxu0 %v719
  %3101 = vmatprep.subr.bf16.mxu0 0
  %3102 = vmatpush1.bf16.msra.mxu0 %v718
  %3103 = vmatprep.subr.bf16.mxu0 0
  %3104 = vmatpush1.bf16.msra.mxu0 %v717
  %3105 = vmatprep.subr.bf16.mxu0 0
  %3106 = vmatpush1.bf16.msra.mxu0 %v716
  %3107 = vmatprep.subr.bf16.mxu0 0
  %3108 = vmatpush1.bf16.msra.mxu0 %v715
  %3109 = vmatprep.subr.bf16.mxu0 0
  %3110 = vmatpush1.bf16.msra.mxu0 %v714
  %3111 = vmatprep.subr.bf16.mxu0 0
  %3112 = vmatpush1.bf16.msra.mxu0 %v713
  %3113 = vmatprep.subr.bf16.mxu0 0
  %3114 = vmatpush1.bf16.msra.mxu0 %v712
  %3115 = vmatprep.subr.bf16.mxu0 0
  %3116 = vmatpush2.bf16.msra.mxu0 0
  %3117 = vmatprep.subr.bf16.mxu0 0
  %3118 = vmatpush2.bf16.msra.mxu0 0
  %3119 = vmatprep.subr.bf16.mxu0 0
  %3120 = vmatpush2.bf16.msra.mxu0 0
  %3121 = vmatprep.subr.bf16.mxu0 0
  %3122 = vmatpush2.bf16.msra.mxu0 0
  %3123 = vmatprep.subr.bf16.mxu0 0
  %3124 = vmatpush2.bf16.msra.mxu0 0
  %3125 = vmatprep.subr.bf16.mxu0 0
  %3126 = vmatpush2.bf16.msra.mxu0 0
  %3127 = vmatprep.subr.bf16.mxu0 0
  %3128 = vmatpush2.bf16.msra.mxu0 0
  %3129 = vmatprep.subr.bf16.mxu0 0
  %3130 = vmatpush2.bf16.msra.mxu0 0
  %3131 = vmatprep.mubr.bf16.mxu0 0
  %3132 = vmatmul.mubr.bf16.gmra.mxu0 %v3095
  %v3133 = vpop.f32.mrf.mxu0
  %v3134 = vadd.f32 0.0, %v3133
  %v3135 = vpop.f32.mrf.mxu0
  %v3136 = vpop.f32.mrf.mxu0
  %v3137 = vadd.f32 0.0, %v3136
  %v3138 = vpop.f32.mrf.mxu0
  %3139 = vmatprep.mubr.bf16.mxu0 0
  %3140 = vmatmul.mubr.bf16.gmra.mxu0 %v3096
  %v3141 = vpop.f32.mrf.mxu0
  %v3142 = vadd.f32 0.0, %v3141
  %v3143 = vpop.f32.mrf.mxu0
  %v3144 = vpop.f32.mrf.mxu0
  %v3145 = vadd.f32 0.0, %v3144
  %v3146 = vpop.f32.mrf.mxu0
  %3147 = vdwg.mxu0
  %v3148 = vpack.c.bf16 %v3137, %v3134
  %v3149 = vpack.c.bf16 %v3145, %v3142
  %v3150 = vld [vmem:[%s4 + $0x1e0] sm:$0xf]
  %v3151 = vld [vmem:[%s4 + $0x1e4] sm:$0xf]
  %v3152 = vld [vmem:[%s4 + $0x1e8] sm:$0xf]
  %v3153 = vld [vmem:[%s4 + $0x1ec] sm:$0xf]
  %v3154 = vld [vmem:[%s4 + $0x1f0] sm:$0xf]
  %v3155 = vld [vmem:[%s4 + $0x1f4] sm:$0xf]
  %v3156 = vld [vmem:[%s4 + $0x1f8] sm:$0xf]
  %v3157 = vld [vmem:[%s4 + $0x1fc] sm:$0xf]
  %v3166 = vunpack.c.l.b16 %v3150
  %v3167 = vunpack.c.l.b16 %v3151
  %v3168 = vunpack.c.l.b16 %v3152
  %v3169 = vunpack.c.l.b16 %v3153
  %v3170 = vunpack.c.l.b16 %v3154
  %v3171 = vunpack.c.l.b16 %v3155
  %v3172 = vunpack.c.l.b16 %v3156
  %v3173 = vunpack.c.l.b16 %v3157
  %v3174 = vpack.c.b16 %v3167, %v3166
  %v3175 = vpack.c.b16 %v3169, %v3168
  %v3176 = vpack.c.b16 %v3171, %v3170
  %v3177 = vpack.c.b16 %v3173, %v3172
  %v3183 = vsel %vm894, %v3148, 0
  %v3186 = vsel %vm894, %v3149, 0
  %3188 = vmatprep.subr.bf16.mxu0 0
  %3189 = vmatpush1.bf16.msra.mxu0 0
  %3190 = vmatprep.subr.bf16.mxu0 0
  %3191 = vmatpush1.bf16.msra.mxu0 0
  %3192 = vmatprep.subr.bf16.mxu0 0
  %3193 = vmatpush1.bf16.msra.mxu0 0
  %3194 = vmatprep.subr.bf16.mxu0 0
  %3195 = vmatpush1.bf16.msra.mxu0 0
  %3196 = vmatprep.subr.bf16.mxu0 0
  %3197 = vmatpush1.bf16.msra.mxu0 %v3177
  %3198 = vmatprep.subr.bf16.mxu0 0
  %3199 = vmatpush1.bf16.msra.mxu0 %v3176
  %3200 = vmatprep.subr.bf16.mxu0 0
  %3201 = vmatpush1.bf16.msra.mxu0 %v3175
  %3202 = vmatprep.subr.bf16.mxu0 0
  %3203 = vmatpush1.bf16.msra.mxu0 %v3174
  %3204 = vmatprep.subr.bf16.mxu0 0
  %3205 = vmatpush2.bf16.msra.mxu0 0
  %3206 = vmatprep.subr.bf16.mxu0 0
  %3207 = vmatpush2.bf16.msra.mxu0 0
  %3208 = vmatprep.subr.bf16.mxu0 0
  %3209 = vmatpush2.bf16.msra.mxu0 0
  %3210 = vmatprep.subr.bf16.mxu0 0
  %3211 = vmatpush2.bf16.msra.mxu0 0
  %3212 = vmatprep.subr.bf16.mxu0 0
  %3213 = vmatpush2.bf16.msra.mxu0 0
  %3214 = vmatprep.subr.bf16.mxu0 0
  %3215 = vmatpush2.bf16.msra.mxu0 0
  %3216 = vmatprep.subr.bf16.mxu0 0
  %3217 = vmatpush2.bf16.msra.mxu0 0
  %3218 = vmatprep.subr.bf16.mxu0 0
  %3219 = vmatpush2.bf16.msra.mxu0 0
  %3220 = vmatprep.mubr.bf16.mxu0 0
  %3221 = vmatmul.mubr.bf16.gmra.mxu0 %v3183
  %v3222 = vpop.f32.mrf.mxu0
  %v3223 = vadd.f32 0.0, %v3222
  %v3224 = vpop.f32.mrf.mxu0
  %v3225 = vpop.f32.mrf.mxu0
  %v3226 = vadd.f32 0.0, %v3225
  %v3227 = vpop.f32.mrf.mxu0
  %3228 = vmatprep.mubr.bf16.mxu0 0
  %3229 = vmatmul.mubr.bf16.gmra.mxu0 %v3186
  %v3230 = vpop.f32.mrf.mxu0
  %v3231 = vadd.f32 0.0, %v3230
  %v3232 = vpop.f32.mrf.mxu0
  %v3233 = vpop.f32.mrf.mxu0
  %v3234 = vadd.f32 0.0, %v3233
  %v3235 = vpop.f32.mrf.mxu0
  %3236 = vdwg.mxu0
  %v3237 = vadd.f32 %v3079, %v3223
  %v3238 = vadd.f32 %v3080, %v3226
  %v3239 = vadd.f32 %v3081, %v3231
  %v3240 = vadd.f32 %v3082, %v3234
  %v3241 = vld [vmem:[%s5] sm:$0x1]
  %v3243 = vlaneseq
  %v3244 = vshrl.u32 %v3243, 7
  %v3245 = vsub.s32 0, %v3244
  %v3246 = vrot.slane %v3241, %v3245
  %v3248 = vadd.f32 %v3237, %v3246
  %v3249 = vadd.f32 %v3238, %v3246
  %v3250 = vadd.f32 %v3239, %v3246
  %v3251 = vadd.f32 %v3240, %v3246
  %v3252 = vmax.f32 %v3248, 0.0
  %v3253 = vmax.f32 %v3249, 0.0
  %v3254 = vmax.f32 %v3250, 0.0
  %v3255 = vmax.f32 %v3251, 0.0
  %v3256 = vpack.c.bf16 %v3253, %v3252
  %v3257 = vpack.c.bf16 %v3255, %v3254
  %v3258 = vld [vmem:[%s6] sm:$0xf]
  %vm3259 = vcmask 261120
  %v3261 = vsel %vm3259, %v3258, 0
  %3263 = vmatprep.subr.bf16.mxu0 0
  %3264 = vmatpush1.bf16.msra.mxu0 0
  %3265 = vmatprep.subr.bf16.mxu0 0
  %3266 = vmatpush1.bf16.msra.mxu0 0
  %3267 = vmatprep.subr.bf16.mxu0 0
  %3268 = vmatpush1.bf16.msra.mxu0 0
  %3269 = vmatprep.subr.bf16.mxu0 0
  %3270 = vmatpush1.bf16.msra.mxu0 0
  %3271 = vmatprep.subr.bf16.mxu0 0
  %3272 = vmatpush1.bf16.msra.mxu0 0
  %3273 = vmatprep.subr.bf16.mxu0 0
  %3274 = vmatpush1.bf16.msra.mxu0 0
  %3275 = vmatprep.subr.bf16.mxu0 0
  %3276 = vmatpush1.bf16.msra.mxu0 %v3257
  %3277 = vmatprep.subr.bf16.mxu0 0
  %3278 = vmatpush1.bf16.msra.mxu0 %v3256
  %3279 = vmatprep.subr.bf16.mxu0 0
  %3280 = vmatpush2.bf16.msra.mxu0 0
  %3281 = vmatprep.subr.bf16.mxu0 0
  %3282 = vmatpush2.bf16.msra.mxu0 0
  %3283 = vmatprep.subr.bf16.mxu0 0
  %3284 = vmatpush2.bf16.msra.mxu0 0
  %3285 = vmatprep.subr.bf16.mxu0 0
  %3286 = vmatpush2.bf16.msra.mxu0 0
  %3287 = vmatprep.subr.bf16.mxu0 0
  %3288 = vmatpush2.bf16.msra.mxu0 0
  %3289 = vmatprep.subr.bf16.mxu0 0
  %3290 = vmatpush2.bf16.msra.mxu0 0
  %3291 = vmatprep.subr.bf16.mxu0 0
  %3292 = vmatpush2.bf16.msra.mxu0 0
  %3293 = vmatprep.subr.bf16.mxu0 0
  %3294 = vmatpush2.bf16.msra.mxu0 0
  %3295 = vmatprep.mubr.bf16.mxu0 0
  %3296 = vmatmul.mubr.bf16.gmra.mxu0 %v3261
  %v3297 = vpop.f32.mrf.mxu0
  %v3298 = vadd.f32 0.0, %v3297
  %v3299 = vpop.f32.mrf.mxu0
  %v3300 = vpop.f32.mrf.mxu0
  %v3301 = vpop.f32.mrf.mxu0
  %3302 = vdwg.mxu0
  %v3303 = vpack.c.bf16 %v3298, %v3298
  %v3304 = vld [vmem:[%s7] sm:$0xf]
  %v3305 = vld [vmem:[%s7 + $0x4] sm:$0xf]
  %v3306 = vld [vmem:[%s7 + $0x8] sm:$0xf]
  %v3307 = vld [vmem:[%s7 + $0xc] sm:$0xf]
  %v3308 = vld [vmem:[%s7 + $0x10] sm:$0xf]
  %v3309 = vld [vmem:[%s7 + $0x14] sm:$0xf]
  %v3310 = vld [vmem:[%s7 + $0x18] sm:$0xf]
  %v3311 = vld [vmem:[%s7 + $0x1c] sm:$0xf]
  %v3312 = vld [vmem:[%s7 + $0x20] sm:$0xf]
  %v3313 = vld [vmem:[%s7 + $0x24] sm:$0xf]
  %v3314 = vld [vmem:[%s7 + $0x28] sm:$0xf]
  %v3315 = vld [vmem:[%s7 + $0x2c] sm:$0xf]
  %v3316 = vld [vmem:[%s7 + $0x30] sm:$0xf]
  %v3317 = vld [vmem:[%s7 + $0x34] sm:$0xf]
  %v3318 = vld [vmem:[%s7 + $0x38] sm:$0xf]
  %v3319 = vld [vmem:[%s7 + $0x3c] sm:$0xf]
  %v3320 = vld [vmem:[%s6 + $0x4] sm:$0xf]
  %v3322 = vsel %vm3259, %v3320, 0
  %3324 = vmatprep.subr.bf16.mxu0 0
  %3325 = vmatpush1.bf16.msra.mxu0 0
  %3326 = vmatprep.subr.bf16.mxu0 0
  %3327 = vmatpush1.bf16.msra.mxu0 0
  %3328 = vmatprep.subr.bf16.mxu0 0
  %3329 = vmatpush1.bf16.msra.mxu0 0
  %3330 = vmatprep.subr.bf16.mxu0 0
  %3331 = vmatpush1.bf16.msra.mxu0 0
  %3332 = vmatprep.subr.bf16.mxu0 0
  %3333 = vmatpush1.bf16.msra.mxu0 0
  %3334 = vmatprep.subr.bf16.mxu0 0
  %3335 = vmatpush1.bf16.msra.mxu0 0
  %3336 = vmatprep.subr.bf16.mxu0 0
  %3337 = vmatpush1.bf16.msra.mxu0 %v3257
  %3338 = vmatprep.subr.bf16.mxu0 0
  %3339 = vmatpush1.bf16.msra.mxu0 %v3256
  %3340 = vmatprep.subr.bf16.mxu0 0
  %3341 = vmatpush2.bf16.msra.mxu0 0
  %3342 = vmatprep.subr.bf16.mxu0 0
  %3343 = vmatpush2.bf16.msra.mxu0 0
  %3344 = vmatprep.subr.bf16.mxu0 0
  %3345 = vmatpush2.bf16.msra.mxu0 0
  %3346 = vmatprep.subr.bf16.mxu0 0
  %3347 = vmatpush2.bf16.msra.mxu0 0
  %3348 = vmatprep.subr.bf16.mxu0 0
  %3349 = vmatpush2.bf16.msra.mxu0 0
  %3350 = vmatprep.subr.bf16.mxu0 0
  %3351 = vmatpush2.bf16.msra.mxu0 0
  %3352 = vmatprep.subr.bf16.mxu0 0
  %3353 = vmatpush2.bf16.msra.mxu0 0
  %3354 = vmatprep.subr.bf16.mxu0 0
  %3355 = vmatpush2.bf16.msra.mxu0 0
  %3356 = vmatprep.mubr.bf16.mxu0 0
  %3357 = vmatmul.mubr.bf16.gmra.mxu0 %v3322
  %v3358 = vpop.f32.mrf.mxu0
  %v3359 = vadd.f32 0.0, %v3358
  %v3360 = vpop.f32.mrf.mxu0
  %v3361 = vpop.f32.mrf.mxu0
  %v3362 = vpop.f32.mrf.mxu0
  %3363 = vdwg.mxu0
  %v3364 = vpack.c.bf16 %v3359, %v3359
  %v3365 = vld [vmem:[%s7 + $0x40] sm:$0xf]
  %v3366 = vld [vmem:[%s7 + $0x44] sm:$0xf]
  %v3367 = vld [vmem:[%s7 + $0x48] sm:$0xf]
  %v3368 = vld [vmem:[%s7 + $0x4c] sm:$0xf]
  %v3369 = vld [vmem:[%s7 + $0x50] sm:$0xf]
  %v3370 = vld [vmem:[%s7 + $0x54] sm:$0xf]
  %v3371 = vld [vmem:[%s7 + $0x58] sm:$0xf]
  %v3372 = vld [vmem:[%s7 + $0x5c] sm:$0xf]
  %v3373 = vld [vmem:[%s7 + $0x60] sm:$0xf]
  %v3374 = vld [vmem:[%s7 + $0x64] sm:$0xf]
  %v3375 = vld [vmem:[%s7 + $0x68] sm:$0xf]
  %v3376 = vld [vmem:[%s7 + $0x6c] sm:$0xf]
  %v3377 = vld [vmem:[%s7 + $0x70] sm:$0xf]
  %v3378 = vld [vmem:[%s7 + $0x74] sm:$0xf]
  %v3379 = vld [vmem:[%s7 + $0x78] sm:$0xf]
  %v3380 = vld [vmem:[%s7 + $0x7c] sm:$0xf]
  %v3397 = vunpack.c.l.b16 %v3365
  %v3398 = vunpack.c.l.b16 %v3366
  %v3399 = vunpack.c.l.b16 %v3367
  %v3400 = vunpack.c.l.b16 %v3368
  %v3401 = vunpack.c.l.b16 %v3369
  %v3402 = vunpack.c.l.b16 %v3370
  %v3403 = vunpack.c.l.b16 %v3371
  %v3404 = vunpack.c.l.b16 %v3372
  %v3405 = vunpack.c.l.b16 %v3373
  %v3406 = vunpack.c.l.b16 %v3374
  %v3407 = vunpack.c.l.b16 %v3375
  %v3408 = vunpack.c.l.b16 %v3376
  %v3409 = vunpack.c.l.b16 %v3377
  %v3410 = vunpack.c.l.b16 %v3378
  %v3411 = vunpack.c.l.b16 %v3379
  %v3412 = vunpack.c.l.b16 %v3380
  %v3413 = vpack.c.b16 %v3398, %v3397
  %v3414 = vpack.c.b16 %v3400, %v3399
  %v3415 = vpack.c.b16 %v3402, %v3401
  %v3416 = vpack.c.b16 %v3404, %v3403
  %v3417 = vpack.c.b16 %v3406, %v3405
  %v3418 = vpack.c.b16 %v3408, %v3407
  %v3419 = vpack.c.b16 %v3410, %v3409
  %v3420 = vpack.c.b16 %v3412, %v3411
  %3429 = vmatprep.subr.bf16.mxu0 0
  %3430 = vmatpush1.bf16.msra.mxu0 %v3420
  %3431 = vmatprep.subr.bf16.mxu0 0
  %3432 = vmatpush1.bf16.msra.mxu0 %v3419
  %3433 = vmatprep.subr.bf16.mxu0 0
  %3434 = vmatpush1.bf16.msra.mxu0 %v3418
  %3435 = vmatprep.subr.bf16.mxu0 0
  %3436 = vmatpush1.bf16.msra.mxu0 %v3417
  %3437 = vmatprep.subr.bf16.mxu0 0
  %3438 = vmatpush1.bf16.msra.mxu0 %v3416
  %3439 = vmatprep.subr.bf16.mxu0 0
  %3440 = vmatpush1.bf16.msra.mxu0 %v3415
  %3441 = vmatprep.subr.bf16.mxu0 0
  %3442 = vmatpush1.bf16.msra.mxu0 %v3414
  %3443 = vmatprep.subr.bf16.mxu0 0
  %3444 = vmatpush1.bf16.msra.mxu0 %v3413
  %3445 = vmatprep.subr.bf16.mxu0 0
  %3446 = vmatpush2.bf16.msra.mxu0 0
  %3447 = vmatprep.subr.bf16.mxu0 0
  %3448 = vmatpush2.bf16.msra.mxu0 0
  %3449 = vmatprep.subr.bf16.mxu0 0
  %3450 = vmatpush2.bf16.msra.mxu0 0
  %3451 = vmatprep.subr.bf16.mxu0 0
  %3452 = vmatpush2.bf16.msra.mxu0 0
  %3453 = vmatprep.subr.bf16.mxu0 0
  %3454 = vmatpush2.bf16.msra.mxu0 0
  %3455 = vmatprep.subr.bf16.mxu0 0
  %3456 = vmatpush2.bf16.msra.mxu0 0
  %3457 = vmatprep.subr.bf16.mxu0 0
  %3458 = vmatpush2.bf16.msra.mxu0 0
  %3459 = vmatprep.subr.bf16.mxu0 0
  %3460 = vmatpush2.bf16.msra.mxu0 0
  %3461 = vmatprep.mubr.bf16.mxu0 0
  %3462 = vmatmul.mubr.bf16.gmra.mxu0 %v3364
  %v3463 = vpop.f32.mrf.mxu0
  %v3464 = vadd.f32 0.0, %v3463
  %v3465 = vpop.f32.mrf.mxu0
  %v3466 = vpop.f32.mrf.mxu0
  %v3467 = vpop.f32.mrf.mxu0
  %3468 = vdwg.mxu0
  %v3485 = vunpack.c.l.b16 %v3304
  %v3486 = vunpack.c.l.b16 %v3305
  %v3487 = vunpack.c.l.b16 %v3306
  %v3488 = vunpack.c.l.b16 %v3307
  %v3489 = vunpack.c.l.b16 %v3308
  %v3490 = vunpack.c.l.b16 %v3309
  %v3491 = vunpack.c.l.b16 %v3310
  %v3492 = vunpack.c.l.b16 %v3311
  %v3493 = vunpack.c.l.b16 %v3312
  %v3494 = vunpack.c.l.b16 %v3313
  %v3495 = vunpack.c.l.b16 %v3314
  %v3496 = vunpack.c.l.b16 %v3315
  %v3497 = vunpack.c.l.b16 %v3316
  %v3498 = vunpack.c.l.b16 %v3317
  %v3499 = vunpack.c.l.b16 %v3318
  %v3500 = vunpack.c.l.b16 %v3319
  %v3501 = vpack.c.b16 %v3486, %v3485
  %v3502 = vpack.c.b16 %v3488, %v3487
  %v3503 = vpack.c.b16 %v3490, %v3489
  %v3504 = vpack.c.b16 %v3492, %v3491
  %v3505 = vpack.c.b16 %v3494, %v3493
  %v3506 = vpack.c.b16 %v3496, %v3495
  %v3507 = vpack.c.b16 %v3498, %v3497
  %v3508 = vpack.c.b16 %v3500, %v3499
  %3517 = vmatprep.subr.bf16.mxu0 0
  %3518 = vmatpush1.bf16.msra.mxu0 %v3508
  %3519 = vmatprep.subr.bf16.mxu0 0
  %3520 = vmatpush1.bf16.msra.mxu0 %v3507
  %3521 = vmatprep.subr.bf16.mxu0 0
  %3522 = vmatpush1.bf16.msra.mxu0 %v3506
  %3523 = vmatprep.subr.bf16.mxu0 0
  %3524 = vmatpush1.bf16.msra.mxu0 %v3505
  %3525 = vmatprep.subr.bf16.mxu0 0
  %3526 = vmatpush1.bf16.msra.mxu0 %v3504
  %3527 = vmatprep.subr.bf16.mxu0 0
  %3528 = vmatpush1.bf16.msra.mxu0 %v3503
  %3529 = vmatprep.subr.bf16.mxu0 0
  %3530 = vmatpush1.bf16.msra.mxu0 %v3502
  %3531 = vmatprep.subr.bf16.mxu0 0
  %3532 = vmatpush1.bf16.msra.mxu0 %v3501
  %3533 = vmatprep.subr.bf16.mxu0 0
  %3534 = vmatpush2.bf16.msra.mxu0 0
  %3535 = vmatprep.subr.bf16.mxu0 0
  %3536 = vmatpush2.bf16.msra.mxu0 0
  %3537 = vmatprep.subr.bf16.mxu0 0
  %3538 = vmatpush2.bf16.msra.mxu0 0
  %3539 = vmatprep.subr.bf16.mxu0 0
  %3540 = vmatpush2.bf16.msra.mxu0 0
  %3541 = vmatprep.subr.bf16.mxu0 0
  %3542 = vmatpush2.bf16.msra.mxu0 0
  %3543 = vmatprep.subr.bf16.mxu0 0
  %3544 = vmatpush2.bf16.msra.mxu0 0
  %3545 = vmatprep.subr.bf16.mxu0 0
  %3546 = vmatpush2.bf16.msra.mxu0 0
  %3547 = vmatprep.subr.bf16.mxu0 0
  %3548 = vmatpush2.bf16.msra.mxu0 0
  %3549 = vmatprep.mubr.bf16.mxu0 0
  %3550 = vmatmul.mubr.bf16.gmra.mxu0 %v3303
  %v3551 = vpop.f32.mrf.mxu0
  %v3552 = vadd.f32 %v3464, %v3551
  %v3553 = vpop.f32.mrf.mxu0
  %v3554 = vpop.f32.mrf.mxu0
  %v3555 = vpop.f32.mrf.mxu0
  %3556 = vdwg.mxu0
  %v3557 = vld [vmem:[%s6 + $0x8] sm:$0xf]
  %v3559 = vsel %vm3259, %v3557, 0
  %3561 = vmatprep.subr.bf16.mxu0 0
  %3562 = vmatpush1.bf16.msra.mxu0 0
  %3563 = vmatprep.subr.bf16.mxu0 0
  %3564 = vmatpush1.bf16.msra.mxu0 0
  %3565 = vmatprep.subr.bf16.mxu0 0
  %3566 = vmatpush1.bf16.msra.mxu0 0
  %3567 = vmatprep.subr.bf16.mxu0 0
  %3568 = vmatpush1.bf16.msra.mxu0 0
  %3569 = vmatprep.subr.bf16.mxu0 0
  %3570 = vmatpush1.bf16.msra.mxu0 0
  %3571 = vmatprep.subr.bf16.mxu0 0
  %3572 = vmatpush1.bf16.msra.mxu0 0
  %3573 = vmatprep.subr.bf16.mxu0 0
  %3574 = vmatpush1.bf16.msra.mxu0 %v3257
  %3575 = vmatprep.subr.bf16.mxu0 0
  %3576 = vmatpush1.bf16.msra.mxu0 %v3256
  %3577 = vmatprep.subr.bf16.mxu0 0
  %3578 = vmatpush2.bf16.msra.mxu0 0
  %3579 = vmatprep.subr.bf16.mxu0 0
  %3580 = vmatpush2.bf16.msra.mxu0 0
  %3581 = vmatprep.subr.bf16.mxu0 0
  %3582 = vmatpush2.bf16.msra.mxu0 0
  %3583 = vmatprep.subr.bf16.mxu0 0
  %3584 = vmatpush2.bf16.msra.mxu0 0
  %3585 = vmatprep.subr.bf16.mxu0 0
  %3586 = vmatpush2.bf16.msra.mxu0 0
  %3587 = vmatprep.subr.bf16.mxu0 0
  %3588 = vmatpush2.bf16.msra.mxu0 0
  %3589 = vmatprep.subr.bf16.mxu0 0
  %3590 = vmatpush2.bf16.msra.mxu0 0
  %3591 = vmatprep.subr.bf16.mxu0 0
  %3592 = vmatpush2.bf16.msra.mxu0 0
  %3593 = vmatprep.mubr.bf16.mxu0 0
  %3594 = vmatmul.mubr.bf16.gmra.mxu0 %v3559
  %v3595 = vpop.f32.mrf.mxu0
  %v3596 = vadd.f32 0.0, %v3595
  %v3597 = vpop.f32.mrf.mxu0
  %v3598 = vpop.f32.mrf.mxu0
  %v3599 = vpop.f32.mrf.mxu0
  %3600 = vdwg.mxu0
  %v3601 = vpack.c.bf16 %v3596, %v3596
  %v3602 = vld [vmem:[%s7 + $0x80] sm:$0xf]
  %v3603 = vld [vmem:[%s7 + $0x84] sm:$0xf]
  %v3604 = vld [vmem:[%s7 + $0x88] sm:$0xf]
  %v3605 = vld [vmem:[%s7 + $0x8c] sm:$0xf]
  %v3606 = vld [vmem:[%s7 + $0x90] sm:$0xf]
  %v3607 = vld [vmem:[%s7 + $0x94] sm:$0xf]
  %v3608 = vld [vmem:[%s7 + $0x98] sm:$0xf]
  %v3609 = vld [vmem:[%s7 + $0x9c] sm:$0xf]
  %v3610 = vld [vmem:[%s7 + $0xa0] sm:$0xf]
  %v3611 = vld [vmem:[%s7 + $0xa4] sm:$0xf]
  %v3612 = vld [vmem:[%s7 + $0xa8] sm:$0xf]
  %v3613 = vld [vmem:[%s7 + $0xac] sm:$0xf]
  %v3614 = vld [vmem:[%s7 + $0xb0] sm:$0xf]
  %v3615 = vld [vmem:[%s7 + $0xb4] sm:$0xf]
  %v3616 = vld [vmem:[%s7 + $0xb8] sm:$0xf]
  %v3617 = vld [vmem:[%s7 + $0xbc] sm:$0xf]
  %v3634 = vunpack.c.l.b16 %v3602
  %v3635 = vunpack.c.l.b16 %v3603
  %v3636 = vunpack.c.l.b16 %v3604
  %v3637 = vunpack.c.l.b16 %v3605
  %v3638 = vunpack.c.l.b16 %v3606
  %v3639 = vunpack.c.l.b16 %v3607
  %v3640 = vunpack.c.l.b16 %v3608
  %v3641 = vunpack.c.l.b16 %v3609
  %v3642 = vunpack.c.l.b16 %v3610
  %v3643 = vunpack.c.l.b16 %v3611
  %v3644 = vunpack.c.l.b16 %v3612
  %v3645 = vunpack.c.l.b16 %v3613
  %v3646 = vunpack.c.l.b16 %v3614
  %v3647 = vunpack.c.l.b16 %v3615
  %v3648 = vunpack.c.l.b16 %v3616
  %v3649 = vunpack.c.l.b16 %v3617
  %v3650 = vpack.c.b16 %v3635, %v3634
  %v3651 = vpack.c.b16 %v3637, %v3636
  %v3652 = vpack.c.b16 %v3639, %v3638
  %v3653 = vpack.c.b16 %v3641, %v3640
  %v3654 = vpack.c.b16 %v3643, %v3642
  %v3655 = vpack.c.b16 %v3645, %v3644
  %v3656 = vpack.c.b16 %v3647, %v3646
  %v3657 = vpack.c.b16 %v3649, %v3648
  %3666 = vmatprep.subr.bf16.mxu0 0
  %3667 = vmatpush1.bf16.msra.mxu0 %v3657
  %3668 = vmatprep.subr.bf16.mxu0 0
  %3669 = vmatpush1.bf16.msra.mxu0 %v3656
  %3670 = vmatprep.subr.bf16.mxu0 0
  %3671 = vmatpush1.bf16.msra.mxu0 %v3655
  %3672 = vmatprep.subr.bf16.mxu0 0
  %3673 = vmatpush1.bf16.msra.mxu0 %v3654
  %3674 = vmatprep.subr.bf16.mxu0 0
  %3675 = vmatpush1.bf16.msra.mxu0 %v3653
  %3676 = vmatprep.subr.bf16.mxu0 0
  %3677 = vmatpush1.bf16.msra.mxu0 %v3652
  %3678 = vmatprep.subr.bf16.mxu0 0
  %3679 = vmatpush1.bf16.msra.mxu0 %v3651
  %3680 = vmatprep.subr.bf16.mxu0 0
  %3681 = vmatpush1.bf16.msra.mxu0 %v3650
  %3682 = vmatprep.subr.bf16.mxu0 0
  %3683 = vmatpush2.bf16.msra.mxu0 0
  %3684 = vmatprep.subr.bf16.mxu0 0
  %3685 = vmatpush2.bf16.msra.mxu0 0
  %3686 = vmatprep.subr.bf16.mxu0 0
  %3687 = vmatpush2.bf16.msra.mxu0 0
  %3688 = vmatprep.subr.bf16.mxu0 0
  %3689 = vmatpush2.bf16.msra.mxu0 0
  %3690 = vmatprep.subr.bf16.mxu0 0
  %3691 = vmatpush2.bf16.msra.mxu0 0
  %3692 = vmatprep.subr.bf16.mxu0 0
  %3693 = vmatpush2.bf16.msra.mxu0 0
  %3694 = vmatprep.subr.bf16.mxu0 0
  %3695 = vmatpush2.bf16.msra.mxu0 0
  %3696 = vmatprep.subr.bf16.mxu0 0
  %3697 = vmatpush2.bf16.msra.mxu0 0
  %3698 = vmatprep.mubr.bf16.mxu0 0
  %3699 = vmatmul.mubr.bf16.gmra.mxu0 %v3601
  %v3700 = vpop.f32.mrf.mxu0
  %v3701 = vadd.f32 0.0, %v3700
  %v3702 = vpop.f32.mrf.mxu0
  %v3703 = vpop.f32.mrf.mxu0
  %v3704 = vpop.f32.mrf.mxu0
  %3705 = vdwg.mxu0
  %v3706 = vadd.f32 %v3552, %v3701
  %v3707 = vld [vmem:[%s6 + $0xc] sm:$0xf]
  %v3709 = vsel %vm3259, %v3707, 0
  %3711 = vmatprep.subr.bf16.mxu0 0
  %3712 = vmatpush1.bf16.msra.mxu0 0
  %3713 = vmatprep.subr.bf16.mxu0 0
  %3714 = vmatpush1.bf16.msra.mxu0 0
  %3715 = vmatprep.subr.bf16.mxu0 0
  %3716 = vmatpush1.bf16.msra.mxu0 0
  %3717 = vmatprep.subr.bf16.mxu0 0
  %3718 = vmatpush1.bf16.msra.mxu0 0
  %3719 = vmatprep.subr.bf16.mxu0 0
  %3720 = vmatpush1.bf16.msra.mxu0 0
  %3721 = vmatprep.subr.bf16.mxu0 0
  %3722 = vmatpush1.bf16.msra.mxu0 0
  %3723 = vmatprep.subr.bf16.mxu0 0
  %3724 = vmatpush1.bf16.msra.mxu0 %v3257
  %3725 = vmatprep.subr.bf16.mxu0 0
  %3726 = vmatpush1.bf16.msra.mxu0 %v3256
  %3727 = vmatprep.subr.bf16.mxu0 0
  %3728 = vmatpush2.bf16.msra.mxu0 0
  %3729 = vmatprep.subr.bf16.mxu0 0
  %3730 = vmatpush2.bf16.msra.mxu0 0
  %3731 = vmatprep.subr.bf16.mxu0 0
  %3732 = vmatpush2.bf16.msra.mxu0 0
  %3733 = vmatprep.subr.bf16.mxu0 0
  %3734 = vmatpush2.bf16.msra.mxu0 0
  %3735 = vmatprep.subr.bf16.mxu0 0
  %3736 = vmatpush2.bf16.msra.mxu0 0
  %3737 = vmatprep.subr.bf16.mxu0 0
  %3738 = vmatpush2.bf16.msra.mxu0 0
  %3739 = vmatprep.subr.bf16.mxu0 0
  %3740 = vmatpush2.bf16.msra.mxu0 0
  %3741 = vmatprep.subr.bf16.mxu0 0
  %3742 = vmatpush2.bf16.msra.mxu0 0
  %3743 = vmatprep.mubr.bf16.mxu0 0
  %3744 = vmatmul.mubr.bf16.gmra.mxu0 %v3709
  %v3745 = vpop.f32.mrf.mxu0
  %v3746 = vadd.f32 0.0, %v3745
  %v3747 = vpop.f32.mrf.mxu0
  %v3748 = vpop.f32.mrf.mxu0
  %v3749 = vpop.f32.mrf.mxu0
  %3750 = vdwg.mxu0
  %v3751 = vpack.c.bf16 %v3746, %v3746
  %v3752 = vld [vmem:[%s7 + $0xc0] sm:$0xf]
  %v3753 = vld [vmem:[%s7 + $0xc4] sm:$0xf]
  %v3754 = vld [vmem:[%s7 + $0xc8] sm:$0xf]
  %v3755 = vld [vmem:[%s7 + $0xcc] sm:$0xf]
  %v3756 = vld [vmem:[%s7 + $0xd0] sm:$0xf]
  %v3757 = vld [vmem:[%s7 + $0xd4] sm:$0xf]
  %v3758 = vld [vmem:[%s7 + $0xd8] sm:$0xf]
  %v3759 = vld [vmem:[%s7 + $0xdc] sm:$0xf]
  %v3760 = vld [vmem:[%s7 + $0xe0] sm:$0xf]
  %v3761 = vld [vmem:[%s7 + $0xe4] sm:$0xf]
  %v3762 = vld [vmem:[%s7 + $0xe8] sm:$0xf]
  %v3763 = vld [vmem:[%s7 + $0xec] sm:$0xf]
  %v3764 = vld [vmem:[%s7 + $0xf0] sm:$0xf]
  %v3765 = vld [vmem:[%s7 + $0xf4] sm:$0xf]
  %v3766 = vld [vmem:[%s7 + $0xf8] sm:$0xf]
  %v3767 = vld [vmem:[%s7 + $0xfc] sm:$0xf]
  %v3784 = vunpack.c.l.b16 %v3752
  %v3785 = vunpack.c.l.b16 %v3753
  %v3786 = vunpack.c.l.b16 %v3754
  %v3787 = vunpack.c.l.b16 %v3755
  %v3788 = vunpack.c.l.b16 %v3756
  %v3789 = vunpack.c.l.b16 %v3757
  %v3790 = vunpack.c.l.b16 %v3758
  %v3791 = vunpack.c.l.b16 %v3759
  %v3792 = vunpack.c.l.b16 %v3760
  %v3793 = vunpack.c.l.b16 %v3761
  %v3794 = vunpack.c.l.b16 %v3762
  %v3795 = vunpack.c.l.b16 %v3763
  %v3796 = vunpack.c.l.b16 %v3764
  %v3797 = vunpack.c.l.b16 %v3765
  %v3798 = vunpack.c.l.b16 %v3766
  %v3799 = vunpack.c.l.b16 %v3767
  %v3800 = vpack.c.b16 %v3785, %v3784
  %v3801 = vpack.c.b16 %v3787, %v3786
  %v3802 = vpack.c.b16 %v3789, %v3788
  %v3803 = vpack.c.b16 %v3791, %v3790
  %v3804 = vpack.c.b16 %v3793, %v3792
  %v3805 = vpack.c.b16 %v3795, %v3794
  %v3806 = vpack.c.b16 %v3797, %v3796
  %v3807 = vpack.c.b16 %v3799, %v3798
  %3816 = vmatprep.subr.bf16.mxu0 0
  %3817 = vmatpush1.bf16.msra.mxu0 %v3807
  %3818 = vmatprep.subr.bf16.mxu0 0
  %3819 = vmatpush1.bf16.msra.mxu0 %v3806
  %3820 = vmatprep.subr.bf16.mxu0 0
  %3821 = vmatpush1.bf16.msra.mxu0 %v3805
  %3822 = vmatprep.subr.bf16.mxu0 0
  %3823 = vmatpush1.bf16.msra.mxu0 %v3804
  %3824 = vmatprep.subr.bf16.mxu0 0
  %3825 = vmatpush1.bf16.msra.mxu0 %v3803
  %3826 = vmatprep.subr.bf16.mxu0 0
  %3827 = vmatpush1.bf16.msra.mxu0 %v3802
  %3828 = vmatprep.subr.bf16.mxu0 0
  %3829 = vmatpush1.bf16.msra.mxu0 %v3801
  %3830 = vmatprep.subr.bf16.mxu0 0
  %3831 = vmatpush1.bf16.msra.mxu0 %v3800
  %3832 = vmatprep.subr.bf16.mxu0 0
  %3833 = vmatpush2.bf16.msra.mxu0 0
  %3834 = vmatprep.subr.bf16.mxu0 0
  %3835 = vmatpush2.bf16.msra.mxu0 0
  %3836 = vmatprep.subr.bf16.mxu0 0
  %3837 = vmatpush2.bf16.msra.mxu0 0
  %3838 = vmatprep.subr.bf16.mxu0 0
  %3839 = vmatpush2.bf16.msra.mxu0 0
  %3840 = vmatprep.subr.bf16.mxu0 0
  %3841 = vmatpush2.bf16.msra.mxu0 0
  %3842 = vmatprep.subr.bf16.mxu0 0
  %3843 = vmatpush2.bf16.msra.mxu0 0
  %3844 = vmatprep.subr.bf16.mxu0 0
  %3845 = vmatpush2.bf16.msra.mxu0 0
  %3846 = vmatprep.subr.bf16.mxu0 0
  %3847 = vmatpush2.bf16.msra.mxu0 0
  %3848 = vmatprep.mubr.bf16.mxu0 0
  %3849 = vmatmul.mubr.bf16.gmra.mxu0 %v3751
  %v3850 = vpop.f32.mrf.mxu0
  %v3851 = vadd.f32 0.0, %v3850
  %v3852 = vpop.f32.mrf.mxu0
  %v3853 = vpop.f32.mrf.mxu0
  %v3854 = vpop.f32.mrf.mxu0
  %3855 = vdwg.mxu0
  %v3856 = vadd.f32 %v3706, %v3851
  %v3857 = vld [vmem:[%s6 + $0x10] sm:$0xf]
  %v3859 = vsel %vm3259, %v3857, 0
  %3861 = vmatprep.subr.bf16.mxu0 0
  %3862 = vmatpush1.bf16.msra.mxu0 0
  %3863 = vmatprep.subr.bf16.mxu0 0
  %3864 = vmatpush1.bf16.msra.mxu0 0
  %3865 = vmatprep.subr.bf16.mxu0 0
  %3866 = vmatpush1.bf16.msra.mxu0 0
  %3867 = vmatprep.subr.bf16.mxu0 0
  %3868 = vmatpush1.bf16.msra.mxu0 0
  %3869 = vmatprep.subr.bf16.mxu0 0
  %3870 = vmatpush1.bf16.msra.mxu0 0
  %3871 = vmatprep.subr.bf16.mxu0 0
  %3872 = vmatpush1.bf16.msra.mxu0 0
  %3873 = vmatprep.subr.bf16.mxu0 0
  %3874 = vmatpush1.bf16.msra.mxu0 %v3257
  %3875 = vmatprep.subr.bf16.mxu0 0
  %3876 = vmatpush1.bf16.msra.mxu0 %v3256
  %3877 = vmatprep.subr.bf16.mxu0 0
  %3878 = vmatpush2.bf16.msra.mxu0 0
  %3879 = vmatprep.subr.bf16.mxu0 0
  %3880 = vmatpush2.bf16.msra.mxu0 0
  %3881 = vmatprep.subr.bf16.mxu0 0
  %3882 = vmatpush2.bf16.msra.mxu0 0
  %3883 = vmatprep.subr.bf16.mxu0 0
  %3884 = vmatpush2.bf16.msra.mxu0 0
  %3885 = vmatprep.subr.bf16.mxu0 0
  %3886 = vmatpush2.bf16.msra.mxu0 0
  %3887 = vmatprep.subr.bf16.mxu0 0
  %3888 = vmatpush2.bf16.msra.mxu0 0
  %3889 = vmatprep.subr.bf16.mxu0 0
  %3890 = vmatpush2.bf16.msra.mxu0 0
  %3891 = vmatprep.subr.bf16.mxu0 0
  %3892 = vmatpush2.bf16.msra.mxu0 0
  %3893 = vmatprep.mubr.bf16.mxu0 0
  %3894 = vmatmul.mubr.bf16.gmra.mxu0 %v3859
  %v3895 = vpop.f32.mrf.mxu0
  %v3896 = vadd.f32 0.0, %v3895
  %v3897 = vpop.f32.mrf.mxu0
  %v3898 = vpop.f32.mrf.mxu0
  %v3899 = vpop.f32.mrf.mxu0
  %3900 = vdwg.mxu0
  %v3901 = vpack.c.bf16 %v3896, %v3896
  %v3902 = vld [vmem:[%s7 + $0x100] sm:$0xf]
  %v3903 = vld [vmem:[%s7 + $0x104] sm:$0xf]
  %v3904 = vld [vmem:[%s7 + $0x108] sm:$0xf]
  %v3905 = vld [vmem:[%s7 + $0x10c] sm:$0xf]
  %v3906 = vld [vmem:[%s7 + $0x110] sm:$0xf]
  %v3907 = vld [vmem:[%s7 + $0x114] sm:$0xf]
  %v3908 = vld [vmem:[%s7 + $0x118] sm:$0xf]
  %v3909 = vld [vmem:[%s7 + $0x11c] sm:$0xf]
  %v3910 = vld [vmem:[%s7 + $0x120] sm:$0xf]
  %v3911 = vld [vmem:[%s7 + $0x124] sm:$0xf]
  %v3912 = vld [vmem:[%s7 + $0x128] sm:$0xf]
  %v3913 = vld [vmem:[%s7 + $0x12c] sm:$0xf]
  %v3914 = vld [vmem:[%s7 + $0x130] sm:$0xf]
  %v3915 = vld [vmem:[%s7 + $0x134] sm:$0xf]
  %v3916 = vld [vmem:[%s7 + $0x138] sm:$0xf]
  %v3917 = vld [vmem:[%s7 + $0x13c] sm:$0xf]
  %v3934 = vunpack.c.l.b16 %v3902
  %v3935 = vunpack.c.l.b16 %v3903
  %v3936 = vunpack.c.l.b16 %v3904
  %v3937 = vunpack.c.l.b16 %v3905
  %v3938 = vunpack.c.l.b16 %v3906
  %v3939 = vunpack.c.l.b16 %v3907
  %v3940 = vunpack.c.l.b16 %v3908
  %v3941 = vunpack.c.l.b16 %v3909
  %v3942 = vunpack.c.l.b16 %v3910
  %v3943 = vunpack.c.l.b16 %v3911
  %v3944 = vunpack.c.l.b16 %v3912
  %v3945 = vunpack.c.l.b16 %v3913
  %v3946 = vunpack.c.l.b16 %v3914
  %v3947 = vunpack.c.l.b16 %v3915
  %v3948 = vunpack.c.l.b16 %v3916
  %v3949 = vunpack.c.l.b16 %v3917
  %v3950 = vpack.c.b16 %v3935, %v3934
  %v3951 = vpack.c.b16 %v3937, %v3936
  %v3952 = vpack.c.b16 %v3939, %v3938
  %v3953 = vpack.c.b16 %v3941, %v3940
  %v3954 = vpack.c.b16 %v3943, %v3942
  %v3955 = vpack.c.b16 %v3945, %v3944
  %v3956 = vpack.c.b16 %v3947, %v3946
  %v3957 = vpack.c.b16 %v3949, %v3948
  %3966 = vmatprep.subr.bf16.mxu0 0
  %3967 = vmatpush1.bf16.msra.mxu0 %v3957
  %3968 = vmatprep.subr.bf16.mxu0 0
  %3969 = vmatpush1.bf16.msra.mxu0 %v3956
  %3970 = vmatprep.subr.bf16.mxu0 0
  %3971 = vmatpush1.bf16.msra.mxu0 %v3955
  %3972 = vmatprep.subr.bf16.mxu0 0
  %3973 = vmatpush1.bf16.msra.mxu0 %v3954
  %3974 = vmatprep.subr.bf16.mxu0 0
  %3975 = vmatpush1.bf16.msra.mxu0 %v3953
  %3976 = vmatprep.subr.bf16.mxu0 0
  %3977 = vmatpush1.bf16.msra.mxu0 %v3952
  %3978 = vmatprep.subr.bf16.mxu0 0
  %3979 = vmatpush1.bf16.msra.mxu0 %v3951
  %3980 = vmatprep.subr.bf16.mxu0 0
  %3981 = vmatpush1.bf16.msra.mxu0 %v3950
  %3982 = vmatprep.subr.bf16.mxu0 0
  %3983 = vmatpush2.bf16.msra.mxu0 0
  %3984 = vmatprep.subr.bf16.mxu0 0
  %3985 = vmatpush2.bf16.msra.mxu0 0
  %3986 = vmatprep.subr.bf16.mxu0 0
  %3987 = vmatpush2.bf16.msra.mxu0 0
  %3988 = vmatprep.subr.bf16.mxu0 0
  %3989 = vmatpush2.bf16.msra.mxu0 0
  %3990 = vmatprep.subr.bf16.mxu0 0
  %3991 = vmatpush2.bf16.msra.mxu0 0
  %3992 = vmatprep.subr.bf16.mxu0 0
  %3993 = vmatpush2.bf16.msra.mxu0 0
  %3994 = vmatprep.subr.bf16.mxu0 0
  %3995 = vmatpush2.bf16.msra.mxu0 0
  %3996 = vmatprep.subr.bf16.mxu0 0
  %3997 = vmatpush2.bf16.msra.mxu0 0
  %3998 = vmatprep.mubr.bf16.mxu0 0
  %3999 = vmatmul.mubr.bf16.gmra.mxu0 %v3901
  %v4000 = vpop.f32.mrf.mxu0
  %v4001 = vadd.f32 0.0, %v4000
  %v4002 = vpop.f32.mrf.mxu0
  %v4003 = vpop.f32.mrf.mxu0
  %v4004 = vpop.f32.mrf.mxu0
  %4005 = vdwg.mxu0
  %v4006 = vadd.f32 %v3856, %v4001
  %v4007 = vld [vmem:[%s6 + $0x14] sm:$0xf]
  %v4009 = vsel %vm3259, %v4007, 0
  %4011 = vmatprep.subr.bf16.mxu0 0
  %4012 = vmatpush1.bf16.msra.mxu0 0
  %4013 = vmatprep.subr.bf16.mxu0 0
  %4014 = vmatpush1.bf16.msra.mxu0 0
  %4015 = vmatprep.subr.bf16.mxu0 0
  %4016 = vmatpush1.bf16.msra.mxu0 0
  %4017 = vmatprep.subr.bf16.mxu0 0
  %4018 = vmatpush1.bf16.msra.mxu0 0
  %4019 = vmatprep.subr.bf16.mxu0 0
  %4020 = vmatpush1.bf16.msra.mxu0 0
  %4021 = vmatprep.subr.bf16.mxu0 0
  %4022 = vmatpush1.bf16.msra.mxu0 0
  %4023 = vmatprep.subr.bf16.mxu0 0
  %4024 = vmatpush1.bf16.msra.mxu0 %v3257
  %4025 = vmatprep.subr.bf16.mxu0 0
  %4026 = vmatpush1.bf16.msra.mxu0 %v3256
  %4027 = vmatprep.subr.bf16.mxu0 0
  %4028 = vmatpush2.bf16.msra.mxu0 0
  %4029 = vmatprep.subr.bf16.mxu0 0
  %4030 = vmatpush2.bf16.msra.mxu0 0
  %4031 = vmatprep.subr.bf16.mxu0 0
  %4032 = vmatpush2.bf16.msra.mxu0 0
  %4033 = vmatprep.subr.bf16.mxu0 0
  %4034 = vmatpush2.bf16.msra.mxu0 0
  %4035 = vmatprep.subr.bf16.mxu0 0
  %4036 = vmatpush2.bf16.msra.mxu0 0
  %4037 = vmatprep.subr.bf16.mxu0 0
  %4038 = vmatpush2.bf16.msra.mxu0 0
  %4039 = vmatprep.subr.bf16.mxu0 0
  %4040 = vmatpush2.bf16.msra.mxu0 0
  %4041 = vmatprep.subr.bf16.mxu0 0
  %4042 = vmatpush2.bf16.msra.mxu0 0
  %4043 = vmatprep.mubr.bf16.mxu0 0
  %4044 = vmatmul.mubr.bf16.gmra.mxu0 %v4009
  %v4045 = vpop.f32.mrf.mxu0
  %v4046 = vadd.f32 0.0, %v4045
  %v4047 = vpop.f32.mrf.mxu0
  %v4048 = vpop.f32.mrf.mxu0
  %v4049 = vpop.f32.mrf.mxu0
  %4050 = vdwg.mxu0
  %v4051 = vpack.c.bf16 %v4046, %v4046
  %v4052 = vld [vmem:[%s7 + $0x140] sm:$0xf]
  %v4053 = vld [vmem:[%s7 + $0x144] sm:$0xf]
  %v4054 = vld [vmem:[%s7 + $0x148] sm:$0xf]
  %v4055 = vld [vmem:[%s7 + $0x14c] sm:$0xf]
  %v4056 = vld [vmem:[%s7 + $0x150] sm:$0xf]
  %v4057 = vld [vmem:[%s7 + $0x154] sm:$0xf]
  %v4058 = vld [vmem:[%s7 + $0x158] sm:$0xf]
  %v4059 = vld [vmem:[%s7 + $0x15c] sm:$0xf]
  %v4060 = vld [vmem:[%s7 + $0x160] sm:$0xf]
  %v4061 = vld [vmem:[%s7 + $0x164] sm:$0xf]
  %v4062 = vld [vmem:[%s7 + $0x168] sm:$0xf]
  %v4063 = vld [vmem:[%s7 + $0x16c] sm:$0xf]
  %v4064 = vld [vmem:[%s7 + $0x170] sm:$0xf]
  %v4065 = vld [vmem:[%s7 + $0x174] sm:$0xf]
  %v4066 = vld [vmem:[%s7 + $0x178] sm:$0xf]
  %v4067 = vld [vmem:[%s7 + $0x17c] sm:$0xf]
  %v4084 = vunpack.c.l.b16 %v4052
  %v4085 = vunpack.c.l.b16 %v4053
  %v4086 = vunpack.c.l.b16 %v4054
  %v4087 = vunpack.c.l.b16 %v4055
  %v4088 = vunpack.c.l.b16 %v4056
  %v4089 = vunpack.c.l.b16 %v4057
  %v4090 = vunpack.c.l.b16 %v4058
  %v4091 = vunpack.c.l.b16 %v4059
  %v4092 = vunpack.c.l.b16 %v4060
  %v4093 = vunpack.c.l.b16 %v4061
  %v4094 = vunpack.c.l.b16 %v4062
  %v4095 = vunpack.c.l.b16 %v4063
  %v4096 = vunpack.c.l.b16 %v4064
  %v4097 = vunpack.c.l.b16 %v4065
  %v4098 = vunpack.c.l.b16 %v4066
  %v4099 = vunpack.c.l.b16 %v4067
  %v4100 = vpack.c.b16 %v4085, %v4084
  %v4101 = vpack.c.b16 %v4087, %v4086
  %v4102 = vpack.c.b16 %v4089, %v4088
  %v4103 = vpack.c.b16 %v4091, %v4090
  %v4104 = vpack.c.b16 %v4093, %v4092
  %v4105 = vpack.c.b16 %v4095, %v4094
  %v4106 = vpack.c.b16 %v4097, %v4096
  %v4107 = vpack.c.b16 %v4099, %v4098
  %4116 = vmatprep.subr.bf16.mxu0 0
  %4117 = vmatpush1.bf16.msra.mxu0 %v4107
  %4118 = vmatprep.subr.bf16.mxu0 0
  %4119 = vmatpush1.bf16.msra.mxu0 %v4106
  %4120 = vmatprep.subr.bf16.mxu0 0
  %4121 = vmatpush1.bf16.msra.mxu0 %v4105
  %4122 = vmatprep.subr.bf16.mxu0 0
  %4123 = vmatpush1.bf16.msra.mxu0 %v4104
  %4124 = vmatprep.subr.bf16.mxu0 0
  %4125 = vmatpush1.bf16.msra.mxu0 %v4103
  %4126 = vmatprep.subr.bf16.mxu0 0
  %4127 = vmatpush1.bf16.msra.mxu0 %v4102
  %4128 = vmatprep.subr.bf16.mxu0 0
  %4129 = vmatpush1.bf16.msra.mxu0 %v4101
  %4130 = vmatprep.subr.bf16.mxu0 0
  %4131 = vmatpush1.bf16.msra.mxu0 %v4100
  %4132 = vmatprep.subr.bf16.mxu0 0
  %4133 = vmatpush2.bf16.msra.mxu0 0
  %4134 = vmatprep.subr.bf16.mxu0 0
  %4135 = vmatpush2.bf16.msra.mxu0 0
  %4136 = vmatprep.subr.bf16.mxu0 0
  %4137 = vmatpush2.bf16.msra.mxu0 0
  %4138 = vmatprep.subr.bf16.mxu0 0
  %4139 = vmatpush2.bf16.msra.mxu0 0
  %4140 = vmatprep.subr.bf16.mxu0 0
  %4141 = vmatpush2.bf16.msra.mxu0 0
  %4142 = vmatprep.subr.bf16.mxu0 0
  %4143 = vmatpush2.bf16.msra.mxu0 0
  %4144 = vmatprep.subr.bf16.mxu0 0
  %4145 = vmatpush2.bf16.msra.mxu0 0
  %4146 = vmatprep.subr.bf16.mxu0 0
  %4147 = vmatpush2.bf16.msra.mxu0 0
  %4148 = vmatprep.mubr.bf16.mxu0 0
  %4149 = vmatmul.mubr.bf16.gmra.mxu0 %v4051
  %v4150 = vpop.f32.mrf.mxu0
  %v4151 = vadd.f32 0.0, %v4150
  %v4152 = vpop.f32.mrf.mxu0
  %v4153 = vpop.f32.mrf.mxu0
  %v4154 = vpop.f32.mrf.mxu0
  %4155 = vdwg.mxu0
  %v4156 = vadd.f32 %v4006, %v4151
  %v4157 = vld [vmem:[%s6 + $0x18] sm:$0xf]
  %v4159 = vsel %vm3259, %v4157, 0
  %4161 = vmatprep.subr.bf16.mxu0 0
  %4162 = vmatpush1.bf16.msra.mxu0 0
  %4163 = vmatprep.subr.bf16.mxu0 0
  %4164 = vmatpush1.bf16.msra.mxu0 0
  %4165 = vmatprep.subr.bf16.mxu0 0
  %4166 = vmatpush1.bf16.msra.mxu0 0
  %4167 = vmatprep.subr.bf16.mxu0 0
  %4168 = vmatpush1.bf16.msra.mxu0 0
  %4169 = vmatprep.subr.bf16.mxu0 0
  %4170 = vmatpush1.bf16.msra.mxu0 0
  %4171 = vmatprep.subr.bf16.mxu0 0
  %4172 = vmatpush1.bf16.msra.mxu0 0
  %4173 = vmatprep.subr.bf16.mxu0 0
  %4174 = vmatpush1.bf16.msra.mxu0 %v3257
  %4175 = vmatprep.subr.bf16.mxu0 0
  %4176 = vmatpush1.bf16.msra.mxu0 %v3256
  %4177 = vmatprep.subr.bf16.mxu0 0
  %4178 = vmatpush2.bf16.msra.mxu0 0
  %4179 = vmatprep.subr.bf16.mxu0 0
  %4180 = vmatpush2.bf16.msra.mxu0 0
  %4181 = vmatprep.subr.bf16.mxu0 0
  %4182 = vmatpush2.bf16.msra.mxu0 0
  %4183 = vmatprep.subr.bf16.mxu0 0
  %4184 = vmatpush2.bf16.msra.mxu0 0
  %4185 = vmatprep.subr.bf16.mxu0 0
  %4186 = vmatpush2.bf16.msra.mxu0 0
  %4187 = vmatprep.subr.bf16.mxu0 0
  %4188 = vmatpush2.bf16.msra.mxu0 0
  %4189 = vmatprep.subr.bf16.mxu0 0
  %4190 = vmatpush2.bf16.msra.mxu0 0
  %4191 = vmatprep.subr.bf16.mxu0 0
  %4192 = vmatpush2.bf16.msra.mxu0 0
  %4193 = vmatprep.mubr.bf16.mxu0 0
  %4194 = vmatmul.mubr.bf16.gmra.mxu0 %v4159
  %v4195 = vpop.f32.mrf.mxu0
  %v4196 = vadd.f32 0.0, %v4195
  %v4197 = vpop.f32.mrf.mxu0
  %v4198 = vpop.f32.mrf.mxu0
  %v4199 = vpop.f32.mrf.mxu0
  %4200 = vdwg.mxu0
  %v4201 = vpack.c.bf16 %v4196, %v4196
  %v4202 = vld [vmem:[%s7 + $0x180] sm:$0xf]
  %v4203 = vld [vmem:[%s7 + $0x184] sm:$0xf]
  %v4204 = vld [vmem:[%s7 + $0x188] sm:$0xf]
  %v4205 = vld [vmem:[%s7 + $0x18c] sm:$0xf]
  %v4206 = vld [vmem:[%s7 + $0x190] sm:$0xf]
  %v4207 = vld [vmem:[%s7 + $0x194] sm:$0xf]
  %v4208 = vld [vmem:[%s7 + $0x198] sm:$0xf]
  %v4209 = vld [vmem:[%s7 + $0x19c] sm:$0xf]
  %v4210 = vld [vmem:[%s7 + $0x1a0] sm:$0xf]
  %v4211 = vld [vmem:[%s7 + $0x1a4] sm:$0xf]
  %v4212 = vld [vmem:[%s7 + $0x1a8] sm:$0xf]
  %v4213 = vld [vmem:[%s7 + $0x1ac] sm:$0xf]
  %v4214 = vld [vmem:[%s7 + $0x1b0] sm:$0xf]
  %v4215 = vld [vmem:[%s7 + $0x1b4] sm:$0xf]
  %v4216 = vld [vmem:[%s7 + $0x1b8] sm:$0xf]
  %v4217 = vld [vmem:[%s7 + $0x1bc] sm:$0xf]
  %v4234 = vunpack.c.l.b16 %v4202
  %v4235 = vunpack.c.l.b16 %v4203
  %v4236 = vunpack.c.l.b16 %v4204
  %v4237 = vunpack.c.l.b16 %v4205
  %v4238 = vunpack.c.l.b16 %v4206
  %v4239 = vunpack.c.l.b16 %v4207
  %v4240 = vunpack.c.l.b16 %v4208
  %v4241 = vunpack.c.l.b16 %v4209
  %v4242 = vunpack.c.l.b16 %v4210
  %v4243 = vunpack.c.l.b16 %v4211
  %v4244 = vunpack.c.l.b16 %v4212
  %v4245 = vunpack.c.l.b16 %v4213
  %v4246 = vunpack.c.l.b16 %v4214
  %v4247 = vunpack.c.l.b16 %v4215
  %v4248 = vunpack.c.l.b16 %v4216
  %v4249 = vunpack.c.l.b16 %v4217
  %v4250 = vpack.c.b16 %v4235, %v4234
  %v4251 = vpack.c.b16 %v4237, %v4236
  %v4252 = vpack.c.b16 %v4239, %v4238
  %v4253 = vpack.c.b16 %v4241, %v4240
  %v4254 = vpack.c.b16 %v4243, %v4242
  %v4255 = vpack.c.b16 %v4245, %v4244
  %v4256 = vpack.c.b16 %v4247, %v4246
  %v4257 = vpack.c.b16 %v4249, %v4248
  %4266 = vmatprep.subr.bf16.mxu0 0
  %4267 = vmatpush1.bf16.msra.mxu0 %v4257
  %4268 = vmatprep.subr.bf16.mxu0 0
  %4269 = vmatpush1.bf16.msra.mxu0 %v4256
  %4270 = vmatprep.subr.bf16.mxu0 0
  %4271 = vmatpush1.bf16.msra.mxu0 %v4255
  %4272 = vmatprep.subr.bf16.mxu0 0
  %4273 = vmatpush1.bf16.msra.mxu0 %v4254
  %4274 = vmatprep.subr.bf16.mxu0 0
  %4275 = vmatpush1.bf16.msra.mxu0 %v4253
  %4276 = vmatprep.subr.bf16.mxu0 0
  %4277 = vmatpush1.bf16.msra.mxu0 %v4252
  %4278 = vmatprep.subr.bf16.mxu0 0
  %4279 = vmatpush1.bf16.msra.mxu0 %v4251
  %4280 = vmatprep.subr.bf16.mxu0 0
  %4281 = vmatpush1.bf16.msra.mxu0 %v4250
  %4282 = vmatprep.subr.bf16.mxu0 0
  %4283 = vmatpush2.bf16.msra.mxu0 0
  %4284 = vmatprep.subr.bf16.mxu0 0
  %4285 = vmatpush2.bf16.msra.mxu0 0
  %4286 = vmatprep.subr.bf16.mxu0 0
  %4287 = vmatpush2.bf16.msra.mxu0 0
  %4288 = vmatprep.subr.bf16.mxu0 0
  %4289 = vmatpush2.bf16.msra.mxu0 0
  %4290 = vmatprep.subr.bf16.mxu0 0
  %4291 = vmatpush2.bf16.msra.mxu0 0
  %4292 = vmatprep.subr.bf16.mxu0 0
  %4293 = vmatpush2.bf16.msra.mxu0 0
  %4294 = vmatprep.subr.bf16.mxu0 0
  %4295 = vmatpush2.bf16.msra.mxu0 0
  %4296 = vmatprep.subr.bf16.mxu0 0
  %4297 = vmatpush2.bf16.msra.mxu0 0
  %4298 = vmatprep.mubr.bf16.mxu0 0
  %4299 = vmatmul.mubr.bf16.gmra.mxu0 %v4201
  %v4300 = vpop.f32.mrf.mxu0
  %v4301 = vadd.f32 0.0, %v4300
  %v4302 = vpop.f32.mrf.mxu0
  %v4303 = vpop.f32.mrf.mxu0
  %v4304 = vpop.f32.mrf.mxu0
  %4305 = vdwg.mxu0
  %v4306 = vadd.f32 %v4156, %v4301
  %v4307 = vld [vmem:[%s6 + $0x1c] sm:$0xf]
  %v4309 = vsel %vm3259, %v4307, 0
  %4311 = vmatprep.subr.bf16.mxu0 0
  %4312 = vmatpush1.bf16.msra.mxu0 0
  %4313 = vmatprep.subr.bf16.mxu0 0
  %4314 = vmatpush1.bf16.msra.mxu0 0
  %4315 = vmatprep.subr.bf16.mxu0 0
  %4316 = vmatpush1.bf16.msra.mxu0 0
  %4317 = vmatprep.subr.bf16.mxu0 0
  %4318 = vmatpush1.bf16.msra.mxu0 0
  %4319 = vmatprep.subr.bf16.mxu0 0
  %4320 = vmatpush1.bf16.msra.mxu0 0
  %4321 = vmatprep.subr.bf16.mxu0 0
  %4322 = vmatpush1.bf16.msra.mxu0 0
  %4323 = vmatprep.subr.bf16.mxu0 0
  %4324 = vmatpush1.bf16.msra.mxu0 %v3257
  %4325 = vmatprep.subr.bf16.mxu0 0
  %4326 = vmatpush1.bf16.msra.mxu0 %v3256
  %4327 = vmatprep.subr.bf16.mxu0 0
  %4328 = vmatpush2.bf16.msra.mxu0 0
  %4329 = vmatprep.subr.bf16.mxu0 0
  %4330 = vmatpush2.bf16.msra.mxu0 0
  %4331 = vmatprep.subr.bf16.mxu0 0
  %4332 = vmatpush2.bf16.msra.mxu0 0
  %4333 = vmatprep.subr.bf16.mxu0 0
  %4334 = vmatpush2.bf16.msra.mxu0 0
  %4335 = vmatprep.subr.bf16.mxu0 0
  %4336 = vmatpush2.bf16.msra.mxu0 0
  %4337 = vmatprep.subr.bf16.mxu0 0
  %4338 = vmatpush2.bf16.msra.mxu0 0
  %4339 = vmatprep.subr.bf16.mxu0 0
  %4340 = vmatpush2.bf16.msra.mxu0 0
  %4341 = vmatprep.subr.bf16.mxu0 0
  %4342 = vmatpush2.bf16.msra.mxu0 0
  %4343 = vmatprep.mubr.bf16.mxu0 0
  %4344 = vmatmul.mubr.bf16.gmra.mxu0 %v4309
  %v4345 = vpop.f32.mrf.mxu0
  %v4346 = vadd.f32 0.0, %v4345
  %v4347 = vpop.f32.mrf.mxu0
  %v4348 = vpop.f32.mrf.mxu0
  %v4349 = vpop.f32.mrf.mxu0
  %4350 = vdwg.mxu0
  %v4351 = vpack.c.bf16 %v4346, %v4346
  %v4352 = vld [vmem:[%s7 + $0x1c0] sm:$0xf]
  %v4353 = vld [vmem:[%s7 + $0x1c4] sm:$0xf]
  %v4354 = vld [vmem:[%s7 + $0x1c8] sm:$0xf]
  %v4355 = vld [vmem:[%s7 + $0x1cc] sm:$0xf]
  %v4356 = vld [vmem:[%s7 + $0x1d0] sm:$0xf]
  %v4357 = vld [vmem:[%s7 + $0x1d4] sm:$0xf]
  %v4358 = vld [vmem:[%s7 + $0x1d8] sm:$0xf]
  %v4359 = vld [vmem:[%s7 + $0x1dc] sm:$0xf]
  %v4360 = vld [vmem:[%s7 + $0x1e0] sm:$0xf]
  %v4361 = vld [vmem:[%s7 + $0x1e4] sm:$0xf]
  %v4362 = vld [vmem:[%s7 + $0x1e8] sm:$0xf]
  %v4363 = vld [vmem:[%s7 + $0x1ec] sm:$0xf]
  %v4364 = vld [vmem:[%s7 + $0x1f0] sm:$0xf]
  %v4365 = vld [vmem:[%s7 + $0x1f4] sm:$0xf]
  %v4366 = vld [vmem:[%s7 + $0x1f8] sm:$0xf]
  %v4367 = vld [vmem:[%s7 + $0x1fc] sm:$0xf]
  %v4384 = vunpack.c.l.b16 %v4352
  %v4385 = vunpack.c.l.b16 %v4353
  %v4386 = vunpack.c.l.b16 %v4354
  %v4387 = vunpack.c.l.b16 %v4355
  %v4388 = vunpack.c.l.b16 %v4356
  %v4389 = vunpack.c.l.b16 %v4357
  %v4390 = vunpack.c.l.b16 %v4358
  %v4391 = vunpack.c.l.b16 %v4359
  %v4392 = vunpack.c.l.b16 %v4360
  %v4393 = vunpack.c.l.b16 %v4361
  %v4394 = vunpack.c.l.b16 %v4362
  %v4395 = vunpack.c.l.b16 %v4363
  %v4396 = vunpack.c.l.b16 %v4364
  %v4397 = vunpack.c.l.b16 %v4365
  %v4398 = vunpack.c.l.b16 %v4366
  %v4399 = vunpack.c.l.b16 %v4367
  %v4400 = vpack.c.b16 %v4385, %v4384
  %v4401 = vpack.c.b16 %v4387, %v4386
  %v4402 = vpack.c.b16 %v4389, %v4388
  %v4403 = vpack.c.b16 %v4391, %v4390
  %v4404 = vpack.c.b16 %v4393, %v4392
  %v4405 = vpack.c.b16 %v4395, %v4394
  %v4406 = vpack.c.b16 %v4397, %v4396
  %v4407 = vpack.c.b16 %v4399, %v4398
  %4416 = vmatprep.subr.bf16.mxu0 0
  %4417 = vmatpush1.bf16.msra.mxu0 %v4407
  %4418 = vmatprep.subr.bf16.mxu0 0
  %4419 = vmatpush1.bf16.msra.mxu0 %v4406
  %4420 = vmatprep.subr.bf16.mxu0 0
  %4421 = vmatpush1.bf16.msra.mxu0 %v4405
  %4422 = vmatprep.subr.bf16.mxu0 0
  %4423 = vmatpush1.bf16.msra.mxu0 %v4404
  %4424 = vmatprep.subr.bf16.mxu0 0
  %4425 = vmatpush1.bf16.msra.mxu0 %v4403
  %4426 = vmatprep.subr.bf16.mxu0 0
  %4427 = vmatpush1.bf16.msra.mxu0 %v4402
  %4428 = vmatprep.subr.bf16.mxu0 0
  %4429 = vmatpush1.bf16.msra.mxu0 %v4401
  %4430 = vmatprep.subr.bf16.mxu0 0
  %4431 = vmatpush1.bf16.msra.mxu0 %v4400
  %4432 = vmatprep.subr.bf16.mxu0 0
  %4433 = vmatpush2.bf16.msra.mxu0 0
  %4434 = vmatprep.subr.bf16.mxu0 0
  %4435 = vmatpush2.bf16.msra.mxu0 0
  %4436 = vmatprep.subr.bf16.mxu0 0
  %4437 = vmatpush2.bf16.msra.mxu0 0
  %4438 = vmatprep.subr.bf16.mxu0 0
  %4439 = vmatpush2.bf16.msra.mxu0 0
  %4440 = vmatprep.subr.bf16.mxu0 0
  %4441 = vmatpush2.bf16.msra.mxu0 0
  %4442 = vmatprep.subr.bf16.mxu0 0
  %4443 = vmatpush2.bf16.msra.mxu0 0
  %4444 = vmatprep.subr.bf16.mxu0 0
  %4445 = vmatpush2.bf16.msra.mxu0 0
  %4446 = vmatprep.subr.bf16.mxu0 0
  %4447 = vmatpush2.bf16.msra.mxu0 0
  %4448 = vmatprep.mubr.bf16.mxu0 0
  %4449 = vmatmul.mubr.bf16.gmra.mxu0 %v4351
  %v4450 = vpop.f32.mrf.mxu0
  %v4451 = vadd.f32 0.0, %v4450
  %v4452 = vpop.f32.mrf.mxu0
  %v4453 = vpop.f32.mrf.mxu0
  %v4454 = vpop.f32.mrf.mxu0
  %4455 = vdwg.mxu0
  %v4456 = vadd.f32 %v4306, %v4451
  %v4457 = vld [vmem:[%s6 + $0x20] sm:$0xf]
  %v4459 = vsel %vm3259, %v4457, 0
  %4461 = vmatprep.subr.bf16.mxu0 0
  %4462 = vmatpush1.bf16.msra.mxu0 0
  %4463 = vmatprep.subr.bf16.mxu0 0
  %4464 = vmatpush1.bf16.msra.mxu0 0
  %4465 = vmatprep.subr.bf16.mxu0 0
  %4466 = vmatpush1.bf16.msra.mxu0 0
  %4467 = vmatprep.subr.bf16.mxu0 0
  %4468 = vmatpush1.bf16.msra.mxu0 0
  %4469 = vmatprep.subr.bf16.mxu0 0
  %4470 = vmatpush1.bf16.msra.mxu0 0
  %4471 = vmatprep.subr.bf16.mxu0 0
  %4472 = vmatpush1.bf16.msra.mxu0 0
  %4473 = vmatprep.subr.bf16.mxu0 0
  %4474 = vmatpush1.bf16.msra.mxu0 %v3257
  %4475 = vmatprep.subr.bf16.mxu0 0
  %4476 = vmatpush1.bf16.msra.mxu0 %v3256
  %4477 = vmatprep.subr.bf16.mxu0 0
  %4478 = vmatpush2.bf16.msra.mxu0 0
  %4479 = vmatprep.subr.bf16.mxu0 0
  %4480 = vmatpush2.bf16.msra.mxu0 0
  %4481 = vmatprep.subr.bf16.mxu0 0
  %4482 = vmatpush2.bf16.msra.mxu0 0
  %4483 = vmatprep.subr.bf16.mxu0 0
  %4484 = vmatpush2.bf16.msra.mxu0 0
  %4485 = vmatprep.subr.bf16.mxu0 0
  %4486 = vmatpush2.bf16.msra.mxu0 0
  %4487 = vmatprep.subr.bf16.mxu0 0
  %4488 = vmatpush2.bf16.msra.mxu0 0
  %4489 = vmatprep.subr.bf16.mxu0 0
  %4490 = vmatpush2.bf16.msra.mxu0 0
  %4491 = vmatprep.subr.bf16.mxu0 0
  %4492 = vmatpush2.bf16.msra.mxu0 0
  %4493 = vmatprep.mubr.bf16.mxu0 0
  %4494 = vmatmul.mubr.bf16.gmra.mxu0 %v4459
  %v4495 = vpop.f32.mrf.mxu0
  %v4496 = vadd.f32 0.0, %v4495
  %v4497 = vpop.f32.mrf.mxu0
  %v4498 = vpop.f32.mrf.mxu0
  %v4499 = vpop.f32.mrf.mxu0
  %4500 = vdwg.mxu0
  %v4501 = vpack.c.bf16 %v4496, %v4496
  %v4502 = vld [vmem:[%s7 + $0x200] sm:$0xf]
  %v4503 = vld [vmem:[%s7 + $0x204] sm:$0xf]
  %v4504 = vld [vmem:[%s7 + $0x208] sm:$0xf]
  %v4505 = vld [vmem:[%s7 + $0x20c] sm:$0xf]
  %v4506 = vld [vmem:[%s7 + $0x210] sm:$0xf]
  %v4507 = vld [vmem:[%s7 + $0x214] sm:$0xf]
  %v4508 = vld [vmem:[%s7 + $0x218] sm:$0xf]
  %v4509 = vld [vmem:[%s7 + $0x21c] sm:$0xf]
  %v4510 = vld [vmem:[%s7 + $0x220] sm:$0xf]
  %v4511 = vld [vmem:[%s7 + $0x224] sm:$0xf]
  %v4512 = vld [vmem:[%s7 + $0x228] sm:$0xf]
  %v4513 = vld [vmem:[%s7 + $0x22c] sm:$0xf]
  %v4514 = vld [vmem:[%s7 + $0x230] sm:$0xf]
  %v4515 = vld [vmem:[%s7 + $0x234] sm:$0xf]
  %v4516 = vld [vmem:[%s7 + $0x238] sm:$0xf]
  %v4517 = vld [vmem:[%s7 + $0x23c] sm:$0xf]
  %v4534 = vunpack.c.l.b16 %v4502
  %v4535 = vunpack.c.l.b16 %v4503
  %v4536 = vunpack.c.l.b16 %v4504
  %v4537 = vunpack.c.l.b16 %v4505
  %v4538 = vunpack.c.l.b16 %v4506
  %v4539 = vunpack.c.l.b16 %v4507
  %v4540 = vunpack.c.l.b16 %v4508
  %v4541 = vunpack.c.l.b16 %v4509
  %v4542 = vunpack.c.l.b16 %v4510
  %v4543 = vunpack.c.l.b16 %v4511
  %v4544 = vunpack.c.l.b16 %v4512
  %v4545 = vunpack.c.l.b16 %v4513
  %v4546 = vunpack.c.l.b16 %v4514
  %v4547 = vunpack.c.l.b16 %v4515
  %v4548 = vunpack.c.l.b16 %v4516
  %v4549 = vunpack.c.l.b16 %v4517
  %v4550 = vpack.c.b16 %v4535, %v4534
  %v4551 = vpack.c.b16 %v4537, %v4536
  %v4552 = vpack.c.b16 %v4539, %v4538
  %v4553 = vpack.c.b16 %v4541, %v4540
  %v4554 = vpack.c.b16 %v4543, %v4542
  %v4555 = vpack.c.b16 %v4545, %v4544
  %v4556 = vpack.c.b16 %v4547, %v4546
  %v4557 = vpack.c.b16 %v4549, %v4548
  %4566 = vmatprep.subr.bf16.mxu0 0
  %4567 = vmatpush1.bf16.msra.mxu0 %v4557
  %4568 = vmatprep.subr.bf16.mxu0 0
  %4569 = vmatpush1.bf16.msra.mxu0 %v4556
  %4570 = vmatprep.subr.bf16.mxu0 0
  %4571 = vmatpush1.bf16.msra.mxu0 %v4555
  %4572 = vmatprep.subr.bf16.mxu0 0
  %4573 = vmatpush1.bf16.msra.mxu0 %v4554
  %4574 = vmatprep.subr.bf16.mxu0 0
  %4575 = vmatpush1.bf16.msra.mxu0 %v4553
  %4576 = vmatprep.subr.bf16.mxu0 0
  %4577 = vmatpush1.bf16.msra.mxu0 %v4552
  %4578 = vmatprep.subr.bf16.mxu0 0
  %4579 = vmatpush1.bf16.msra.mxu0 %v4551
  %4580 = vmatprep.subr.bf16.mxu0 0
  %4581 = vmatpush1.bf16.msra.mxu0 %v4550
  %4582 = vmatprep.subr.bf16.mxu0 0
  %4583 = vmatpush2.bf16.msra.mxu0 0
  %4584 = vmatprep.subr.bf16.mxu0 0
  %4585 = vmatpush2.bf16.msra.mxu0 0
  %4586 = vmatprep.subr.bf16.mxu0 0
  %4587 = vmatpush2.bf16.msra.mxu0 0
  %4588 = vmatprep.subr.bf16.mxu0 0
  %4589 = vmatpush2.bf16.msra.mxu0 0
  %4590 = vmatprep.subr.bf16.mxu0 0
  %4591 = vmatpush2.bf16.msra.mxu0 0
  %4592 = vmatprep.subr.bf16.mxu0 0
  %4593 = vmatpush2.bf16.msra.mxu0 0
  %4594 = vmatprep.subr.bf16.mxu0 0
  %4595 = vmatpush2.bf16.msra.mxu0 0
  %4596 = vmatprep.subr.bf16.mxu0 0
  %4597 = vmatpush2.bf16.msra.mxu0 0
  %4598 = vmatprep.mubr.bf16.mxu0 0
  %4599 = vmatmul.mubr.bf16.gmra.mxu0 %v4501
  %v4600 = vpop.f32.mrf.mxu0
  %v4601 = vadd.f32 0.0, %v4600
  %v4602 = vpop.f32.mrf.mxu0
  %v4603 = vpop.f32.mrf.mxu0
  %v4604 = vpop.f32.mrf.mxu0
  %4605 = vdwg.mxu0
  %v4606 = vadd.f32 %v4456, %v4601
  %v4607 = vld [vmem:[%s6 + $0x24] sm:$0xf]
  %v4609 = vsel %vm3259, %v4607, 0
  %4611 = vmatprep.subr.bf16.mxu0 0
  %4612 = vmatpush1.bf16.msra.mxu0 0
  %4613 = vmatprep.subr.bf16.mxu0 0
  %4614 = vmatpush1.bf16.msra.mxu0 0
  %4615 = vmatprep.subr.bf16.mxu0 0
  %4616 = vmatpush1.bf16.msra.mxu0 0
  %4617 = vmatprep.subr.bf16.mxu0 0
  %4618 = vmatpush1.bf16.msra.mxu0 0
  %4619 = vmatprep.subr.bf16.mxu0 0
  %4620 = vmatpush1.bf16.msra.mxu0 0
  %4621 = vmatprep.subr.bf16.mxu0 0
  %4622 = vmatpush1.bf16.msra.mxu0 0
  %4623 = vmatprep.subr.bf16.mxu0 0
  %4624 = vmatpush1.bf16.msra.mxu0 %v3257
  %4625 = vmatprep.subr.bf16.mxu0 0
  %4626 = vmatpush1.bf16.msra.mxu0 %v3256
  %4627 = vmatprep.subr.bf16.mxu0 0
  %4628 = vmatpush2.bf16.msra.mxu0 0
  %4629 = vmatprep.subr.bf16.mxu0 0
  %4630 = vmatpush2.bf16.msra.mxu0 0
  %4631 = vmatprep.subr.bf16.mxu0 0
  %4632 = vmatpush2.bf16.msra.mxu0 0
  %4633 = vmatprep.subr.bf16.mxu0 0
  %4634 = vmatpush2.bf16.msra.mxu0 0
  %4635 = vmatprep.subr.bf16.mxu0 0
  %4636 = vmatpush2.bf16.msra.mxu0 0
  %4637 = vmatprep.subr.bf16.mxu0 0
  %4638 = vmatpush2.bf16.msra.mxu0 0
  %4639 = vmatprep.subr.bf16.mxu0 0
  %4640 = vmatpush2.bf16.msra.mxu0 0
  %4641 = vmatprep.subr.bf16.mxu0 0
  %4642 = vmatpush2.bf16.msra.mxu0 0
  %4643 = vmatprep.mubr.bf16.mxu0 0
  %4644 = vmatmul.mubr.bf16.gmra.mxu0 %v4609
  %v4645 = vpop.f32.mrf.mxu0
  %v4646 = vadd.f32 0.0, %v4645
  %v4647 = vpop.f32.mrf.mxu0
  %v4648 = vpop.f32.mrf.mxu0
  %v4649 = vpop.f32.mrf.mxu0
  %4650 = vdwg.mxu0
  %v4651 = vpack.c.bf16 %v4646, %v4646
  %v4652 = vld [vmem:[%s7 + $0x240] sm:$0xf]
  %v4653 = vld [vmem:[%s7 + $0x244] sm:$0xf]
  %v4654 = vld [vmem:[%s7 + $0x248] sm:$0xf]
  %v4655 = vld [vmem:[%s7 + $0x24c] sm:$0xf]
  %v4656 = vld [vmem:[%s7 + $0x250] sm:$0xf]
  %v4657 = vld [vmem:[%s7 + $0x254] sm:$0xf]
  %v4658 = vld [vmem:[%s7 + $0x258] sm:$0xf]
  %v4659 = vld [vmem:[%s7 + $0x25c] sm:$0xf]
  %v4660 = vld [vmem:[%s7 + $0x260] sm:$0xf]
  %v4661 = vld [vmem:[%s7 + $0x264] sm:$0xf]
  %v4662 = vld [vmem:[%s7 + $0x268] sm:$0xf]
  %v4663 = vld [vmem:[%s7 + $0x26c] sm:$0xf]
  %v4664 = vld [vmem:[%s7 + $0x270] sm:$0xf]
  %v4665 = vld [vmem:[%s7 + $0x274] sm:$0xf]
  %v4666 = vld [vmem:[%s7 + $0x278] sm:$0xf]
  %v4667 = vld [vmem:[%s7 + $0x27c] sm:$0xf]
  %v4684 = vunpack.c.l.b16 %v4652
  %v4685 = vunpack.c.l.b16 %v4653
  %v4686 = vunpack.c.l.b16 %v4654
  %v4687 = vunpack.c.l.b16 %v4655
  %v4688 = vunpack.c.l.b16 %v4656
  %v4689 = vunpack.c.l.b16 %v4657
  %v4690 = vunpack.c.l.b16 %v4658
  %v4691 = vunpack.c.l.b16 %v4659
  %v4692 = vunpack.c.l.b16 %v4660
  %v4693 = vunpack.c.l.b16 %v4661
  %v4694 = vunpack.c.l.b16 %v4662
  %v4695 = vunpack.c.l.b16 %v4663
  %v4696 = vunpack.c.l.b16 %v4664
  %v4697 = vunpack.c.l.b16 %v4665
  %v4698 = vunpack.c.l.b16 %v4666
  %v4699 = vunpack.c.l.b16 %v4667
  %v4700 = vpack.c.b16 %v4685, %v4684
  %v4701 = vpack.c.b16 %v4687, %v4686
  %v4702 = vpack.c.b16 %v4689, %v4688
  %v4703 = vpack.c.b16 %v4691, %v4690
  %v4704 = vpack.c.b16 %v4693, %v4692
  %v4705 = vpack.c.b16 %v4695, %v4694
  %v4706 = vpack.c.b16 %v4697, %v4696
  %v4707 = vpack.c.b16 %v4699, %v4698
  %4716 = vmatprep.subr.bf16.mxu0 0
  %4717 = vmatpush1.bf16.msra.mxu0 %v4707
  %4718 = vmatprep.subr.bf16.mxu0 0
  %4719 = vmatpush1.bf16.msra.mxu0 %v4706
  %4720 = vmatprep.subr.bf16.mxu0 0
  %4721 = vmatpush1.bf16.msra.mxu0 %v4705
  %4722 = vmatprep.subr.bf16.mxu0 0
  %4723 = vmatpush1.bf16.msra.mxu0 %v4704
  %4724 = vmatprep.subr.bf16.mxu0 0
  %4725 = vmatpush1.bf16.msra.mxu0 %v4703
  %4726 = vmatprep.subr.bf16.mxu0 0
  %4727 = vmatpush1.bf16.msra.mxu0 %v4702
  %4728 = vmatprep.subr.bf16.mxu0 0
  %4729 = vmatpush1.bf16.msra.mxu0 %v4701
  %4730 = vmatprep.subr.bf16.mxu0 0
  %4731 = vmatpush1.bf16.msra.mxu0 %v4700
  %4732 = vmatprep.subr.bf16.mxu0 0
  %4733 = vmatpush2.bf16.msra.mxu0 0
  %4734 = vmatprep.subr.bf16.mxu0 0
  %4735 = vmatpush2.bf16.msra.mxu0 0
  %4736 = vmatprep.subr.bf16.mxu0 0
  %4737 = vmatpush2.bf16.msra.mxu0 0
  %4738 = vmatprep.subr.bf16.mxu0 0
  %4739 = vmatpush2.bf16.msra.mxu0 0
  %4740 = vmatprep.subr.bf16.mxu0 0
  %4741 = vmatpush2.bf16.msra.mxu0 0
  %4742 = vmatprep.subr.bf16.mxu0 0
  %4743 = vmatpush2.bf16.msra.mxu0 0
  %4744 = vmatprep.subr.bf16.mxu0 0
  %4745 = vmatpush2.bf16.msra.mxu0 0
  %4746 = vmatprep.subr.bf16.mxu0 0
  %4747 = vmatpush2.bf16.msra.mxu0 0
  %4748 = vmatprep.mubr.bf16.mxu0 0
  %4749 = vmatmul.mubr.bf16.gmra.mxu0 %v4651
  %v4750 = vpop.f32.mrf.mxu0
  %v4751 = vadd.f32 0.0, %v4750
  %v4752 = vpop.f32.mrf.mxu0
  %v4753 = vpop.f32.mrf.mxu0
  %v4754 = vpop.f32.mrf.mxu0
  %4755 = vdwg.mxu0
  %v4756 = vadd.f32 %v4606, %v4751
  %v4757 = vld [vmem:[%s6 + $0x28] sm:$0xf]
  %v4759 = vsel %vm3259, %v4757, 0
  %4761 = vmatprep.subr.bf16.mxu0 0
  %4762 = vmatpush1.bf16.msra.mxu0 0
  %4763 = vmatprep.subr.bf16.mxu0 0
  %4764 = vmatpush1.bf16.msra.mxu0 0
  %4765 = vmatprep.subr.bf16.mxu0 0
  %4766 = vmatpush1.bf16.msra.mxu0 0
  %4767 = vmatprep.subr.bf16.mxu0 0
  %4768 = vmatpush1.bf16.msra.mxu0 0
  %4769 = vmatprep.subr.bf16.mxu0 0
  %4770 = vmatpush1.bf16.msra.mxu0 0
  %4771 = vmatprep.subr.bf16.mxu0 0
  %4772 = vmatpush1.bf16.msra.mxu0 0
  %4773 = vmatprep.subr.bf16.mxu0 0
  %4774 = vmatpush1.bf16.msra.mxu0 %v3257
  %4775 = vmatprep.subr.bf16.mxu0 0
  %4776 = vmatpush1.bf16.msra.mxu0 %v3256
  %4777 = vmatprep.subr.bf16.mxu0 0
  %4778 = vmatpush2.bf16.msra.mxu0 0
  %4779 = vmatprep.subr.bf16.mxu0 0
  %4780 = vmatpush2.bf16.msra.mxu0 0
  %4781 = vmatprep.subr.bf16.mxu0 0
  %4782 = vmatpush2.bf16.msra.mxu0 0
  %4783 = vmatprep.subr.bf16.mxu0 0
  %4784 = vmatpush2.bf16.msra.mxu0 0
  %4785 = vmatprep.subr.bf16.mxu0 0
  %4786 = vmatpush2.bf16.msra.mxu0 0
  %4787 = vmatprep.subr.bf16.mxu0 0
  %4788 = vmatpush2.bf16.msra.mxu0 0
  %4789 = vmatprep.subr.bf16.mxu0 0
  %4790 = vmatpush2.bf16.msra.mxu0 0
  %4791 = vmatprep.subr.bf16.mxu0 0
  %4792 = vmatpush2.bf16.msra.mxu0 0
  %4793 = vmatprep.mubr.bf16.mxu0 0
  %4794 = vmatmul.mubr.bf16.gmra.mxu0 %v4759
  %v4795 = vpop.f32.mrf.mxu0
  %v4796 = vadd.f32 0.0, %v4795
  %v4797 = vpop.f32.mrf.mxu0
  %v4798 = vpop.f32.mrf.mxu0
  %v4799 = vpop.f32.mrf.mxu0
  %4800 = vdwg.mxu0
  %v4801 = vpack.c.bf16 %v4796, %v4796
  %v4802 = vld [vmem:[%s7 + $0x280] sm:$0xf]
  %v4803 = vld [vmem:[%s7 + $0x284] sm:$0xf]
  %v4804 = vld [vmem:[%s7 + $0x288] sm:$0xf]
  %v4805 = vld [vmem:[%s7 + $0x28c] sm:$0xf]
  %v4806 = vld [vmem:[%s7 + $0x290] sm:$0xf]
  %v4807 = vld [vmem:[%s7 + $0x294] sm:$0xf]
  %v4808 = vld [vmem:[%s7 + $0x298] sm:$0xf]
  %v4809 = vld [vmem:[%s7 + $0x29c] sm:$0xf]
  %v4810 = vld [vmem:[%s7 + $0x2a0] sm:$0xf]
  %v4811 = vld [vmem:[%s7 + $0x2a4] sm:$0xf]
  %v4812 = vld [vmem:[%s7 + $0x2a8] sm:$0xf]
  %v4813 = vld [vmem:[%s7 + $0x2ac] sm:$0xf]
  %v4814 = vld [vmem:[%s7 + $0x2b0] sm:$0xf]
  %v4815 = vld [vmem:[%s7 + $0x2b4] sm:$0xf]
  %v4816 = vld [vmem:[%s7 + $0x2b8] sm:$0xf]
  %v4817 = vld [vmem:[%s7 + $0x2bc] sm:$0xf]
  %v4834 = vunpack.c.l.b16 %v4802
  %v4835 = vunpack.c.l.b16 %v4803
  %v4836 = vunpack.c.l.b16 %v4804
  %v4837 = vunpack.c.l.b16 %v4805
  %v4838 = vunpack.c.l.b16 %v4806
  %v4839 = vunpack.c.l.b16 %v4807
  %v4840 = vunpack.c.l.b16 %v4808
  %v4841 = vunpack.c.l.b16 %v4809
  %v4842 = vunpack.c.l.b16 %v4810
  %v4843 = vunpack.c.l.b16 %v4811
  %v4844 = vunpack.c.l.b16 %v4812
  %v4845 = vunpack.c.l.b16 %v4813
  %v4846 = vunpack.c.l.b16 %v4814
  %v4847 = vunpack.c.l.b16 %v4815
  %v4848 = vunpack.c.l.b16 %v4816
  %v4849 = vunpack.c.l.b16 %v4817
  %v4850 = vpack.c.b16 %v4835, %v4834
  %v4851 = vpack.c.b16 %v4837, %v4836
  %v4852 = vpack.c.b16 %v4839, %v4838
  %v4853 = vpack.c.b16 %v4841, %v4840
  %v4854 = vpack.c.b16 %v4843, %v4842
  %v4855 = vpack.c.b16 %v4845, %v4844
  %v4856 = vpack.c.b16 %v4847, %v4846
  %v4857 = vpack.c.b16 %v4849, %v4848
  %4866 = vmatprep.subr.bf16.mxu0 0
  %4867 = vmatpush1.bf16.msra.mxu0 %v4857
  %4868 = vmatprep.subr.bf16.mxu0 0
  %4869 = vmatpush1.bf16.msra.mxu0 %v4856
  %4870 = vmatprep.subr.bf16.mxu0 0
  %4871 = vmatpush1.bf16.msra.mxu0 %v4855
  %4872 = vmatprep.subr.bf16.mxu0 0
  %4873 = vmatpush1.bf16.msra.mxu0 %v4854
  %4874 = vmatprep.subr.bf16.mxu0 0
  %4875 = vmatpush1.bf16.msra.mxu0 %v4853
  %4876 = vmatprep.subr.bf16.mxu0 0
  %4877 = vmatpush1.bf16.msra.mxu0 %v4852
  %4878 = vmatprep.subr.bf16.mxu0 0
  %4879 = vmatpush1.bf16.msra.mxu0 %v4851
  %4880 = vmatprep.subr.bf16.mxu0 0
  %4881 = vmatpush1.bf16.msra.mxu0 %v4850
  %4882 = vmatprep.subr.bf16.mxu0 0
  %4883 = vmatpush2.bf16.msra.mxu0 0
  %4884 = vmatprep.subr.bf16.mxu0 0
  %4885 = vmatpush2.bf16.msra.mxu0 0
  %4886 = vmatprep.subr.bf16.mxu0 0
  %4887 = vmatpush2.bf16.msra.mxu0 0
  %4888 = vmatprep.subr.bf16.mxu0 0
  %4889 = vmatpush2.bf16.msra.mxu0 0
  %4890 = vmatprep.subr.bf16.mxu0 0
  %4891 = vmatpush2.bf16.msra.mxu0 0
  %4892 = vmatprep.subr.bf16.mxu0 0
  %4893 = vmatpush2.bf16.msra.mxu0 0
  %4894 = vmatprep.subr.bf16.mxu0 0
  %4895 = vmatpush2.bf16.msra.mxu0 0
  %4896 = vmatprep.subr.bf16.mxu0 0
  %4897 = vmatpush2.bf16.msra.mxu0 0
  %4898 = vmatprep.mubr.bf16.mxu0 0
  %4899 = vmatmul.mubr.bf16.gmra.mxu0 %v4801
  %v4900 = vpop.f32.mrf.mxu0
  %v4901 = vadd.f32 0.0, %v4900
  %v4902 = vpop.f32.mrf.mxu0
  %v4903 = vpop.f32.mrf.mxu0
  %v4904 = vpop.f32.mrf.mxu0
  %4905 = vdwg.mxu0
  %v4906 = vadd.f32 %v4756, %v4901
  %v4907 = vld [vmem:[%s6 + $0x2c] sm:$0xf]
  %v4909 = vsel %vm3259, %v4907, 0
  %4911 = vmatprep.subr.bf16.mxu0 0
  %4912 = vmatpush1.bf16.msra.mxu0 0
  %4913 = vmatprep.subr.bf16.mxu0 0
  %4914 = vmatpush1.bf16.msra.mxu0 0
  %4915 = vmatprep.subr.bf16.mxu0 0
  %4916 = vmatpush1.bf16.msra.mxu0 0
  %4917 = vmatprep.subr.bf16.mxu0 0
  %4918 = vmatpush1.bf16.msra.mxu0 0
  %4919 = vmatprep.subr.bf16.mxu0 0
  %4920 = vmatpush1.bf16.msra.mxu0 0
  %4921 = vmatprep.subr.bf16.mxu0 0
  %4922 = vmatpush1.bf16.msra.mxu0 0
  %4923 = vmatprep.subr.bf16.mxu0 0
  %4924 = vmatpush1.bf16.msra.mxu0 %v3257
  %4925 = vmatprep.subr.bf16.mxu0 0
  %4926 = vmatpush1.bf16.msra.mxu0 %v3256
  %4927 = vmatprep.subr.bf16.mxu0 0
  %4928 = vmatpush2.bf16.msra.mxu0 0
  %4929 = vmatprep.subr.bf16.mxu0 0
  %4930 = vmatpush2.bf16.msra.mxu0 0
  %4931 = vmatprep.subr.bf16.mxu0 0
  %4932 = vmatpush2.bf16.msra.mxu0 0
  %4933 = vmatprep.subr.bf16.mxu0 0
  %4934 = vmatpush2.bf16.msra.mxu0 0
  %4935 = vmatprep.subr.bf16.mxu0 0
  %4936 = vmatpush2.bf16.msra.mxu0 0
  %4937 = vmatprep.subr.bf16.mxu0 0
  %4938 = vmatpush2.bf16.msra.mxu0 0
  %4939 = vmatprep.subr.bf16.mxu0 0
  %4940 = vmatpush2.bf16.msra.mxu0 0
  %4941 = vmatprep.subr.bf16.mxu0 0
  %4942 = vmatpush2.bf16.msra.mxu0 0
  %4943 = vmatprep.mubr.bf16.mxu0 0
  %4944 = vmatmul.mubr.bf16.gmra.mxu0 %v4909
  %v4945 = vpop.f32.mrf.mxu0
  %v4946 = vadd.f32 0.0, %v4945
  %v4947 = vpop.f32.mrf.mxu0
  %v4948 = vpop.f32.mrf.mxu0
  %v4949 = vpop.f32.mrf.mxu0
  %4950 = vdwg.mxu0
  %v4951 = vpack.c.bf16 %v4946, %v4946
  %v4952 = vld [vmem:[%s7 + $0x2c0] sm:$0xf]
  %v4953 = vld [vmem:[%s7 + $0x2c4] sm:$0xf]
  %v4954 = vld [vmem:[%s7 + $0x2c8] sm:$0xf]
  %v4955 = vld [vmem:[%s7 + $0x2cc] sm:$0xf]
  %v4956 = vld [vmem:[%s7 + $0x2d0] sm:$0xf]
  %v4957 = vld [vmem:[%s7 + $0x2d4] sm:$0xf]
  %v4958 = vld [vmem:[%s7 + $0x2d8] sm:$0xf]
  %v4959 = vld [vmem:[%s7 + $0x2dc] sm:$0xf]
  %v4960 = vld [vmem:[%s7 + $0x2e0] sm:$0xf]
  %v4961 = vld [vmem:[%s7 + $0x2e4] sm:$0xf]
  %v4962 = vld [vmem:[%s7 + $0x2e8] sm:$0xf]
  %v4963 = vld [vmem:[%s7 + $0x2ec] sm:$0xf]
  %v4964 = vld [vmem:[%s7 + $0x2f0] sm:$0xf]
  %v4965 = vld [vmem:[%s7 + $0x2f4] sm:$0xf]
  %v4966 = vld [vmem:[%s7 + $0x2f8] sm:$0xf]
  %v4967 = vld [vmem:[%s7 + $0x2fc] sm:$0xf]
  %v4984 = vunpack.c.l.b16 %v4952
  %v4985 = vunpack.c.l.b16 %v4953
  %v4986 = vunpack.c.l.b16 %v4954
  %v4987 = vunpack.c.l.b16 %v4955
  %v4988 = vunpack.c.l.b16 %v4956
  %v4989 = vunpack.c.l.b16 %v4957
  %v4990 = vunpack.c.l.b16 %v4958
  %v4991 = vunpack.c.l.b16 %v4959
  %v4992 = vunpack.c.l.b16 %v4960
  %v4993 = vunpack.c.l.b16 %v4961
  %v4994 = vunpack.c.l.b16 %v4962
  %v4995 = vunpack.c.l.b16 %v4963
  %v4996 = vunpack.c.l.b16 %v4964
  %v4997 = vunpack.c.l.b16 %v4965
  %v4998 = vunpack.c.l.b16 %v4966
  %v4999 = vunpack.c.l.b16 %v4967
  %v5000 = vpack.c.b16 %v4985, %v4984
  %v5001 = vpack.c.b16 %v4987, %v4986
  %v5002 = vpack.c.b16 %v4989, %v4988
  %v5003 = vpack.c.b16 %v4991, %v4990
  %v5004 = vpack.c.b16 %v4993, %v4992
  %v5005 = vpack.c.b16 %v4995, %v4994
  %v5006 = vpack.c.b16 %v4997, %v4996
  %v5007 = vpack.c.b16 %v4999, %v4998
  %5016 = vmatprep.subr.bf16.mxu0 0
  %5017 = vmatpush1.bf16.msra.mxu0 %v5007
  %5018 = vmatprep.subr.bf16.mxu0 0
  %5019 = vmatpush1.bf16.msra.mxu0 %v5006
  %5020 = vmatprep.subr.bf16.mxu0 0
  %5021 = vmatpush1.bf16.msra.mxu0 %v5005
  %5022 = vmatprep.subr.bf16.mxu0 0
  %5023 = vmatpush1.bf16.msra.mxu0 %v5004
  %5024 = vmatprep.subr.bf16.mxu0 0
  %5025 = vmatpush1.bf16.msra.mxu0 %v5003
  %5026 = vmatprep.subr.bf16.mxu0 0
  %5027 = vmatpush1.bf16.msra.mxu0 %v5002
  %5028 = vmatprep.subr.bf16.mxu0 0
  %5029 = vmatpush1.bf16.msra.mxu0 %v5001
  %5030 = vmatprep.subr.bf16.mxu0 0
  %5031 = vmatpush1.bf16.msra.mxu0 %v5000
  %5032 = vmatprep.subr.bf16.mxu0 0
  %5033 = vmatpush2.bf16.msra.mxu0 0
  %5034 = vmatprep.subr.bf16.mxu0 0
  %5035 = vmatpush2.bf16.msra.mxu0 0
  %5036 = vmatprep.subr.bf16.mxu0 0
  %5037 = vmatpush2.bf16.msra.mxu0 0
  %5038 = vmatprep.subr.bf16.mxu0 0
  %5039 = vmatpush2.bf16.msra.mxu0 0
  %5040 = vmatprep.subr.bf16.mxu0 0
  %5041 = vmatpush2.bf16.msra.mxu0 0
  %5042 = vmatprep.subr.bf16.mxu0 0
  %5043 = vmatpush2.bf16.msra.mxu0 0
  %5044 = vmatprep.subr.bf16.mxu0 0
  %5045 = vmatpush2.bf16.msra.mxu0 0
  %5046 = vmatprep.subr.bf16.mxu0 0
  %5047 = vmatpush2.bf16.msra.mxu0 0
  %5048 = vmatprep.mubr.bf16.mxu0 0
  %5049 = vmatmul.mubr.bf16.gmra.mxu0 %v4951
  %v5050 = vpop.f32.mrf.mxu0
  %v5051 = vadd.f32 0.0, %v5050
  %v5052 = vpop.f32.mrf.mxu0
  %v5053 = vpop.f32.mrf.mxu0
  %v5054 = vpop.f32.mrf.mxu0
  %5055 = vdwg.mxu0
  %v5056 = vadd.f32 %v4906, %v5051
  %v5057 = vld [vmem:[%s6 + $0x30] sm:$0xf]
  %v5059 = vsel %vm3259, %v5057, 0
  %5061 = vmatprep.subr.bf16.mxu0 0
  %5062 = vmatpush1.bf16.msra.mxu0 0
  %5063 = vmatprep.subr.bf16.mxu0 0
  %5064 = vmatpush1.bf16.msra.mxu0 0
  %5065 = vmatprep.subr.bf16.mxu0 0
  %5066 = vmatpush1.bf16.msra.mxu0 0
  %5067 = vmatprep.subr.bf16.mxu0 0
  %5068 = vmatpush1.bf16.msra.mxu0 0
  %5069 = vmatprep.subr.bf16.mxu0 0
  %5070 = vmatpush1.bf16.msra.mxu0 0
  %5071 = vmatprep.subr.bf16.mxu0 0
  %5072 = vmatpush1.bf16.msra.mxu0 0
  %5073 = vmatprep.subr.bf16.mxu0 0
  %5074 = vmatpush1.bf16.msra.mxu0 %v3257
  %5075 = vmatprep.subr.bf16.mxu0 0
  %5076 = vmatpush1.bf16.msra.mxu0 %v3256
  %5077 = vmatprep.subr.bf16.mxu0 0
  %5078 = vmatpush2.bf16.msra.mxu0 0
  %5079 = vmatprep.subr.bf16.mxu0 0
  %5080 = vmatpush2.bf16.msra.mxu0 0
  %5081 = vmatprep.subr.bf16.mxu0 0
  %5082 = vmatpush2.bf16.msra.mxu0 0
  %5083 = vmatprep.subr.bf16.mxu0 0
  %5084 = vmatpush2.bf16.msra.mxu0 0
  %5085 = vmatprep.subr.bf16.mxu0 0
  %5086 = vmatpush2.bf16.msra.mxu0 0
  %5087 = vmatprep.subr.bf16.mxu0 0
  %5088 = vmatpush2.bf16.msra.mxu0 0
  %5089 = vmatprep.subr.bf16.mxu0 0
  %5090 = vmatpush2.bf16.msra.mxu0 0
  %5091 = vmatprep.subr.bf16.mxu0 0
  %5092 = vmatpush2.bf16.msra.mxu0 0
  %5093 = vmatprep.mubr.bf16.mxu0 0
  %5094 = vmatmul.mubr.bf16.gmra.mxu0 %v5059
  %v5095 = vpop.f32.mrf.mxu0
  %v5096 = vadd.f32 0.0, %v5095
  %v5097 = vpop.f32.mrf.mxu0
  %v5098 = vpop.f32.mrf.mxu0
  %v5099 = vpop.f32.mrf.mxu0
  %5100 = vdwg.mxu0
  %v5101 = vpack.c.bf16 %v5096, %v5096
  %v5102 = vld [vmem:[%s7 + $0x300] sm:$0xf]
  %v5103 = vld [vmem:[%s7 + $0x304] sm:$0xf]
  %v5104 = vld [vmem:[%s7 + $0x308] sm:$0xf]
  %v5105 = vld [vmem:[%s7 + $0x30c] sm:$0xf]
  %v5106 = vld [vmem:[%s7 + $0x310] sm:$0xf]
  %v5107 = vld [vmem:[%s7 + $0x314] sm:$0xf]
  %v5108 = vld [vmem:[%s7 + $0x318] sm:$0xf]
  %v5109 = vld [vmem:[%s7 + $0x31c] sm:$0xf]
  %v5110 = vld [vmem:[%s7 + $0x320] sm:$0xf]
  %v5111 = vld [vmem:[%s7 + $0x324] sm:$0xf]
  %v5112 = vld [vmem:[%s7 + $0x328] sm:$0xf]
  %v5113 = vld [vmem:[%s7 + $0x32c] sm:$0xf]
  %v5114 = vld [vmem:[%s7 + $0x330] sm:$0xf]
  %v5115 = vld [vmem:[%s7 + $0x334] sm:$0xf]
  %v5116 = vld [vmem:[%s7 + $0x338] sm:$0xf]
  %v5117 = vld [vmem:[%s7 + $0x33c] sm:$0xf]
  %v5134 = vunpack.c.l.b16 %v5102
  %v5135 = vunpack.c.l.b16 %v5103
  %v5136 = vunpack.c.l.b16 %v5104
  %v5137 = vunpack.c.l.b16 %v5105
  %v5138 = vunpack.c.l.b16 %v5106
  %v5139 = vunpack.c.l.b16 %v5107
  %v5140 = vunpack.c.l.b16 %v5108
  %v5141 = vunpack.c.l.b16 %v5109
  %v5142 = vunpack.c.l.b16 %v5110
  %v5143 = vunpack.c.l.b16 %v5111
  %v5144 = vunpack.c.l.b16 %v5112
  %v5145 = vunpack.c.l.b16 %v5113
  %v5146 = vunpack.c.l.b16 %v5114
  %v5147 = vunpack.c.l.b16 %v5115
  %v5148 = vunpack.c.l.b16 %v5116
  %v5149 = vunpack.c.l.b16 %v5117
  %v5150 = vpack.c.b16 %v5135, %v5134
  %v5151 = vpack.c.b16 %v5137, %v5136
  %v5152 = vpack.c.b16 %v5139, %v5138
  %v5153 = vpack.c.b16 %v5141, %v5140
  %v5154 = vpack.c.b16 %v5143, %v5142
  %v5155 = vpack.c.b16 %v5145, %v5144
  %v5156 = vpack.c.b16 %v5147, %v5146
  %v5157 = vpack.c.b16 %v5149, %v5148
  %5166 = vmatprep.subr.bf16.mxu0 0
  %5167 = vmatpush1.bf16.msra.mxu0 %v5157
  %5168 = vmatprep.subr.bf16.mxu0 0
  %5169 = vmatpush1.bf16.msra.mxu0 %v5156
  %5170 = vmatprep.subr.bf16.mxu0 0
  %5171 = vmatpush1.bf16.msra.mxu0 %v5155
  %5172 = vmatprep.subr.bf16.mxu0 0
  %5173 = vmatpush1.bf16.msra.mxu0 %v5154
  %5174 = vmatprep.subr.bf16.mxu0 0
  %5175 = vmatpush1.bf16.msra.mxu0 %v5153
  %5176 = vmatprep.subr.bf16.mxu0 0
  %5177 = vmatpush1.bf16.msra.mxu0 %v5152
  %5178 = vmatprep.subr.bf16.mxu0 0
  %5179 = vmatpush1.bf16.msra.mxu0 %v5151
  %5180 = vmatprep.subr.bf16.mxu0 0
  %5181 = vmatpush1.bf16.msra.mxu0 %v5150
  %5182 = vmatprep.subr.bf16.mxu0 0
  %5183 = vmatpush2.bf16.msra.mxu0 0
  %5184 = vmatprep.subr.bf16.mxu0 0
  %5185 = vmatpush2.bf16.msra.mxu0 0
  %5186 = vmatprep.subr.bf16.mxu0 0
  %5187 = vmatpush2.bf16.msra.mxu0 0
  %5188 = vmatprep.subr.bf16.mxu0 0
  %5189 = vmatpush2.bf16.msra.mxu0 0
  %5190 = vmatprep.subr.bf16.mxu0 0
  %5191 = vmatpush2.bf16.msra.mxu0 0
  %5192 = vmatprep.subr.bf16.mxu0 0
  %5193 = vmatpush2.bf16.msra.mxu0 0
  %5194 = vmatprep.subr.bf16.mxu0 0
  %5195 = vmatpush2.bf16.msra.mxu0 0
  %5196 = vmatprep.subr.bf16.mxu0 0
  %5197 = vmatpush2.bf16.msra.mxu0 0
  %5198 = vmatprep.mubr.bf16.mxu0 0
  %5199 = vmatmul.mubr.bf16.gmra.mxu0 %v5101
  %v5200 = vpop.f32.mrf.mxu0
  %v5201 = vadd.f32 0.0, %v5200
  %v5202 = vpop.f32.mrf.mxu0
  %v5203 = vpop.f32.mrf.mxu0
  %v5204 = vpop.f32.mrf.mxu0
  %5205 = vdwg.mxu0
  %v5206 = vadd.f32 %v5056, %v5201
  %v5207 = vld [vmem:[%s6 + $0x34] sm:$0xf]
  %v5209 = vsel %vm3259, %v5207, 0
  %5211 = vmatprep.subr.bf16.mxu0 0
  %5212 = vmatpush1.bf16.msra.mxu0 0
  %5213 = vmatprep.subr.bf16.mxu0 0
  %5214 = vmatpush1.bf16.msra.mxu0 0
  %5215 = vmatprep.subr.bf16.mxu0 0
  %5216 = vmatpush1.bf16.msra.mxu0 0
  %5217 = vmatprep.subr.bf16.mxu0 0
  %5218 = vmatpush1.bf16.msra.mxu0 0
  %5219 = vmatprep.subr.bf16.mxu0 0
  %5220 = vmatpush1.bf16.msra.mxu0 0
  %5221 = vmatprep.subr.bf16.mxu0 0
  %5222 = vmatpush1.bf16.msra.mxu0 0
  %5223 = vmatprep.subr.bf16.mxu0 0
  %5224 = vmatpush1.bf16.msra.mxu0 %v3257
  %5225 = vmatprep.subr.bf16.mxu0 0
  %5226 = vmatpush1.bf16.msra.mxu0 %v3256
  %5227 = vmatprep.subr.bf16.mxu0 0
  %5228 = vmatpush2.bf16.msra.mxu0 0
  %5229 = vmatprep.subr.bf16.mxu0 0
  %5230 = vmatpush2.bf16.msra.mxu0 0
  %5231 = vmatprep.subr.bf16.mxu0 0
  %5232 = vmatpush2.bf16.msra.mxu0 0
  %5233 = vmatprep.subr.bf16.mxu0 0
  %5234 = vmatpush2.bf16.msra.mxu0 0
  %5235 = vmatprep.subr.bf16.mxu0 0
  %5236 = vmatpush2.bf16.msra.mxu0 0
  %5237 = vmatprep.subr.bf16.mxu0 0
  %5238 = vmatpush2.bf16.msra.mxu0 0
  %5239 = vmatprep.subr.bf16.mxu0 0
  %5240 = vmatpush2.bf16.msra.mxu0 0
  %5241 = vmatprep.subr.bf16.mxu0 0
  %5242 = vmatpush2.bf16.msra.mxu0 0
  %5243 = vmatprep.mubr.bf16.mxu0 0
  %5244 = vmatmul.mubr.bf16.gmra.mxu0 %v5209
  %v5245 = vpop.f32.mrf.mxu0
  %v5246 = vadd.f32 0.0, %v5245
  %v5247 = vpop.f32.mrf.mxu0
  %v5248 = vpop.f32.mrf.mxu0
  %v5249 = vpop.f32.mrf.mxu0
  %5250 = vdwg.mxu0
  %v5251 = vpack.c.bf16 %v5246, %v5246
  %v5252 = vld [vmem:[%s7 + $0x340] sm:$0xf]
  %v5253 = vld [vmem:[%s7 + $0x344] sm:$0xf]
  %v5254 = vld [vmem:[%s7 + $0x348] sm:$0xf]
  %v5255 = vld [vmem:[%s7 + $0x34c] sm:$0xf]
  %v5256 = vld [vmem:[%s7 + $0x350] sm:$0xf]
  %v5257 = vld [vmem:[%s7 + $0x354] sm:$0xf]
  %v5258 = vld [vmem:[%s7 + $0x358] sm:$0xf]
  %v5259 = vld [vmem:[%s7 + $0x35c] sm:$0xf]
  %v5260 = vld [vmem:[%s7 + $0x360] sm:$0xf]
  %v5261 = vld [vmem:[%s7 + $0x364] sm:$0xf]
  %v5262 = vld [vmem:[%s7 + $0x368] sm:$0xf]
  %v5263 = vld [vmem:[%s7 + $0x36c] sm:$0xf]
  %v5264 = vld [vmem:[%s7 + $0x370] sm:$0xf]
  %v5265 = vld [vmem:[%s7 + $0x374] sm:$0xf]
  %v5266 = vld [vmem:[%s7 + $0x378] sm:$0xf]
  %v5267 = vld [vmem:[%s7 + $0x37c] sm:$0xf]
  %v5284 = vunpack.c.l.b16 %v5252
  %v5285 = vunpack.c.l.b16 %v5253
  %v5286 = vunpack.c.l.b16 %v5254
  %v5287 = vunpack.c.l.b16 %v5255
  %v5288 = vunpack.c.l.b16 %v5256
  %v5289 = vunpack.c.l.b16 %v5257
  %v5290 = vunpack.c.l.b16 %v5258
  %v5291 = vunpack.c.l.b16 %v5259
  %v5292 = vunpack.c.l.b16 %v5260
  %v5293 = vunpack.c.l.b16 %v5261
  %v5294 = vunpack.c.l.b16 %v5262
  %v5295 = vunpack.c.l.b16 %v5263
  %v5296 = vunpack.c.l.b16 %v5264
  %v5297 = vunpack.c.l.b16 %v5265
  %v5298 = vunpack.c.l.b16 %v5266
  %v5299 = vunpack.c.l.b16 %v5267
  %v5300 = vpack.c.b16 %v5285, %v5284
  %v5301 = vpack.c.b16 %v5287, %v5286
  %v5302 = vpack.c.b16 %v5289, %v5288
  %v5303 = vpack.c.b16 %v5291, %v5290
  %v5304 = vpack.c.b16 %v5293, %v5292
  %v5305 = vpack.c.b16 %v5295, %v5294
  %v5306 = vpack.c.b16 %v5297, %v5296
  %v5307 = vpack.c.b16 %v5299, %v5298
  %5316 = vmatprep.subr.bf16.mxu0 0
  %5317 = vmatpush1.bf16.msra.mxu0 %v5307
  %5318 = vmatprep.subr.bf16.mxu0 0
  %5319 = vmatpush1.bf16.msra.mxu0 %v5306
  %5320 = vmatprep.subr.bf16.mxu0 0
  %5321 = vmatpush1.bf16.msra.mxu0 %v5305
  %5322 = vmatprep.subr.bf16.mxu0 0
  %5323 = vmatpush1.bf16.msra.mxu0 %v5304
  %5324 = vmatprep.subr.bf16.mxu0 0
  %5325 = vmatpush1.bf16.msra.mxu0 %v5303
  %5326 = vmatprep.subr.bf16.mxu0 0
  %5327 = vmatpush1.bf16.msra.mxu0 %v5302
  %5328 = vmatprep.subr.bf16.mxu0 0
  %5329 = vmatpush1.bf16.msra.mxu0 %v5301
  %5330 = vmatprep.subr.bf16.mxu0 0
  %5331 = vmatpush1.bf16.msra.mxu0 %v5300
  %5332 = vmatprep.subr.bf16.mxu0 0
  %5333 = vmatpush2.bf16.msra.mxu0 0
  %5334 = vmatprep.subr.bf16.mxu0 0
  %5335 = vmatpush2.bf16.msra.mxu0 0
  %5336 = vmatprep.subr.bf16.mxu0 0
  %5337 = vmatpush2.bf16.msra.mxu0 0
  %5338 = vmatprep.subr.bf16.mxu0 0
  %5339 = vmatpush2.bf16.msra.mxu0 0
  %5340 = vmatprep.subr.bf16.mxu0 0
  %5341 = vmatpush2.bf16.msra.mxu0 0
  %5342 = vmatprep.subr.bf16.mxu0 0
  %5343 = vmatpush2.bf16.msra.mxu0 0
  %5344 = vmatprep.subr.bf16.mxu0 0
  %5345 = vmatpush2.bf16.msra.mxu0 0
  %5346 = vmatprep.subr.bf16.mxu0 0
  %5347 = vmatpush2.bf16.msra.mxu0 0
  %5348 = vmatprep.mubr.bf16.mxu0 0
  %5349 = vmatmul.mubr.bf16.gmra.mxu0 %v5251
  %v5350 = vpop.f32.mrf.mxu0
  %v5351 = vadd.f32 0.0, %v5350
  %v5352 = vpop.f32.mrf.mxu0
  %v5353 = vpop.f32.mrf.mxu0
  %v5354 = vpop.f32.mrf.mxu0
  %5355 = vdwg.mxu0
  %v5356 = vadd.f32 %v5206, %v5351
  %v5357 = vld [vmem:[%s6 + $0x38] sm:$0xf]
  %v5359 = vsel %vm3259, %v5357, 0
  %5361 = vmatprep.subr.bf16.mxu0 0
  %5362 = vmatpush1.bf16.msra.mxu0 0
  %5363 = vmatprep.subr.bf16.mxu0 0
  %5364 = vmatpush1.bf16.msra.mxu0 0
  %5365 = vmatprep.subr.bf16.mxu0 0
  %5366 = vmatpush1.bf16.msra.mxu0 0
  %5367 = vmatprep.subr.bf16.mxu0 0
  %5368 = vmatpush1.bf16.msra.mxu0 0
  %5369 = vmatprep.subr.bf16.mxu0 0
  %5370 = vmatpush1.bf16.msra.mxu0 0
  %5371 = vmatprep.subr.bf16.mxu0 0
  %5372 = vmatpush1.bf16.msra.mxu0 0
  %5373 = vmatprep.subr.bf16.mxu0 0
  %5374 = vmatpush1.bf16.msra.mxu0 %v3257
  %5375 = vmatprep.subr.bf16.mxu0 0
  %5376 = vmatpush1.bf16.msra.mxu0 %v3256
  %5377 = vmatprep.subr.bf16.mxu0 0
  %5378 = vmatpush2.bf16.msra.mxu0 0
  %5379 = vmatprep.subr.bf16.mxu0 0
  %5380 = vmatpush2.bf16.msra.mxu0 0
  %5381 = vmatprep.subr.bf16.mxu0 0
  %5382 = vmatpush2.bf16.msra.mxu0 0
  %5383 = vmatprep.subr.bf16.mxu0 0
  %5384 = vmatpush2.bf16.msra.mxu0 0
  %5385 = vmatprep.subr.bf16.mxu0 0
  %5386 = vmatpush2.bf16.msra.mxu0 0
  %5387 = vmatprep.subr.bf16.mxu0 0
  %5388 = vmatpush2.bf16.msra.mxu0 0
  %5389 = vmatprep.subr.bf16.mxu0 0
  %5390 = vmatpush2.bf16.msra.mxu0 0
  %5391 = vmatprep.subr.bf16.mxu0 0
  %5392 = vmatpush2.bf16.msra.mxu0 0
  %5393 = vmatprep.mubr.bf16.mxu0 0
  %5394 = vmatmul.mubr.bf16.gmra.mxu0 %v5359
  %v5395 = vpop.f32.mrf.mxu0
  %v5396 = vadd.f32 0.0, %v5395
  %v5397 = vpop.f32.mrf.mxu0
  %v5398 = vpop.f32.mrf.mxu0
  %v5399 = vpop.f32.mrf.mxu0
  %5400 = vdwg.mxu0
  %v5401 = vpack.c.bf16 %v5396, %v5396
  %v5402 = vld [vmem:[%s7 + $0x380] sm:$0xf]
  %v5403 = vld [vmem:[%s7 + $0x384] sm:$0xf]
  %v5404 = vld [vmem:[%s7 + $0x388] sm:$0xf]
  %v5405 = vld [vmem:[%s7 + $0x38c] sm:$0xf]
  %v5406 = vld [vmem:[%s7 + $0x390] sm:$0xf]
  %v5407 = vld [vmem:[%s7 + $0x394] sm:$0xf]
  %v5408 = vld [vmem:[%s7 + $0x398] sm:$0xf]
  %v5409 = vld [vmem:[%s7 + $0x39c] sm:$0xf]
  %v5410 = vld [vmem:[%s7 + $0x3a0] sm:$0xf]
  %v5411 = vld [vmem:[%s7 + $0x3a4] sm:$0xf]
  %v5412 = vld [vmem:[%s7 + $0x3a8] sm:$0xf]
  %v5413 = vld [vmem:[%s7 + $0x3ac] sm:$0xf]
  %v5414 = vld [vmem:[%s7 + $0x3b0] sm:$0xf]
  %v5415 = vld [vmem:[%s7 + $0x3b4] sm:$0xf]
  %v5416 = vld [vmem:[%s7 + $0x3b8] sm:$0xf]
  %v5417 = vld [vmem:[%s7 + $0x3bc] sm:$0xf]
  %v5434 = vunpack.c.l.b16 %v5402
  %v5435 = vunpack.c.l.b16 %v5403
  %v5436 = vunpack.c.l.b16 %v5404
  %v5437 = vunpack.c.l.b16 %v5405
  %v5438 = vunpack.c.l.b16 %v5406
  %v5439 = vunpack.c.l.b16 %v5407
  %v5440 = vunpack.c.l.b16 %v5408
  %v5441 = vunpack.c.l.b16 %v5409
  %v5442 = vunpack.c.l.b16 %v5410
  %v5443 = vunpack.c.l.b16 %v5411
  %v5444 = vunpack.c.l.b16 %v5412
  %v5445 = vunpack.c.l.b16 %v5413
  %v5446 = vunpack.c.l.b16 %v5414
  %v5447 = vunpack.c.l.b16 %v5415
  %v5448 = vunpack.c.l.b16 %v5416
  %v5449 = vunpack.c.l.b16 %v5417
  %v5450 = vpack.c.b16 %v5435, %v5434
  %v5451 = vpack.c.b16 %v5437, %v5436
  %v5452 = vpack.c.b16 %v5439, %v5438
  %v5453 = vpack.c.b16 %v5441, %v5440
  %v5454 = vpack.c.b16 %v5443, %v5442
  %v5455 = vpack.c.b16 %v5445, %v5444
  %v5456 = vpack.c.b16 %v5447, %v5446
  %v5457 = vpack.c.b16 %v5449, %v5448
  %5466 = vmatprep.subr.bf16.mxu0 0
  %5467 = vmatpush1.bf16.msra.mxu0 %v5457
  %5468 = vmatprep.subr.bf16.mxu0 0
  %5469 = vmatpush1.bf16.msra.mxu0 %v5456
  %5470 = vmatprep.subr.bf16.mxu0 0
  %5471 = vmatpush1.bf16.msra.mxu0 %v5455
  %5472 = vmatprep.subr.bf16.mxu0 0
  %5473 = vmatpush1.bf16.msra.mxu0 %v5454
  %5474 = vmatprep.subr.bf16.mxu0 0
  %5475 = vmatpush1.bf16.msra.mxu0 %v5453
  %5476 = vmatprep.subr.bf16.mxu0 0
  %5477 = vmatpush1.bf16.msra.mxu0 %v5452
  %5478 = vmatprep.subr.bf16.mxu0 0
  %5479 = vmatpush1.bf16.msra.mxu0 %v5451
  %5480 = vmatprep.subr.bf16.mxu0 0
  %5481 = vmatpush1.bf16.msra.mxu0 %v5450
  %5482 = vmatprep.subr.bf16.mxu0 0
  %5483 = vmatpush2.bf16.msra.mxu0 0
  %5484 = vmatprep.subr.bf16.mxu0 0
  %5485 = vmatpush2.bf16.msra.mxu0 0
  %5486 = vmatprep.subr.bf16.mxu0 0
  %5487 = vmatpush2.bf16.msra.mxu0 0
  %5488 = vmatprep.subr.bf16.mxu0 0
  %5489 = vmatpush2.bf16.msra.mxu0 0
  %5490 = vmatprep.subr.bf16.mxu0 0
  %5491 = vmatpush2.bf16.msra.mxu0 0
  %5492 = vmatprep.subr.bf16.mxu0 0
  %5493 = vmatpush2.bf16.msra.mxu0 0
  %5494 = vmatprep.subr.bf16.mxu0 0
  %5495 = vmatpush2.bf16.msra.mxu0 0
  %5496 = vmatprep.subr.bf16.mxu0 0
  %5497 = vmatpush2.bf16.msra.mxu0 0
  %5498 = vmatprep.mubr.bf16.mxu0 0
  %5499 = vmatmul.mubr.bf16.gmra.mxu0 %v5401
  %v5500 = vpop.f32.mrf.mxu0
  %v5501 = vadd.f32 0.0, %v5500
  %v5502 = vpop.f32.mrf.mxu0
  %v5503 = vpop.f32.mrf.mxu0
  %v5504 = vpop.f32.mrf.mxu0
  %5505 = vdwg.mxu0
  %v5506 = vadd.f32 %v5356, %v5501
  %v5507 = vld [vmem:[%s6 + $0x3c] sm:$0xf]
  %v5509 = vsel %vm3259, %v5507, 0
  %5511 = vmatprep.subr.bf16.mxu0 0
  %5512 = vmatpush1.bf16.msra.mxu0 0
  %5513 = vmatprep.subr.bf16.mxu0 0
  %5514 = vmatpush1.bf16.msra.mxu0 0
  %5515 = vmatprep.subr.bf16.mxu0 0
  %5516 = vmatpush1.bf16.msra.mxu0 0
  %5517 = vmatprep.subr.bf16.mxu0 0
  %5518 = vmatpush1.bf16.msra.mxu0 0
  %5519 = vmatprep.subr.bf16.mxu0 0
  %5520 = vmatpush1.bf16.msra.mxu0 0
  %5521 = vmatprep.subr.bf16.mxu0 0
  %5522 = vmatpush1.bf16.msra.mxu0 0
  %5523 = vmatprep.subr.bf16.mxu0 0
  %5524 = vmatpush1.bf16.msra.mxu0 %v3257
  %5525 = vmatprep.subr.bf16.mxu0 0
  %5526 = vmatpush1.bf16.msra.mxu0 %v3256
  %5527 = vmatprep.subr.bf16.mxu0 0
  %5528 = vmatpush2.bf16.msra.mxu0 0
  %5529 = vmatprep.subr.bf16.mxu0 0
  %5530 = vmatpush2.bf16.msra.mxu0 0
  %5531 = vmatprep.subr.bf16.mxu0 0
  %5532 = vmatpush2.bf16.msra.mxu0 0
  %5533 = vmatprep.subr.bf16.mxu0 0
  %5534 = vmatpush2.bf16.msra.mxu0 0
  %5535 = vmatprep.subr.bf16.mxu0 0
  %5536 = vmatpush2.bf16.msra.mxu0 0
  %5537 = vmatprep.subr.bf16.mxu0 0
  %5538 = vmatpush2.bf16.msra.mxu0 0
  %5539 = vmatprep.subr.bf16.mxu0 0
  %5540 = vmatpush2.bf16.msra.mxu0 0
  %5541 = vmatprep.subr.bf16.mxu0 0
  %5542 = vmatpush2.bf16.msra.mxu0 0
  %5543 = vmatprep.mubr.bf16.mxu0 0
  %5544 = vmatmul.mubr.bf16.gmra.mxu0 %v5509
  %v5545 = vpop.f32.mrf.mxu0
  %v5546 = vadd.f32 0.0, %v5545
  %v5547 = vpop.f32.mrf.mxu0
  %v5548 = vpop.f32.mrf.mxu0
  %v5549 = vpop.f32.mrf.mxu0
  %5550 = vdwg.mxu0
  %v5551 = vpack.c.bf16 %v5546, %v5546
  %v5552 = vld [vmem:[%s7 + $0x3c0] sm:$0xf]
  %v5553 = vld [vmem:[%s7 + $0x3c4] sm:$0xf]
  %v5554 = vld [vmem:[%s7 + $0x3c8] sm:$0xf]
  %v5555 = vld [vmem:[%s7 + $0x3cc] sm:$0xf]
  %v5556 = vld [vmem:[%s7 + $0x3d0] sm:$0xf]
  %v5557 = vld [vmem:[%s7 + $0x3d4] sm:$0xf]
  %v5558 = vld [vmem:[%s7 + $0x3d8] sm:$0xf]
  %v5559 = vld [vmem:[%s7 + $0x3dc] sm:$0xf]
  %v5560 = vld [vmem:[%s7 + $0x3e0] sm:$0xf]
  %v5561 = vld [vmem:[%s7 + $0x3e4] sm:$0xf]
  %v5562 = vld [vmem:[%s7 + $0x3e8] sm:$0xf]
  %v5563 = vld [vmem:[%s7 + $0x3ec] sm:$0xf]
  %v5564 = vld [vmem:[%s7 + $0x3f0] sm:$0xf]
  %v5565 = vld [vmem:[%s7 + $0x3f4] sm:$0xf]
  %v5566 = vld [vmem:[%s7 + $0x3f8] sm:$0xf]
  %v5567 = vld [vmem:[%s7 + $0x3fc] sm:$0xf]
  %v5584 = vunpack.c.l.b16 %v5552
  %v5585 = vunpack.c.l.b16 %v5553
  %v5586 = vunpack.c.l.b16 %v5554
  %v5587 = vunpack.c.l.b16 %v5555
  %v5588 = vunpack.c.l.b16 %v5556
  %v5589 = vunpack.c.l.b16 %v5557
  %v5590 = vunpack.c.l.b16 %v5558
  %v5591 = vunpack.c.l.b16 %v5559
  %v5592 = vunpack.c.l.b16 %v5560
  %v5593 = vunpack.c.l.b16 %v5561
  %v5594 = vunpack.c.l.b16 %v5562
  %v5595 = vunpack.c.l.b16 %v5563
  %v5596 = vunpack.c.l.b16 %v5564
  %v5597 = vunpack.c.l.b16 %v5565
  %v5598 = vunpack.c.l.b16 %v5566
  %v5599 = vunpack.c.l.b16 %v5567
  %v5600 = vpack.c.b16 %v5585, %v5584
  %v5601 = vpack.c.b16 %v5587, %v5586
  %v5602 = vpack.c.b16 %v5589, %v5588
  %v5603 = vpack.c.b16 %v5591, %v5590
  %v5604 = vpack.c.b16 %v5593, %v5592
  %v5605 = vpack.c.b16 %v5595, %v5594
  %v5606 = vpack.c.b16 %v5597, %v5596
  %v5607 = vpack.c.b16 %v5599, %v5598
  %5616 = vmatprep.subr.bf16.mxu0 0
  %5617 = vmatpush1.bf16.msra.mxu0 %v5607
  %5618 = vmatprep.subr.bf16.mxu0 0
  %5619 = vmatpush1.bf16.msra.mxu0 %v5606
  %5620 = vmatprep.subr.bf16.mxu0 0
  %5621 = vmatpush1.bf16.msra.mxu0 %v5605
  %5622 = vmatprep.subr.bf16.mxu0 0
  %5623 = vmatpush1.bf16.msra.mxu0 %v5604
  %5624 = vmatprep.subr.bf16.mxu0 0
  %5625 = vmatpush1.bf16.msra.mxu0 %v5603
  %5626 = vmatprep.subr.bf16.mxu0 0
  %5627 = vmatpush1.bf16.msra.mxu0 %v5602
  %5628 = vmatprep.subr.bf16.mxu0 0
  %5629 = vmatpush1.bf16.msra.mxu0 %v5601
  %5630 = vmatprep.subr.bf16.mxu0 0
  %5631 = vmatpush1.bf16.msra.mxu0 %v5600
  %5632 = vmatprep.subr.bf16.mxu0 0
  %5633 = vmatpush2.bf16.msra.mxu0 0
  %5634 = vmatprep.subr.bf16.mxu0 0
  %5635 = vmatpush2.bf16.msra.mxu0 0
  %5636 = vmatprep.subr.bf16.mxu0 0
  %5637 = vmatpush2.bf16.msra.mxu0 0
  %5638 = vmatprep.subr.bf16.mxu0 0
  %5639 = vmatpush2.bf16.msra.mxu0 0
  %5640 = vmatprep.subr.bf16.mxu0 0
  %5641 = vmatpush2.bf16.msra.mxu0 0
  %5642 = vmatprep.subr.bf16.mxu0 0
  %5643 = vmatpush2.bf16.msra.mxu0 0
  %5644 = vmatprep.subr.bf16.mxu0 0
  %5645 = vmatpush2.bf16.msra.mxu0 0
  %5646 = vmatprep.subr.bf16.mxu0 0
  %5647 = vmatpush2.bf16.msra.mxu0 0
  %5648 = vmatprep.mubr.bf16.mxu0 0
  %5649 = vmatmul.mubr.bf16.gmra.mxu0 %v5551
  %v5650 = vpop.f32.mrf.mxu0
  %v5651 = vadd.f32 0.0, %v5650
  %v5652 = vpop.f32.mrf.mxu0
  %v5653 = vpop.f32.mrf.mxu0
  %v5654 = vpop.f32.mrf.mxu0
  %5655 = vdwg.mxu0
  %v5656 = vadd.f32 %v5506, %v5651
  %v5657 = vld [vmem:[%s8] sm:$0x1]
  %v5659 = vlaneseq
  %v5660 = vshrl.u32 %v5659, 7
  %v5661 = vsub.s32 0, %v5660
  %v5662 = vrot.slane %v5657, %v5661
  %v5664 = vadd.f32 %v5656, %v5662
  %v5665 = vmax.f32 %v5664, 0.0
  %v5666 = vpack.c.bf16 %v5665, %v5665
  %v5667 = vld [vmem:[%s9] sm:$0xff]
  %v5668 = vld [vmem:[%s9 + $0x8] sm:$0xff]
  %v5669 = vld [vmem:[%s9 + $0x10] sm:$0xff]
  %v5670 = vld [vmem:[%s9 + $0x18] sm:$0xff]
  %v5671 = vld [vmem:[%s9 + $0x20] sm:$0xff]
  %v5672 = vld [vmem:[%s9 + $0x28] sm:$0xff]
  %v5673 = vld [vmem:[%s9 + $0x30] sm:$0xff]
  %v5674 = vld [vmem:[%s9 + $0x38] sm:$0xff]
  %v5675 = vld [vmem:[%s9 + $0x40] sm:$0xff]
  %v5676 = vld [vmem:[%s9 + $0x48] sm:$0xff]
  %v5677 = vld [vmem:[%s9 + $0x50] sm:$0xff]
  %v5678 = vld [vmem:[%s9 + $0x58] sm:$0xff]
  %v5679 = vld [vmem:[%s9 + $0x60] sm:$0xff]
  %v5680 = vld [vmem:[%s9 + $0x68] sm:$0xff]
  %v5681 = vld [vmem:[%s9 + $0x70] sm:$0xff]
  %v5682 = vld [vmem:[%s9 + $0x78] sm:$0xff]
  %v5683 = vld [vmem:[%s10] sm:$0x3]
  %v5685 = vlaneseq
  %v5686 = vshrl.u32 %v5685, 7
  %v5687 = vsub.s32 0, %v5686
  %v5688 = vrot.slane %v5683, %v5687
  %v5689 = vlaneseq
  %v5690 = vshrl.u32 %v5689, 7
  %v5691 = vsub.s32 1, %v5690
  %v5692 = vrot.slane %v5683, %v5691
  %v5711 = vunpack.c.l.b16 %v5667
  %v5712 = vunpack.c.h.b16 %v5667
  %v5713 = vunpack.c.l.b16 %v5668
  %v5714 = vunpack.c.h.b16 %v5668
  %v5715 = vunpack.c.l.b16 %v5669
  %v5716 = vunpack.c.h.b16 %v5669
  %v5717 = vunpack.c.l.b16 %v5670
  %v5718 = vunpack.c.h.b16 %v5670
  %v5719 = vunpack.c.l.b16 %v5671
  %v5720 = vunpack.c.h.b16 %v5671
  %v5721 = vunpack.c.l.b16 %v5672
  %v5722 = vunpack.c.h.b16 %v5672
  %v5723 = vunpack.c.l.b16 %v5673
  %v5724 = vunpack.c.h.b16 %v5673
  %v5725 = vunpack.c.l.b16 %v5674
  %v5726 = vunpack.c.h.b16 %v5674
  %v5727 = vunpack.c.l.b16 %v5675
  %v5728 = vunpack.c.h.b16 %v5675
  %v5729 = vunpack.c.l.b16 %v5676
  %v5730 = vunpack.c.h.b16 %v5676
  %v5731 = vunpack.c.l.b16 %v5677
  %v5732 = vunpack.c.h.b16 %v5677
  %v5733 = vunpack.c.l.b16 %v5678
  %v5734 = vunpack.c.h.b16 %v5678
  %v5735 = vunpack.c.l.b16 %v5679
  %v5736 = vunpack.c.h.b16 %v5679
  %v5737 = vunpack.c.l.b16 %v5680
  %v5738 = vunpack.c.h.b16 %v5680
  %v5739 = vunpack.c.l.b16 %v5681
  %v5740 = vunpack.c.h.b16 %v5681
  %v5741 = vunpack.c.l.b16 %v5682
  %v5742 = vunpack.c.h.b16 %v5682
  %v5743 = vpack.c.b16 %v5713, %v5711
  %v5744 = vpack.c.b16 %v5714, %v5712
  %v5745 = vpack.c.b16 %v5717, %v5715
  %v5746 = vpack.c.b16 %v5718, %v5716
  %v5747 = vpack.c.b16 %v5721, %v5719
  %v5748 = vpack.c.b16 %v5722, %v5720
  %v5749 = vpack.c.b16 %v5725, %v5723
  %v5750 = vpack.c.b16 %v5726, %v5724
  %v5751 = vpack.c.b16 %v5729, %v5727
  %v5752 = vpack.c.b16 %v5730, %v5728
  %v5753 = vpack.c.b16 %v5733, %v5731
  %v5754 = vpack.c.b16 %v5734, %v5732
  %v5755 = vpack.c.b16 %v5737, %v5735
  %v5756 = vpack.c.b16 %v5738, %v5736
  %v5757 = vpack.c.b16 %v5741, %v5739
  %v5758 = vpack.c.b16 %v5742, %v5740
  %5775 = vmatprep.subr.bf16.mxu0 %v5758
  %5776 = vmatpush1.bf16.msra.mxu0 %v5757
  %5777 = vmatprep.subr.bf16.mxu0 %v5756
  %5778 = vmatpush1.bf16.msra.mxu0 %v5755
  %5779 = vmatprep.subr.bf16.mxu0 %v5754
  %5780 = vmatpush1.bf16.msra.mxu0 %v5753
  %5781 = vmatprep.subr.bf16.mxu0 %v5752
  %5782 = vmatpush1.bf16.msra.mxu0 %v5751
  %5783 = vmatprep.subr.bf16.mxu0 %v5750
  %5784 = vmatpush1.bf16.msra.mxu0 %v5749
  %5785 = vmatprep.subr.bf16.mxu0 %v5748
  %5786 = vmatpush1.bf16.msra.mxu0 %v5747
  %5787 = vmatprep.subr.bf16.mxu0 %v5746
  %5788 = vmatpush1.bf16.msra.mxu0 %v5745
  %5789 = vmatprep.subr.bf16.mxu0 %v5744
  %5790 = vmatpush1.bf16.msra.mxu0 %v5743
  %5791 = vmatprep.subr.bf16.mxu0 0
  %5792 = vmatpush2.bf16.msra.mxu0 0
  %5793 = vmatprep.subr.bf16.mxu0 0
  %5794 = vmatpush2.bf16.msra.mxu0 0
  %5795 = vmatprep.subr.bf16.mxu0 0
  %5796 = vmatpush2.bf16.msra.mxu0 0
  %5797 = vmatprep.subr.bf16.mxu0 0
  %5798 = vmatpush2.bf16.msra.mxu0 0
  %5799 = vmatprep.subr.bf16.mxu0 0
  %5800 = vmatpush2.bf16.msra.mxu0 0
  %5801 = vmatprep.subr.bf16.mxu0 0
  %5802 = vmatpush2.bf16.msra.mxu0 0
  %5803 = vmatprep.subr.bf16.mxu0 0
  %5804 = vmatpush2.bf16.msra.mxu0 0
  %5805 = vmatprep.subr.bf16.mxu0 0
  %5806 = vmatpush2.bf16.msra.mxu0 0
  %5807 = vmatprep.mubr.bf16.mxu0 0
  %5808 = vmatmul.mubr.bf16.gmra.mxu0 %v5666
  %v5809 = vpop.f32.mrf.mxu0
  %v5810 = vadd.f32 %v5688, %v5809
  %v5811 = vpop.f32.mrf.mxu0
  %v5812 = vadd.f32 %v5692, %v5811
  %v5813 = vpop.f32.mrf.mxu0
  %v5814 = vpop.f32.mrf.mxu0
  %5815 = vdwg.mxu0
  %v5816 = vmul.f32 %v5810, 2.0
  %v5817 = vmul.f32 %v5812, 2.0
  %v5818 = vpack.c.bf16 %v5816, %v5816
  %v5819 = vpack.c.bf16 %v5817, %v5817
  %v5820 = vld [vmem:[%s11] sm:$0xff]
  %v5821 = vld [vmem:[%s11 + $0x8] sm:$0xff]
  %v5822 = vld [vmem:[%s11 + $0x10] sm:$0xff]
  %v5823 = vld [vmem:[%s11 + $0x18] sm:$0xff]
  %v5824 = vld [vmem:[%s11 + $0x20] sm:$0xff]
  %v5825 = vld [vmem:[%s11 + $0x28] sm:$0xff]
  %v5826 = vld [vmem:[%s11 + $0x30] sm:$0xff]
  %v5827 = vld [vmem:[%s11 + $0x38] sm:$0xff]
  %v5828 = vld [vmem:[%s11 + $0x40] sm:$0xff]
  %v5829 = vld [vmem:[%s11 + $0x48] sm:$0xff]
  %v5830 = vld [vmem:[%s11 + $0x50] sm:$0xff]
  %v5831 = vld [vmem:[%s11 + $0x58] sm:$0xff]
  %v5832 = vld [vmem:[%s11 + $0x60] sm:$0xff]
  %v5833 = vld [vmem:[%s11 + $0x68] sm:$0xff]
  %v5834 = vld [vmem:[%s11 + $0x70] sm:$0xff]
  %v5835 = vld [vmem:[%s11 + $0x78] sm:$0xff]
  %v5836 = vld [vmem:[%s11 + $0x80] sm:$0xff]
  %v5837 = vld [vmem:[%s11 + $0x88] sm:$0xff]
  %v5838 = vld [vmem:[%s11 + $0x90] sm:$0xff]
  %v5839 = vld [vmem:[%s11 + $0x98] sm:$0xff]
  %v5840 = vld [vmem:[%s11 + $0xa0] sm:$0xff]
  %v5841 = vld [vmem:[%s11 + $0xa8] sm:$0xff]
  %v5842 = vld [vmem:[%s11 + $0xb0] sm:$0xff]
  %v5843 = vld [vmem:[%s11 + $0xb8] sm:$0xff]
  %v5844 = vld [vmem:[%s11 + $0xc0] sm:$0xff]
  %v5845 = vld [vmem:[%s11 + $0xc8] sm:$0xff]
  %v5846 = vld [vmem:[%s11 + $0xd0] sm:$0xff]
  %v5847 = vld [vmem:[%s11 + $0xd8] sm:$0xff]
  %v5848 = vld [vmem:[%s11 + $0xe0] sm:$0xff]
  %v5849 = vld [vmem:[%s11 + $0xe8] sm:$0xff]
  %v5850 = vld [vmem:[%s11 + $0xf0] sm:$0xff]
  %v5851 = vld [vmem:[%s11 + $0xf8] sm:$0xff]
  %v5852 = vld [vmem:[%s11 + $0x100] sm:$0xff]
  %v5853 = vld [vmem:[%s11 + $0x108] sm:$0xff]
  %v5854 = vld [vmem:[%s11 + $0x110] sm:$0xff]
  %v5855 = vld [vmem:[%s11 + $0x118] sm:$0xff]
  %v5856 = vld [vmem:[%s11 + $0x120] sm:$0xff]
  %v5857 = vld [vmem:[%s11 + $0x128] sm:$0xff]
  %v5858 = vld [vmem:[%s11 + $0x130] sm:$0xff]
  %v5859 = vld [vmem:[%s11 + $0x138] sm:$0xff]
  %v5860 = vld [vmem:[%s11 + $0x140] sm:$0xff]
  %v5861 = vld [vmem:[%s11 + $0x148] sm:$0xff]
  %v5862 = vld [vmem:[%s11 + $0x150] sm:$0xff]
  %v5863 = vld [vmem:[%s11 + $0x158] sm:$0xff]
  %v5864 = vld [vmem:[%s11 + $0x160] sm:$0xff]
  %v5865 = vld [vmem:[%s11 + $0x168] sm:$0xff]
  %v5866 = vld [vmem:[%s11 + $0x170] sm:$0xff]
  %v5867 = vld [vmem:[%s11 + $0x178] sm:$0xff]
  %v5868 = vld [vmem:[%s11 + $0x180] sm:$0xff]
  %v5869 = vld [vmem:[%s11 + $0x188] sm:$0xff]
  %v5870 = vld [vmem:[%s11 + $0x190] sm:$0xff]
  %v5871 = vld [vmem:[%s11 + $0x198] sm:$0xff]
  %v5872 = vld [vmem:[%s11 + $0x1a0] sm:$0xff]
  %v5873 = vld [vmem:[%s11 + $0x1a8] sm:$0xff]
  %v5874 = vld [vmem:[%s11 + $0x1b0] sm:$0xff]
  %v5875 = vld [vmem:[%s11 + $0x1b8] sm:$0xff]
  %v5876 = vld [vmem:[%s11 + $0x1c0] sm:$0xff]
  %v5877 = vld [vmem:[%s11 + $0x1c8] sm:$0xff]
  %v5878 = vld [vmem:[%s11 + $0x1d0] sm:$0xff]
  %v5879 = vld [vmem:[%s11 + $0x1d8] sm:$0xff]
  %v5880 = vld [vmem:[%s11 + $0x1e0] sm:$0xff]
  %v5881 = vld [vmem:[%s11 + $0x1e8] sm:$0xff]
  %v5882 = vld [vmem:[%s11 + $0x1f0] sm:$0xff]
  %v5883 = vld [vmem:[%s11 + $0x1f8] sm:$0xff]
  %v5884 = vld [vmem:[%s11 + $0x200] sm:$0xff]
  %v5885 = vld [vmem:[%s11 + $0x208] sm:$0xff]
  %v5886 = vld [vmem:[%s11 + $0x210] sm:$0xff]
  %v5887 = vld [vmem:[%s11 + $0x218] sm:$0xff]
  %v5888 = vld [vmem:[%s11 + $0x220] sm:$0xff]
  %v5889 = vld [vmem:[%s11 + $0x228] sm:$0xff]
  %v5890 = vld [vmem:[%s11 + $0x230] sm:$0xff]
  %v5891 = vld [vmem:[%s11 + $0x238] sm:$0xff]
  %v5892 = vld [vmem:[%s11 + $0x240] sm:$0xff]
  %v5893 = vld [vmem:[%s11 + $0x248] sm:$0xff]
  %v5894 = vld [vmem:[%s11 + $0x250] sm:$0xff]
  %v5895 = vld [vmem:[%s11 + $0x258] sm:$0xff]
  %v5896 = vld [vmem:[%s11 + $0x260] sm:$0xff]
  %v5897 = vld [vmem:[%s11 + $0x268] sm:$0xff]
  %v5898 = vld [vmem:[%s11 + $0x270] sm:$0xff]
  %v5899 = vld [vmem:[%s11 + $0x278] sm:$0xff]
  %v5900 = vld [vmem:[%s11 + $0x280] sm:$0xff]
  %v5901 = vld [vmem:[%s11 + $0x288] sm:$0xff]
  %v5902 = vld [vmem:[%s11 + $0x290] sm:$0xff]
  %v5903 = vld [vmem:[%s11 + $0x298] sm:$0xff]
  %v5904 = vld [vmem:[%s11 + $0x2a0] sm:$0xff]
  %v5905 = vld [vmem:[%s11 + $0x2a8] sm:$0xff]
  %v5906 = vld [vmem:[%s11 + $0x2b0] sm:$0xff]
  %v5907 = vld [vmem:[%s11 + $0x2b8] sm:$0xff]
  %v5908 = vld [vmem:[%s11 + $0x2c0] sm:$0xff]
  %v5909 = vld [vmem:[%s11 + $0x2c8] sm:$0xff]
  %v5910 = vld [vmem:[%s11 + $0x2d0] sm:$0xff]
  %v5911 = vld [vmem:[%s11 + $0x2d8] sm:$0xff]
  %v5912 = vld [vmem:[%s11 + $0x2e0] sm:$0xff]
  %v5913 = vld [vmem:[%s11 + $0x2e8] sm:$0xff]
  %v5914 = vld [vmem:[%s11 + $0x2f0] sm:$0xff]
  %v5915 = vld [vmem:[%s11 + $0x2f8] sm:$0xff]
  %v5916 = vld [vmem:[%s11 + $0x300] sm:$0xff]
  %v5917 = vld [vmem:[%s11 + $0x308] sm:$0xff]
  %v5918 = vld [vmem:[%s11 + $0x310] sm:$0xff]
  %v5919 = vld [vmem:[%s11 + $0x318] sm:$0xff]
  %v5920 = vld [vmem:[%s11 + $0x320] sm:$0xff]
  %v5921 = vld [vmem:[%s11 + $0x328] sm:$0xff]
  %v5922 = vld [vmem:[%s11 + $0x330] sm:$0xff]
  %v5923 = vld [vmem:[%s11 + $0x338] sm:$0xff]
  %v5924 = vld [vmem:[%s11 + $0x340] sm:$0xff]
  %v5925 = vld [vmem:[%s11 + $0x348] sm:$0xff]
  %v5926 = vld [vmem:[%s11 + $0x350] sm:$0xff]
  %v5927 = vld [vmem:[%s11 + $0x358] sm:$0xff]
  %v5928 = vld [vmem:[%s11 + $0x360] sm:$0xff]
  %v5929 = vld [vmem:[%s11 + $0x368] sm:$0xff]
  %v5930 = vld [vmem:[%s11 + $0x370] sm:$0xff]
  %v5931 = vld [vmem:[%s11 + $0x378] sm:$0xff]
  %v5932 = vld [vmem:[%s11 + $0x380] sm:$0xff]
  %v5933 = vld [vmem:[%s11 + $0x388] sm:$0xff]
  %v5934 = vld [vmem:[%s11 + $0x390] sm:$0xff]
  %v5935 = vld [vmem:[%s11 + $0x398] sm:$0xff]
  %v5936 = vld [vmem:[%s11 + $0x3a0] sm:$0xff]
  %v5937 = vld [vmem:[%s11 + $0x3a8] sm:$0xff]
  %v5938 = vld [vmem:[%s11 + $0x3b0] sm:$0xff]
  %v5939 = vld [vmem:[%s11 + $0x3b8] sm:$0xff]
  %v5940 = vld [vmem:[%s11 + $0x3c0] sm:$0xff]
  %v5941 = vld [vmem:[%s11 + $0x3c8] sm:$0xff]
  %v5942 = vld [vmem:[%s11 + $0x3d0] sm:$0xff]
  %v5943 = vld [vmem:[%s11 + $0x3d8] sm:$0xff]
  %v5944 = vld [vmem:[%s11 + $0x3e0] sm:$0xff]
  %v5945 = vld [vmem:[%s11 + $0x3e8] sm:$0xff]
  %v5946 = vld [vmem:[%s11 + $0x3f0] sm:$0xff]
  %v5947 = vld [vmem:[%s11 + $0x3f8] sm:$0xff]
  %v5948 = vld [vmem:[%s11 + $0x400] sm:$0xff]
  %v5949 = vld [vmem:[%s11 + $0x408] sm:$0xff]
  %v5950 = vld [vmem:[%s11 + $0x410] sm:$0xff]
  %v5951 = vld [vmem:[%s11 + $0x418] sm:$0xff]
  %v5952 = vld [vmem:[%s11 + $0x420] sm:$0xff]
  %v5953 = vld [vmem:[%s11 + $0x428] sm:$0xff]
  %v5954 = vld [vmem:[%s11 + $0x430] sm:$0xff]
  %v5955 = vld [vmem:[%s11 + $0x438] sm:$0xff]
  %v5956 = vld [vmem:[%s11 + $0x440] sm:$0xff]
  %v5957 = vld [vmem:[%s11 + $0x448] sm:$0xff]
  %v5958 = vld [vmem:[%s11 + $0x450] sm:$0xff]
  %v5959 = vld [vmem:[%s11 + $0x458] sm:$0xff]
  %v5960 = vld [vmem:[%s11 + $0x460] sm:$0xff]
  %v5961 = vld [vmem:[%s11 + $0x468] sm:$0xff]
  %v5962 = vld [vmem:[%s11 + $0x470] sm:$0xff]
  %v5963 = vld [vmem:[%s11 + $0x478] sm:$0xff]
  %v5964 = vld [vmem:[%s11 + $0x480] sm:$0xff]
  %v5965 = vld [vmem:[%s11 + $0x488] sm:$0xff]
  %v5966 = vld [vmem:[%s11 + $0x490] sm:$0xff]
  %v5967 = vld [vmem:[%s11 + $0x498] sm:$0xff]
  %v5968 = vld [vmem:[%s11 + $0x4a0] sm:$0xff]
  %v5969 = vld [vmem:[%s11 + $0x4a8] sm:$0xff]
  %v5970 = vld [vmem:[%s11 + $0x4b0] sm:$0xff]
  %v5971 = vld [vmem:[%s11 + $0x4b8] sm:$0xff]
  %v5972 = vld [vmem:[%s11 + $0x4c0] sm:$0xff]
  %v5973 = vld [vmem:[%s11 + $0x4c8] sm:$0xff]
  %v5974 = vld [vmem:[%s11 + $0x4d0] sm:$0xff]
  %v5975 = vld [vmem:[%s11 + $0x4d8] sm:$0xff]
  %v5976 = vld [vmem:[%s11 + $0x4e0] sm:$0xff]
  %v5977 = vld [vmem:[%s11 + $0x4e8] sm:$0xff]
  %v5978 = vld [vmem:[%s11 + $0x4f0] sm:$0xff]
  %v5979 = vld [vmem:[%s11 + $0x4f8] sm:$0xff]
  %v5980 = vld [vmem:[%s11 + $0x500] sm:$0xff]
  %v5981 = vld [vmem:[%s11 + $0x508] sm:$0xff]
  %v5982 = vld [vmem:[%s11 + $0x510] sm:$0xff]
  %v5983 = vld [vmem:[%s11 + $0x518] sm:$0xff]
  %v5984 = vld [vmem:[%s11 + $0x520] sm:$0xff]
  %v5985 = vld [vmem:[%s11 + $0x528] sm:$0xff]
  %v5986 = vld [vmem:[%s11 + $0x530] sm:$0xff]
  %v5987 = vld [vmem:[%s11 + $0x538] sm:$0xff]
  %v5988 = vld [vmem:[%s11 + $0x540] sm:$0xff]
  %v5989 = vld [vmem:[%s11 + $0x548] sm:$0xff]
  %v5990 = vld [vmem:[%s11 + $0x550] sm:$0xff]
  %v5991 = vld [vmem:[%s11 + $0x558] sm:$0xff]
  %v5992 = vld [vmem:[%s11 + $0x560] sm:$0xff]
  %v5993 = vld [vmem:[%s11 + $0x568] sm:$0xff]
  %v5994 = vld [vmem:[%s11 + $0x570] sm:$0xff]
  %v5995 = vld [vmem:[%s11 + $0x578] sm:$0xff]
  %v5996 = vld [vmem:[%s11 + $0x580] sm:$0xff]
  %v5997 = vld [vmem:[%s11 + $0x588] sm:$0xff]
  %v5998 = vld [vmem:[%s11 + $0x590] sm:$0xff]
  %v5999 = vld [vmem:[%s11 + $0x598] sm:$0xff]
  %v6000 = vld [vmem:[%s11 + $0x5a0] sm:$0xff]
  %v6001 = vld [vmem:[%s11 + $0x5a8] sm:$0xff]
  %v6002 = vld [vmem:[%s11 + $0x5b0] sm:$0xff]
  %v6003 = vld [vmem:[%s11 + $0x5b8] sm:$0xff]
  %v6004 = vld [vmem:[%s11 + $0x5c0] sm:$0xff]
  %v6005 = vld [vmem:[%s11 + $0x5c8] sm:$0xff]
  %v6006 = vld [vmem:[%s11 + $0x5d0] sm:$0xff]
  %v6007 = vld [vmem:[%s11 + $0x5d8] sm:$0xff]
  %v6008 = vld [vmem:[%s11 + $0x5e0] sm:$0xff]
  %v6009 = vld [vmem:[%s11 + $0x5e8] sm:$0xff]
  %v6010 = vld [vmem:[%s11 + $0x5f0] sm:$0xff]
  %v6011 = vld [vmem:[%s11 + $0x5f8] sm:$0xff]
  %v6012 = vld [vmem:[%s12] sm:$0xff]
  %v6013 = vld [vmem:[%s12 + $0x8] sm:$0xf]
  %v6016 = vlaneseq
  %v6017 = vshrl.u32 %v6016, 7
  %v6018 = vsub.s32 0, %v6017
  %v6019 = vrot.slane %v6012, %v6018
  %v6020 = vlaneseq
  %v6021 = vshrl.u32 %v6020, 7
  %v6022 = vsub.s32 1, %v6021
  %v6023 = vrot.slane %v6012, %v6022
  %v6024 = vlaneseq
  %v6025 = vshrl.u32 %v6024, 7
  %v6026 = vsub.s32 2, %v6025
  %v6027 = vrot.slane %v6012, %v6026
  %v6028 = vlaneseq
  %v6029 = vshrl.u32 %v6028, 7
  %v6030 = vsub.s32 3, %v6029
  %v6031 = vrot.slane %v6012, %v6030
  %v6032 = vlaneseq
  %v6033 = vshrl.u32 %v6032, 7
  %v6034 = vsub.s32 4, %v6033
  %v6035 = vrot.slane %v6012, %v6034
  %v6036 = vlaneseq
  %v6037 = vshrl.u32 %v6036, 7
  %v6038 = vsub.s32 5, %v6037
  %v6039 = vrot.slane %v6012, %v6038
  %v6040 = vlaneseq
  %v6041 = vshrl.u32 %v6040, 7
  %v6042 = vsub.s32 6, %v6041
  %v6043 = vrot.slane %v6012, %v6042
  %v6044 = vlaneseq
  %v6045 = vshrl.u32 %v6044, 7
  %v6046 = vsub.s32 7, %v6045
  %v6047 = vrot.slane %v6012, %v6046
  %v6048 = vlaneseq
  %v6049 = vshrl.u32 %v6048, 7
  %v6050 = vsub.s32 0, %v6049
  %v6051 = vrot.slane %v6013, %v6050
  %v6052 = vlaneseq
  %v6053 = vshrl.u32 %v6052, 7
  %v6054 = vsub.s32 1, %v6053
  %v6055 = vrot.slane %v6013, %v6054
  %v6056 = vlaneseq
  %v6057 = vshrl.u32 %v6056, 7
  %v6058 = vsub.s32 2, %v6057
  %v6059 = vrot.slane %v6013, %v6058
  %v6060 = vlaneseq
  %v6061 = vshrl.u32 %v6060, 7
  %v6062 = vsub.s32 3, %v6061
  %v6063 = vrot.slane %v6013, %v6062
  %v6268 = vunpack.c.l.b16 %v5820
  %v6269 = vunpack.c.h.b16 %v5820
  %v6270 = vunpack.c.l.b16 %v5821
  %v6271 = vunpack.c.h.b16 %v5821
  %v6272 = vunpack.c.l.b16 %v5822
  %v6273 = vunpack.c.h.b16 %v5822
  %v6274 = vunpack.c.l.b16 %v5823
  %v6275 = vunpack.c.h.b16 %v5823
  %v6276 = vunpack.c.l.b16 %v5824
  %v6277 = vunpack.c.h.b16 %v5824
  %v6278 = vunpack.c.l.b16 %v5825
  %v6279 = vunpack.c.h.b16 %v5825
  %v6280 = vunpack.c.l.b16 %v5826
  %v6281 = vunpack.c.h.b16 %v5826
  %v6282 = vunpack.c.l.b16 %v5827
  %v6283 = vunpack.c.h.b16 %v5827
  %v6284 = vunpack.c.l.b16 %v5828
  %v6285 = vunpack.c.h.b16 %v5828
  %v6286 = vunpack.c.l.b16 %v5829
  %v6287 = vunpack.c.h.b16 %v5829
  %v6288 = vunpack.c.l.b16 %v5830
  %v6289 = vunpack.c.h.b16 %v5830
  %v6290 = vunpack.c.l.b16 %v5831
  %v6291 = vunpack.c.h.b16 %v5831
  %v6292 = vunpack.c.l.b16 %v5832
  %v6293 = vunpack.c.h.b16 %v5832
  %v6294 = vunpack.c.l.b16 %v5833
  %v6295 = vunpack.c.h.b16 %v5833
  %v6296 = vunpack.c.l.b16 %v5834
  %v6297 = vunpack.c.h.b16 %v5834
  %v6298 = vunpack.c.l.b16 %v5835
  %v6299 = vunpack.c.h.b16 %v5835
  %v6300 = vunpack.c.l.b16 %v5836
  %v6301 = vunpack.c.h.b16 %v5836
  %v6302 = vunpack.c.l.b16 %v5837
  %v6303 = vunpack.c.h.b16 %v5837
  %v6304 = vunpack.c.l.b16 %v5838
  %v6305 = vunpack.c.h.b16 %v5838
  %v6306 = vunpack.c.l.b16 %v5839
  %v6307 = vunpack.c.h.b16 %v5839
  %v6308 = vunpack.c.l.b16 %v5840
  %v6309 = vunpack.c.h.b16 %v5840
  %v6310 = vunpack.c.l.b16 %v5841
  %v6311 = vunpack.c.h.b16 %v5841
  %v6312 = vunpack.c.l.b16 %v5842
  %v6313 = vunpack.c.h.b16 %v5842
  %v6314 = vunpack.c.l.b16 %v5843
  %v6315 = vunpack.c.h.b16 %v5843
  %v6316 = vunpack.c.l.b16 %v5844
  %v6317 = vunpack.c.h.b16 %v5844
  %v6318 = vunpack.c.l.b16 %v5845
  %v6319 = vunpack.c.h.b16 %v5845
  %v6320 = vunpack.c.l.b16 %v5846
  %v6321 = vunpack.c.h.b16 %v5846
  %v6322 = vunpack.c.l.b16 %v5847
  %v6323 = vunpack.c.h.b16 %v5847
  %v6324 = vunpack.c.l.b16 %v5848
  %v6325 = vunpack.c.h.b16 %v5848
  %v6326 = vunpack.c.l.b16 %v5849
  %v6327 = vunpack.c.h.b16 %v5849
  %v6328 = vunpack.c.l.b16 %v5850
  %v6329 = vunpack.c.h.b16 %v5850
  %v6330 = vunpack.c.l.b16 %v5851
  %v6331 = vunpack.c.h.b16 %v5851
  %v6332 = vunpack.c.l.b16 %v5852
  %v6333 = vunpack.c.h.b16 %v5852
  %v6334 = vunpack.c.l.b16 %v5853
  %v6335 = vunpack.c.h.b16 %v5853
  %v6336 = vunpack.c.l.b16 %v5854
  %v6337 = vunpack.c.h.b16 %v5854
  %v6338 = vunpack.c.l.b16 %v5855
  %v6339 = vunpack.c.h.b16 %v5855
  %v6340 = vunpack.c.l.b16 %v5856
  %v6341 = vunpack.c.h.b16 %v5856
  %v6342 = vunpack.c.l.b16 %v5857
  %v6343 = vunpack.c.h.b16 %v5857
  %v6344 = vunpack.c.l.b16 %v5858
  %v6345 = vunpack.c.h.b16 %v5858
  %v6346 = vunpack.c.l.b16 %v5859
  %v6347 = vunpack.c.h.b16 %v5859
  %v6348 = vunpack.c.l.b16 %v5860
  %v6349 = vunpack.c.h.b16 %v5860
  %v6350 = vunpack.c.l.b16 %v5861
  %v6351 = vunpack.c.h.b16 %v5861
  %v6352 = vunpack.c.l.b16 %v5862
  %v6353 = vunpack.c.h.b16 %v5862
  %v6354 = vunpack.c.l.b16 %v5863
  %v6355 = vunpack.c.h.b16 %v5863
  %v6356 = vunpack.c.l.b16 %v5864
  %v6357 = vunpack.c.h.b16 %v5864
  %v6358 = vunpack.c.l.b16 %v5865
  %v6359 = vunpack.c.h.b16 %v5865
  %v6360 = vunpack.c.l.b16 %v5866
  %v6361 = vunpack.c.h.b16 %v5866
  %v6362 = vunpack.c.l.b16 %v5867
  %v6363 = vunpack.c.h.b16 %v5867
  %v6364 = vunpack.c.l.b16 %v5868
  %v6365 = vunpack.c.h.b16 %v5868
  %v6366 = vunpack.c.l.b16 %v5869
  %v6367 = vunpack.c.h.b16 %v5869
  %v6368 = vunpack.c.l.b16 %v5870
  %v6369 = vunpack.c.h.b16 %v5870
  %v6370 = vunpack.c.l.b16 %v5871
  %v6371 = vunpack.c.h.b16 %v5871
  %v6372 = vunpack.c.l.b16 %v5872
  %v6373 = vunpack.c.h.b16 %v5872
  %v6374 = vunpack.c.l.b16 %v5873
  %v6375 = vunpack.c.h.b16 %v5873
  %v6376 = vunpack.c.l.b16 %v5874
  %v6377 = vunpack.c.h.b16 %v5874
  %v6378 = vunpack.c.l.b16 %v5875
  %v6379 = vunpack.c.h.b16 %v5875
  %v6380 = vunpack.c.l.b16 %v5876
  %v6381 = vunpack.c.h.b16 %v5876
  %v6382 = vunpack.c.l.b16 %v5877
  %v6383 = vunpack.c.h.b16 %v5877
  %v6384 = vunpack.c.l.b16 %v5878
  %v6385 = vunpack.c.h.b16 %v5878
  %v6386 = vunpack.c.l.b16 %v5879
  %v6387 = vunpack.c.h.b16 %v5879
  %v6388 = vunpack.c.l.b16 %v5880
  %v6389 = vunpack.c.h.b16 %v5880
  %v6390 = vunpack.c.l.b16 %v5881
  %v6391 = vunpack.c.h.b16 %v5881
  %v6392 = vunpack.c.l.b16 %v5882
  %v6393 = vunpack.c.h.b16 %v5882
  %v6394 = vunpack.c.l.b16 %v5883
  %v6395 = vunpack.c.h.b16 %v5883
  %v6396 = vunpack.c.l.b16 %v5884
  %v6397 = vunpack.c.h.b16 %v5884
  %v6398 = vunpack.c.l.b16 %v5885
  %v6399 = vunpack.c.h.b16 %v5885
  %v6400 = vunpack.c.l.b16 %v5886
  %v6401 = vunpack.c.h.b16 %v5886
  %v6402 = vunpack.c.l.b16 %v5887
  %v6403 = vunpack.c.h.b16 %v5887
  %v6404 = vunpack.c.l.b16 %v5888
  %v6405 = vunpack.c.h.b16 %v5888
  %v6406 = vunpack.c.l.b16 %v5889
  %v6407 = vunpack.c.h.b16 %v5889
  %v6408 = vunpack.c.l.b16 %v5890
  %v6409 = vunpack.c.h.b16 %v5890
  %v6410 = vunpack.c.l.b16 %v5891
  %v6411 = vunpack.c.h.b16 %v5891
  %v6412 = vunpack.c.l.b16 %v5892
  %v6413 = vunpack.c.h.b16 %v5892
  %v6414 = vunpack.c.l.b16 %v5893
  %v6415 = vunpack.c.h.b16 %v5893
  %v6416 = vunpack.c.l.b16 %v5894
  %v6417 = vunpack.c.h.b16 %v5894
  %v6418 = vunpack.c.l.b16 %v5895
  %v6419 = vunpack.c.h.b16 %v5895
  %v6420 = vunpack.c.l.b16 %v5896
  %v6421 = vunpack.c.h.b16 %v5896
  %v6422 = vunpack.c.l.b16 %v5897
  %v6423 = vunpack.c.h.b16 %v5897
  %v6424 = vunpack.c.l.b16 %v5898
  %v6425 = vunpack.c.h.b16 %v5898
  %v6426 = vunpack.c.l.b16 %v5899
  %v6427 = vunpack.c.h.b16 %v5899
  %v6428 = vunpack.c.l.b16 %v5900
  %v6429 = vunpack.c.h.b16 %v5900
  %v6430 = vunpack.c.l.b16 %v5901
  %v6431 = vunpack.c.h.b16 %v5901
  %v6432 = vunpack.c.l.b16 %v5902
  %v6433 = vunpack.c.h.b16 %v5902
  %v6434 = vunpack.c.l.b16 %v5903
  %v6435 = vunpack.c.h.b16 %v5903
  %v6436 = vunpack.c.l.b16 %v5904
  %v6437 = vunpack.c.h.b16 %v5904
  %v6438 = vunpack.c.l.b16 %v5905
  %v6439 = vunpack.c.h.b16 %v5905
  %v6440 = vunpack.c.l.b16 %v5906
  %v6441 = vunpack.c.h.b16 %v5906
  %v6442 = vunpack.c.l.b16 %v5907
  %v6443 = vunpack.c.h.b16 %v5907
  %v6444 = vunpack.c.l.b16 %v5908
  %v6445 = vunpack.c.h.b16 %v5908
  %v6446 = vunpack.c.l.b16 %v5909
  %v6447 = vunpack.c.h.b16 %v5909
  %v6448 = vunpack.c.l.b16 %v5910
  %v6449 = vunpack.c.h.b16 %v5910
  %v6450 = vunpack.c.l.b16 %v5911
  %v6451 = vunpack.c.h.b16 %v5911
  %v6452 = vunpack.c.l.b16 %v5912
  %v6453 = vunpack.c.h.b16 %v5912
  %v6454 = vunpack.c.l.b16 %v5913
  %v6455 = vunpack.c.h.b16 %v5913
  %v6456 = vunpack.c.l.b16 %v5914
  %v6457 = vunpack.c.h.b16 %v5914
  %v6458 = vunpack.c.l.b16 %v5915
  %v6459 = vunpack.c.h.b16 %v5915
  %v6460 = vunpack.c.l.b16 %v5916
  %v6461 = vunpack.c.h.b16 %v5916
  %v6462 = vunpack.c.l.b16 %v5917
  %v6463 = vunpack.c.h.b16 %v5917
  %v6464 = vunpack.c.l.b16 %v5918
  %v6465 = vunpack.c.h.b16 %v5918
  %v6466 = vunpack.c.l.b16 %v5919
  %v6467 = vunpack.c.h.b16 %v5919
  %v6468 = vunpack.c.l.b16 %v5920
  %v6469 = vunpack.c.h.b16 %v5920
  %v6470 = vunpack.c.l.b16 %v5921
  %v6471 = vunpack.c.h.b16 %v5921
  %v6472 = vunpack.c.l.b16 %v5922
  %v6473 = vunpack.c.h.b16 %v5922
  %v6474 = vunpack.c.l.b16 %v5923
  %v6475 = vunpack.c.h.b16 %v5923
  %v6476 = vunpack.c.l.b16 %v5924
  %v6477 = vunpack.c.h.b16 %v5924
  %v6478 = vunpack.c.l.b16 %v5925
  %v6479 = vunpack.c.h.b16 %v5925
  %v6480 = vunpack.c.l.b16 %v5926
  %v6481 = vunpack.c.h.b16 %v5926
  %v6482 = vunpack.c.l.b16 %v5927
  %v6483 = vunpack.c.h.b16 %v5927
  %v6484 = vunpack.c.l.b16 %v5928
  %v6485 = vunpack.c.h.b16 %v5928
  %v6486 = vunpack.c.l.b16 %v5929
  %v6487 = vunpack.c.h.b16 %v5929
  %v6488 = vunpack.c.l.b16 %v5930
  %v6489 = vunpack.c.h.b16 %v5930
  %v6490 = vunpack.c.l.b16 %v5931
  %v6491 = vunpack.c.h.b16 %v5931
  %v6492 = vunpack.c.l.b16 %v5932
  %v6493 = vunpack.c.h.b16 %v5932
  %v6494 = vunpack.c.l.b16 %v5933
  %v6495 = vunpack.c.h.b16 %v5933
  %v6496 = vunpack.c.l.b16 %v5934
  %v6497 = vunpack.c.h.b16 %v5934
  %v6498 = vunpack.c.l.b16 %v5935
  %v6499 = vunpack.c.h.b16 %v5935
  %v6500 = vunpack.c.l.b16 %v5936
  %v6501 = vunpack.c.h.b16 %v5936
  %v6502 = vunpack.c.l.b16 %v5937
  %v6503 = vunpack.c.h.b16 %v5937
  %v6504 = vunpack.c.l.b16 %v5938
  %v6505 = vunpack.c.h.b16 %v5938
  %v6506 = vunpack.c.l.b16 %v5939
  %v6507 = vunpack.c.h.b16 %v5939
  %v6508 = vunpack.c.l.b16 %v5940
  %v6509 = vunpack.c.h.b16 %v5940
  %v6510 = vunpack.c.l.b16 %v5941
  %v6511 = vunpack.c.h.b16 %v5941
  %v6512 = vunpack.c.l.b16 %v5942
  %v6513 = vunpack.c.h.b16 %v5942
  %v6514 = vunpack.c.l.b16 %v5943
  %v6515 = vunpack.c.h.b16 %v5943
  %v6516 = vunpack.c.l.b16 %v5944
  %v6517 = vunpack.c.h.b16 %v5944
  %v6518 = vunpack.c.l.b16 %v5945
  %v6519 = vunpack.c.h.b16 %v5945
  %v6520 = vunpack.c.l.b16 %v5946
  %v6521 = vunpack.c.h.b16 %v5946
  %v6522 = vunpack.c.l.b16 %v5947
  %v6523 = vunpack.c.h.b16 %v5947
  %v6524 = vunpack.c.l.b16 %v5948
  %v6525 = vunpack.c.h.b16 %v5948
  %v6526 = vunpack.c.l.b16 %v5949
  %v6527 = vunpack.c.h.b16 %v5949
  %v6528 = vunpack.c.l.b16 %v5950
  %v6529 = vunpack.c.h.b16 %v5950
  %v6530 = vunpack.c.l.b16 %v5951
  %v6531 = vunpack.c.h.b16 %v5951
  %v6532 = vunpack.c.l.b16 %v5952
  %v6533 = vunpack.c.h.b16 %v5952
  %v6534 = vunpack.c.l.b16 %v5953
  %v6535 = vunpack.c.h.b16 %v5953
  %v6536 = vunpack.c.l.b16 %v5954
  %v6537 = vunpack.c.h.b16 %v5954
  %v6538 = vunpack.c.l.b16 %v5955
  %v6539 = vunpack.c.h.b16 %v5955
  %v6540 = vunpack.c.l.b16 %v5956
  %v6541 = vunpack.c.h.b16 %v5956
  %v6542 = vunpack.c.l.b16 %v5957
  %v6543 = vunpack.c.h.b16 %v5957
  %v6544 = vunpack.c.l.b16 %v5958
  %v6545 = vunpack.c.h.b16 %v5958
  %v6546 = vunpack.c.l.b16 %v5959
  %v6547 = vunpack.c.h.b16 %v5959
  %v6548 = vunpack.c.l.b16 %v5960
  %v6549 = vunpack.c.h.b16 %v5960
  %v6550 = vunpack.c.l.b16 %v5961
  %v6551 = vunpack.c.h.b16 %v5961
  %v6552 = vunpack.c.l.b16 %v5962
  %v6553 = vunpack.c.h.b16 %v5962
  %v6554 = vunpack.c.l.b16 %v5963
  %v6555 = vunpack.c.h.b16 %v5963
  %v6556 = vunpack.c.l.b16 %v5964
  %v6557 = vunpack.c.h.b16 %v5964
  %v6558 = vunpack.c.l.b16 %v5965
  %v6559 = vunpack.c.h.b16 %v5965
  %v6560 = vunpack.c.l.b16 %v5966
  %v6561 = vunpack.c.h.b16 %v5966
  %v6562 = vunpack.c.l.b16 %v5967
  %v6563 = vunpack.c.h.b16 %v5967
  %v6564 = vunpack.c.l.b16 %v5968
  %v6565 = vunpack.c.h.b16 %v5968
  %v6566 = vunpack.c.l.b16 %v5969
  %v6567 = vunpack.c.h.b16 %v5969
  %v6568 = vunpack.c.l.b16 %v5970
  %v6569 = vunpack.c.h.b16 %v5970
  %v6570 = vunpack.c.l.b16 %v5971
  %v6571 = vunpack.c.h.b16 %v5971
  %v6572 = vunpack.c.l.b16 %v5972
  %v6573 = vunpack.c.h.b16 %v5972
  %v6574 = vunpack.c.l.b16 %v5973
  %v6575 = vunpack.c.h.b16 %v5973
  %v6576 = vunpack.c.l.b16 %v5974
  %v6577 = vunpack.c.h.b16 %v5974
  %v6578 = vunpack.c.l.b16 %v5975
  %v6579 = vunpack.c.h.b16 %v5975
  %v6580 = vunpack.c.l.b16 %v5976
  %v6581 = vunpack.c.h.b16 %v5976
  %v6582 = vunpack.c.l.b16 %v5977
  %v6583 = vunpack.c.h.b16 %v5977
  %v6584 = vunpack.c.l.b16 %v5978
  %v6585 = vunpack.c.h.b16 %v5978
  %v6586 = vunpack.c.l.b16 %v5979
  %v6587 = vunpack.c.h.b16 %v5979
  %v6588 = vunpack.c.l.b16 %v5980
  %v6589 = vunpack.c.h.b16 %v5980
  %v6590 = vunpack.c.l.b16 %v5981
  %v6591 = vunpack.c.h.b16 %v5981
  %v6592 = vunpack.c.l.b16 %v5982
  %v6593 = vunpack.c.h.b16 %v5982
  %v6594 = vunpack.c.l.b16 %v5983
  %v6595 = vunpack.c.h.b16 %v5983
  %v6596 = vunpack.c.l.b16 %v5984
  %v6597 = vunpack.c.h.b16 %v5984
  %v6598 = vunpack.c.l.b16 %v5985
  %v6599 = vunpack.c.h.b16 %v5985
  %v6600 = vunpack.c.l.b16 %v5986
  %v6601 = vunpack.c.h.b16 %v5986
  %v6602 = vunpack.c.l.b16 %v5987
  %v6603 = vunpack.c.h.b16 %v5987
  %v6604 = vunpack.c.l.b16 %v5988
  %v6605 = vunpack.c.h.b16 %v5988
  %v6606 = vunpack.c.l.b16 %v5989
  %v6607 = vunpack.c.h.b16 %v5989
  %v6608 = vunpack.c.l.b16 %v5990
  %v6609 = vunpack.c.h.b16 %v5990
  %v6610 = vunpack.c.l.b16 %v5991
  %v6611 = vunpack.c.h.b16 %v5991
  %v6612 = vunpack.c.l.b16 %v5992
  %v6613 = vunpack.c.h.b16 %v5992
  %v6614 = vunpack.c.l.b16 %v5993
  %v6615 = vunpack.c.h.b16 %v5993
  %v6616 = vunpack.c.l.b16 %v5994
  %v6617 = vunpack.c.h.b16 %v5994
  %v6618 = vunpack.c.l.b16 %v5995
  %v6619 = vunpack.c.h.b16 %v5995
  %v6620 = vunpack.c.l.b16 %v5996
  %v6621 = vunpack.c.h.b16 %v5996
  %v6622 = vunpack.c.l.b16 %v5997
  %v6623 = vunpack.c.h.b16 %v5997
  %v6624 = vunpack.c.l.b16 %v5998
  %v6625 = vunpack.c.h.b16 %v5998
  %v6626 = vunpack.c.l.b16 %v5999
  %v6627 = vunpack.c.h.b16 %v5999
  %v6628 = vunpack.c.l.b16 %v6000
  %v6629 = vunpack.c.h.b16 %v6000
  %v6630 = vunpack.c.l.b16 %v6001
  %v6631 = vunpack.c.h.b16 %v6001
  %v6632 = vunpack.c.l.b16 %v6002
  %v6633 = vunpack.c.h.b16 %v6002
  %v6634 = vunpack.c.l.b16 %v6003
  %v6635 = vunpack.c.h.b16 %v6003
  %v6636 = vunpack.c.l.b16 %v6004
  %v6637 = vunpack.c.h.b16 %v6004
  %v6638 = vunpack.c.l.b16 %v6005
  %v6639 = vunpack.c.h.b16 %v6005
  %v6640 = vunpack.c.l.b16 %v6006
  %v6641 = vunpack.c.h.b16 %v6006
  %v6642 = vunpack.c.l.b16 %v6007
  %v6643 = vunpack.c.h.b16 %v6007
  %v6644 = vunpack.c.l.b16 %v6008
  %v6645 = vunpack.c.h.b16 %v6008
  %v6646 = vunpack.c.l.b16 %v6009
  %v6647 = vunpack.c.h.b16 %v6009
  %v6648 = vunpack.c.l.b16 %v6010
  %v6649 = vunpack.c.h.b16 %v6010
  %v6650 = vunpack.c.l.b16 %v6011
  %v6651 = vunpack.c.h.b16 %v6011
  %v6652 = vpack.c.b16 %v6280, %v6268
  %v6653 = vpack.c.b16 %v6281, %v6269
  %v6654 = vpack.c.b16 %v6282, %v6270
  %v6655 = vpack.c.b16 %v6283, %v6271
  %v6656 = vpack.c.b16 %v6284, %v6272
  %v6657 = vpack.c.b16 %v6285, %v6273
  %v6658 = vpack.c.b16 %v6286, %v6274
  %v6659 = vpack.c.b16 %v6287, %v6275
  %v6660 = vpack.c.b16 %v6288, %v6276
  %v6661 = vpack.c.b16 %v6289, %v6277
  %v6662 = vpack.c.b16 %v6290, %v6278
  %v6663 = vpack.c.b16 %v6291, %v6279
  %v6664 = vpack.c.b16 %v6304, %v6292
  %v6665 = vpack.c.b16 %v6305, %v6293
  %v6666 = vpack.c.b16 %v6306, %v6294
  %v6667 = vpack.c.b16 %v6307, %v6295
  %v6668 = vpack.c.b16 %v6308, %v6296
  %v6669 = vpack.c.b16 %v6309, %v6297
  %v6670 = vpack.c.b16 %v6310, %v6298
  %v6671 = vpack.c.b16 %v6311, %v6299
  %v6672 = vpack.c.b16 %v6312, %v6300
  %v6673 = vpack.c.b16 %v6313, %v6301
  %v6674 = vpack.c.b16 %v6314, %v6302
  %v6675 = vpack.c.b16 %v6315, %v6303
  %v6676 = vpack.c.b16 %v6328, %v6316
  %v6677 = vpack.c.b16 %v6329, %v6317
  %v6678 = vpack.c.b16 %v6330, %v6318
  %v6679 = vpack.c.b16 %v6331, %v6319
  %v6680 = vpack.c.b16 %v6332, %v6320
  %v6681 = vpack.c.b16 %v6333, %v6321
  %v6682 = vpack.c.b16 %v6334, %v6322
  %v6683 = vpack.c.b16 %v6335, %v6323
  %v6684 = vpack.c.b16 %v6336, %v6324
  %v6685 = vpack.c.b16 %v6337, %v6325
  %v6686 = vpack.c.b16 %v6338, %v6326
  %v6687 = vpack.c.b16 %v6339, %v6327
  %v6688 = vpack.c.b16 %v6352, %v6340
  %v6689 = vpack.c.b16 %v6353, %v6341
  %v6690 = vpack.c.b16 %v6354, %v6342
  %v6691 = vpack.c.b16 %v6355, %v6343
  %v6692 = vpack.c.b16 %v6356, %v6344
  %v6693 = vpack.c.b16 %v6357, %v6345
  %v6694 = vpack.c.b16 %v6358, %v6346
  %v6695 = vpack.c.b16 %v6359, %v6347
  %v6696 = vpack.c.b16 %v6360, %v6348
  %v6697 = vpack.c.b16 %v6361, %v6349
  %v6698 = vpack.c.b16 %v6362, %v6350
  %v6699 = vpack.c.b16 %v6363, %v6351
  %v6700 = vpack.c.b16 %v6376, %v6364
  %v6701 = vpack.c.b16 %v6377, %v6365
  %v6702 = vpack.c.b16 %v6378, %v6366
  %v6703 = vpack.c.b16 %v6379, %v6367
  %v6704 = vpack.c.b16 %v6380, %v6368
  %v6705 = vpack.c.b16 %v6381, %v6369
  %v6706 = vpack.c.b16 %v6382, %v6370
  %v6707 = vpack.c.b16 %v6383, %v6371
  %v6708 = vpack.c.b16 %v6384, %v6372
  %v6709 = vpack.c.b16 %v6385, %v6373
  %v6710 = vpack.c.b16 %v6386, %v6374
  %v6711 = vpack.c.b16 %v6387, %v6375
  %v6712 = vpack.c.b16 %v6400, %v6388
  %v6713 = vpack.c.b16 %v6401, %v6389
  %v6714 = vpack.c.b16 %v6402, %v6390
  %v6715 = vpack.c.b16 %v6403, %v6391
  %v6716 = vpack.c.b16 %v6404, %v6392
  %v6717 = vpack.c.b16 %v6405, %v6393
  %v6718 = vpack.c.b16 %v6406, %v6394
  %v6719 = vpack.c.b16 %v6407, %v6395
  %v6720 = vpack.c.b16 %v6408, %v6396
  %v6721 = vpack.c.b16 %v6409, %v6397
  %v6722 = vpack.c.b16 %v6410, %v6398
  %v6723 = vpack.c.b16 %v6411, %v6399
  %v6724 = vpack.c.b16 %v6424, %v6412
  %v6725 = vpack.c.b16 %v6425, %v6413
  %v6726 = vpack.c.b16 %v6426, %v6414
  %v6727 = vpack.c.b16 %v6427, %v6415
  %v6728 = vpack.c.b16 %v6428, %v6416
  %v6729 = vpack.c.b16 %v6429, %v6417
  %v6730 = vpack.c.b16 %v6430, %v6418
  %v6731 = vpack.c.b16 %v6431, %v6419
  %v6732 = vpack.c.b16 %v6432, %v6420
  %v6733 = vpack.c.b16 %v6433, %v6421
  %v6734 = vpack.c.b16 %v6434, %v6422
  %v6735 = vpack.c.b16 %v6435, %v6423
  %v6736 = vpack.c.b16 %v6448, %v6436
  %v6737 = vpack.c.b16 %v6449, %v6437
  %v6738 = vpack.c.b16 %v6450, %v6438
  %v6739 = vpack.c.b16 %v6451, %v6439
  %v6740 = vpack.c.b16 %v6452, %v6440
  %v6741 = vpack.c.b16 %v6453, %v6441
  %v6742 = vpack.c.b16 %v6454, %v6442
  %v6743 = vpack.c.b16 %v6455, %v6443
  %v6744 = vpack.c.b16 %v6456, %v6444
  %v6745 = vpack.c.b16 %v6457, %v6445
  %v6746 = vpack.c.b16 %v6458, %v6446
  %v6747 = vpack.c.b16 %v6459, %v6447
  %v6748 = vpack.c.b16 %v6472, %v6460
  %v6749 = vpack.c.b16 %v6473, %v6461
  %v6750 = vpack.c.b16 %v6474, %v6462
  %v6751 = vpack.c.b16 %v6475, %v6463
  %v6752 = vpack.c.b16 %v6476, %v6464
  %v6753 = vpack.c.b16 %v6477, %v6465
  %v6754 = vpack.c.b16 %v6478, %v6466
  %v6755 = vpack.c.b16 %v6479, %v6467
  %v6756 = vpack.c.b16 %v6480, %v6468
  %v6757 = vpack.c.b16 %v6481, %v6469
  %v6758 = vpack.c.b16 %v6482, %v6470
  %v6759 = vpack.c.b16 %v6483, %v6471
  %v6760 = vpack.c.b16 %v6496, %v6484
  %v6761 = vpack.c.b16 %v6497, %v6485
  %v6762 = vpack.c.b16 %v6498, %v6486
  %v6763 = vpack.c.b16 %v6499, %v6487
  %v6764 = vpack.c.b16 %v6500, %v6488
  %v6765 = vpack.c.b16 %v6501, %v6489
  %v6766 = vpack.c.b16 %v6502, %v6490
  %v6767 = vpack.c.b16 %v6503, %v6491
  %v6768 = vpack.c.b16 %v6504, %v6492
  %v6769 = vpack.c.b16 %v6505, %v6493
  %v6770 = vpack.c.b16 %v6506, %v6494
  %v6771 = vpack.c.b16 %v6507, %v6495
  %v6772 = vpack.c.b16 %v6520, %v6508
  %v6773 = vpack.c.b16 %v6521, %v6509
  %v6774 = vpack.c.b16 %v6522, %v6510
  %v6775 = vpack.c.b16 %v6523, %v6511
  %v6776 = vpack.c.b16 %v6524, %v6512
  %v6777 = vpack.c.b16 %v6525, %v6513
  %v6778 = vpack.c.b16 %v6526, %v6514
  %v6779 = vpack.c.b16 %v6527, %v6515
  %v6780 = vpack.c.b16 %v6528, %v6516
  %v6781 = vpack.c.b16 %v6529, %v6517
  %v6782 = vpack.c.b16 %v6530, %v6518
  %v6783 = vpack.c.b16 %v6531, %v6519
  %v6784 = vpack.c.b16 %v6544, %v6532
  %v6785 = vpack.c.b16 %v6545, %v6533
  %v6786 = vpack.c.b16 %v6546, %v6534
  %v6787 = vpack.c.b16 %v6547, %v6535
  %v6788 = vpack.c.b16 %v6548, %v6536
  %v6789 = vpack.c.b16 %v6549, %v6537
  %v6790 = vpack.c.b16 %v6550, %v6538
  %v6791 = vpack.c.b16 %v6551, %v6539
  %v6792 = vpack.c.b16 %v6552, %v6540
  %v6793 = vpack.c.b16 %v6553, %v6541
  %v6794 = vpack.c.b16 %v6554, %v6542
  %v6795 = vpack.c.b16 %v6555, %v6543
  %v6796 = vpack.c.b16 %v6568, %v6556
  %v6797 = vpack.c.b16 %v6569, %v6557
  %v6798 = vpack.c.b16 %v6570, %v6558
  %v6799 = vpack.c.b16 %v6571, %v6559
  %v6800 = vpack.c.b16 %v6572, %v6560
  %v6801 = vpack.c.b16 %v6573, %v6561
  %v6802 = vpack.c.b16 %v6574, %v6562
  %v6803 = vpack.c.b16 %v6575, %v6563
  %v6804 = vpack.c.b16 %v6576, %v6564
  %v6805 = vpack.c.b16 %v6577, %v6565
  %v6806 = vpack.c.b16 %v6578, %v6566
  %v6807 = vpack.c.b16 %v6579, %v6567
  %v6808 = vpack.c.b16 %v6592, %v6580
  %v6809 = vpack.c.b16 %v6593, %v6581
  %v6810 = vpack.c.b16 %v6594, %v6582
  %v6811 = vpack.c.b16 %v6595, %v6583
  %v6812 = vpack.c.b16 %v6596, %v6584
  %v6813 = vpack.c.b16 %v6597, %v6585
  %v6814 = vpack.c.b16 %v6598, %v6586
  %v6815 = vpack.c.b16 %v6599, %v6587
  %v6816 = vpack.c.b16 %v6600, %v6588
  %v6817 = vpack.c.b16 %v6601, %v6589
  %v6818 = vpack.c.b16 %v6602, %v6590
  %v6819 = vpack.c.b16 %v6603, %v6591
  %v6820 = vpack.c.b16 %v6616, %v6604
  %v6821 = vpack.c.b16 %v6617, %v6605
  %v6822 = vpack.c.b16 %v6618, %v6606
  %v6823 = vpack.c.b16 %v6619, %v6607
  %v6824 = vpack.c.b16 %v6620, %v6608
  %v6825 = vpack.c.b16 %v6621, %v6609
  %v6826 = vpack.c.b16 %v6622, %v6610
  %v6827 = vpack.c.b16 %v6623, %v6611
  %v6828 = vpack.c.b16 %v6624, %v6612
  %v6829 = vpack.c.b16 %v6625, %v6613
  %v6830 = vpack.c.b16 %v6626, %v6614
  %v6831 = vpack.c.b16 %v6627, %v6615
  %v6832 = vpack.c.b16 %v6640, %v6628
  %v6833 = vpack.c.b16 %v6641, %v6629
  %v6834 = vpack.c.b16 %v6642, %v6630
  %v6835 = vpack.c.b16 %v6643, %v6631
  %v6836 = vpack.c.b16 %v6644, %v6632
  %v6837 = vpack.c.b16 %v6645, %v6633
  %v6838 = vpack.c.b16 %v6646, %v6634
  %v6839 = vpack.c.b16 %v6647, %v6635
  %v6840 = vpack.c.b16 %v6648, %v6636
  %v6841 = vpack.c.b16 %v6649, %v6637
  %v6842 = vpack.c.b16 %v6650, %v6638
  %v6843 = vpack.c.b16 %v6651, %v6639
  %7036 = vmatprep.subr.bf16.mxu0 %v6737
  %7037 = vmatpush1.bf16.msra.mxu0 %v6736
  %7038 = vmatprep.subr.bf16.mxu0 %v6725
  %7039 = vmatpush1.bf16.msra.mxu0 %v6724
  %7040 = vmatprep.subr.bf16.mxu0 %v6713
  %7041 = vmatpush1.bf16.msra.mxu0 %v6712
  %7042 = vmatprep.subr.bf16.mxu0 %v6701
  %7043 = vmatpush1.bf16.msra.mxu0 %v6700
  %7044 = vmatprep.subr.bf16.mxu0 %v6689
  %7045 = vmatpush1.bf16.msra.mxu0 %v6688
  %7046 = vmatprep.subr.bf16.mxu0 %v6677
  %7047 = vmatpush1.bf16.msra.mxu0 %v6676
  %7048 = vmatprep.subr.bf16.mxu0 %v6665
  %7049 = vmatpush1.bf16.msra.mxu0 %v6664
  %7050 = vmatprep.subr.bf16.mxu0 %v6653
  %7051 = vmatpush1.bf16.msra.mxu0 %v6652
  %7052 = vmatprep.subr.bf16.mxu0 %v6833
  %7053 = vmatpush2.bf16.msra.mxu0 %v6832
  %7054 = vmatprep.subr.bf16.mxu0 %v6821
  %7055 = vmatpush2.bf16.msra.mxu0 %v6820
  %7056 = vmatprep.subr.bf16.mxu0 %v6809
  %7057 = vmatpush2.bf16.msra.mxu0 %v6808
  %7058 = vmatprep.subr.bf16.mxu0 %v6797
  %7059 = vmatpush2.bf16.msra.mxu0 %v6796
  %7060 = vmatprep.subr.bf16.mxu0 %v6785
  %7061 = vmatpush2.bf16.msra.mxu0 %v6784
  %7062 = vmatprep.subr.bf16.mxu0 %v6773
  %7063 = vmatpush2.bf16.msra.mxu0 %v6772
  %7064 = vmatprep.subr.bf16.mxu0 %v6761
  %7065 = vmatpush2.bf16.msra.mxu0 %v6760
  %7066 = vmatprep.subr.bf16.mxu0 %v6749
  %7067 = vmatpush2.bf16.msra.mxu0 %v6748
  %7068 = vmatprep.mubr.bf16.mxu0 %v5819
  %7069 = vmatmul.mubr.bf16.gmra.mxu0 %v5818
  %v7070 = vpop.f32.mrf.mxu0
  %v7071 = vadd.f32 %v6019, %v7070
  %v7072 = vpop.f32.mrf.mxu0
  %v7073 = vadd.f32 %v6023, %v7072
  %v7074 = vpop.f32.mrf.mxu0
  %v7075 = vpop.f32.mrf.mxu0
  %7076 = vdwg.mxu0
  %7077 = vmatprep.subr.bf16.mxu0 %v6739
  %7078 = vmatpush1.bf16.msra.mxu0 %v6738
  %7079 = vmatprep.subr.bf16.mxu0 %v6727
  %7080 = vmatpush1.bf16.msra.mxu0 %v6726
  %7081 = vmatprep.subr.bf16.mxu0 %v6715
  %7082 = vmatpush1.bf16.msra.mxu0 %v6714
  %7083 = vmatprep.subr.bf16.mxu0 %v6703
  %7084 = vmatpush1.bf16.msra.mxu0 %v6702
  %7085 = vmatprep.subr.bf16.mxu0 %v6691
  %7086 = vmatpush1.bf16.msra.mxu0 %v6690
  %7087 = vmatprep.subr.bf16.mxu0 %v6679
  %7088 = vmatpush1.bf16.msra.mxu0 %v6678
  %7089 = vmatprep.subr.bf16.mxu0 %v6667
  %7090 = vmatpush1.bf16.msra.mxu0 %v6666
  %7091 = vmatprep.subr.bf16.mxu0 %v6655
  %7092 = vmatpush1.bf16.msra.mxu0 %v6654
  %7093 = vmatprep.subr.bf16.mxu0 %v6835
  %7094 = vmatpush2.bf16.msra.mxu0 %v6834
  %7095 = vmatprep.subr.bf16.mxu0 %v6823
  %7096 = vmatpush2.bf16.msra.mxu0 %v6822
  %7097 = vmatprep.subr.bf16.mxu0 %v6811
  %7098 = vmatpush2.bf16.msra.mxu0 %v6810
  %7099 = vmatprep.subr.bf16.mxu0 %v6799
  %7100 = vmatpush2.bf16.msra.mxu0 %v6798
  %7101 = vmatprep.subr.bf16.mxu0 %v6787
  %7102 = vmatpush2.bf16.msra.mxu0 %v6786
  %7103 = vmatprep.subr.bf16.mxu0 %v6775
  %7104 = vmatpush2.bf16.msra.mxu0 %v6774
  %7105 = vmatprep.subr.bf16.mxu0 %v6763
  %7106 = vmatpush2.bf16.msra.mxu0 %v6762
  %7107 = vmatprep.subr.bf16.mxu0 %v6751
  %7108 = vmatpush2.bf16.msra.mxu0 %v6750
  %7109 = vmatprep.mubr.bf16.mxu0 %v5819
  %7110 = vmatmul.mubr.bf16.gmra.mxu0 %v5818
  %v7111 = vpop.f32.mrf.mxu0
  %v7112 = vadd.f32 %v6027, %v7111
  %v7113 = vpop.f32.mrf.mxu0
  %v7114 = vadd.f32 %v6031, %v7113
  %v7115 = vpop.f32.mrf.mxu0
  %v7116 = vpop.f32.mrf.mxu0
  %7117 = vdwg.mxu0
  %7118 = vmatprep.subr.bf16.mxu0 %v6741
  %7119 = vmatpush1.bf16.msra.mxu0 %v6740
  %7120 = vmatprep.subr.bf16.mxu0 %v6729
  %7121 = vmatpush1.bf16.msra.mxu0 %v6728
  %7122 = vmatprep.subr.bf16.mxu0 %v6717
  %7123 = vmatpush1.bf16.msra.mxu0 %v6716
  %7124 = vmatprep.subr.bf16.mxu0 %v6705
  %7125 = vmatpush1.bf16.msra.mxu0 %v6704
  %7126 = vmatprep.subr.bf16.mxu0 %v6693
  %7127 = vmatpush1.bf16.msra.mxu0 %v6692
  %7128 = vmatprep.subr.bf16.mxu0 %v6681
  %7129 = vmatpush1.bf16.msra.mxu0 %v6680
  %7130 = vmatprep.subr.bf16.mxu0 %v6669
  %7131 = vmatpush1.bf16.msra.mxu0 %v6668
  %7132 = vmatprep.subr.bf16.mxu0 %v6657
  %7133 = vmatpush1.bf16.msra.mxu0 %v6656
  %7134 = vmatprep.subr.bf16.mxu0 %v6837
  %7135 = vmatpush2.bf16.msra.mxu0 %v6836
  %7136 = vmatprep.subr.bf16.mxu0 %v6825
  %7137 = vmatpush2.bf16.msra.mxu0 %v6824
  %7138 = vmatprep.subr.bf16.mxu0 %v6813
  %7139 = vmatpush2.bf16.msra.mxu0 %v6812
  %7140 = vmatprep.subr.bf16.mxu0 %v6801
  %7141 = vmatpush2.bf16.msra.mxu0 %v6800
  %7142 = vmatprep.subr.bf16.mxu0 %v6789
  %7143 = vmatpush2.bf16.msra.mxu0 %v6788
  %7144 = vmatprep.subr.bf16.mxu0 %v6777
  %7145 = vmatpush2.bf16.msra.mxu0 %v6776
  %7146 = vmatprep.subr.bf16.mxu0 %v6765
  %7147 = vmatpush2.bf16.msra.mxu0 %v6764
  %7148 = vmatprep.subr.bf16.mxu0 %v6753
  %7149 = vmatpush2.bf16.msra.mxu0 %v6752
  %7150 = vmatprep.mubr.bf16.mxu0 %v5819
  %7151 = vmatmul.mubr.bf16.gmra.mxu0 %v5818
  %v7152 = vpop.f32.mrf.mxu0
  %v7153 = vadd.f32 %v6035, %v7152
  %v7154 = vpop.f32.mrf.mxu0
  %v7155 = vadd.f32 %v6039, %v7154
  %v7156 = vpop.f32.mrf.mxu0
  %v7157 = vpop.f32.mrf.mxu0
  %7158 = vdwg.mxu0
  %7159 = vmatprep.subr.bf16.mxu0 %v6743
  %7160 = vmatpush1.bf16.msra.mxu0 %v6742
  %7161 = vmatprep.subr.bf16.mxu0 %v6731
  %7162 = vmatpush1.bf16.msra.mxu0 %v6730
  %7163 = vmatprep.subr.bf16.mxu0 %v6719
  %7164 = vmatpush1.bf16.msra.mxu0 %v6718
  %7165 = vmatprep.subr.bf16.mxu0 %v6707
  %7166 = vmatpush1.bf16.msra.mxu0 %v6706
  %7167 = vmatprep.subr.bf16.mxu0 %v6695
  %7168 = vmatpush1.bf16.msra.mxu0 %v6694
  %7169 = vmatprep.subr.bf16.mxu0 %v6683
  %7170 = vmatpush1.bf16.msra.mxu0 %v6682
  %7171 = vmatprep.subr.bf16.mxu0 %v6671
  %7172 = vmatpush1.bf16.msra.mxu0 %v6670
  %7173 = vmatprep.subr.bf16.mxu0 %v6659
  %7174 = vmatpush1.bf16.msra.mxu0 %v6658
  %7175 = vmatprep.subr.bf16.mxu0 %v6839
  %7176 = vmatpush2.bf16.msra.mxu0 %v6838
  %7177 = vmatprep.subr.bf16.mxu0 %v6827
  %7178 = vmatpush2.bf16.msra.mxu0 %v6826
  %7179 = vmatprep.subr.bf16.mxu0 %v6815
  %7180 = vmatpush2.bf16.msra.mxu0 %v6814
  %7181 = vmatprep.subr.bf16.mxu0 %v6803
  %7182 = vmatpush2.bf16.msra.mxu0 %v6802
  %7183 = vmatprep.subr.bf16.mxu0 %v6791
  %7184 = vmatpush2.bf16.msra.mxu0 %v6790
  %7185 = vmatprep.subr.bf16.mxu0 %v6779
  %7186 = vmatpush2.bf16.msra.mxu0 %v6778
  %7187 = vmatprep.subr.bf16.mxu0 %v6767
  %7188 = vmatpush2.bf16.msra.mxu0 %v6766
  %7189 = vmatprep.subr.bf16.mxu0 %v6755
  %7190 = vmatpush2.bf16.msra.mxu0 %v6754
  %7191 = vmatprep.mubr.bf16.mxu0 %v5819
  %7192 = vmatmul.mubr.bf16.gmra.mxu0 %v5818
  %v7193 = vpop.f32.mrf.mxu0
  %v7194 = vadd.f32 %v6043, %v7193
  %v7195 = vpop.f32.mrf.mxu0
  %v7196 = vadd.f32 %v6047, %v7195
  %v7197 = vpop.f32.mrf.mxu0
  %v7198 = vpop.f32.mrf.mxu0
  %7199 = vdwg.mxu0
  %7200 = vmatprep.subr.bf16.mxu0 %v6745
  %7201 = vmatpush1.bf16.msra.mxu0 %v6744
  %7202 = vmatprep.subr.bf16.mxu0 %v6733
  %7203 = vmatpush1.bf16.msra.mxu0 %v6732
  %7204 = vmatprep.subr.bf16.mxu0 %v6721
  %7205 = vmatpush1.bf16.msra.mxu0 %v6720
  %7206 = vmatprep.subr.bf16.mxu0 %v6709
  %7207 = vmatpush1.bf16.msra.mxu0 %v6708
  %7208 = vmatprep.subr.bf16.mxu0 %v6697
  %7209 = vmatpush1.bf16.msra.mxu0 %v6696
  %7210 = vmatprep.subr.bf16.mxu0 %v6685
  %7211 = vmatpush1.bf16.msra.mxu0 %v6684
  %7212 = vmatprep.subr.bf16.mxu0 %v6673
  %7213 = vmatpush1.bf16.msra.mxu0 %v6672
  %7214 = vmatprep.subr.bf16.mxu0 %v6661
  %7215 = vmatpush1.bf16.msra.mxu0 %v6660
  %7216 = vmatprep.subr.bf16.mxu0 %v6841
  %7217 = vmatpush2.bf16.msra.mxu0 %v6840
  %7218 = vmatprep.subr.bf16.mxu0 %v6829
  %7219 = vmatpush2.bf16.msra.mxu0 %v6828
  %7220 = vmatprep.subr.bf16.mxu0 %v6817
  %7221 = vmatpush2.bf16.msra.mxu0 %v6816
  %7222 = vmatprep.subr.bf16.mxu0 %v6805
  %7223 = vmatpush2.bf16.msra.mxu0 %v6804
  %7224 = vmatprep.subr.bf16.mxu0 %v6793
  %7225 = vmatpush2.bf16.msra.mxu0 %v6792
  %7226 = vmatprep.subr.bf16.mxu0 %v6781
  %7227 = vmatpush2.bf16.msra.mxu0 %v6780
  %7228 = vmatprep.subr.bf16.mxu0 %v6769
  %7229 = vmatpush2.bf16.msra.mxu0 %v6768
  %7230 = vmatprep.subr.bf16.mxu0 %v6757
  %7231 = vmatpush2.bf16.msra.mxu0 %v6756
  %7232 = vmatprep.mubr.bf16.mxu0 %v5819
  %7233 = vmatmul.mubr.bf16.gmra.mxu0 %v5818
  %v7234 = vpop.f32.mrf.mxu0
  %v7235 = vadd.f32 %v6051, %v7234
  %v7236 = vpop.f32.mrf.mxu0
  %v7237 = vadd.f32 %v6055, %v7236
  %v7238 = vpop.f32.mrf.mxu0
  %v7239 = vpop.f32.mrf.mxu0
  %7240 = vdwg.mxu0
  %7241 = vmatprep.subr.bf16.mxu0 %v6747
  %7242 = vmatpush1.bf16.msra.mxu0 %v6746
  %7243 = vmatprep.subr.bf16.mxu0 %v6735
  %7244 = vmatpush1.bf16.msra.mxu0 %v6734
  %7245 = vmatprep.subr.bf16.mxu0 %v6723
  %7246 = vmatpush1.bf16.msra.mxu0 %v6722
  %7247 = vmatprep.subr.bf16.mxu0 %v6711
  %7248 = vmatpush1.bf16.msra.mxu0 %v6710
  %7249 = vmatprep.subr.bf16.mxu0 %v6699
  %7250 = vmatpush1.bf16.msra.mxu0 %v6698
  %7251 = vmatprep.subr.bf16.mxu0 %v6687
  %7252 = vmatpush1.bf16.msra.mxu0 %v6686
  %7253 = vmatprep.subr.bf16.mxu0 %v6675
  %7254 = vmatpush1.bf16.msra.mxu0 %v6674
  %7255 = vmatprep.subr.bf16.mxu0 %v6663
  %7256 = vmatpush1.bf16.msra.mxu0 %v6662
  %7257 = vmatprep.subr.bf16.mxu0 %v6843
  %7258 = vmatpush2.bf16.msra.mxu0 %v6842
  %7259 = vmatprep.subr.bf16.mxu0 %v6831
  %7260 = vmatpush2.bf16.msra.mxu0 %v6830
  %7261 = vmatprep.subr.bf16.mxu0 %v6819
  %7262 = vmatpush2.bf16.msra.mxu0 %v6818
  %7263 = vmatprep.subr.bf16.mxu0 %v6807
  %7264 = vmatpush2.bf16.msra.mxu0 %v6806
  %7265 = vmatprep.subr.bf16.mxu0 %v6795
  %7266 = vmatpush2.bf16.msra.mxu0 %v6794
  %7267 = vmatprep.subr.bf16.mxu0 %v6783
  %7268 = vmatpush2.bf16.msra.mxu0 %v6782
  %7269 = vmatprep.subr.bf16.mxu0 %v6771
  %7270 = vmatpush2.bf16.msra.mxu0 %v6770
  %7271 = vmatprep.subr.bf16.mxu0 %v6759
  %7272 = vmatpush2.bf16.msra.mxu0 %v6758
  %7273 = vmatprep.mubr.bf16.mxu0 %v5819
  %7274 = vmatmul.mubr.bf16.gmra.mxu0 %v5818
  %v7275 = vpop.f32.mrf.mxu0
  %v7276 = vadd.f32 %v6059, %v7275
  %v7277 = vpop.f32.mrf.mxu0
  %v7278 = vadd.f32 %v6063, %v7277
  %v7279 = vpop.f32.mrf.mxu0
  %v7280 = vpop.f32.mrf.mxu0
  %7281 = vdwg.mxu0
  %v7294 = vcombine.low %v7071, %v7073
  %v7295 = vcombine.low %v7112, %v7114
  %v7297 = vunpack.c.l.s4 1983009808
  %v7298 = vunpack.c.0.s8 %v7297
  %v7299 = vlaneseq
  %v7300 = vshrl.u32 %v7299, 7
  %v7301 = vsub.s32 %v7298, %v7300
  %v7302 = vrot.slane %v7294, %v7301
  %v7304 = vunpack.c.l.s4 1983009808
  %v7305 = vunpack.c.0.s8 %v7304
  %v7306 = vlaneseq
  %v7307 = vshrl.u32 %v7306, 7
  %v7308 = vsub.s32 %v7305, %v7307
  %v7309 = vrot.slane %v7295, %v7308
  %v7310 = vcombine.low %v7302, %v7309
  %v7311 = vcombine.low %v7153, %v7155
  %v7312 = vcombine.low %v7194, %v7196
  %v7314 = vunpack.c.l.s4 1983009808
  %v7315 = vunpack.c.0.s8 %v7314
  %v7316 = vlaneseq
  %v7317 = vshrl.u32 %v7316, 7
  %v7318 = vsub.s32 %v7315, %v7317
  %v7319 = vrot.slane %v7311, %v7318
  %v7321 = vunpack.c.l.s4 1983009808
  %v7322 = vunpack.c.0.s8 %v7321
  %v7323 = vlaneseq
  %v7324 = vshrl.u32 %v7323, 7
  %v7325 = vsub.s32 %v7322, %v7324
  %v7326 = vrot.slane %v7312, %v7325
  %v7327 = vcombine.low %v7319, %v7326
  %v7328 = vcombine.low %v7235, %v7237
  %v7329 = vcombine.low %v7276, %v7278
  %v7331 = vunpack.c.l.s4 1983009808
  %v7332 = vunpack.c.0.s8 %v7331
  %v7333 = vlaneseq
  %v7334 = vshrl.u32 %v7333, 7
  %v7335 = vsub.s32 %v7332, %v7334
  %v7336 = vrot.slane %v7328, %v7335
  %v7338 = vunpack.c.l.s4 1983009808
  %v7339 = vunpack.c.0.s8 %v7338
  %v7340 = vlaneseq
  %v7341 = vshrl.u32 %v7340, 7
  %v7342 = vsub.s32 %v7339, %v7341
  %v7343 = vrot.slane %v7329, %v7342
  %v7344 = vcombine.low %v7336, %v7343
  %7348 = vst [vmem:[%s13] sm:$0xff] %v7310
  %7349 = vst [vmem:[%s13 + $0x8] sm:$0xff] %v7327
  %7350 = vst [vmem:[%s13 + $0x10] sm:$0xff] %v7344
  %v7351 = vmax.f32 %v7071, 0.0
  %v7352 = vmax.f32 %v7073, 0.0
  %v7353 = vmax.f32 %v7112, 0.0
  %v7354 = vmax.f32 %v7114, 0.0
  %v7355 = vmax.f32 %v7153, 0.0
  %v7356 = vmax.f32 %v7155, 0.0
  %v7357 = vmax.f32 %v7194, 0.0
  %v7358 = vmax.f32 %v7196, 0.0
  %v7359 = vmax.f32 %v7235, 0.0
  %v7360 = vmax.f32 %v7237, 0.0
  %v7361 = vmax.f32 %v7276, 0.0
  %v7362 = vmax.f32 %v7278, 0.0
  %v7363 = vmin.f32 %v7351, 1.0
  %v7364 = vmin.f32 %v7352, 1.0
  %v7365 = vmin.f32 %v7353, 1.0
  %v7366 = vmin.f32 %v7354, 1.0
  %v7367 = vmin.f32 %v7355, 1.0
  %v7368 = vmin.f32 %v7356, 1.0
  %v7369 = vmin.f32 %v7357, 1.0
  %v7370 = vmin.f32 %v7358, 1.0
  %v7371 = vmin.f32 %v7359, 1.0
  %v7372 = vmin.f32 %v7360, 1.0
  %v7373 = vmin.f32 %v7361, 1.0
  %v7374 = vmin.f32 %v7362, 1.0
  %v7387 = vcombine.low %v7363, %v7364
  %v7388 = vcombine.low %v7365, %v7366
  %v7390 = vunpack.c.l.s4 1983009808
  %v7391 = vunpack.c.0.s8 %v7390
  %v7392 = vlaneseq
  %v7393 = vshrl.u32 %v7392, 7
  %v7394 = vsub.s32 %v7391, %v7393
  %v7395 = vrot.slane %v7387, %v7394
  %v7397 = vunpack.c.l.s4 1983009808
  %v7398 = vunpack.c.0.s8 %v7397
  %v7399 = vlaneseq
  %v7400 = vshrl.u32 %v7399, 7
  %v7401 = vsub.s32 %v7398, %v7400
  %v7402 = vrot.slane %v7388, %v7401
  %v7403 = vcombine.low %v7395, %v7402
  %v7404 = vcombine.low %v7367, %v7368
  %v7405 = vcombine.low %v7369, %v7370
  %v7407 = vunpack.c.l.s4 1983009808
  %v7408 = vunpack.c.0.s8 %v7407
  %v7409 = vlaneseq
  %v7410 = vshrl.u32 %v7409, 7
  %v7411 = vsub.s32 %v7408, %v7410
  %v7412 = vrot.slane %v7404, %v7411
  %v7414 = vunpack.c.l.s4 1983009808
  %v7415 = vunpack.c.0.s8 %v7414
  %v7416 = vlaneseq
  %v7417 = vshrl.u32 %v7416, 7
  %v7418 = vsub.s32 %v7415, %v7417
  %v7419 = vrot.slane %v7405, %v7418
  %v7420 = vcombine.low %v7412, %v7419
  %v7421 = vcombine.low %v7371, %v7372
  %v7422 = vcombine.low %v7373, %v7374
  %v7424 = vunpack.c.l.s4 1983009808
  %v7425 = vunpack.c.0.s8 %v7424
  %v7426 = vlaneseq
  %v7427 = vshrl.u32 %v7426, 7
  %v7428 = vsub.s32 %v7425, %v7427
  %v7429 = vrot.slane %v7421, %v7428
  %v7431 = vunpack.c.l.s4 1983009808
  %v7432 = vunpack.c.0.s8 %v7431
  %v7433 = vlaneseq
  %v7434 = vshrl.u32 %v7433, 7
  %v7435 = vsub.s32 %v7432, %v7434
  %v7436 = vrot.slane %v7422, %v7435
  %v7437 = vcombine.low %v7429, %v7436
  %7441 = vst [vmem:[%s14] sm:$0xff] %v7403
  %7442 = vst [vmem:[%s14 + $0x8] sm:$0xff] %v7420
  %7443 = vst [vmem:[%s14 + $0x10] sm:$0xff] %v7437
  // Predicated region
  $region54: #{coarse_model_forward.5} parent=0 // pred_check
    _
  $region55: #{coarse_model_forward.5} parent=0 // pred_check_branch
    %7445 = sbr.rel (0) target = $region57
  $region56: #{coarse_model_forward.5} parent=0 // pred_region
    _
  $region57: #{coarse_model_forward.5} parent=0 // pred_fallthru
    _
  // Predicated region
  $region58: #{coarse_model_forward.5} parent=0 // pred_check
    _
  $region59: #{coarse_model_forward.5} parent=0 // pred_check_branch
    %7447 = sbr.rel (0) target = $region61
  $region60: #{coarse_model_forward.5} parent=0 // pred_region
    _
  $region61: #{coarse_model_forward.5} parent=0 // pred_fallthru
    _
  // Predicated region
  $region62: #{coarse_model_forward.5} parent=0 // pred_check
    _
  $region63: #{coarse_model_forward.5} parent=0 // pred_check_branch
    %7449 = sbr.rel (0) target = $region65
  $region64: #{coarse_model_forward.5} parent=0 // pred_region
    _
  $region65: #{coarse_model_forward.5} parent=0 // pred_fallthru
    _
  // Predicated region
  $region66: #{coarse_model_forward.5} parent=0 // pred_check
    _
  $region67: #{coarse_model_forward.5} parent=0 // pred_check_branch
    %7451 = sbr.rel (0) target = $region69
  $region68: #{coarse_model_forward.5} parent=0 // pred_region
    _
  $region69: #{coarse_model_forward.5} parent=0 // pred_fallthru
    _

</llo_original>
